<compile_context>
chip_gen: v5e
topology: v5e:2x2
jax: 0.10.0
libtpu: 0.0.40
codegen_flags: <defaults>
</compile_context>

<pallas_src>
import functools

import jax
import jax.numpy as jnp
from jax.experimental import pallas as pl
from jax.experimental.pallas import tpu as pltpu

EPS = 1e-5
LANE = 128                       # pad C_out and K up to multiples of the lane width
TILE_M = 512                     # rows of output pixels per grid step
VMEM_LIMIT = 32 * 1024 * 1024    # explicit scoped-VMEM budget (safe on v5e/v6e/v7x)


def _round_up(x, m):
    return -(-x // m) * m


# ----------------------------------------------------------------------------
# Pallas kernel: fused (patches @ weights) + per-channel shift, then activation.
# Grouped/batched form: refs carry a leading singleton group dim.
# ----------------------------------------------------------------------------
def _fused_matmul_kernel(p_ref, w_ref, b_ref, o_ref, *, act):
    y = jnp.dot(p_ref[0], w_ref[0], preferred_element_type=jnp.float32)
    y = y + b_ref[...]                        # (TM, Cp) + (1, Cp)
    if act == "lrelu":
        y = jnp.where(y > 0.0, y, 0.2 * y)
    elif act == "relu":
        y = jnp.maximum(y, 0.0)
    elif act == "tanh":
        y = jnp.tanh(y)
    # act == "none" falls through
    o_ref[0] = y.astype(o_ref.dtype)


def fused_matmul_grouped(patches, w_mat, shift, act):
    """(G, M, K) @ (G, K, C) + shift[C] -> activation; bf16 inputs, f32 accumulate."""
    G, M, K = patches.shape
    C = w_mat.shape[-1]

    # Pad K (lane dim of the patch tile) to a multiple of 128.
    k_pad = _round_up(max(K, LANE), LANE)
    if k_pad != K:
        patches = jnp.pad(patches, ((0, 0), (0, 0), (0, k_pad - K)))
        w_mat = jnp.pad(w_mat, ((0, 0), (0, k_pad - K), (0, 0)))

    # Pad C_out to a multiple of 128 so every output store is lane-dense.
    c_pad = _round_up(max(C, LANE), LANE)
    if c_pad != C:
        w_mat = jnp.pad(w_mat, ((0, 0), (0, 0), (0, c_pad - C)))
        shift = jnp.pad(shift, (0, c_pad - C))

    # Pad / tile M.
    m_pad = _round_up(max(M, 8), 8)
    tm = min(TILE_M, m_pad)
    m_pad = _round_up(m_pad, tm)
    if m_pad != M:
        patches = jnp.pad(patches, ((0, 0), (0, m_pad - M), (0, 0)))

    shift2 = shift.reshape(1, c_pad).astype(jnp.float32)

    out = pl.pallas_call(
        functools.partial(_fused_matmul_kernel, act=act),
        out_shape=jax.ShapeDtypeStruct((G, m_pad, c_pad), jnp.bfloat16),
        grid=(G, m_pad // tm),
        in_specs=[
            pl.BlockSpec((1, tm, k_pad), lambda g, i: (g, i, 0)),
            pl.BlockSpec((1, k_pad, c_pad), lambda g, i: (g, 0, 0)),
            pl.BlockSpec((1, c_pad), lambda g, i: (0, 0)),
        ],
        out_specs=pl.BlockSpec((1, tm, c_pad), lambda g, i: (g, i, 0)),
        compiler_params=pltpu.CompilerParams(
            dimension_semantics=("parallel", "parallel"),
            vmem_limit_bytes=VMEM_LIMIT,
        ),
    )(patches.astype(jnp.bfloat16), w_mat.astype(jnp.bfloat16), shift2)
    return out[:, :M, :C]


# ----------------------------------------------------------------------------
# Conv lowerings (plain-JAX data movement around the fused Pallas matmul).
# ----------------------------------------------------------------------------
def conv2d_block(x, w, shift, act):
    """Conv2d(k=4, s=2, p=1). x NHWC (bf16), w torch layout (C_out, C_in, 4, 4)."""
    N, H, W, C = x.shape
    Ho, Wo = H // 2, W // 2
    xp = jnp.pad(x, ((0, 0), (1, 1), (1, 1), (0, 0)))
    cols = []
    for kh in range(4):
        for kw in range(4):
            cols.append(xp[:, kh:kh + 2 * (Ho - 1) + 1:2,
                              kw:kw + 2 * (Wo - 1) + 1:2, :])
    patches = jnp.stack(cols, axis=3).reshape(1, N * Ho * Wo, 16 * C)
    c_out = w.shape[0]
    w_mat = jnp.transpose(w, (2, 3, 1, 0)).reshape(1, 16 * C, c_out)  # (kh,kw,ci),co
    out = fused_matmul_grouped(patches, w_mat, shift, act)
    return out[0].reshape(N, Ho, Wo, c_out)


def conv_transpose2d_block(inputs, w, shift, act):
    """ConvTranspose2d(k=4, s=2, p=1) via the 4-way sub-pixel decomposition.

    inputs: list of NHWC tensors; a skip connection is passed as a second entry
    and folded into the patch columns (no concatenated tensor is materialized).
    w: torch layout (C_in_total, C_out, 4, 4).

    Each output parity (po, pw) = (oh%2, ow%2) is a stride-1 2x2 correlation:
        out[2i+po, 2j+pw] = sum_{a,b in {0,1}}
            xpad[i+po+a, j+pw+b] . w[:, :, 3-po-2a, 3-pw-2b]
    with xpad = input zero-padded by 1 on each spatial side.
    """
    N, H, W = inputs[0].shape[:3]
    c_out = w.shape[1]
    xps = [jnp.pad(x, ((0, 0), (1, 1), (1, 1), (0, 0))) for x in inputs]
    patch_groups, weight_groups = [], []
    for po in range(2):
        for pw in range(2):
            cols, wrows = [], []
            for a in range(2):
                for b in range(2):
                    taps = [xp[:, po + a:po + a + H, pw + b:pw + b + W, :]
                            for xp in xps]
                    cols.append(taps[0] if len(taps) == 1
                                else jnp.concatenate(taps, axis=-1))
                    wrows.append(w[:, :, 3 - po - 2 * a, 3 - pw - 2 * b])
            patch_groups.append(jnp.stack(cols, axis=3).reshape(N * H * W, -1))
            weight_groups.append(jnp.concatenate(wrows, axis=0))
    patches = jnp.stack(patch_groups)      # (4, N*H*W, 4*C_in_total)
    w_mats = jnp.stack(weight_groups)      # (4, 4*C_in_total, C_out)
    out = fused_matmul_grouped(patches, w_mats, shift, act)      # (4, M, C_out)
    out = out.reshape(2, 2, N, H, W, c_out)                      # (po, pw, N, H, W, C)
    out = jnp.transpose(out, (2, 3, 0, 4, 1, 5)).reshape(N, 2 * H, 2 * W, c_out)
    return out


# ----------------------------------------------------------------------------
# Parameter initialization (deterministic, synthetic). BN scale folded into w.
# ----------------------------------------------------------------------------
def init_layer(key, kind, c_in, c_out, use_bn, has_bias):
    kw_, kb, kg, kbe = jax.random.split(key, 4)
    if kind == "conv":
        w = 0.05 * jax.random.normal(kw_, (c_out, c_in, 4, 4), jnp.float32)
    else:  # convT
        w = 0.05 * jax.random.normal(kw_, (c_in, c_out, 4, 4), jnp.float32)
    bias = (0.05 * jax.random.normal(kb, (c_out,), jnp.float32)
            if has_bias else jnp.zeros((c_out,), jnp.float32))
    if use_bn:
        gamma = 1.0 + 0.1 * jax.random.normal(kg, (c_out,), jnp.float32)
        beta = 0.1 * jax.random.normal(kbe, (c_out,), jnp.float32)
        running_mean = jnp.zeros((c_out,), jnp.float32)
        running_var = jnp.ones((c_out,), jnp.float32)
        scale = gamma / jnp.sqrt(running_var + EPS)
        shift = beta + scale * (bias - running_mean)   # bias is 0 when BN is on
    else:
        scale = jnp.ones((c_out,), jnp.float32)
        shift = bias
    # Fold the scale into the weights so the kernel only does "+ shift".
    if kind == "conv":
        w = w * scale[:, None, None, None]
    else:
        w = w * scale[None, :, None, None]
    return {"kind": kind, "w": w, "shift": shift}


def init_unet_params(key, in_channels=3, out_channels=3, features=8):
    f = features
    cfg = [
        ("conv",  in_channels, f,     False, True,  "lrelu"),       # down1
        ("conv",  f,           2 * f, True,  False, "lrelu"),       # down2
        ("conv",  2 * f,       4 * f, True,  False, "lrelu"),       # down3
        ("conv",  4 * f,       8 * f, True,  False, "lrelu"),       # down4
        ("conv",  8 * f,       8 * f, True,  False, "lrelu"),       # down5
        ("conv",  8 * f,       8 * f, True,  False, "lrelu"),       # down6
        ("conv",  8 * f,       8 * f, False, True,  "relu"),        # bottleneck
        ("convT", 8 * f,       8 * f, True,  False, "relu"),        # up1 (dropout=id)
        ("convT", 16 * f,      8 * f, True,  False, "relu"),        # up2 (dropout=id)
        ("convT", 16 * f,      8 * f, True,  False, "relu"),        # up3
        ("convT", 16 * f,      4 * f, True,  False, "relu"),        # up4
        ("convT", 8 * f,       2 * f, True,  False, "relu"),        # up5
        ("convT", 4 * f,       f,     True,  False, "relu"),        # up6
        ("convT", 2 * f,       out_channels, False, True, "tanh"),  # final_up
    ]
    keys = jax.random.split(key, len(cfg))
    params = []
    for k, (kind, ci, co, use_bn, has_bias, act) in zip(keys, cfg):
        p = init_layer(k, kind, ci, co, use_bn, has_bias)
        p["act"] = act
        params.append(p)
    return params


def apply_layer(p, inputs):
    if p["kind"] == "conv":
        x = inputs[0] if len(inputs) == 1 else jnp.concatenate(inputs, axis=-1)
        return conv2d_block(x, p["w"], p["shift"], p["act"])
    return conv_transpose2d_block(inputs, p["w"], p["shift"], p["act"])


# ----------------------------------------------------------------------------
# UNetGenerator forward (NCHW in / NCHW out, NHWC bf16 internally)
# ----------------------------------------------------------------------------
def unet_forward(params, x_nchw):
    x = jnp.transpose(x_nchw, (0, 2, 3, 1)).astype(jnp.bfloat16)  # NCHW -> NHWC
    (d1p, d2p, d3p, d4p, d5p, d6p, bnp,
     u1p, u2p, u3p, u4p, u5p, u6p, fup) = params

    d1 = apply_layer(d1p, [x])
    d2 = apply_layer(d2p, [d1])
    d3 = apply_layer(d3p, [d2])
    d4 = apply_layer(d4p, [d3])
    d5 = apply_layer(d5p, [d4])
    d6 = apply_layer(d6p, [d5])
    bn = apply_layer(bnp, [d6])
    u1 = apply_layer(u1p, [bn])
    u2 = apply_layer(u2p, [u1, d6])      # skip concat folded into patch columns
    u3 = apply_layer(u3p, [u2, d5])
    u4 = apply_layer(u4p, [u3, d4])
    u5 = apply_layer(u5p, [u4, d3])
    u6 = apply_layer(u6p, [u5, d2])
    out = apply_layer(fup, [u6, d1])
    return jnp.transpose(out, (0, 3, 1, 2)).astype(jnp.float32)   # NHWC -> NCHW


if __name__ == "__main__":
    key = jax.random.PRNGKey(0)
    kp, kx = jax.random.split(key)

    in_channels, out_channels, features = 3, 3, 8
    # spatial must be 128: the architecture downsamples 7x (6 downs + bottleneck)
    batch, spatial = 2, 128
    params = init_unet_params(kp, in_channels, out_channels, features)
    x = jax.random.normal(kx, (batch, in_channels, spatial, spatial), jnp.float32)

    fwd = jax.jit(lambda xx: unet_forward(params, xx))
    y = fwd(x)
    jax.block_until_ready(y)

    assert y.shape == (batch, out_channels, spatial, spatial), y.shape
    assert bool(jnp.all(jnp.isfinite(y)))
    print("KERNEL_OK")
</pallas_src>

<mosaic_0001>
module attributes {stable_mosaic.version = 11 : i64} {
  func.func @_fused_matmul_kernel(%arg0: i32, %arg1: i32, %arg2: memref<1x512x128xbf16, #tpu.memory_space<vmem>>, %arg3: memref<1x128x128xbf16, #tpu.memory_space<vmem>>, %arg4: memref<1x128xf32, #tpu.memory_space<vmem>>, %arg5: memref<1x512x128xbf16, #tpu.memory_space<vmem>>) attributes {dimension_semantics = [#tpu.dimension_semantics<parallel>, #tpu.dimension_semantics<parallel>], iteration_bounds = array<i64: 1, 16>, scalar_prefetch = 0 : i64, scratch_operands = 0 : i64, tpu.core_type = #tpu.core_type<tc>, window_params = [{transform_indices = @transform_0, window_bounds = array<i64: 1, 512, 128>}, {transform_indices = @transform_1, window_bounds = array<i64: 1, 128, 128>}, {pipeline_mode = #tpu.pipeline_mode<synchronous>, transform_indices = @transform_2, window_bounds = array<i64: 1, 128>}, {transform_indices = @transform_3, window_bounds = array<i64: 1, 512, 128>}]} {
    %c0 = arith.constant 0 : index
    %c0_0 = arith.constant 0 : index
    %c0_1 = arith.constant 0 : index
    %0 = vector.load %arg2[%c0, %c0_0, %c0_1] : memref<1x512x128xbf16, #tpu.memory_space<vmem>>, vector<1x512x128xbf16>
    %1 = vector.shape_cast %0 : vector<1x512x128xbf16> to vector<512x128xbf16>
    %c0_2 = arith.constant 0 : index
    %c0_3 = arith.constant 0 : index
    %c0_4 = arith.constant 0 : index
    %2 = vector.load %arg3[%c0_2, %c0_3, %c0_4] : memref<1x128x128xbf16, #tpu.memory_space<vmem>>, vector<1x128x128xbf16>
    %3 = vector.shape_cast %2 : vector<1x128x128xbf16> to vector<128x128xbf16>
    %cst = arith.constant dense<0.000000e+00> : vector<512x128xf32>
    %4 = tpu.matmul %1, %3, %cst {dimension_numbers = #tpu.dot_dimension_numbers<[1], [0], [0], [1], [0, 0, 1, 1], [], []>} : vector<512x128xbf16>, vector<128x128xbf16>, vector<512x128xf32> -> vector<512x128xf32>
    %c0_5 = arith.constant 0 : index
    %c0_6 = arith.constant 0 : index
    %5 = vector.load %arg4[%c0_5, %c0_6] : memref<1x128xf32, #tpu.memory_space<vmem>>, vector<1x128xf32>
    %6 = vector.broadcast %5 : vector<1x128xf32> to vector<512x128xf32>
    %7 = arith.addf %4, %6 : vector<512x128xf32>
    %cst_7 = arith.constant 0.000000e+00 : f32
    %8 = vector.broadcast %cst_7 : f32 to vector<512x128xf32>
    %9 = arith.cmpf ogt, %7, %8 : vector<512x128xf32>
    %cst_8 = arith.constant 2.000000e-01 : f32
    %10 = vector.broadcast %cst_8 : f32 to vector<512x128xf32>
    %11 = arith.mulf %10, %7 : vector<512x128xf32>
    %12 = arith.select %9, %7, %11 : vector<512x128xi1>, vector<512x128xf32>
    %13 = arith.truncf %12 : vector<512x128xf32> to vector<512x128xbf16>
    %c0_9 = arith.constant 0 : index
    %c0_10 = arith.constant 0 : index
    %c0_11 = arith.constant 0 : index
    %14 = vector.load %arg5[%c0_9, %c0_10, %c0_11] : memref<1x512x128xbf16, #tpu.memory_space<vmem>>, vector<1x512x128xbf16>
    %15 = vector.shape_cast %14 : vector<1x512x128xbf16> to vector<512x128xbf16>
    %16 = vector.shape_cast %13 : vector<512x128xbf16> to vector<1x512x128xbf16>
    tpu.vector_store %arg5[%c0_9, %c0_10, %c0_11], %16 {strides = array<i32>} : memref<1x512x128xbf16, #tpu.memory_space<vmem>>, vector<1x512x128xbf16>,
    return
  }
  func.func @transform_0(%arg0: i32, %arg1: i32) -> (i32, i32, i32) {
    %c0_i32 = arith.constant 0 : i32
    %c0_i32_0 = arith.constant 0 : i32
    return %arg0, %arg1, %c0_i32 : i32, i32, i32
  }
  func.func @transform_1(%arg0: i32, %arg1: i32) -> (i32, i32, i32) {
    %c0_i32 = arith.constant 0 : i32
    %c0_i32_0 = arith.constant 0 : i32
    %c0_i32_1 = arith.constant 0 : i32
    return %arg0, %c0_i32, %c0_i32_0 : i32, i32, i32
  }
  func.func @transform_2(%arg0: i32, %arg1: i32) -> (i32, i32) {
    %c0_i32 = arith.constant 0 : i32
    %c0_i32_0 = arith.constant 0 : i32
    %c0_i32_1 = arith.constant 0 : i32
    return %c0_i32, %c0_i32_0 : i32, i32
  }
  func.func @transform_3(%arg0: i32, %arg1: i32) -> (i32, i32, i32) {
    %c0_i32 = arith.constant 0 : i32
    %c0_i32_0 = arith.constant 0 : i32
    return %arg0, %arg1, %c0_i32 : i32, i32, i32
  }
}

module attributes {stable_mosaic.version = 11 : i64} {
  func.func @_fused_matmul_kernel(%arg0: i32, %arg1: i32, %arg2: memref<1x512x128xbf16, #tpu.memory_space<vmem>>, %arg3: memref<1x128x128xbf16, #tpu.memory_space<vmem>>, %arg4: memref<1x128xf32, #tpu.memory_space<vmem>>, %arg5: memref<1x512x128xbf16, #tpu.memory_space<vmem>>) attributes {dimension_semantics = [#tpu.dimension_semantics<parallel>, #tpu.dimension_semantics<parallel>], iteration_bounds = array<i64: 1, 4>, scalar_prefetch = 0 : i64, scratch_operands = 0 : i64, tpu.core_type = #tpu.core_type<tc>, window_params = [{transform_indices = @transform_0, window_bounds = array<i64: 1, 512, 128>}, {transform_indices = @transform_1, window_bounds = array<i64: 1, 128, 128>}, {pipeline_mode = #tpu.pipeline_mode<synchronous>, transform_indices = @transform_2, window_bounds = array<i64: 1, 128>}, {transform_indices = @transform_3, window_bounds = array<i64: 1, 512, 128>}]} {
    %c0 = arith.constant 0 : index
    %c0_0 = arith.constant 0 : index
    %c0_1 = arith.constant 0 : index
    %0 = vector.load %arg2[%c0, %c0_0, %c0_1] : memref<1x512x128xbf16, #tpu.memory_space<vmem>>, vector<1x512x128xbf16>
    %1 = vector.shape_cast %0 : vector<1x512x128xbf16> to vector<512x128xbf16>
    %c0_2 = arith.constant 0 : index
    %c0_3 = arith.constant 0 : index
    %c0_4 = arith.constant 0 : index
    %2 = vector.load %arg3[%c0_2, %c0_3, %c0_4] : memref<1x128x128xbf16, #tpu.memory_space<vmem>>, vector<1x128x128xbf16>
    %3 = vector.shape_cast %2 : vector<1x128x128xbf16> to vector<128x128xbf16>
    %cst = arith.constant dense<0.000000e+00> : vector<512x128xf32>
    %4 = tpu.matmul %1, %3, %cst {dimension_numbers = #tpu.dot_dimension_numbers<[1], [0], [0], [1], [0, 0, 1, 1], [], []>} : vector<512x128xbf16>, vector<128x128xbf16>, vector<512x128xf32> -> vector<512x128xf32>
    %c0_5 = arith.constant 0 : index
    %c0_6 = arith.constant 0 : index
    %5 = vector.load %arg4[%c0_5, %c0_6] : memref<1x128xf32, #tpu.memory_space<vmem>>, vector<1x128xf32>
    %6 = vector.broadcast %5 : vector<1x128xf32> to vector<512x128xf32>
    %7 = arith.addf %4, %6 : vector<512x128xf32>
    %cst_7 = arith.constant 0.000000e+00 : f32
    %8 = vector.broadcast %cst_7 : f32 to vector<512x128xf32>
    %9 = arith.cmpf ogt, %7, %8 : vector<512x128xf32>
    %cst_8 = arith.constant 2.000000e-01 : f32
    %10 = vector.broadcast %cst_8 : f32 to vector<512x128xf32>
    %11 = arith.mulf %10, %7 : vector<512x128xf32>
    %12 = arith.select %9, %7, %11 : vector<512x128xi1>, vector<512x128xf32>
    %13 = arith.truncf %12 : vector<512x128xf32> to vector<512x128xbf16>
    %c0_9 = arith.constant 0 : index
    %c0_10 = arith.constant 0 : index
    %c0_11 = arith.constant 0 : index
    %14 = vector.load %arg5[%c0_9, %c0_10, %c0_11] : memref<1x512x128xbf16, #tpu.memory_space<vmem>>, vector<1x512x128xbf16>
    %15 = vector.shape_cast %14 : vector<1x512x128xbf16> to vector<512x128xbf16>
    %16 = vector.shape_cast %13 : vector<512x128xbf16> to vector<1x512x128xbf16>
    tpu.vector_store %arg5[%c0_9, %c0_10, %c0_11], %16 {strides = array<i32>} : memref<1x512x128xbf16, #tpu.memory_space<vmem>>, vector<1x512x128xbf16>,
    return
  }
  func.func @transform_0(%arg0: i32, %arg1: i32) -> (i32, i32, i32) {
    %c0_i32 = arith.constant 0 : i32
    %c0_i32_0 = arith.constant 0 : i32
    return %arg0, %arg1, %c0_i32 : i32, i32, i32
  }
  func.func @transform_1(%arg0: i32, %arg1: i32) -> (i32, i32, i32) {
    %c0_i32 = arith.constant 0 : i32
    %c0_i32_0 = arith.constant 0 : i32
    %c0_i32_1 = arith.constant 0 : i32
    return %arg0, %c0_i32, %c0_i32_0 : i32, i32, i32
  }
  func.func @transform_2(%arg0: i32, %arg1: i32) -> (i32, i32) {
    %c0_i32 = arith.constant 0 : i32
    %c0_i32_0 = arith.constant 0 : i32
    %c0_i32_1 = arith.constant 0 : i32
    return %c0_i32, %c0_i32_0 : i32, i32
  }
  func.func @transform_3(%arg0: i32, %arg1: i32) -> (i32, i32, i32) {
    %c0_i32 = arith.constant 0 : i32
    %c0_i32_0 = arith.constant 0 : i32
    return %arg0, %arg1, %c0_i32 : i32, i32, i32
  }
}

module attributes {stable_mosaic.version = 11 : i64} {
  func.func @_fused_matmul_kernel(%arg0: i32, %arg1: i32, %arg2: memref<1x512x256xbf16, #tpu.memory_space<vmem>>, %arg3: memref<1x256x128xbf16, #tpu.memory_space<vmem>>, %arg4: memref<1x128xf32, #tpu.memory_space<vmem>>, %arg5: memref<1x512x128xbf16, #tpu.memory_space<vmem>>) attributes {dimension_semantics = [#tpu.dimension_semantics<parallel>, #tpu.dimension_semantics<parallel>], iteration_bounds = array<i64: 1, 1>, scalar_prefetch = 0 : i64, scratch_operands = 0 : i64, tpu.core_type = #tpu.core_type<tc>, window_params = [{transform_indices = @transform_0, window_bounds = array<i64: 1, 512, 256>}, {transform_indices = @transform_1, window_bounds = array<i64: 1, 256, 128>}, {pipeline_mode = #tpu.pipeline_mode<synchronous>, transform_indices = @transform_2, window_bounds = array<i64: 1, 128>}, {transform_indices = @transform_3, window_bounds = array<i64: 1, 512, 128>}]} {
    %c0 = arith.constant 0 : index
    %c0_0 = arith.constant 0 : index
    %c0_1 = arith.constant 0 : index
    %0 = vector.load %arg2[%c0, %c0_0, %c0_1] : memref<1x512x256xbf16, #tpu.memory_space<vmem>>, vector<1x512x256xbf16>
    %1 = vector.shape_cast %0 : vector<1x512x256xbf16> to vector<512x256xbf16>
    %c0_2 = arith.constant 0 : index
    %c0_3 = arith.constant 0 : index
    %c0_4 = arith.constant 0 : index
    %2 = vector.load %arg3[%c0_2, %c0_3, %c0_4] : memref<1x256x128xbf16, #tpu.memory_space<vmem>>, vector<1x256x128xbf16>
    %3 = vector.shape_cast %2 : vector<1x256x128xbf16> to vector<256x128xbf16>
    %cst = arith.constant dense<0.000000e+00> : vector<512x128xf32>
    %4 = tpu.matmul %1, %3, %cst {dimension_numbers = #tpu.dot_dimension_numbers<[1], [0], [0], [1], [0, 0, 1, 1], [], []>} : vector<512x256xbf16>, vector<256x128xbf16>, vector<512x128xf32> -> vector<512x128xf32>
    %c0_5 = arith.constant 0 : index
    %c0_6 = arith.constant 0 : index
    %5 = vector.load %arg4[%c0_5, %c0_6] : memref<1x128xf32, #tpu.memory_space<vmem>>, vector<1x128xf32>
    %6 = vector.broadcast %5 : vector<1x128xf32> to vector<512x128xf32>
    %7 = arith.addf %4, %6 : vector<512x128xf32>
    %cst_7 = arith.constant 0.000000e+00 : f32
    %8 = vector.broadcast %cst_7 : f32 to vector<512x128xf32>
    %9 = arith.cmpf ogt, %7, %8 : vector<512x128xf32>
    %cst_8 = arith.constant 2.000000e-01 : f32
    %10 = vector.broadcast %cst_8 : f32 to vector<512x128xf32>
    %11 = arith.mulf %10, %7 : vector<512x128xf32>
    %12 = arith.select %9, %7, %11 : vector<512x128xi1>, vector<512x128xf32>
    %13 = arith.truncf %12 : vector<512x128xf32> to vector<512x128xbf16>
    %c0_9 = arith.constant 0 : index
    %c0_10 = arith.constant 0 : index
    %c0_11 = arith.constant 0 : index
    %14 = vector.load %arg5[%c0_9, %c0_10, %c0_11] : memref<1x512x128xbf16, #tpu.memory_space<vmem>>, vector<1x512x128xbf16>
    %15 = vector.shape_cast %14 : vector<1x512x128xbf16> to vector<512x128xbf16>
    %16 = vector.shape_cast %13 : vector<512x128xbf16> to vector<1x512x128xbf16>
    tpu.vector_store %arg5[%c0_9, %c0_10, %c0_11], %16 {strides = array<i32>} : memref<1x512x128xbf16, #tpu.memory_space<vmem>>, vector<1x512x128xbf16>,
    return
  }
  func.func @transform_0(%arg0: i32, %arg1: i32) -> (i32, i32, i32) {
    %c0_i32 = arith.constant 0 : i32
    %c0_i32_0 = arith.constant 0 : i32
    return %arg0, %arg1, %c0_i32 : i32, i32, i32
  }
  func.func @transform_1(%arg0: i32, %arg1: i32) -> (i32, i32, i32) {
    %c0_i32 = arith.constant 0 : i32
    %c0_i32_0 = arith.constant 0 : i32
    %c0_i32_1 = arith.constant 0 : i32
    return %arg0, %c0_i32, %c0_i32_0 : i32, i32, i32
  }
  func.func @transform_2(%arg0: i32, %arg1: i32) -> (i32, i32) {
    %c0_i32 = arith.constant 0 : i32
    %c0_i32_0 = arith.constant 0 : i32
    %c0_i32_1 = arith.constant 0 : i32
    return %c0_i32, %c0_i32_0 : i32, i32
  }
  func.func @transform_3(%arg0: i32, %arg1: i32) -> (i32, i32, i32) {
    %c0_i32 = arith.constant 0 : i32
    %c0_i32_0 = arith.constant 0 : i32
    return %arg0, %arg1, %c0_i32 : i32, i32, i32
  }
}

module attributes {stable_mosaic.version = 11 : i64} {
  func.func @_fused_matmul_kernel(%arg0: i32, %arg1: i32, %arg2: memref<1x128x512xbf16, #tpu.memory_space<vmem>>, %arg3: memref<1x512x128xbf16, #tpu.memory_space<vmem>>, %arg4: memref<1x128xf32, #tpu.memory_space<vmem>>, %arg5: memref<1x128x128xbf16, #tpu.memory_space<vmem>>) attributes {dimension_semantics = [#tpu.dimension_semantics<parallel>, #tpu.dimension_semantics<parallel>], iteration_bounds = array<i64: 1, 1>, scalar_prefetch = 0 : i64, scratch_operands = 0 : i64, tpu.core_type = #tpu.core_type<tc>, window_params = [{transform_indices = @transform_0, window_bounds = array<i64: 1, 128, 512>}, {transform_indices = @transform_1, window_bounds = array<i64: 1, 512, 128>}, {pipeline_mode = #tpu.pipeline_mode<synchronous>, transform_indices = @transform_2, window_bounds = array<i64: 1, 128>}, {transform_indices = @transform_3, window_bounds = array<i64: 1, 128, 128>}]} {
    %c0 = arith.constant 0 : index
    %c0_0 = arith.constant 0 : index
    %c0_1 = arith.constant 0 : index
    %0 = vector.load %arg2[%c0, %c0_0, %c0_1] : memref<1x128x512xbf16, #tpu.memory_space<vmem>>, vector<1x128x512xbf16>
    %1 = vector.shape_cast %0 : vector<1x128x512xbf16> to vector<128x512xbf16>
    %c0_2 = arith.constant 0 : index
    %c0_3 = arith.constant 0 : index
    %c0_4 = arith.constant 0 : index
    %2 = vector.load %arg3[%c0_2, %c0_3, %c0_4] : memref<1x512x128xbf16, #tpu.memory_space<vmem>>, vector<1x512x128xbf16>
    %3 = vector.shape_cast %2 : vector<1x512x128xbf16> to vector<512x128xbf16>
    %cst = arith.constant dense<0.000000e+00> : vector<128x128xf32>
    %4 = tpu.matmul %1, %3, %cst {dimension_numbers = #tpu.dot_dimension_numbers<[1], [0], [0], [1], [0, 0, 1, 1], [], []>} : vector<128x512xbf16>, vector<512x128xbf16>, vector<128x128xf32> -> vector<128x128xf32>
    %c0_5 = arith.constant 0 : index
    %c0_6 = arith.constant 0 : index
    %5 = vector.load %arg4[%c0_5, %c0_6] : memref<1x128xf32, #tpu.memory_space<vmem>>, vector<1x128xf32>
    %6 = vector.broadcast %5 : vector<1x128xf32> to vector<128x128xf32>
    %7 = arith.addf %4, %6 : vector<128x128xf32>
    %cst_7 = arith.constant 0.000000e+00 : f32
    %8 = vector.broadcast %cst_7 : f32 to vector<128x128xf32>
    %9 = arith.cmpf ogt, %7, %8 : vector<128x128xf32>
    %cst_8 = arith.constant 2.000000e-01 : f32
    %10 = vector.broadcast %cst_8 : f32 to vector<128x128xf32>
    %11 = arith.mulf %10, %7 : vector<128x128xf32>
    %12 = arith.select %9, %7, %11 : vector<128x128xi1>, vector<128x128xf32>
    %13 = arith.truncf %12 : vector<128x128xf32> to vector<128x128xbf16>
    %c0_9 = arith.constant 0 : index
    %c0_10 = arith.constant 0 : index
    %c0_11 = arith.constant 0 : index
    %14 = vector.load %arg5[%c0_9, %c0_10, %c0_11] : memref<1x128x128xbf16, #tpu.memory_space<vmem>>, vector<1x128x128xbf16>
    %15 = vector.shape_cast %14 : vector<1x128x128xbf16> to vector<128x128xbf16>
    %16 = vector.shape_cast %13 : vector<128x128xbf16> to vector<1x128x128xbf16>
    tpu.vector_store %arg5[%c0_9, %c0_10, %c0_11], %16 {strides = array<i32>} : memref<1x128x128xbf16, #tpu.memory_space<vmem>>, vector<1x128x128xbf16>,
    return
  }
  func.func @transform_0(%arg0: i32, %arg1: i32) -> (i32, i32, i32) {
    %c0_i32 = arith.constant 0 : i32
    %c0_i32_0 = arith.constant 0 : i32
    return %arg0, %arg1, %c0_i32 : i32, i32, i32
  }
  func.func @transform_1(%arg0: i32, %arg1: i32) -> (i32, i32, i32) {
    %c0_i32 = arith.constant 0 : i32
    %c0_i32_0 = arith.constant 0 : i32
    %c0_i32_1 = arith.constant 0 : i32
    return %arg0, %c0_i32, %c0_i32_0 : i32, i32, i32
  }
  func.func @transform_2(%arg0: i32, %arg1: i32) -> (i32, i32) {
    %c0_i32 = arith.constant 0 : i32
    %c0_i32_0 = arith.constant 0 : i32
    %c0_i32_1 = arith.constant 0 : i32
    return %c0_i32, %c0_i32_0 : i32, i32
  }
  func.func @transform_3(%arg0: i32, %arg1: i32) -> (i32, i32, i32) {
    %c0_i32 = arith.constant 0 : i32
    %c0_i32_0 = arith.constant 0 : i32
    return %arg0, %arg1, %c0_i32 : i32, i32, i32
  }
}

module attributes {stable_mosaic.version = 11 : i64} {
  func.func @_fused_matmul_kernel(%arg0: i32, %arg1: i32, %arg2: memref<1x32x1024xbf16, #tpu.memory_space<vmem>>, %arg3: memref<1x1024x128xbf16, #tpu.memory_space<vmem>>, %arg4: memref<1x128xf32, #tpu.memory_space<vmem>>, %arg5: memref<1x32x128xbf16, #tpu.memory_space<vmem>>) attributes {dimension_semantics = [#tpu.dimension_semantics<parallel>, #tpu.dimension_semantics<parallel>], iteration_bounds = array<i64: 1, 1>, scalar_prefetch = 0 : i64, scratch_operands = 0 : i64, tpu.core_type = #tpu.core_type<tc>, window_params = [{transform_indices = @transform_0, window_bounds = array<i64: 1, 32, 1024>}, {transform_indices = @transform_1, window_bounds = array<i64: 1, 1024, 128>}, {pipeline_mode = #tpu.pipeline_mode<synchronous>, transform_indices = @transform_2, window_bounds = array<i64: 1, 128>}, {transform_indices = @transform_3, window_bounds = array<i64: 1, 32, 128>}]} {
    %c0 = arith.constant 0 : index
    %c0_0 = arith.constant 0 : index
    %c0_1 = arith.constant 0 : index
    %0 = vector.load %arg2[%c0, %c0_0, %c0_1] : memref<1x32x1024xbf16, #tpu.memory_space<vmem>>, vector<1x32x1024xbf16>
    %1 = vector.shape_cast %0 : vector<1x32x1024xbf16> to vector<32x1024xbf16>
    %c0_2 = arith.constant 0 : index
    %c0_3 = arith.constant 0 : index
    %c0_4 = arith.constant 0 : index
    %2 = vector.load %arg3[%c0_2, %c0_3, %c0_4] : memref<1x1024x128xbf16, #tpu.memory_space<vmem>>, vector<1x1024x128xbf16>
    %3 = vector.shape_cast %2 : vector<1x1024x128xbf16> to vector<1024x128xbf16>
    %cst = arith.constant dense<0.000000e+00> : vector<32x128xf32>
    %4 = tpu.matmul %1, %3, %cst {dimension_numbers = #tpu.dot_dimension_numbers<[1], [0], [0], [1], [0, 0, 1, 1], [], []>} : vector<32x1024xbf16>, vector<1024x128xbf16>, vector<32x128xf32> -> vector<32x128xf32>
    %c0_5 = arith.constant 0 : index
    %c0_6 = arith.constant 0 : index
    %5 = vector.load %arg4[%c0_5, %c0_6] : memref<1x128xf32, #tpu.memory_space<vmem>>, vector<1x128xf32>
    %6 = vector.broadcast %5 : vector<1x128xf32> to vector<32x128xf32>
    %7 = arith.addf %4, %6 : vector<32x128xf32>
    %cst_7 = arith.constant 0.000000e+00 : f32
    %8 = vector.broadcast %cst_7 : f32 to vector<32x128xf32>
    %9 = arith.cmpf ogt, %7, %8 : vector<32x128xf32>
    %cst_8 = arith.constant 2.000000e-01 : f32
    %10 = vector.broadcast %cst_8 : f32 to vector<32x128xf32>
    %11 = arith.mulf %10, %7 : vector<32x128xf32>
    %12 = arith.select %9, %7, %11 : vector<32x128xi1>, vector<32x128xf32>
    %13 = arith.truncf %12 : vector<32x128xf32> to vector<32x128xbf16>
    %c0_9 = arith.constant 0 : index
    %c0_10 = arith.constant 0 : index
    %c0_11 = arith.constant 0 : index
    %14 = vector.load %arg5[%c0_9, %c0_10, %c0_11] : memref<1x32x128xbf16, #tpu.memory_space<vmem>>, vector<1x32x128xbf16>
    %15 = vector.shape_cast %14 : vector<1x32x128xbf16> to vector<32x128xbf16>
    %16 = vector.shape_cast %13 : vector<32x128xbf16> to vector<1x32x128xbf16>
    tpu.vector_store %arg5[%c0_9, %c0_10, %c0_11], %16 {strides = array<i32>} : memref<1x32x128xbf16, #tpu.memory_space<vmem>>, vector<1x32x128xbf16>,
    return
  }
  func.func @transform_0(%arg0: i32, %arg1: i32) -> (i32, i32, i32) {
    %c0_i32 = arith.constant 0 : i32
    %c0_i32_0 = arith.constant 0 : i32
    return %arg0, %arg1, %c0_i32 : i32, i32, i32
  }
  func.func @transform_1(%arg0: i32, %arg1: i32) -> (i32, i32, i32) {
    %c0_i32 = arith.constant 0 : i32
    %c0_i32_0 = arith.constant 0 : i32
    %c0_i32_1 = arith.constant 0 : i32
    return %arg0, %c0_i32, %c0_i32_0 : i32, i32, i32
  }
  func.func @transform_2(%arg0: i32, %arg1: i32) -> (i32, i32) {
    %c0_i32 = arith.constant 0 : i32
    %c0_i32_0 = arith.constant 0 : i32
    %c0_i32_1 = arith.constant 0 : i32
    return %c0_i32, %c0_i32_0 : i32, i32
  }
  func.func @transform_3(%arg0: i32, %arg1: i32) -> (i32, i32, i32) {
    %c0_i32 = arith.constant 0 : i32
    %c0_i32_0 = arith.constant 0 : i32
    return %arg0, %arg1, %c0_i32 : i32, i32, i32
  }
}

module attributes {stable_mosaic.version = 11 : i64} {
  func.func @_fused_matmul_kernel(%arg0: i32, %arg1: i32, %arg2: memref<1x8x1024xbf16, #tpu.memory_space<vmem>>, %arg3: memref<1x1024x128xbf16, #tpu.memory_space<vmem>>, %arg4: memref<1x128xf32, #tpu.memory_space<vmem>>, %arg5: memref<1x8x128xbf16, #tpu.memory_space<vmem>>) attributes {dimension_semantics = [#tpu.dimension_semantics<parallel>, #tpu.dimension_semantics<parallel>], iteration_bounds = array<i64: 1, 1>, scalar_prefetch = 0 : i64, scratch_operands = 0 : i64, tpu.core_type = #tpu.core_type<tc>, window_params = [{transform_indices = @transform_0, window_bounds = array<i64: 1, 8, 1024>}, {transform_indices = @transform_1, window_bounds = array<i64: 1, 1024, 128>}, {pipeline_mode = #tpu.pipeline_mode<synchronous>, transform_indices = @transform_2, window_bounds = array<i64: 1, 128>}, {transform_indices = @transform_3, window_bounds = array<i64: 1, 8, 128>}]} {
    %c0 = arith.constant 0 : index
    %c0_0 = arith.constant 0 : index
    %c0_1 = arith.constant 0 : index
    %0 = vector.load %arg2[%c0, %c0_0, %c0_1] : memref<1x8x1024xbf16, #tpu.memory_space<vmem>>, vector<1x8x1024xbf16>
    %1 = vector.shape_cast %0 : vector<1x8x1024xbf16> to vector<8x1024xbf16>
    %c0_2 = arith.constant 0 : index
    %c0_3 = arith.constant 0 : index
    %c0_4 = arith.constant 0 : index
    %2 = vector.load %arg3[%c0_2, %c0_3, %c0_4] : memref<1x1024x128xbf16, #tpu.memory_space<vmem>>, vector<1x1024x128xbf16>
    %3 = vector.shape_cast %2 : vector<1x1024x128xbf16> to vector<1024x128xbf16>
    %cst = arith.constant dense<0.000000e+00> : vector<8x128xf32>
    %4 = tpu.matmul %1, %3, %cst {dimension_numbers = #tpu.dot_dimension_numbers<[1], [0], [0], [1], [0, 0, 1, 1], [], []>} : vector<8x1024xbf16>, vector<1024x128xbf16>, vector<8x128xf32> -> vector<8x128xf32>
    %c0_5 = arith.constant 0 : index
    %c0_6 = arith.constant 0 : index
    %5 = vector.load %arg4[%c0_5, %c0_6] : memref<1x128xf32, #tpu.memory_space<vmem>>, vector<1x128xf32>
    %6 = vector.broadcast %5 : vector<1x128xf32> to vector<8x128xf32>
    %7 = arith.addf %4, %6 : vector<8x128xf32>
    %cst_7 = arith.constant 0.000000e+00 : f32
    %8 = vector.broadcast %cst_7 : f32 to vector<8x128xf32>
    %9 = arith.cmpf ogt, %7, %8 : vector<8x128xf32>
    %cst_8 = arith.constant 2.000000e-01 : f32
    %10 = vector.broadcast %cst_8 : f32 to vector<8x128xf32>
    %11 = arith.mulf %10, %7 : vector<8x128xf32>
    %12 = arith.select %9, %7, %11 : vector<8x128xi1>, vector<8x128xf32>
    %13 = arith.truncf %12 : vector<8x128xf32> to vector<8x128xbf16>
    %c0_9 = arith.constant 0 : index
    %c0_10 = arith.constant 0 : index
    %c0_11 = arith.constant 0 : index
    %14 = vector.load %arg5[%c0_9, %c0_10, %c0_11] : memref<1x8x128xbf16, #tpu.memory_space<vmem>>, vector<1x8x128xbf16>
    %15 = vector.shape_cast %14 : vector<1x8x128xbf16> to vector<8x128xbf16>
    %16 = vector.shape_cast %13 : vector<8x128xbf16> to vector<1x8x128xbf16>
    tpu.vector_store %arg5[%c0_9, %c0_10, %c0_11], %16 {strides = array<i32>} : memref<1x8x128xbf16, #tpu.memory_space<vmem>>, vector<1x8x128xbf16>,
    return
  }
  func.func @transform_0(%arg0: i32, %arg1: i32) -> (i32, i32, i32) {
    %c0_i32 = arith.constant 0 : i32
    %c0_i32_0 = arith.constant 0 : i32
    return %arg0, %arg1, %c0_i32 : i32, i32, i32
  }
  func.func @transform_1(%arg0: i32, %arg1: i32) -> (i32, i32, i32) {
    %c0_i32 = arith.constant 0 : i32
    %c0_i32_0 = arith.constant 0 : i32
    %c0_i32_1 = arith.constant 0 : i32
    return %arg0, %c0_i32, %c0_i32_0 : i32, i32, i32
  }
  func.func @transform_2(%arg0: i32, %arg1: i32) -> (i32, i32) {
    %c0_i32 = arith.constant 0 : i32
    %c0_i32_0 = arith.constant 0 : i32
    %c0_i32_1 = arith.constant 0 : i32
    return %c0_i32, %c0_i32_0 : i32, i32
  }
  func.func @transform_3(%arg0: i32, %arg1: i32) -> (i32, i32, i32) {
    %c0_i32 = arith.constant 0 : i32
    %c0_i32_0 = arith.constant 0 : i32
    return %arg0, %arg1, %c0_i32 : i32, i32, i32
  }
}

module attributes {stable_mosaic.version = 11 : i64} {
  func.func @_fused_matmul_kernel(%arg0: i32, %arg1: i32, %arg2: memref<1x8x1024xbf16, #tpu.memory_space<vmem>>, %arg3: memref<1x1024x128xbf16, #tpu.memory_space<vmem>>, %arg4: memref<1x128xf32, #tpu.memory_space<vmem>>, %arg5: memref<1x8x128xbf16, #tpu.memory_space<vmem>>) attributes {dimension_semantics = [#tpu.dimension_semantics<parallel>, #tpu.dimension_semantics<parallel>], iteration_bounds = array<i64: 1, 1>, scalar_prefetch = 0 : i64, scratch_operands = 0 : i64, tpu.core_type = #tpu.core_type<tc>, window_params = [{transform_indices = @transform_0, window_bounds = array<i64: 1, 8, 1024>}, {transform_indices = @transform_1, window_bounds = array<i64: 1, 1024, 128>}, {pipeline_mode = #tpu.pipeline_mode<synchronous>, transform_indices = @transform_2, window_bounds = array<i64: 1, 128>}, {transform_indices = @transform_3, window_bounds = array<i64: 1, 8, 128>}]} {
    %c0 = arith.constant 0 : index
    %c0_0 = arith.constant 0 : index
    %c0_1 = arith.constant 0 : index
    %0 = vector.load %arg2[%c0, %c0_0, %c0_1] : memref<1x8x1024xbf16, #tpu.memory_space<vmem>>, vector<1x8x1024xbf16>
    %1 = vector.shape_cast %0 : vector<1x8x1024xbf16> to vector<8x1024xbf16>
    %c0_2 = arith.constant 0 : index
    %c0_3 = arith.constant 0 : index
    %c0_4 = arith.constant 0 : index
    %2 = vector.load %arg3[%c0_2, %c0_3, %c0_4] : memref<1x1024x128xbf16, #tpu.memory_space<vmem>>, vector<1x1024x128xbf16>
    %3 = vector.shape_cast %2 : vector<1x1024x128xbf16> to vector<1024x128xbf16>
    %cst = arith.constant dense<0.000000e+00> : vector<8x128xf32>
    %4 = tpu.matmul %1, %3, %cst {dimension_numbers = #tpu.dot_dimension_numbers<[1], [0], [0], [1], [0, 0, 1, 1], [], []>} : vector<8x1024xbf16>, vector<1024x128xbf16>, vector<8x128xf32> -> vector<8x128xf32>
    %c0_5 = arith.constant 0 : index
    %c0_6 = arith.constant 0 : index
    %5 = vector.load %arg4[%c0_5, %c0_6] : memref<1x128xf32, #tpu.memory_space<vmem>>, vector<1x128xf32>
    %6 = vector.broadcast %5 : vector<1x128xf32> to vector<8x128xf32>
    %7 = arith.addf %4, %6 : vector<8x128xf32>
    %cst_7 = arith.constant 0.000000e+00 : f32
    %8 = vector.broadcast %cst_7 : f32 to vector<8x128xf32>
    %9 = arith.maximumf %7, %8 : vector<8x128xf32>
    %10 = arith.truncf %9 : vector<8x128xf32> to vector<8x128xbf16>
    %c0_8 = arith.constant 0 : index
    %c0_9 = arith.constant 0 : index
    %c0_10 = arith.constant 0 : index
    %11 = vector.load %arg5[%c0_8, %c0_9, %c0_10] : memref<1x8x128xbf16, #tpu.memory_space<vmem>>, vector<1x8x128xbf16>
    %12 = vector.shape_cast %11 : vector<1x8x128xbf16> to vector<8x128xbf16>
    %13 = vector.shape_cast %10 : vector<8x128xbf16> to vector<1x8x128xbf16>
    tpu.vector_store %arg5[%c0_8, %c0_9, %c0_10], %13 {strides = array<i32>} : memref<1x8x128xbf16, #tpu.memory_space<vmem>>, vector<1x8x128xbf16>,
    return
  }
  func.func @transform_0(%arg0: i32, %arg1: i32) -> (i32, i32, i32) {
    %c0_i32 = arith.constant 0 : i32
    %c0_i32_0 = arith.constant 0 : i32
    return %arg0, %arg1, %c0_i32 : i32, i32, i32
  }
  func.func @transform_1(%arg0: i32, %arg1: i32) -> (i32, i32, i32) {
    %c0_i32 = arith.constant 0 : i32
    %c0_i32_0 = arith.constant 0 : i32
    %c0_i32_1 = arith.constant 0 : i32
    return %arg0, %c0_i32, %c0_i32_0 : i32, i32, i32
  }
  func.func @transform_2(%arg0: i32, %arg1: i32) -> (i32, i32) {
    %c0_i32 = arith.constant 0 : i32
    %c0_i32_0 = arith.constant 0 : i32
    %c0_i32_1 = arith.constant 0 : i32
    return %c0_i32, %c0_i32_0 : i32, i32
  }
  func.func @transform_3(%arg0: i32, %arg1: i32) -> (i32, i32, i32) {
    %c0_i32 = arith.constant 0 : i32
    %c0_i32_0 = arith.constant 0 : i32
    return %arg0, %arg1, %c0_i32 : i32, i32, i32
  }
}

module attributes {stable_mosaic.version = 11 : i64} {
  func.func @_fused_matmul_kernel(%arg0: i32, %arg1: i32, %arg2: memref<1x8x256xbf16, #tpu.memory_space<vmem>>, %arg3: memref<1x256x128xbf16, #tpu.memory_space<vmem>>, %arg4: memref<1x128xf32, #tpu.memory_space<vmem>>, %arg5: memref<1x8x128xbf16, #tpu.memory_space<vmem>>) attributes {dimension_semantics = [#tpu.dimension_semantics<parallel>, #tpu.dimension_semantics<parallel>], iteration_bounds = array<i64: 4, 1>, scalar_prefetch = 0 : i64, scratch_operands = 0 : i64, tpu.core_type = #tpu.core_type<tc>, window_params = [{transform_indices = @transform_0, window_bounds = array<i64: 1, 8, 256>}, {transform_indices = @transform_1, window_bounds = array<i64: 1, 256, 128>}, {pipeline_mode = #tpu.pipeline_mode<synchronous>, transform_indices = @transform_2, window_bounds = array<i64: 1, 128>}, {transform_indices = @transform_3, window_bounds = array<i64: 1, 8, 128>}]} {
    %c0 = arith.constant 0 : index
    %c0_0 = arith.constant 0 : index
    %c0_1 = arith.constant 0 : index
    %0 = vector.load %arg2[%c0, %c0_0, %c0_1] : memref<1x8x256xbf16, #tpu.memory_space<vmem>>, vector<1x8x256xbf16>
    %1 = vector.shape_cast %0 : vector<1x8x256xbf16> to vector<8x256xbf16>
    %c0_2 = arith.constant 0 : index
    %c0_3 = arith.constant 0 : index
    %c0_4 = arith.constant 0 : index
    %2 = vector.load %arg3[%c0_2, %c0_3, %c0_4] : memref<1x256x128xbf16, #tpu.memory_space<vmem>>, vector<1x256x128xbf16>
    %3 = vector.shape_cast %2 : vector<1x256x128xbf16> to vector<256x128xbf16>
    %cst = arith.constant dense<0.000000e+00> : vector<8x128xf32>
    %4 = tpu.matmul %1, %3, %cst {dimension_numbers = #tpu.dot_dimension_numbers<[1], [0], [0], [1], [0, 0, 1, 1], [], []>} : vector<8x256xbf16>, vector<256x128xbf16>, vector<8x128xf32> -> vector<8x128xf32>
    %c0_5 = arith.constant 0 : index
    %c0_6 = arith.constant 0 : index
    %5 = vector.load %arg4[%c0_5, %c0_6] : memref<1x128xf32, #tpu.memory_space<vmem>>, vector<1x128xf32>
    %6 = vector.broadcast %5 : vector<1x128xf32> to vector<8x128xf32>
    %7 = arith.addf %4, %6 : vector<8x128xf32>
    %cst_7 = arith.constant 0.000000e+00 : f32
    %8 = vector.broadcast %cst_7 : f32 to vector<8x128xf32>
    %9 = arith.maximumf %7, %8 : vector<8x128xf32>
    %10 = arith.truncf %9 : vector<8x128xf32> to vector<8x128xbf16>
    %c0_8 = arith.constant 0 : index
    %c0_9 = arith.constant 0 : index
    %c0_10 = arith.constant 0 : index
    %11 = vector.load %arg5[%c0_8, %c0_9, %c0_10] : memref<1x8x128xbf16, #tpu.memory_space<vmem>>, vector<1x8x128xbf16>
    %12 = vector.shape_cast %11 : vector<1x8x128xbf16> to vector<8x128xbf16>
    %13 = vector.shape_cast %10 : vector<8x128xbf16> to vector<1x8x128xbf16>
    tpu.vector_store %arg5[%c0_8, %c0_9, %c0_10], %13 {strides = array<i32>} : memref<1x8x128xbf16, #tpu.memory_space<vmem>>, vector<1x8x128xbf16>,
    return
  }
  func.func @transform_0(%arg0: i32, %arg1: i32) -> (i32, i32, i32) {
    %c0_i32 = arith.constant 0 : i32
    %c0_i32_0 = arith.constant 0 : i32
    return %arg0, %arg1, %c0_i32 : i32, i32, i32
  }
  func.func @transform_1(%arg0: i32, %arg1: i32) -> (i32, i32, i32) {
    %c0_i32 = arith.constant 0 : i32
    %c0_i32_0 = arith.constant 0 : i32
    %c0_i32_1 = arith.constant 0 : i32
    return %arg0, %c0_i32, %c0_i32_0 : i32, i32, i32
  }
  func.func @transform_2(%arg0: i32, %arg1: i32) -> (i32, i32) {
    %c0_i32 = arith.constant 0 : i32
    %c0_i32_0 = arith.constant 0 : i32
    %c0_i32_1 = arith.constant 0 : i32
    return %c0_i32, %c0_i32_0 : i32, i32
  }
  func.func @transform_3(%arg0: i32, %arg1: i32) -> (i32, i32, i32) {
    %c0_i32 = arith.constant 0 : i32
    %c0_i32_0 = arith.constant 0 : i32
    return %arg0, %arg1, %c0_i32 : i32, i32, i32
  }
}

module attributes {stable_mosaic.version = 11 : i64} {
  func.func @_fused_matmul_kernel(%arg0: i32, %arg1: i32, %arg2: memref<1x8x512xbf16, #tpu.memory_space<vmem>>, %arg3: memref<1x512x128xbf16, #tpu.memory_space<vmem>>, %arg4: memref<1x128xf32, #tpu.memory_space<vmem>>, %arg5: memref<1x8x128xbf16, #tpu.memory_space<vmem>>) attributes {dimension_semantics = [#tpu.dimension_semantics<parallel>, #tpu.dimension_semantics<parallel>], iteration_bounds = array<i64: 4, 1>, scalar_prefetch = 0 : i64, scratch_operands = 0 : i64, tpu.core_type = #tpu.core_type<tc>, window_params = [{transform_indices = @transform_0, window_bounds = array<i64: 1, 8, 512>}, {transform_indices = @transform_1, window_bounds = array<i64: 1, 512, 128>}, {pipeline_mode = #tpu.pipeline_mode<synchronous>, transform_indices = @transform_2, window_bounds = array<i64: 1, 128>}, {transform_indices = @transform_3, window_bounds = array<i64: 1, 8, 128>}]} {
    %c0 = arith.constant 0 : index
    %c0_0 = arith.constant 0 : index
    %c0_1 = arith.constant 0 : index
    %0 = vector.load %arg2[%c0, %c0_0, %c0_1] : memref<1x8x512xbf16, #tpu.memory_space<vmem>>, vector<1x8x512xbf16>
    %1 = vector.shape_cast %0 : vector<1x8x512xbf16> to vector<8x512xbf16>
    %c0_2 = arith.constant 0 : index
    %c0_3 = arith.constant 0 : index
    %c0_4 = arith.constant 0 : index
    %2 = vector.load %arg3[%c0_2, %c0_3, %c0_4] : memref<1x512x128xbf16, #tpu.memory_space<vmem>>, vector<1x512x128xbf16>
    %3 = vector.shape_cast %2 : vector<1x512x128xbf16> to vector<512x128xbf16>
    %cst = arith.constant dense<0.000000e+00> : vector<8x128xf32>
    %4 = tpu.matmul %1, %3, %cst {dimension_numbers = #tpu.dot_dimension_numbers<[1], [0], [0], [1], [0, 0, 1, 1], [], []>} : vector<8x512xbf16>, vector<512x128xbf16>, vector<8x128xf32> -> vector<8x128xf32>
    %c0_5 = arith.constant 0 : index
    %c0_6 = arith.constant 0 : index
    %5 = vector.load %arg4[%c0_5, %c0_6] : memref<1x128xf32, #tpu.memory_space<vmem>>, vector<1x128xf32>
    %6 = vector.broadcast %5 : vector<1x128xf32> to vector<8x128xf32>
    %7 = arith.addf %4, %6 : vector<8x128xf32>
    %cst_7 = arith.constant 0.000000e+00 : f32
    %8 = vector.broadcast %cst_7 : f32 to vector<8x128xf32>
    %9 = arith.maximumf %7, %8 : vector<8x128xf32>
    %10 = arith.truncf %9 : vector<8x128xf32> to vector<8x128xbf16>
    %c0_8 = arith.constant 0 : index
    %c0_9 = arith.constant 0 : index
    %c0_10 = arith.constant 0 : index
    %11 = vector.load %arg5[%c0_8, %c0_9, %c0_10] : memref<1x8x128xbf16, #tpu.memory_space<vmem>>, vector<1x8x128xbf16>
    %12 = vector.shape_cast %11 : vector<1x8x128xbf16> to vector<8x128xbf16>
    %13 = vector.shape_cast %10 : vector<8x128xbf16> to vector<1x8x128xbf16>
    tpu.vector_store %arg5[%c0_8, %c0_9, %c0_10], %13 {strides = array<i32>} : memref<1x8x128xbf16, #tpu.memory_space<vmem>>, vector<1x8x128xbf16>,
    return
  }
  func.func @transform_0(%arg0: i32, %arg1: i32) -> (i32, i32, i32) {
    %c0_i32 = arith.constant 0 : i32
    %c0_i32_0 = arith.constant 0 : i32
    return %arg0, %arg1, %c0_i32 : i32, i32, i32
  }
  func.func @transform_1(%arg0: i32, %arg1: i32) -> (i32, i32, i32) {
    %c0_i32 = arith.constant 0 : i32
    %c0_i32_0 = arith.constant 0 : i32
    %c0_i32_1 = arith.constant 0 : i32
    return %arg0, %c0_i32, %c0_i32_0 : i32, i32, i32
  }
  func.func @transform_2(%arg0: i32, %arg1: i32) -> (i32, i32) {
    %c0_i32 = arith.constant 0 : i32
    %c0_i32_0 = arith.constant 0 : i32
    %c0_i32_1 = arith.constant 0 : i32
    return %c0_i32, %c0_i32_0 : i32, i32
  }
  func.func @transform_3(%arg0: i32, %arg1: i32) -> (i32, i32, i32) {
    %c0_i32 = arith.constant 0 : i32
    %c0_i32_0 = arith.constant 0 : i32
    return %arg0, %arg1, %c0_i32 : i32, i32, i32
  }
}

module attributes {stable_mosaic.version = 11 : i64} {
  func.func @_fused_matmul_kernel(%arg0: i32, %arg1: i32, %arg2: memref<1x32x512xbf16, #tpu.memory_space<vmem>>, %arg3: memref<1x512x128xbf16, #tpu.memory_space<vmem>>, %arg4: memref<1x128xf32, #tpu.memory_space<vmem>>, %arg5: memref<1x32x128xbf16, #tpu.memory_space<vmem>>) attributes {dimension_semantics = [#tpu.dimension_semantics<parallel>, #tpu.dimension_semantics<parallel>], iteration_bounds = array<i64: 4, 1>, scalar_prefetch = 0 : i64, scratch_operands = 0 : i64, tpu.core_type = #tpu.core_type<tc>, window_params = [{transform_indices = @transform_0, window_bounds = array<i64: 1, 32, 512>}, {transform_indices = @transform_1, window_bounds = array<i64: 1, 512, 128>}, {pipeline_mode = #tpu.pipeline_mode<synchronous>, transform_indices = @transform_2, window_bounds = array<i64: 1, 128>}, {transform_indices = @transform_3, window_bounds = array<i64: 1, 32, 128>}]} {
    %c0 = arith.constant 0 : index
    %c0_0 = arith.constant 0 : index
    %c0_1 = arith.constant 0 : index
    %0 = vector.load %arg2[%c0, %c0_0, %c0_1] : memref<1x32x512xbf16, #tpu.memory_space<vmem>>, vector<1x32x512xbf16>
    %1 = vector.shape_cast %0 : vector<1x32x512xbf16> to vector<32x512xbf16>
    %c0_2 = arith.constant 0 : index
    %c0_3 = arith.constant 0 : index
    %c0_4 = arith.constant 0 : index
    %2 = vector.load %arg3[%c0_2, %c0_3, %c0_4] : memref<1x512x128xbf16, #tpu.memory_space<vmem>>, vector<1x512x128xbf16>
    %3 = vector.shape_cast %2 : vector<1x512x128xbf16> to vector<512x128xbf16>
    %cst = arith.constant dense<0.000000e+00> : vector<32x128xf32>
    %4 = tpu.matmul %1, %3, %cst {dimension_numbers = #tpu.dot_dimension_numbers<[1], [0], [0], [1], [0, 0, 1, 1], [], []>} : vector<32x512xbf16>, vector<512x128xbf16>, vector<32x128xf32> -> vector<32x128xf32>
    %c0_5 = arith.constant 0 : index
    %c0_6 = arith.constant 0 : index
    %5 = vector.load %arg4[%c0_5, %c0_6] : memref<1x128xf32, #tpu.memory_space<vmem>>, vector<1x128xf32>
    %6 = vector.broadcast %5 : vector<1x128xf32> to vector<32x128xf32>
    %7 = arith.addf %4, %6 : vector<32x128xf32>
    %cst_7 = arith.constant 0.000000e+00 : f32
    %8 = vector.broadcast %cst_7 : f32 to vector<32x128xf32>
    %9 = arith.maximumf %7, %8 : vector<32x128xf32>
    %10 = arith.truncf %9 : vector<32x128xf32> to vector<32x128xbf16>
    %c0_8 = arith.constant 0 : index
    %c0_9 = arith.constant 0 : index
    %c0_10 = arith.constant 0 : index
    %11 = vector.load %arg5[%c0_8, %c0_9, %c0_10] : memref<1x32x128xbf16, #tpu.memory_space<vmem>>, vector<1x32x128xbf16>
    %12 = vector.shape_cast %11 : vector<1x32x128xbf16> to vector<32x128xbf16>
    %13 = vector.shape_cast %10 : vector<32x128xbf16> to vector<1x32x128xbf16>
    tpu.vector_store %arg5[%c0_8, %c0_9, %c0_10], %13 {strides = array<i32>} : memref<1x32x128xbf16, #tpu.memory_space<vmem>>, vector<1x32x128xbf16>,
    return
  }
  func.func @transform_0(%arg0: i32, %arg1: i32) -> (i32, i32, i32) {
    %c0_i32 = arith.constant 0 : i32
    %c0_i32_0 = arith.constant 0 : i32
    return %arg0, %arg1, %c0_i32 : i32, i32, i32
  }
  func.func @transform_1(%arg0: i32, %arg1: i32) -> (i32, i32, i32) {
    %c0_i32 = arith.constant 0 : i32
    %c0_i32_0 = arith.constant 0 : i32
    %c0_i32_1 = arith.constant 0 : i32
    return %arg0, %c0_i32, %c0_i32_0 : i32, i32, i32
  }
  func.func @transform_2(%arg0: i32, %arg1: i32) -> (i32, i32) {
    %c0_i32 = arith.constant 0 : i32
    %c0_i32_0 = arith.constant 0 : i32
    %c0_i32_1 = arith.constant 0 : i32
    return %c0_i32, %c0_i32_0 : i32, i32
  }
  func.func @transform_3(%arg0: i32, %arg1: i32) -> (i32, i32, i32) {
    %c0_i32 = arith.constant 0 : i32
    %c0_i32_0 = arith.constant 0 : i32
    return %arg0, %arg1, %c0_i32 : i32, i32, i32
  }
}

module attributes {stable_mosaic.version = 11 : i64} {
  func.func @_fused_matmul_kernel(%arg0: i32, %arg1: i32, %arg2: memref<1x128x512xbf16, #tpu.memory_space<vmem>>, %arg3: memref<1x512x128xbf16, #tpu.memory_space<vmem>>, %arg4: memref<1x128xf32, #tpu.memory_space<vmem>>, %arg5: memref<1x128x128xbf16, #tpu.memory_space<vmem>>) attributes {dimension_semantics = [#tpu.dimension_semantics<parallel>, #tpu.dimension_semantics<parallel>], iteration_bounds = array<i64: 4, 1>, scalar_prefetch = 0 : i64, scratch_operands = 0 : i64, tpu.core_type = #tpu.core_type<tc>, window_params = [{transform_indices = @transform_0, window_bounds = array<i64: 1, 128, 512>}, {transform_indices = @transform_1, window_bounds = array<i64: 1, 512, 128>}, {pipeline_mode = #tpu.pipeline_mode<synchronous>, transform_indices = @transform_2, window_bounds = array<i64: 1, 128>}, {transform_indices = @transform_3, window_bounds = array<i64: 1, 128, 128>}]} {
    %c0 = arith.constant 0 : index
    %c0_0 = arith.constant 0 : index
    %c0_1 = arith.constant 0 : index
    %0 = vector.load %arg2[%c0, %c0_0, %c0_1] : memref<1x128x512xbf16, #tpu.memory_space<vmem>>, vector<1x128x512xbf16>
    %1 = vector.shape_cast %0 : vector<1x128x512xbf16> to vector<128x512xbf16>
    %c0_2 = arith.constant 0 : index
    %c0_3 = arith.constant 0 : index
    %c0_4 = arith.constant 0 : index
    %2 = vector.load %arg3[%c0_2, %c0_3, %c0_4] : memref<1x512x128xbf16, #tpu.memory_space<vmem>>, vector<1x512x128xbf16>
    %3 = vector.shape_cast %2 : vector<1x512x128xbf16> to vector<512x128xbf16>
    %cst = arith.constant dense<0.000000e+00> : vector<128x128xf32>
    %4 = tpu.matmul %1, %3, %cst {dimension_numbers = #tpu.dot_dimension_numbers<[1], [0], [0], [1], [0, 0, 1, 1], [], []>} : vector<128x512xbf16>, vector<512x128xbf16>, vector<128x128xf32> -> vector<128x128xf32>
    %c0_5 = arith.constant 0 : index
    %c0_6 = arith.constant 0 : index
    %5 = vector.load %arg4[%c0_5, %c0_6] : memref<1x128xf32, #tpu.memory_space<vmem>>, vector<1x128xf32>
    %6 = vector.broadcast %5 : vector<1x128xf32> to vector<128x128xf32>
    %7 = arith.addf %4, %6 : vector<128x128xf32>
    %cst_7 = arith.constant 0.000000e+00 : f32
    %8 = vector.broadcast %cst_7 : f32 to vector<128x128xf32>
    %9 = arith.maximumf %7, %8 : vector<128x128xf32>
    %10 = arith.truncf %9 : vector<128x128xf32> to vector<128x128xbf16>
    %c0_8 = arith.constant 0 : index
    %c0_9 = arith.constant 0 : index
    %c0_10 = arith.constant 0 : index
    %11 = vector.load %arg5[%c0_8, %c0_9, %c0_10] : memref<1x128x128xbf16, #tpu.memory_space<vmem>>, vector<1x128x128xbf16>
    %12 = vector.shape_cast %11 : vector<1x128x128xbf16> to vector<128x128xbf16>
    %13 = vector.shape_cast %10 : vector<128x128xbf16> to vector<1x128x128xbf16>
    tpu.vector_store %arg5[%c0_8, %c0_9, %c0_10], %13 {strides = array<i32>} : memref<1x128x128xbf16, #tpu.memory_space<vmem>>, vector<1x128x128xbf16>,
    return
  }
  func.func @transform_0(%arg0: i32, %arg1: i32) -> (i32, i32, i32) {
    %c0_i32 = arith.constant 0 : i32
    %c0_i32_0 = arith.constant 0 : i32
    return %arg0, %arg1, %c0_i32 : i32, i32, i32
  }
  func.func @transform_1(%arg0: i32, %arg1: i32) -> (i32, i32, i32) {
    %c0_i32 = arith.constant 0 : i32
    %c0_i32_0 = arith.constant 0 : i32
    %c0_i32_1 = arith.constant 0 : i32
    return %arg0, %c0_i32, %c0_i32_0 : i32, i32, i32
  }
  func.func @transform_2(%arg0: i32, %arg1: i32) -> (i32, i32) {
    %c0_i32 = arith.constant 0 : i32
    %c0_i32_0 = arith.constant 0 : i32
    %c0_i32_1 = arith.constant 0 : i32
    return %c0_i32, %c0_i32_0 : i32, i32
  }
  func.func @transform_3(%arg0: i32, %arg1: i32) -> (i32, i32, i32) {
    %c0_i32 = arith.constant 0 : i32
    %c0_i32_0 = arith.constant 0 : i32
    return %arg0, %arg1, %c0_i32 : i32, i32, i32
  }
}

module attributes {stable_mosaic.version = 11 : i64} {
  func.func @_fused_matmul_kernel(%arg0: i32, %arg1: i32, %arg2: memref<1x512x256xbf16, #tpu.memory_space<vmem>>, %arg3: memref<1x256x128xbf16, #tpu.memory_space<vmem>>, %arg4: memref<1x128xf32, #tpu.memory_space<vmem>>, %arg5: memref<1x512x128xbf16, #tpu.memory_space<vmem>>) attributes {dimension_semantics = [#tpu.dimension_semantics<parallel>, #tpu.dimension_semantics<parallel>], iteration_bounds = array<i64: 4, 1>, scalar_prefetch = 0 : i64, scratch_operands = 0 : i64, tpu.core_type = #tpu.core_type<tc>, window_params = [{transform_indices = @transform_0, window_bounds = array<i64: 1, 512, 256>}, {transform_indices = @transform_1, window_bounds = array<i64: 1, 256, 128>}, {pipeline_mode = #tpu.pipeline_mode<synchronous>, transform_indices = @transform_2, window_bounds = array<i64: 1, 128>}, {transform_indices = @transform_3, window_bounds = array<i64: 1, 512, 128>}]} {
    %c0 = arith.constant 0 : index
    %c0_0 = arith.constant 0 : index
    %c0_1 = arith.constant 0 : index
    %0 = vector.load %arg2[%c0, %c0_0, %c0_1] : memref<1x512x256xbf16, #tpu.memory_space<vmem>>, vector<1x512x256xbf16>
    %1 = vector.shape_cast %0 : vector<1x512x256xbf16> to vector<512x256xbf16>
    %c0_2 = arith.constant 0 : index
    %c0_3 = arith.constant 0 : index
    %c0_4 = arith.constant 0 : index
    %2 = vector.load %arg3[%c0_2, %c0_3, %c0_4] : memref<1x256x128xbf16, #tpu.memory_space<vmem>>, vector<1x256x128xbf16>
    %3 = vector.shape_cast %2 : vector<1x256x128xbf16> to vector<256x128xbf16>
    %cst = arith.constant dense<0.000000e+00> : vector<512x128xf32>
    %4 = tpu.matmul %1, %3, %cst {dimension_numbers = #tpu.dot_dimension_numbers<[1], [0], [0], [1], [0, 0, 1, 1], [], []>} : vector<512x256xbf16>, vector<256x128xbf16>, vector<512x128xf32> -> vector<512x128xf32>
    %c0_5 = arith.constant 0 : index
    %c0_6 = arith.constant 0 : index
    %5 = vector.load %arg4[%c0_5, %c0_6] : memref<1x128xf32, #tpu.memory_space<vmem>>, vector<1x128xf32>
    %6 = vector.broadcast %5 : vector<1x128xf32> to vector<512x128xf32>
    %7 = arith.addf %4, %6 : vector<512x128xf32>
    %cst_7 = arith.constant 0.000000e+00 : f32
    %8 = vector.broadcast %cst_7 : f32 to vector<512x128xf32>
    %9 = arith.maximumf %7, %8 : vector<512x128xf32>
    %10 = arith.truncf %9 : vector<512x128xf32> to vector<512x128xbf16>
    %c0_8 = arith.constant 0 : index
    %c0_9 = arith.constant 0 : index
    %c0_10 = arith.constant 0 : index
    %11 = vector.load %arg5[%c0_8, %c0_9, %c0_10] : memref<1x512x128xbf16, #tpu.memory_space<vmem>>, vector<1x512x128xbf16>
    %12 = vector.shape_cast %11 : vector<1x512x128xbf16> to vector<512x128xbf16>
    %13 = vector.shape_cast %10 : vector<512x128xbf16> to vector<1x512x128xbf16>
    tpu.vector_store %arg5[%c0_8, %c0_9, %c0_10], %13 {strides = array<i32>} : memref<1x512x128xbf16, #tpu.memory_space<vmem>>, vector<1x512x128xbf16>,
    return
  }
  func.func @transform_0(%arg0: i32, %arg1: i32) -> (i32, i32, i32) {
    %c0_i32 = arith.constant 0 : i32
    %c0_i32_0 = arith.constant 0 : i32
    return %arg0, %arg1, %c0_i32 : i32, i32, i32
  }
  func.func @transform_1(%arg0: i32, %arg1: i32) -> (i32, i32, i32) {
    %c0_i32 = arith.constant 0 : i32
    %c0_i32_0 = arith.constant 0 : i32
    %c0_i32_1 = arith.constant 0 : i32
    return %arg0, %c0_i32, %c0_i32_0 : i32, i32, i32
  }
  func.func @transform_2(%arg0: i32, %arg1: i32) -> (i32, i32) {
    %c0_i32 = arith.constant 0 : i32
    %c0_i32_0 = arith.constant 0 : i32
    %c0_i32_1 = arith.constant 0 : i32
    return %c0_i32, %c0_i32_0 : i32, i32
  }
  func.func @transform_3(%arg0: i32, %arg1: i32) -> (i32, i32, i32) {
    %c0_i32 = arith.constant 0 : i32
    %c0_i32_0 = arith.constant 0 : i32
    return %arg0, %arg1, %c0_i32 : i32, i32, i32
  }
}

module attributes {stable_mosaic.version = 11 : i64} {
  func.func @_fused_matmul_kernel(%arg0: i32, %arg1: i32, %arg2: memref<1x512x128xbf16, #tpu.memory_space<vmem>>, %arg3: memref<1x128x128xbf16, #tpu.memory_space<vmem>>, %arg4: memref<1x128xf32, #tpu.memory_space<vmem>>, %arg5: memref<1x512x128xbf16, #tpu.memory_space<vmem>>) attributes {dimension_semantics = [#tpu.dimension_semantics<parallel>, #tpu.dimension_semantics<parallel>], iteration_bounds = array<i64: 4, 4>, scalar_prefetch = 0 : i64, scratch_operands = 0 : i64, tpu.core_type = #tpu.core_type<tc>, window_params = [{transform_indices = @transform_0, window_bounds = array<i64: 1, 512, 128>}, {transform_indices = @transform_1, window_bounds = array<i64: 1, 128, 128>}, {pipeline_mode = #tpu.pipeline_mode<synchronous>, transform_indices = @transform_2, window_bounds = array<i64: 1, 128>}, {transform_indices = @transform_3, window_bounds = array<i64: 1, 512, 128>}]} {
    %c0 = arith.constant 0 : index
    %c0_0 = arith.constant 0 : index
    %c0_1 = arith.constant 0 : index
    %0 = vector.load %arg2[%c0, %c0_0, %c0_1] : memref<1x512x128xbf16, #tpu.memory_space<vmem>>, vector<1x512x128xbf16>
    %1 = vector.shape_cast %0 : vector<1x512x128xbf16> to vector<512x128xbf16>
    %c0_2 = arith.constant 0 : index
    %c0_3 = arith.constant 0 : index
    %c0_4 = arith.constant 0 : index
    %2 = vector.load %arg3[%c0_2, %c0_3, %c0_4] : memref<1x128x128xbf16, #tpu.memory_space<vmem>>, vector<1x128x128xbf16>
    %3 = vector.shape_cast %2 : vector<1x128x128xbf16> to vector<128x128xbf16>
    %cst = arith.constant dense<0.000000e+00> : vector<512x128xf32>
    %4 = tpu.matmul %1, %3, %cst {dimension_numbers = #tpu.dot_dimension_numbers<[1], [0], [0], [1], [0, 0, 1, 1], [], []>} : vector<512x128xbf16>, vector<128x128xbf16>, vector<512x128xf32> -> vector<512x128xf32>
    %c0_5 = arith.constant 0 : index
    %c0_6 = arith.constant 0 : index
    %5 = vector.load %arg4[%c0_5, %c0_6] : memref<1x128xf32, #tpu.memory_space<vmem>>, vector<1x128xf32>
    %6 = vector.broadcast %5 : vector<1x128xf32> to vector<512x128xf32>
    %7 = arith.addf %4, %6 : vector<512x128xf32>
    %cst_7 = arith.constant 0.000000e+00 : f32
    %8 = vector.broadcast %cst_7 : f32 to vector<512x128xf32>
    %9 = arith.maximumf %7, %8 : vector<512x128xf32>
    %10 = arith.truncf %9 : vector<512x128xf32> to vector<512x128xbf16>
    %c0_8 = arith.constant 0 : index
    %c0_9 = arith.constant 0 : index
    %c0_10 = arith.constant 0 : index
    %11 = vector.load %arg5[%c0_8, %c0_9, %c0_10] : memref<1x512x128xbf16, #tpu.memory_space<vmem>>, vector<1x512x128xbf16>
    %12 = vector.shape_cast %11 : vector<1x512x128xbf16> to vector<512x128xbf16>
    %13 = vector.shape_cast %10 : vector<512x128xbf16> to vector<1x512x128xbf16>
    tpu.vector_store %arg5[%c0_8, %c0_9, %c0_10], %13 {strides = array<i32>} : memref<1x512x128xbf16, #tpu.memory_space<vmem>>, vector<1x512x128xbf16>,
    return
  }
  func.func @transform_0(%arg0: i32, %arg1: i32) -> (i32, i32, i32) {
    %c0_i32 = arith.constant 0 : i32
    %c0_i32_0 = arith.constant 0 : i32
    return %arg0, %arg1, %c0_i32 : i32, i32, i32
  }
  func.func @transform_1(%arg0: i32, %arg1: i32) -> (i32, i32, i32) {
    %c0_i32 = arith.constant 0 : i32
    %c0_i32_0 = arith.constant 0 : i32
    %c0_i32_1 = arith.constant 0 : i32
    return %arg0, %c0_i32, %c0_i32_0 : i32, i32, i32
  }
  func.func @transform_2(%arg0: i32, %arg1: i32) -> (i32, i32) {
    %c0_i32 = arith.constant 0 : i32
    %c0_i32_0 = arith.constant 0 : i32
    %c0_i32_1 = arith.constant 0 : i32
    return %c0_i32, %c0_i32_0 : i32, i32
  }
  func.func @transform_3(%arg0: i32, %arg1: i32) -> (i32, i32, i32) {
    %c0_i32 = arith.constant 0 : i32
    %c0_i32_0 = arith.constant 0 : i32
    return %arg0, %arg1, %c0_i32 : i32, i32, i32
  }
}

module attributes {stable_mosaic.version = 11 : i64} {
  func.func @_fused_matmul_kernel(%arg0: i32, %arg1: i32, %arg2: memref<1x512x128xbf16, #tpu.memory_space<vmem>>, %arg3: memref<1x128x128xbf16, #tpu.memory_space<vmem>>, %arg4: memref<1x128xf32, #tpu.memory_space<vmem>>, %arg5: memref<1x512x128xbf16, #tpu.memory_space<vmem>>) attributes {dimension_semantics = [#tpu.dimension_semantics<parallel>, #tpu.dimension_semantics<parallel>], iteration_bounds = array<i64: 4, 16>, scalar_prefetch = 0 : i64, scratch_operands = 0 : i64, tpu.core_type = #tpu.core_type<tc>, window_params = [{transform_indices = @transform_0, window_bounds = array<i64: 1, 512, 128>}, {transform_indices = @transform_1, window_bounds = array<i64: 1, 128, 128>}, {pipeline_mode = #tpu.pipeline_mode<synchronous>, transform_indices = @transform_2, window_bounds = array<i64: 1, 128>}, {transform_indices = @transform_3, window_bounds = array<i64: 1, 512, 128>}]} {
    %c0 = arith.constant 0 : index
    %c0_0 = arith.constant 0 : index
    %c0_1 = arith.constant 0 : index
    %0 = vector.load %arg2[%c0, %c0_0, %c0_1] : memref<1x512x128xbf16, #tpu.memory_space<vmem>>, vector<1x512x128xbf16>
    %1 = vector.shape_cast %0 : vector<1x512x128xbf16> to vector<512x128xbf16>
    %c0_2 = arith.constant 0 : index
    %c0_3 = arith.constant 0 : index
    %c0_4 = arith.constant 0 : index
    %2 = vector.load %arg3[%c0_2, %c0_3, %c0_4] : memref<1x128x128xbf16, #tpu.memory_space<vmem>>, vector<1x128x128xbf16>
    %3 = vector.shape_cast %2 : vector<1x128x128xbf16> to vector<128x128xbf16>
    %cst = arith.constant dense<0.000000e+00> : vector<512x128xf32>
    %4 = tpu.matmul %1, %3, %cst {dimension_numbers = #tpu.dot_dimension_numbers<[1], [0], [0], [1], [0, 0, 1, 1], [], []>} : vector<512x128xbf16>, vector<128x128xbf16>, vector<512x128xf32> -> vector<512x128xf32>
    %c0_5 = arith.constant 0 : index
    %c0_6 = arith.constant 0 : index
    %5 = vector.load %arg4[%c0_5, %c0_6] : memref<1x128xf32, #tpu.memory_space<vmem>>, vector<1x128xf32>
    %6 = vector.broadcast %5 : vector<1x128xf32> to vector<512x128xf32>
    %7 = arith.addf %4, %6 : vector<512x128xf32>
    %8 = math.tanh %7 : vector<512x128xf32>
    %9 = arith.truncf %8 : vector<512x128xf32> to vector<512x128xbf16>
    %c0_7 = arith.constant 0 : index
    %c0_8 = arith.constant 0 : index
    %c0_9 = arith.constant 0 : index
    %10 = vector.load %arg5[%c0_7, %c0_8, %c0_9] : memref<1x512x128xbf16, #tpu.memory_space<vmem>>, vector<1x512x128xbf16>
    %11 = vector.shape_cast %10 : vector<1x512x128xbf16> to vector<512x128xbf16>
    %12 = vector.shape_cast %9 : vector<512x128xbf16> to vector<1x512x128xbf16>
    tpu.vector_store %arg5[%c0_7, %c0_8, %c0_9], %12 {strides = array<i32>} : memref<1x512x128xbf16, #tpu.memory_space<vmem>>, vector<1x512x128xbf16>,
    return
  }
  func.func @transform_0(%arg0: i32, %arg1: i32) -> (i32, i32, i32) {
    %c0_i32 = arith.constant 0 : i32
    %c0_i32_0 = arith.constant 0 : i32
    return %arg0, %arg1, %c0_i32 : i32, i32, i32
  }
  func.func @transform_1(%arg0: i32, %arg1: i32) -> (i32, i32, i32) {
    %c0_i32 = arith.constant 0 : i32
    %c0_i32_0 = arith.constant 0 : i32
    %c0_i32_1 = arith.constant 0 : i32
    return %arg0, %c0_i32, %c0_i32_0 : i32, i32, i32
  }
  func.func @transform_2(%arg0: i32, %arg1: i32) -> (i32, i32) {
    %c0_i32 = arith.constant 0 : i32
    %c0_i32_0 = arith.constant 0 : i32
    %c0_i32_1 = arith.constant 0 : i32
    return %c0_i32, %c0_i32_0 : i32, i32
  }
  func.func @transform_3(%arg0: i32, %arg1: i32) -> (i32, i32, i32) {
    %c0_i32 = arith.constant 0 : i32
    %c0_i32_0 = arith.constant 0 : i32
    return %arg0, %arg1, %c0_i32 : i32, i32, i32
  }
}

</mosaic_0001>

<llo_original>
// kernel: _lambda_.14
$region0: #{_lambda_.14}
  #allocation0 [shape = 'u32[]', space=smem, size = 0x4, offset = 0x4, fixed_abs, tag = 'smem constant byte address 0x4 - core index']
  #allocation1 [shape = 'u32[72,128]{1,0:T(1,128)}', space=vmem, size = 0x9000, scoped, tag = 'internal scratch']
  %s0 = inlined_call_operand.vmem [shape: bf16[1,8192,128], index: 0, kind: input, shape index: {}]
  %s1 = inlined_call_operand.vmem [shape: bf16[1,128,128], index: 1, kind: input, shape index: {}]
  %s2 = inlined_call_operand.vmem [shape: f32[1,128], index: 2, kind: input, shape index: {}]
  %s3 = inlined_call_operand.vmem [shape: bf16[1,8192,128], index: 3, kind: output, shape index: {}]
  %s4 = sld [smem:[#allocation0]]
  $region45: #{_lambda_.14} parent=0
    _
  %s6 = ssub.s32 1, %s4
  %s7 = scalar_select 0, %s6, %s4
  loop: start=0, step=1, limit=18
  $region2: #{_lambda_.14} parent=0 // loop_pre_header
    _
  $region3: #{_lambda_.14} parent=0 // loop_header
    %s9 = sphi 0, %s13
    %p10 = scmp.ge.s32.totalorder %s9, 18
    %s16 = sphi 0, %s28
    %s17 = sphi 0, %s24
    %s18 = sphi 0, %s16
    %s19 = sphi 0, %s17
    %s20 = sphi 0, %s18
    %s21 = sphi 0, %s19
    %s33 = sphi 0, %s35
    %s36 = sphi 0, %s33
    %s37 = sphi 0, %s36
    %s53 = sphi 0, %s37
    %s59 = sphi 0, %s61
    %s62 = sphi 0, %s59
    %s63 = sphi 0, %s62
    %s79 = sphi 0, %s63
    %s83 = sphi 0, %s83
    %s85 = sphi 0, %s83
    %s86 = sphi 0, %s85
    %s100 = sphi 0, %s86
    %s108 = sphi 0, %s110
    %s111 = sphi 0, %s108
    %s112 = sphi 0, %s111
    %s128 = sphi 0, %s112
  $region4: #{_lambda_.14} parent=0 // loop_header_branch
    %12 = sbr.rel (%p10) target = $region8
  $region5: #{_lambda_.14} parent=0 // loop_body
    %s14 = ssub.s32 %s9, 1
    %s15 = ssub.s32 %s9, 2
    %s22 = sadd.s32 1, %s17
    %p23 = scmp.ge.s32.totalorder %s22, 16
    %s24 = scalar_select %p23, 0, %s22
    %s25 = sadd.s32 1, %s16
    %s26 = scalar_select %p23, %s25, %s16
    %p27 = scmp.ge.s32.totalorder %s26, 1
    %s28 = scalar_select %p27, 0, %s26
    %s29 = ssub.s32 %s16, %s28
    %s30 = ssub.s32 %s17, %s24
    %s31 = sor.u32 %s29, %s30
    %p32 = scmp.eq.s32.totalorder %s31, 0
    %s34 = sadd.s32 %s33, 1
    %s35 = scalar_select %p32, %s33, %s34
    %p38 = pneg %p32
    %p39 = scmp.eq.s32.totalorder %s9, 15
    %p40 = por %p38, %p39
    %p41 = scmp.ne.s32.totalorder %s33, %s36
    %p42 = scmp.eq.s32.totalorder %s9, 0
    %p43 = por %p41, %p42
    %p44 = scmp.ne.s32.totalorder %s33, %s36
    %p45 = scmp.eq.s32.totalorder %s14, 15
    %p46 = por %p44, %p45
    %p47 = scmp.ne.s32.totalorder %s36, %s37
    %p48 = scmp.eq.s32.totalorder %s14, 0
    %p49 = por %p47, %p48
    %p50 = scmp.ne.s32.totalorder %s36, %s37
    %p51 = scmp.eq.s32.totalorder %s15, 15
    %p52 = por %p50, %p51
    %p54 = scmp.ne.s32.totalorder %s37, %s53
    %p55 = scmp.eq.s32.totalorder %s15, 0
    %p56 = por %p54, %p55
    %s57 = ssub.s32 %s16, %s28
    %p58 = scmp.eq.s32.totalorder %s57, 0
    %s60 = sadd.s32 %s59, 1
    %s61 = scalar_select %p58, %s59, %s60
    %p64 = pneg %p58
    %p65 = scmp.eq.s32.totalorder %s9, 15
    %p66 = por %p64, %p65
    %p67 = scmp.ne.s32.totalorder %s59, %s62
    %p68 = scmp.eq.s32.totalorder %s9, 0
    %p69 = por %p67, %p68
    %p70 = scmp.ne.s32.totalorder %s59, %s62
    %p71 = scmp.eq.s32.totalorder %s14, 15
    %p72 = por %p70, %p71
    %p73 = scmp.ne.s32.totalorder %s62, %s63
    %p74 = scmp.eq.s32.totalorder %s14, 0
    %p75 = por %p73, %p74
    %p76 = scmp.ne.s32.totalorder %s62, %s63
    %p77 = scmp.eq.s32.totalorder %s15, 15
    %p78 = por %p76, %p77
    %p80 = scmp.ne.s32.totalorder %s63, %s79
    %p81 = scmp.eq.s32.totalorder %s15, 0
    %p82 = por %p80, %p81
    %s84 = sadd.s32 %s83, 1
    %p87 = scmp.eq.s32.totalorder %s9, 15
    %p88 = scmp.ne.s32.totalorder %s83, %s85
    %p89 = scmp.eq.s32.totalorder %s9, 0
    %p90 = por %p88, %p89
    %p91 = scmp.ne.s32.totalorder %s83, %s85
    %p92 = scmp.eq.s32.totalorder %s14, 15
    %p93 = por %p91, %p92
    %p94 = scmp.ne.s32.totalorder %s85, %s86
    %p95 = scmp.eq.s32.totalorder %s14, 0
    %p96 = por %p94, %p95
    %p97 = scmp.ne.s32.totalorder %s85, %s86
    %p98 = scmp.eq.s32.totalorder %s15, 15
    %p99 = por %p97, %p98
    %p101 = scmp.ne.s32.totalorder %s86, %s100
    %p102 = scmp.eq.s32.totalorder %s15, 0
    %p103 = por %p101, %p102
    %s104 = ssub.s32 %s16, %s28
    %s105 = ssub.s32 %s17, %s24
    %s106 = sor.u32 %s104, %s105
    %p107 = scmp.eq.s32.totalorder %s106, 0
    %s109 = sadd.s32 %s108, 1
    %s110 = scalar_select %p107, %s108, %s109
    %p113 = pneg %p107
    %p114 = scmp.eq.s32.totalorder %s9, 15
    %p115 = por %p113, %p114
    %p116 = scmp.ne.s32.totalorder %s108, %s111
    %p117 = scmp.eq.s32.totalorder %s9, 0
    %p118 = por %p116, %p117
    %p119 = scmp.ne.s32.totalorder %s108, %s111
    %p120 = scmp.eq.s32.totalorder %s14, 15
    %p121 = por %p119, %p120
    %p122 = scmp.ne.s32.totalorder %s111, %s112
    %p123 = scmp.eq.s32.totalorder %s14, 0
    %p124 = por %p122, %p123
    %p125 = scmp.ne.s32.totalorder %s111, %s112
    %p126 = scmp.eq.s32.totalorder %s15, 15
    %p127 = por %p125, %p126
    %p129 = scmp.ne.s32.totalorder %s112, %s128
    %p130 = scmp.eq.s32.totalorder %s15, 0
    %p131 = por %p129, %p130
    %p132 = scmp.le.s32.totalorder 1, %s9
    %p133 = scmp.lt.s32.totalorder %s9, 17
    %p134 = pnand %p132, %p133
    %p135 = pneg %p134
    // Predicated region
    $region9: #{_lambda_.14} parent=5 // pred_check
      _
    $region10: #{_lambda_.14} parent=5 // pred_check_branch
      %137 = sbr.rel (%p134) target = $region12
    $region11: #{_lambda_.14} parent=5 // pred_region
      %s138 = ssub.s32 %s9, 1
      // Predicated region
      $region13: #{_lambda_.14} parent=11 // pred_check
        %p139 = pneg %p75
      $region14: #{_lambda_.14} parent=11 // pred_check_branch
        %141 = sbr.rel (%p139) target = $region16
      $region15: #{_lambda_.14} parent=11 // pred_region
        %p142 = scmp.lt.s32.totalorder %s18, 0
        %s143 = scalar_select %p142, %s18, 0
        %s144 = smul.addr %s143, 16
        %s145 = smul.addr %s144, 4
        %s146 = scalar_lea.vmem %s1, %s145
      $region16: #{_lambda_.14} parent=11 // pred_fallthru
        _
      // Predicated region
      $region17: #{_lambda_.14} parent=11 // pred_check
        %p147 = pneg %p96
      $region18: #{_lambda_.14} parent=11 // pred_check_branch
        %149 = sbr.rel (%p147) target = $region20
      $region19: #{_lambda_.14} parent=11 // pred_region
        _
      $region20: #{_lambda_.14} parent=11 // pred_fallthru
        _
    $region12: #{_lambda_.14} parent=5 // pred_fallthru
      _
    %p150 = scmp.lt.s32.totalorder %s9, 16
    // Predicated region
    $region21: #{_lambda_.14} parent=5 // pred_check
      %p151 = pneg %p150
    $region22: #{_lambda_.14} parent=5 // pred_check_branch
      %153 = sbr.rel (%p151) target = $region24
    $region23: #{_lambda_.14} parent=5 // pred_region
      // Predicated region
      $region25: #{_lambda_.14} parent=23 // pred_check
        %p154 = pneg %p43
      $region26: #{_lambda_.14} parent=23 // pred_check_branch
        %156 = sbr.rel (%p154) target = $region28
      $region27: #{_lambda_.14} parent=23 // pred_region
        %s157 = smul.u32 64, %s17
        %p158 = scmp.lt.s32.totalorder %s16, 0
        %s159 = scalar_select %p158, %s16, 0
        %p160 = scmp.lt.s32.totalorder %s157, 1023
        %s161 = scalar_select %p160, %s157, 1023
        %s162 = smul.addr %s159, 1024
        %s163 = sadd.s32 %s161, %s162
        %s164 = smul.addr %s163, 4
        %s165 = scalar_lea.vmem %s0, %s164
        %s166 = smul.u32 64, %s17
      $region28: #{_lambda_.14} parent=23 // pred_fallthru
        _
    $region24: #{_lambda_.14} parent=5 // pred_fallthru
      _
    %p167 = scmp.le.s32.totalorder 1, %s9
    %p168 = scmp.lt.s32.totalorder %s9, 17
    %p169 = pnand %p167, %p168
    %p170 = pneg %p169
    // Predicated region
    $region29: #{_lambda_.14} parent=5 // pred_check
      _
    $region30: #{_lambda_.14} parent=5 // pred_check_branch
      %172 = sbr.rel (%p169) target = $region32
    $region31: #{_lambda_.14} parent=5 // pred_region
      %s173 = ssub.s32 %s9, 1
      %s174 = smul.u32 64, %s19
      %p175 = scmp.lt.s32.totalorder %s18, 0
      %s176 = scalar_select %p175, %s18, 0
      %p177 = scmp.lt.s32.totalorder %s174, 1023
      %s178 = scalar_select %p177, %s174, 1023
      %s179 = smul.addr %s176, 1024
      %s180 = sadd.s32 %s178, %s179
      %s181 = smul.addr %s180, 4
      %s182 = scalar_lea.vmem %s0, %s181
      %p183 = pneg %p49
      %p184 = pneg %p46
      %p185 = scmp.lt.s32.totalorder %s18, 0
      %s186 = scalar_select %p185, %s18, 0
      %s187 = smul.addr %s186, 16
      %s188 = smul.addr %s187, 4
      %s189 = scalar_lea.vmem %s1, %s188
      %p190 = pneg %p75
      %p191 = pneg %p72
      %p192 = pneg %p96
      %p193 = pneg %p93
      %p194 = pneg %p124
      %p195 = pneg %p121
      %s196 = smul.u32 64, %s19
      %p197 = scmp.lt.s32.totalorder %s18, 0
      %s198 = scalar_select %p197, %s18, 0
      %p199 = scmp.lt.s32.totalorder %s196, 1023
      %s200 = scalar_select %p199, %s196, 1023
      %s201 = smul.addr %s198, 1024
      %s202 = sadd.s32 %s200, %s201
      %s203 = smul.addr %s202, 4
      %s204 = scalar_lea.vmem %s3, %s203
      %s205 = smul.u32 64, %s19
      %p206 = scmp.lt.s32.totalorder %s18, 0
      %s207 = scalar_select %p206, %s18, 0
      %p208 = scmp.lt.s32.totalorder %s205, 1023
      %s209 = scalar_select %p208, %s205, 1023
      %s210 = smul.addr %s207, 1024
      %s211 = sadd.s32 %s209, %s210
      %s212 = smul.addr %s211, 4
      %s213 = scalar_lea.vmem %s0, %s212
      %s214 = smul.u32 64, %s19
      %p215 = scmp.lt.s32.totalorder %s18, 0
      %s216 = scalar_select %p215, %s18, 0
      %s217 = smul.addr %s216, 16
      %s218 = smul.addr %s217, 4
      %s219 = scalar_lea.vmem %s1, %s218
      %s220 = smul.u32 64, %s19
      %p221 = scmp.lt.s32.totalorder %s18, 0
      %s222 = scalar_select %p221, %s18, 0
      %p223 = scmp.lt.s32.totalorder %s220, 1023
      %s224 = scalar_select %p223, %s220, 1023
      %s225 = smul.addr %s222, 1024
      %s226 = sadd.s32 %s224, %s225
      %s227 = smul.addr %s226, 4
      %s228 = scalar_lea.vmem %s3, %s227
      %s229 = smul.u32 64, %s19
      %v230 = vld [vmem:[%s213] sm:$0xf]
      %v231 = vld [vmem:[%s213 + $0x4] sm:$0xf]
      %v232 = vld [vmem:[%s213 + $0x8] sm:$0xf]
      %v233 = vld [vmem:[%s213 + $0xc] sm:$0xf]
      %v234 = vld [vmem:[%s213 + $0x10] sm:$0xf]
      %v235 = vld [vmem:[%s213 + $0x14] sm:$0xf]
      %v236 = vld [vmem:[%s213 + $0x18] sm:$0xf]
      %v237 = vld [vmem:[%s213 + $0x1c] sm:$0xf]
      %v238 = vld [vmem:[%s213 + $0x20] sm:$0xf]
      %v239 = vld [vmem:[%s213 + $0x24] sm:$0xf]
      %v240 = vld [vmem:[%s213 + $0x28] sm:$0xf]
      %v241 = vld [vmem:[%s213 + $0x2c] sm:$0xf]
      %v242 = vld [vmem:[%s213 + $0x30] sm:$0xf]
      %v243 = vld [vmem:[%s213 + $0x34] sm:$0xf]
      %v244 = vld [vmem:[%s213 + $0x38] sm:$0xf]
      %v245 = vld [vmem:[%s213 + $0x3c] sm:$0xf]
      %v246 = vld [vmem:[%s213 + $0x40] sm:$0xf]
      %v247 = vld [vmem:[%s213 + $0x44] sm:$0xf]
      %v248 = vld [vmem:[%s213 + $0x48] sm:$0xf]
      %v249 = vld [vmem:[%s213 + $0x4c] sm:$0xf]
      %v250 = vld [vmem:[%s213 + $0x50] sm:$0xf]
      %v251 = vld [vmem:[%s213 + $0x54] sm:$0xf]
      %v252 = vld [vmem:[%s213 + $0x58] sm:$0xf]
      %v253 = vld [vmem:[%s213 + $0x5c] sm:$0xf]
      %v254 = vld [vmem:[%s213 + $0x60] sm:$0xf]
      %v255 = vld [vmem:[%s213 + $0x64] sm:$0xf]
      %v256 = vld [vmem:[%s213 + $0x68] sm:$0xf]
      %v257 = vld [vmem:[%s213 + $0x6c] sm:$0xf]
      %v258 = vld [vmem:[%s213 + $0x70] sm:$0xf]
      %v259 = vld [vmem:[%s213 + $0x74] sm:$0xf]
      %v260 = vld [vmem:[%s213 + $0x78] sm:$0xf]
      %v261 = vld [vmem:[%s213 + $0x7c] sm:$0xf]
      %v262 = vld [vmem:[%s213 + $0x80] sm:$0xf]
      %v263 = vld [vmem:[%s213 + $0x84] sm:$0xf]
      %v264 = vld [vmem:[%s213 + $0x88] sm:$0xf]
      %v265 = vld [vmem:[%s213 + $0x8c] sm:$0xf]
      %v266 = vld [vmem:[%s213 + $0x90] sm:$0xf]
      %v267 = vld [vmem:[%s213 + $0x94] sm:$0xf]
      %v268 = vld [vmem:[%s213 + $0x98] sm:$0xf]
      %v269 = vld [vmem:[%s213 + $0x9c] sm:$0xf]
      %v270 = vld [vmem:[%s213 + $0xa0] sm:$0xf]
      %v271 = vld [vmem:[%s213 + $0xa4] sm:$0xf]
      %v272 = vld [vmem:[%s213 + $0xa8] sm:$0xf]
      %v273 = vld [vmem:[%s213 + $0xac] sm:$0xf]
      %v274 = vld [vmem:[%s213 + $0xb0] sm:$0xf]
      %v275 = vld [vmem:[%s213 + $0xb4] sm:$0xf]
      %v276 = vld [vmem:[%s213 + $0xb8] sm:$0xf]
      %v277 = vld [vmem:[%s213 + $0xbc] sm:$0xf]
      %v278 = vld [vmem:[%s213 + $0xc0] sm:$0xf]
      %v279 = vld [vmem:[%s213 + $0xc4] sm:$0xf]
      %v280 = vld [vmem:[%s213 + $0xc8] sm:$0xf]
      %v281 = vld [vmem:[%s213 + $0xcc] sm:$0xf]
      %v282 = vld [vmem:[%s213 + $0xd0] sm:$0xf]
      %v283 = vld [vmem:[%s213 + $0xd4] sm:$0xf]
      %v284 = vld [vmem:[%s213 + $0xd8] sm:$0xf]
      %v285 = vld [vmem:[%s213 + $0xdc] sm:$0xf]
      %v286 = vld [vmem:[%s213 + $0xe0] sm:$0xf]
      %v287 = vld [vmem:[%s213 + $0xe4] sm:$0xf]
      %v288 = vld [vmem:[%s213 + $0xe8] sm:$0xf]
      %v289 = vld [vmem:[%s213 + $0xec] sm:$0xf]
      %v290 = vld [vmem:[%s213 + $0xf0] sm:$0xf]
      %v291 = vld [vmem:[%s213 + $0xf4] sm:$0xf]
      %v292 = vld [vmem:[%s213 + $0xf8] sm:$0xf]
      %v293 = vld [vmem:[%s213 + $0xfc] sm:$0xf]
      %v294 = vld [vmem:[%s219] sm:$0xf]
      %v295 = vld [vmem:[%s219 + $0x4] sm:$0xf]
      %v296 = vld [vmem:[%s219 + $0x8] sm:$0xf]
      %v297 = vld [vmem:[%s219 + $0xc] sm:$0xf]
      %v298 = vld [vmem:[%s219 + $0x10] sm:$0xf]
      %v299 = vld [vmem:[%s219 + $0x14] sm:$0xf]
      %v300 = vld [vmem:[%s219 + $0x18] sm:$0xf]
      %v301 = vld [vmem:[%s219 + $0x1c] sm:$0xf]
      %v302 = vld [vmem:[%s219 + $0x20] sm:$0xf]
      %v303 = vld [vmem:[%s219 + $0x24] sm:$0xf]
      %v304 = vld [vmem:[%s219 + $0x28] sm:$0xf]
      %v305 = vld [vmem:[%s219 + $0x2c] sm:$0xf]
      %v306 = vld [vmem:[%s219 + $0x30] sm:$0xf]
      %v307 = vld [vmem:[%s219 + $0x34] sm:$0xf]
      %v308 = vld [vmem:[%s219 + $0x38] sm:$0xf]
      %v309 = vld [vmem:[%s219 + $0x3c] sm:$0xf]
      %v310 = vld [vmem:[%s2] sm:$0x1]
      %v312 = vperm.slane %v310, 0
      %v378 = vunpack.c.l.b16 %v230
      %v379 = vunpack.c.l.b16 %v231
      %v380 = vunpack.c.l.b16 %v232
      %v381 = vunpack.c.l.b16 %v233
      %v382 = vunpack.c.l.b16 %v234
      %v383 = vunpack.c.l.b16 %v235
      %v384 = vunpack.c.l.b16 %v236
      %v385 = vunpack.c.l.b16 %v237
      %v386 = vunpack.c.l.b16 %v238
      %v387 = vunpack.c.l.b16 %v239
      %v388 = vunpack.c.l.b16 %v240
      %v389 = vunpack.c.l.b16 %v241
      %v390 = vunpack.c.l.b16 %v242
      %v391 = vunpack.c.l.b16 %v243
      %v392 = vunpack.c.l.b16 %v244
      %v393 = vunpack.c.l.b16 %v245
      %v394 = vunpack.c.l.b16 %v246
      %v395 = vunpack.c.l.b16 %v247
      %v396 = vunpack.c.l.b16 %v248
      %v397 = vunpack.c.l.b16 %v249
      %v398 = vunpack.c.l.b16 %v250
      %v399 = vunpack.c.l.b16 %v251
      %v400 = vunpack.c.l.b16 %v252
      %v401 = vunpack.c.l.b16 %v253
      %v402 = vunpack.c.l.b16 %v254
      %v403 = vunpack.c.l.b16 %v255
      %v404 = vunpack.c.l.b16 %v256
      %v405 = vunpack.c.l.b16 %v257
      %v406 = vunpack.c.l.b16 %v258
      %v407 = vunpack.c.l.b16 %v259
      %v408 = vunpack.c.l.b16 %v260
      %v409 = vunpack.c.l.b16 %v261
      %v410 = vunpack.c.l.b16 %v262
      %v411 = vunpack.c.l.b16 %v263
      %v412 = vunpack.c.l.b16 %v264
      %v413 = vunpack.c.l.b16 %v265
      %v414 = vunpack.c.l.b16 %v266
      %v415 = vunpack.c.l.b16 %v267
      %v416 = vunpack.c.l.b16 %v268
      %v417 = vunpack.c.l.b16 %v269
      %v418 = vunpack.c.l.b16 %v270
      %v419 = vunpack.c.l.b16 %v271
      %v420 = vunpack.c.l.b16 %v272
      %v421 = vunpack.c.l.b16 %v273
      %v422 = vunpack.c.l.b16 %v274
      %v423 = vunpack.c.l.b16 %v275
      %v424 = vunpack.c.l.b16 %v276
      %v425 = vunpack.c.l.b16 %v277
      %v426 = vunpack.c.l.b16 %v278
      %v427 = vunpack.c.l.b16 %v279
      %v428 = vunpack.c.l.b16 %v280
      %v429 = vunpack.c.l.b16 %v281
      %v430 = vunpack.c.l.b16 %v282
      %v431 = vunpack.c.l.b16 %v283
      %v432 = vunpack.c.l.b16 %v284
      %v433 = vunpack.c.l.b16 %v285
      %v434 = vunpack.c.l.b16 %v286
      %v435 = vunpack.c.l.b16 %v287
      %v436 = vunpack.c.l.b16 %v288
      %v437 = vunpack.c.l.b16 %v289
      %v438 = vunpack.c.l.b16 %v290
      %v439 = vunpack.c.l.b16 %v291
      %v440 = vunpack.c.l.b16 %v292
      %v441 = vunpack.c.l.b16 %v293
      %v442 = vpack.c.b16 %v379, %v378
      %v443 = vpack.c.b16 %v381, %v380
      %v444 = vpack.c.b16 %v383, %v382
      %v445 = vpack.c.b16 %v385, %v384
      %v446 = vpack.c.b16 %v387, %v386
      %v447 = vpack.c.b16 %v389, %v388
      %v448 = vpack.c.b16 %v391, %v390
      %v449 = vpack.c.b16 %v393, %v392
      %v450 = vpack.c.b16 %v395, %v394
      %v451 = vpack.c.b16 %v397, %v396
      %v452 = vpack.c.b16 %v399, %v398
      %v453 = vpack.c.b16 %v401, %v400
      %v454 = vpack.c.b16 %v403, %v402
      %v455 = vpack.c.b16 %v405, %v404
      %v456 = vpack.c.b16 %v407, %v406
      %v457 = vpack.c.b16 %v409, %v408
      %v458 = vpack.c.b16 %v411, %v410
      %v459 = vpack.c.b16 %v413, %v412
      %v460 = vpack.c.b16 %v415, %v414
      %v461 = vpack.c.b16 %v417, %v416
      %v462 = vpack.c.b16 %v419, %v418
      %v463 = vpack.c.b16 %v421, %v420
      %v464 = vpack.c.b16 %v423, %v422
      %v465 = vpack.c.b16 %v425, %v424
      %v466 = vpack.c.b16 %v427, %v426
      %v467 = vpack.c.b16 %v429, %v428
      %v468 = vpack.c.b16 %v431, %v430
      %v469 = vpack.c.b16 %v433, %v432
      %v470 = vpack.c.b16 %v435, %v434
      %v471 = vpack.c.b16 %v437, %v436
      %v472 = vpack.c.b16 %v439, %v438
      %v473 = vpack.c.b16 %v441, %v440
      %v522 = vunpack.c.l.b16 %v294
      %v523 = vunpack.c.l.b16 %v295
      %v524 = vunpack.c.l.b16 %v296
      %v525 = vunpack.c.l.b16 %v297
      %v526 = vunpack.c.l.b16 %v298
      %v527 = vunpack.c.l.b16 %v299
      %v528 = vunpack.c.l.b16 %v300
      %v529 = vunpack.c.l.b16 %v301
      %v530 = vunpack.c.l.b16 %v302
      %v531 = vunpack.c.l.b16 %v303
      %v532 = vunpack.c.l.b16 %v304
      %v533 = vunpack.c.l.b16 %v305
      %v534 = vunpack.c.l.b16 %v306
      %v535 = vunpack.c.l.b16 %v307
      %v536 = vunpack.c.l.b16 %v308
      %v537 = vunpack.c.l.b16 %v309
      %v538 = vpack.c.b16 %v523, %v522
      %v539 = vpack.c.b16 %v525, %v524
      %v540 = vpack.c.b16 %v527, %v526
      %v541 = vpack.c.b16 %v529, %v528
      %v542 = vpack.c.b16 %v531, %v530
      %v543 = vpack.c.b16 %v533, %v532
      %v544 = vpack.c.b16 %v535, %v534
      %v545 = vpack.c.b16 %v537, %v536
      %554 = vmatpush.bf16.msra.mxu0 %v545
      %555 = vmatpush.bf16.msra.mxu0 %v544
      %556 = vmatpush.bf16.msra.mxu0 %v543
      %557 = vmatpush.bf16.msra.mxu0 %v542
      %558 = vmatpush.bf16.msra.mxu0 %v541
      %559 = vmatpush.bf16.msra.mxu0 %v540
      %560 = vmatpush.bf16.msra.mxu0 %v539
      %561 = vmatpush.bf16.msra.mxu0 %v538
      %562 = vmatmul.bf16.gmra.mxu0 %v442
      %v563 = vpop.f32.mrf.mxu0
      %v564 = vadd.f32 %v312, %v563
      %v565 = vpop.f32.mrf.mxu0
      %v566 = vadd.f32 %v312, %v565
      %567 = vmatmul.bf16.gmra.mxu0 %v443
      %v568 = vpop.f32.mrf.mxu0
      %v569 = vadd.f32 %v312, %v568
      %v570 = vpop.f32.mrf.mxu0
      %v571 = vadd.f32 %v312, %v570
      %572 = vmatmul.bf16.gmra.mxu0 %v444
      %v573 = vpop.f32.mrf.mxu0
      %v574 = vadd.f32 %v312, %v573
      %v575 = vpop.f32.mrf.mxu0
      %v576 = vadd.f32 %v312, %v575
      %577 = vmatmul.bf16.gmra.mxu0 %v445
      %v578 = vpop.f32.mrf.mxu0
      %v579 = vadd.f32 %v312, %v578
      %v580 = vpop.f32.mrf.mxu0
      %v581 = vadd.f32 %v312, %v580
      %582 = vmatmul.bf16.gmra.mxu0 %v446
      %v583 = vpop.f32.mrf.mxu0
      %v584 = vadd.f32 %v312, %v583
      %v585 = vpop.f32.mrf.mxu0
      %v586 = vadd.f32 %v312, %v585
      %587 = vmatmul.bf16.gmra.mxu0 %v447
      %v588 = vpop.f32.mrf.mxu0
      %v589 = vadd.f32 %v312, %v588
      %v590 = vpop.f32.mrf.mxu0
      %v591 = vadd.f32 %v312, %v590
      %592 = vmatmul.bf16.gmra.mxu0 %v448
      %v593 = vpop.f32.mrf.mxu0
      %v594 = vadd.f32 %v312, %v593
      %v595 = vpop.f32.mrf.mxu0
      %v596 = vadd.f32 %v312, %v595
      %597 = vmatmul.bf16.gmra.mxu0 %v449
      %v598 = vpop.f32.mrf.mxu0
      %v599 = vadd.f32 %v312, %v598
      %v600 = vpop.f32.mrf.mxu0
      %v601 = vadd.f32 %v312, %v600
      %602 = vmatmul.bf16.gmra.mxu0 %v450
      %v603 = vpop.f32.mrf.mxu0
      %v604 = vadd.f32 %v312, %v603
      %v605 = vpop.f32.mrf.mxu0
      %v606 = vadd.f32 %v312, %v605
      %607 = vmatmul.bf16.gmra.mxu0 %v451
      %v608 = vpop.f32.mrf.mxu0
      %v609 = vadd.f32 %v312, %v608
      %v610 = vpop.f32.mrf.mxu0
      %v611 = vadd.f32 %v312, %v610
      %612 = vmatmul.bf16.gmra.mxu0 %v452
      %v613 = vpop.f32.mrf.mxu0
      %v614 = vadd.f32 %v312, %v613
      %v615 = vpop.f32.mrf.mxu0
      %v616 = vadd.f32 %v312, %v615
      %617 = vmatmul.bf16.gmra.mxu0 %v453
      %v618 = vpop.f32.mrf.mxu0
      %v619 = vadd.f32 %v312, %v618
      %v620 = vpop.f32.mrf.mxu0
      %v621 = vadd.f32 %v312, %v620
      %622 = vmatmul.bf16.gmra.mxu0 %v454
      %v623 = vpop.f32.mrf.mxu0
      %v624 = vadd.f32 %v312, %v623
      %v625 = vpop.f32.mrf.mxu0
      %v626 = vadd.f32 %v312, %v625
      %627 = vmatmul.bf16.gmra.mxu0 %v455
      %v628 = vpop.f32.mrf.mxu0
      %v629 = vadd.f32 %v312, %v628
      %v630 = vpop.f32.mrf.mxu0
      %v631 = vadd.f32 %v312, %v630
      %632 = vmatmul.bf16.gmra.mxu0 %v456
      %v633 = vpop.f32.mrf.mxu0
      %v634 = vadd.f32 %v312, %v633
      %v635 = vpop.f32.mrf.mxu0
      %v636 = vadd.f32 %v312, %v635
      %637 = vmatmul.bf16.gmra.mxu0 %v457
      %v638 = vpop.f32.mrf.mxu0
      %v639 = vadd.f32 %v312, %v638
      %v640 = vpop.f32.mrf.mxu0
      %v641 = vadd.f32 %v312, %v640
      %642 = vmatmul.bf16.gmra.mxu0 %v458
      %v643 = vpop.f32.mrf.mxu0
      %v644 = vadd.f32 %v312, %v643
      %v645 = vpop.f32.mrf.mxu0
      %v646 = vadd.f32 %v312, %v645
      %647 = vmatmul.bf16.gmra.mxu0 %v459
      %v648 = vpop.f32.mrf.mxu0
      %v649 = vadd.f32 %v312, %v648
      %v650 = vpop.f32.mrf.mxu0
      %v651 = vadd.f32 %v312, %v650
      %652 = vmatmul.bf16.gmra.mxu0 %v460
      %v653 = vpop.f32.mrf.mxu0
      %v654 = vadd.f32 %v312, %v653
      %v655 = vpop.f32.mrf.mxu0
      %v656 = vadd.f32 %v312, %v655
      %657 = vmatmul.bf16.gmra.mxu0 %v461
      %v658 = vpop.f32.mrf.mxu0
      %v659 = vadd.f32 %v312, %v658
      %v660 = vpop.f32.mrf.mxu0
      %v661 = vadd.f32 %v312, %v660
      %662 = vmatmul.bf16.gmra.mxu0 %v462
      %v663 = vpop.f32.mrf.mxu0
      %v664 = vadd.f32 %v312, %v663
      %v665 = vpop.f32.mrf.mxu0
      %v666 = vadd.f32 %v312, %v665
      %667 = vmatmul.bf16.gmra.mxu0 %v463
      %v668 = vpop.f32.mrf.mxu0
      %v669 = vadd.f32 %v312, %v668
      %v670 = vpop.f32.mrf.mxu0
      %v671 = vadd.f32 %v312, %v670
      %672 = vmatmul.bf16.gmra.mxu0 %v464
      %v673 = vpop.f32.mrf.mxu0
      %v674 = vadd.f32 %v312, %v673
      %v675 = vpop.f32.mrf.mxu0
      %v676 = vadd.f32 %v312, %v675
      %677 = vmatmul.bf16.gmra.mxu0 %v465
      %v678 = vpop.f32.mrf.mxu0
      %v679 = vadd.f32 %v312, %v678
      %v680 = vpop.f32.mrf.mxu0
      %v681 = vadd.f32 %v312, %v680
      %682 = vmatmul.bf16.gmra.mxu0 %v466
      %v683 = vpop.f32.mrf.mxu0
      %v684 = vadd.f32 %v312, %v683
      %v685 = vpop.f32.mrf.mxu0
      %v686 = vadd.f32 %v312, %v685
      %687 = vmatmul.bf16.gmra.mxu0 %v467
      %v688 = vpop.f32.mrf.mxu0
      %v689 = vadd.f32 %v312, %v688
      %v690 = vpop.f32.mrf.mxu0
      %v691 = vadd.f32 %v312, %v690
      %692 = vmatmul.bf16.gmra.mxu0 %v468
      %v693 = vpop.f32.mrf.mxu0
      %v694 = vadd.f32 %v312, %v693
      %v695 = vpop.f32.mrf.mxu0
      %v696 = vadd.f32 %v312, %v695
      %697 = vmatmul.bf16.gmra.mxu0 %v469
      %v698 = vpop.f32.mrf.mxu0
      %v699 = vadd.f32 %v312, %v698
      %v700 = vpop.f32.mrf.mxu0
      %v701 = vadd.f32 %v312, %v700
      %702 = vmatmul.bf16.gmra.mxu0 %v470
      %v703 = vpop.f32.mrf.mxu0
      %v704 = vadd.f32 %v312, %v703
      %v705 = vpop.f32.mrf.mxu0
      %v706 = vadd.f32 %v312, %v705
      %707 = vmatmul.bf16.gmra.mxu0 %v471
      %v708 = vpop.f32.mrf.mxu0
      %v709 = vadd.f32 %v312, %v708
      %v710 = vpop.f32.mrf.mxu0
      %v711 = vadd.f32 %v312, %v710
      %712 = vmatmul.bf16.gmra.mxu0 %v472
      %v713 = vpop.f32.mrf.mxu0
      %v714 = vadd.f32 %v312, %v713
      %v715 = vpop.f32.mrf.mxu0
      %v716 = vadd.f32 %v312, %v715
      %717 = vmatmul.bf16.gmra.mxu0 %v473
      %v718 = vpop.f32.mrf.mxu0
      %v719 = vadd.f32 %v312, %v718
      %v720 = vpop.f32.mrf.mxu0
      %v721 = vadd.f32 %v312, %v720
      %722 = vdwg.mxu0
      %vm723 = vcmp.gt.f32.partialorder %v564, 0.0
      %vm724 = vcmp.gt.f32.partialorder %v566, 0.0
      %vm725 = vcmp.gt.f32.partialorder %v569, 0.0
      %vm726 = vcmp.gt.f32.partialorder %v571, 0.0
      %vm727 = vcmp.gt.f32.partialorder %v574, 0.0
      %vm728 = vcmp.gt.f32.partialorder %v576, 0.0
      %vm729 = vcmp.gt.f32.partialorder %v579, 0.0
      %vm730 = vcmp.gt.f32.partialorder %v581, 0.0
      %vm731 = vcmp.gt.f32.partialorder %v584, 0.0
      %vm732 = vcmp.gt.f32.partialorder %v586, 0.0
      %vm733 = vcmp.gt.f32.partialorder %v589, 0.0
      %vm734 = vcmp.gt.f32.partialorder %v591, 0.0
      %vm735 = vcmp.gt.f32.partialorder %v594, 0.0
      %vm736 = vcmp.gt.f32.partialorder %v596, 0.0
      %vm737 = vcmp.gt.f32.partialorder %v599, 0.0
      %vm738 = vcmp.gt.f32.partialorder %v601, 0.0
      %vm739 = vcmp.gt.f32.partialorder %v604, 0.0
      %vm740 = vcmp.gt.f32.partialorder %v606, 0.0
      %vm741 = vcmp.gt.f32.partialorder %v609, 0.0
      %vm742 = vcmp.gt.f32.partialorder %v611, 0.0
      %vm743 = vcmp.gt.f32.partialorder %v614, 0.0
      %vm744 = vcmp.gt.f32.partialorder %v616, 0.0
      %vm745 = vcmp.gt.f32.partialorder %v619, 0.0
      %vm746 = vcmp.gt.f32.partialorder %v621, 0.0
      %vm747 = vcmp.gt.f32.partialorder %v624, 0.0
      %vm748 = vcmp.gt.f32.partialorder %v626, 0.0
      %vm749 = vcmp.gt.f32.partialorder %v629, 0.0
      %vm750 = vcmp.gt.f32.partialorder %v631, 0.0
      %vm751 = vcmp.gt.f32.partialorder %v634, 0.0
      %vm752 = vcmp.gt.f32.partialorder %v636, 0.0
      %vm753 = vcmp.gt.f32.partialorder %v639, 0.0
      %vm754 = vcmp.gt.f32.partialorder %v641, 0.0
      %vm755 = vcmp.gt.f32.partialorder %v644, 0.0
      %vm756 = vcmp.gt.f32.partialorder %v646, 0.0
      %vm757 = vcmp.gt.f32.partialorder %v649, 0.0
      %vm758 = vcmp.gt.f32.partialorder %v651, 0.0
      %vm759 = vcmp.gt.f32.partialorder %v654, 0.0
      %vm760 = vcmp.gt.f32.partialorder %v656, 0.0
      %vm761 = vcmp.gt.f32.partialorder %v659, 0.0
      %vm762 = vcmp.gt.f32.partialorder %v661, 0.0
      %vm763 = vcmp.gt.f32.partialorder %v664, 0.0
      %vm764 = vcmp.gt.f32.partialorder %v666, 0.0
      %vm765 = vcmp.gt.f32.partialorder %v669, 0.0
      %vm766 = vcmp.gt.f32.partialorder %v671, 0.0
      %vm767 = vcmp.gt.f32.partialorder %v674, 0.0
      %vm768 = vcmp.gt.f32.partialorder %v676, 0.0
      %vm769 = vcmp.gt.f32.partialorder %v679, 0.0
      %vm770 = vcmp.gt.f32.partialorder %v681, 0.0
      %vm771 = vcmp.gt.f32.partialorder %v684, 0.0
      %vm772 = vcmp.gt.f32.partialorder %v686, 0.0
      %vm773 = vcmp.gt.f32.partialorder %v689, 0.0
      %vm774 = vcmp.gt.f32.partialorder %v691, 0.0
      %vm775 = vcmp.gt.f32.partialorder %v694, 0.0
      %vm776 = vcmp.gt.f32.partialorder %v696, 0.0
      %vm777 = vcmp.gt.f32.partialorder %v699, 0.0
      %vm778 = vcmp.gt.f32.partialorder %v701, 0.0
      %vm779 = vcmp.gt.f32.partialorder %v704, 0.0
      %vm780 = vcmp.gt.f32.partialorder %v706, 0.0
      %vm781 = vcmp.gt.f32.partialorder %v709, 0.0
      %vm782 = vcmp.gt.f32.partialorder %v711, 0.0
      %vm783 = vcmp.gt.f32.partialorder %v714, 0.0
      %vm784 = vcmp.gt.f32.partialorder %v716, 0.0
      %vm785 = vcmp.gt.f32.partialorder %v719, 0.0
      %vm786 = vcmp.gt.f32.partialorder %v721, 0.0
      %v787 = vmul.f32 %v564, 0.2
      %v788 = vmul.f32 %v566, 0.2
      %v789 = vmul.f32 %v569, 0.2
      %v790 = vmul.f32 %v571, 0.2
      %v791 = vmul.f32 %v574, 0.2
      %v792 = vmul.f32 %v576, 0.2
      %v793 = vmul.f32 %v579, 0.2
      %v794 = vmul.f32 %v581, 0.2
      %v795 = vmul.f32 %v584, 0.2
      %v796 = vmul.f32 %v586, 0.2
      %v797 = vmul.f32 %v589, 0.2
      %v798 = vmul.f32 %v591, 0.2
      %v799 = vmul.f32 %v594, 0.2
      %v800 = vmul.f32 %v596, 0.2
      %v801 = vmul.f32 %v599, 0.2
      %v802 = vmul.f32 %v601, 0.2
      %v803 = vmul.f32 %v604, 0.2
      %v804 = vmul.f32 %v606, 0.2
      %v805 = vmul.f32 %v609, 0.2
      %v806 = vmul.f32 %v611, 0.2
      %v807 = vmul.f32 %v614, 0.2
      %v808 = vmul.f32 %v616, 0.2
      %v809 = vmul.f32 %v619, 0.2
      %v810 = vmul.f32 %v621, 0.2
      %v811 = vmul.f32 %v624, 0.2
      %v812 = vmul.f32 %v626, 0.2
      %v813 = vmul.f32 %v629, 0.2
      %v814 = vmul.f32 %v631, 0.2
      %v815 = vmul.f32 %v634, 0.2
      %v816 = vmul.f32 %v636, 0.2
      %v817 = vmul.f32 %v639, 0.2
      %v818 = vmul.f32 %v641, 0.2
      %v819 = vmul.f32 %v644, 0.2
      %v820 = vmul.f32 %v646, 0.2
      %v821 = vmul.f32 %v649, 0.2
      %v822 = vmul.f32 %v651, 0.2
      %v823 = vmul.f32 %v654, 0.2
      %v824 = vmul.f32 %v656, 0.2
      %v825 = vmul.f32 %v659, 0.2
      %v826 = vmul.f32 %v661, 0.2
      %v827 = vmul.f32 %v664, 0.2
      %v828 = vmul.f32 %v666, 0.2
      %v829 = vmul.f32 %v669, 0.2
      %v830 = vmul.f32 %v671, 0.2
      %v831 = vmul.f32 %v674, 0.2
      %v832 = vmul.f32 %v676, 0.2
      %v833 = vmul.f32 %v679, 0.2
      %v834 = vmul.f32 %v681, 0.2
      %v835 = vmul.f32 %v684, 0.2
      %v836 = vmul.f32 %v686, 0.2
      %v837 = vmul.f32 %v689, 0.2
      %v838 = vmul.f32 %v691, 0.2
      %v839 = vmul.f32 %v694, 0.2
      %v840 = vmul.f32 %v696, 0.2
      %v841 = vmul.f32 %v699, 0.2
      %v842 = vmul.f32 %v701, 0.2
      %v843 = vmul.f32 %v704, 0.2
      %v844 = vmul.f32 %v706, 0.2
      %v845 = vmul.f32 %v709, 0.2
      %v846 = vmul.f32 %v711, 0.2
      %v847 = vmul.f32 %v714, 0.2
      %v848 = vmul.f32 %v716, 0.2
      %v849 = vmul.f32 %v719, 0.2
      %v850 = vmul.f32 %v721, 0.2
      %v851 = vsel %vm723, %v564, %v787
      %v852 = vsel %vm724, %v566, %v788
      %v853 = vsel %vm725, %v569, %v789
      %v854 = vsel %vm726, %v571, %v790
      %v855 = vsel %vm727, %v574, %v791
      %v856 = vsel %vm728, %v576, %v792
      %v857 = vsel %vm729, %v579, %v793
      %v858 = vsel %vm730, %v581, %v794
      %v859 = vsel %vm731, %v584, %v795
      %v860 = vsel %vm732, %v586, %v796
      %v861 = vsel %vm733, %v589, %v797
      %v862 = vsel %vm734, %v591, %v798
      %v863 = vsel %vm735, %v594, %v799
      %v864 = vsel %vm736, %v596, %v800
      %v865 = vsel %vm737, %v599, %v801
      %v866 = vsel %vm738, %v601, %v802
      %v867 = vsel %vm739, %v604, %v803
      %v868 = vsel %vm740, %v606, %v804
      %v869 = vsel %vm741, %v609, %v805
      %v870 = vsel %vm742, %v611, %v806
      %v871 = vsel %vm743, %v614, %v807
      %v872 = vsel %vm744, %v616, %v808
      %v873 = vsel %vm745, %v619, %v809
      %v874 = vsel %vm746, %v621, %v810
      %v875 = vsel %vm747, %v624, %v811
      %v876 = vsel %vm748, %v626, %v812
      %v877 = vsel %vm749, %v629, %v813
      %v878 = vsel %vm750, %v631, %v814
      %v879 = vsel %vm751, %v634, %v815
      %v880 = vsel %vm752, %v636, %v816
      %v881 = vsel %vm753, %v639, %v817
      %v882 = vsel %vm754, %v641, %v818
      %v883 = vsel %vm755, %v644, %v819
      %v884 = vsel %vm756, %v646, %v820
      %v885 = vsel %vm757, %v649, %v821
      %v886 = vsel %vm758, %v651, %v822
      %v887 = vsel %vm759, %v654, %v823
      %v888 = vsel %vm760, %v656, %v824
      %v889 = vsel %vm761, %v659, %v825
      %v890 = vsel %vm762, %v661, %v826
      %v891 = vsel %vm763, %v664, %v827
      %v892 = vsel %vm764, %v666, %v828
      %v893 = vsel %vm765, %v669, %v829
      %v894 = vsel %vm766, %v671, %v830
      %v895 = vsel %vm767, %v674, %v831
      %v896 = vsel %vm768, %v676, %v832
      %v897 = vsel %vm769, %v679, %v833
      %v898 = vsel %vm770, %v681, %v834
      %v899 = vsel %vm771, %v684, %v835
      %v900 = vsel %vm772, %v686, %v836
      %v901 = vsel %vm773, %v689, %v837
      %v902 = vsel %vm774, %v691, %v838
      %v903 = vsel %vm775, %v694, %v839
      %v904 = vsel %vm776, %v696, %v840
      %v905 = vsel %vm777, %v699, %v841
      %v906 = vsel %vm778, %v701, %v842
      %v907 = vsel %vm779, %v704, %v843
      %v908 = vsel %vm780, %v706, %v844
      %v909 = vsel %vm781, %v709, %v845
      %v910 = vsel %vm782, %v711, %v846
      %v911 = vsel %vm783, %v714, %v847
      %v912 = vsel %vm784, %v716, %v848
      %v913 = vsel %vm785, %v719, %v849
      %v914 = vsel %vm786, %v721, %v850
      %v915 = vpack.c.bf16 %v851, %v851
      %v916 = vpack.c.bf16 %v852, %v852
      %v917 = vpack.c.bf16 %v853, %v853
      %v918 = vpack.c.bf16 %v854, %v854
      %v919 = vpack.c.bf16 %v855, %v855
      %v920 = vpack.c.bf16 %v856, %v856
      %v921 = vpack.c.bf16 %v857, %v857
      %v922 = vpack.c.bf16 %v858, %v858
      %v923 = vpack.c.bf16 %v859, %v859
      %v924 = vpack.c.bf16 %v860, %v860
      %v925 = vpack.c.bf16 %v861, %v861
      %v926 = vpack.c.bf16 %v862, %v862
      %v927 = vpack.c.bf16 %v863, %v863
      %v928 = vpack.c.bf16 %v864, %v864
      %v929 = vpack.c.bf16 %v865, %v865
      %v930 = vpack.c.bf16 %v866, %v866
      %v931 = vpack.c.bf16 %v867, %v867
      %v932 = vpack.c.bf16 %v868, %v868
      %v933 = vpack.c.bf16 %v869, %v869
      %v934 = vpack.c.bf16 %v870, %v870
      %v935 = vpack.c.bf16 %v871, %v871
      %v936 = vpack.c.bf16 %v872, %v872
      %v937 = vpack.c.bf16 %v873, %v873
      %v938 = vpack.c.bf16 %v874, %v874
      %v939 = vpack.c.bf16 %v875, %v875
      %v940 = vpack.c.bf16 %v876, %v876
      %v941 = vpack.c.bf16 %v877, %v877
      %v942 = vpack.c.bf16 %v878, %v878
      %v943 = vpack.c.bf16 %v879, %v879
      %v944 = vpack.c.bf16 %v880, %v880
      %v945 = vpack.c.bf16 %v881, %v881
      %v946 = vpack.c.bf16 %v882, %v882
      %v947 = vpack.c.bf16 %v883, %v883
      %v948 = vpack.c.bf16 %v884, %v884
      %v949 = vpack.c.bf16 %v885, %v885
      %v950 = vpack.c.bf16 %v886, %v886
      %v951 = vpack.c.bf16 %v887, %v887
      %v952 = vpack.c.bf16 %v888, %v888
      %v953 = vpack.c.bf16 %v889, %v889
      %v954 = vpack.c.bf16 %v890, %v890
      %v955 = vpack.c.bf16 %v891, %v891
      %v956 = vpack.c.bf16 %v892, %v892
      %v957 = vpack.c.bf16 %v893, %v893
      %v958 = vpack.c.bf16 %v894, %v894
      %v959 = vpack.c.bf16 %v895, %v895
      %v960 = vpack.c.bf16 %v896, %v896
      %v961 = vpack.c.bf16 %v897, %v897
      %v962 = vpack.c.bf16 %v898, %v898
      %v963 = vpack.c.bf16 %v899, %v899
      %v964 = vpack.c.bf16 %v900, %v900
      %v965 = vpack.c.bf16 %v901, %v901
      %v966 = vpack.c.bf16 %v902, %v902
      %v967 = vpack.c.bf16 %v903, %v903
      %v968 = vpack.c.bf16 %v904, %v904
      %v969 = vpack.c.bf16 %v905, %v905
      %v970 = vpack.c.bf16 %v906, %v906
      %v971 = vpack.c.bf16 %v907, %v907
      %v972 = vpack.c.bf16 %v908, %v908
      %v973 = vpack.c.bf16 %v909, %v909
      %v974 = vpack.c.bf16 %v910, %v910
      %v975 = vpack.c.bf16 %v911, %v911
      %v976 = vpack.c.bf16 %v912, %v912
      %v977 = vpack.c.bf16 %v913, %v913
      %v978 = vpack.c.bf16 %v914, %v914
      %979 = vst [vmem:[%s228] sm:$0xf] %v915
      %980 = vst [vmem:[%s228 + $0x4] sm:$0xf] %v916
      %981 = vst [vmem:[%s228 + $0x8] sm:$0xf] %v917
      %982 = vst [vmem:[%s228 + $0xc] sm:$0xf] %v918
      %983 = vst [vmem:[%s228 + $0x10] sm:$0xf] %v919
      %984 = vst [vmem:[%s228 + $0x14] sm:$0xf] %v920
      %985 = vst [vmem:[%s228 + $0x18] sm:$0xf] %v921
      %986 = vst [vmem:[%s228 + $0x1c] sm:$0xf] %v922
      %987 = vst [vmem:[%s228 + $0x20] sm:$0xf] %v923
      %988 = vst [vmem:[%s228 + $0x24] sm:$0xf] %v924
      %989 = vst [vmem:[%s228 + $0x28] sm:$0xf] %v925
      %990 = vst [vmem:[%s228 + $0x2c] sm:$0xf] %v926
      %991 = vst [vmem:[%s228 + $0x30] sm:$0xf] %v927
      %992 = vst [vmem:[%s228 + $0x34] sm:$0xf] %v928
      %993 = vst [vmem:[%s228 + $0x38] sm:$0xf] %v929
      %994 = vst [vmem:[%s228 + $0x3c] sm:$0xf] %v930
      %995 = vst [vmem:[%s228 + $0x40] sm:$0xf] %v931
      %996 = vst [vmem:[%s228 + $0x44] sm:$0xf] %v932
      %997 = vst [vmem:[%s228 + $0x48] sm:$0xf] %v933
      %998 = vst [vmem:[%s228 + $0x4c] sm:$0xf] %v934
      %999 = vst [vmem:[%s228 + $0x50] sm:$0xf] %v935
      %1000 = vst [vmem:[%s228 + $0x54] sm:$0xf] %v936
      %1001 = vst [vmem:[%s228 + $0x58] sm:$0xf] %v937
      %1002 = vst [vmem:[%s228 + $0x5c] sm:$0xf] %v938
      %1003 = vst [vmem:[%s228 + $0x60] sm:$0xf] %v939
      %1004 = vst [vmem:[%s228 + $0x64] sm:$0xf] %v940
      %1005 = vst [vmem:[%s228 + $0x68] sm:$0xf] %v941
      %1006 = vst [vmem:[%s228 + $0x6c] sm:$0xf] %v942
      %1007 = vst [vmem:[%s228 + $0x70] sm:$0xf] %v943
      %1008 = vst [vmem:[%s228 + $0x74] sm:$0xf] %v944
      %1009 = vst [vmem:[%s228 + $0x78] sm:$0xf] %v945
      %1010 = vst [vmem:[%s228 + $0x7c] sm:$0xf] %v946
      %1011 = vst [vmem:[%s228 + $0x80] sm:$0xf] %v947
      %1012 = vst [vmem:[%s228 + $0x84] sm:$0xf] %v948
      %1013 = vst [vmem:[%s228 + $0x88] sm:$0xf] %v949
      %1014 = vst [vmem:[%s228 + $0x8c] sm:$0xf] %v950
      %1015 = vst [vmem:[%s228 + $0x90] sm:$0xf] %v951
      %1016 = vst [vmem:[%s228 + $0x94] sm:$0xf] %v952
      %1017 = vst [vmem:[%s228 + $0x98] sm:$0xf] %v953
      %1018 = vst [vmem:[%s228 + $0x9c] sm:$0xf] %v954
      %1019 = vst [vmem:[%s228 + $0xa0] sm:$0xf] %v955
      %1020 = vst [vmem:[%s228 + $0xa4] sm:$0xf] %v956
      %1021 = vst [vmem:[%s228 + $0xa8] sm:$0xf] %v957
      %1022 = vst [vmem:[%s228 + $0xac] sm:$0xf] %v958
      %1023 = vst [vmem:[%s228 + $0xb0] sm:$0xf] %v959
      %1024 = vst [vmem:[%s228 + $0xb4] sm:$0xf] %v960
      %1025 = vst [vmem:[%s228 + $0xb8] sm:$0xf] %v961
      %1026 = vst [vmem:[%s228 + $0xbc] sm:$0xf] %v962
      %1027 = vst [vmem:[%s228 + $0xc0] sm:$0xf] %v963
      %1028 = vst [vmem:[%s228 + $0xc4] sm:$0xf] %v964
      %1029 = vst [vmem:[%s228 + $0xc8] sm:$0xf] %v965
      %1030 = vst [vmem:[%s228 + $0xcc] sm:$0xf] %v966
      %1031 = vst [vmem:[%s228 + $0xd0] sm:$0xf] %v967
      %1032 = vst [vmem:[%s228 + $0xd4] sm:$0xf] %v968
      %1033 = vst [vmem:[%s228 + $0xd8] sm:$0xf] %v969
      %1034 = vst [vmem:[%s228 + $0xdc] sm:$0xf] %v970
      %1035 = vst [vmem:[%s228 + $0xe0] sm:$0xf] %v971
      %1036 = vst [vmem:[%s228 + $0xe4] sm:$0xf] %v972
      %1037 = vst [vmem:[%s228 + $0xe8] sm:$0xf] %v973
      %1038 = vst [vmem:[%s228 + $0xec] sm:$0xf] %v974
      %1039 = vst [vmem:[%s228 + $0xf0] sm:$0xf] %v975
      %1040 = vst [vmem:[%s228 + $0xf4] sm:$0xf] %v976
      %1041 = vst [vmem:[%s228 + $0xf8] sm:$0xf] %v977
      %1042 = vst [vmem:[%s228 + $0xfc] sm:$0xf] %v978
      %s1043 = smul.u32 64, %s19
      %p1044 = scmp.lt.s32.totalorder %s18, 0
      %s1045 = scalar_select %p1044, %s18, 0
      %p1046 = scmp.lt.s32.totalorder %s1043, 1023
      %s1047 = scalar_select %p1046, %s1043, 1023
      %s1048 = smul.addr %s1045, 1024
      %s1049 = sadd.s32 %s1047, %s1048
      %s1050 = smul.addr %s1049, 4
      %s1051 = scalar_lea.vmem %s3, %s1050
      // Predicated region
      $region33: #{_lambda_.14} parent=31 // pred_check
        %p1052 = pneg %p121
      $region34: #{_lambda_.14} parent=31 // pred_check_branch
        %1054 = sbr.rel (%p1052) target = $region36
      $region35: #{_lambda_.14} parent=31 // pred_region
        %s1055 = smul.u32 64, %s19
      $region36: #{_lambda_.14} parent=31 // pred_fallthru
        _
    $region32: #{_lambda_.14} parent=5 // pred_fallthru
      _
    %p1056 = scmp.le.s32.totalorder 2, %s9
    // Predicated region
    $region37: #{_lambda_.14} parent=5 // pred_check
      %p1057 = pneg %p1056
    $region38: #{_lambda_.14} parent=5 // pred_check_branch
      %1059 = sbr.rel (%p1057) target = $region40
    $region39: #{_lambda_.14} parent=5 // pred_region
      %s1060 = ssub.s32 %s9, 2
      // Predicated region
      $region41: #{_lambda_.14} parent=39 // pred_check
        %p1061 = pneg %p127
      $region42: #{_lambda_.14} parent=39 // pred_check_branch
        %1063 = sbr.rel (%p1061) target = $region44
      $region43: #{_lambda_.14} parent=39 // pred_region
        %s1064 = smul.u32 64, %s21
        %p1065 = scmp.lt.s32.totalorder %s20, 0
        %s1066 = scalar_select %p1065, %s20, 0
        %p1067 = scmp.lt.s32.totalorder %s1064, 1023
        %s1068 = scalar_select %p1067, %s1064, 1023
        %s1069 = smul.addr %s1066, 1024
        %s1070 = sadd.s32 %s1068, %s1069
        %s1071 = smul.addr %s1070, 4
        %s1072 = scalar_lea.vmem %s3, %s1071
      $region44: #{_lambda_.14} parent=39 // pred_fallthru
        _
    $region40: #{_lambda_.14} parent=5 // pred_fallthru
      _
  $region6: #{_lambda_.14} parent=0 // loop_footer
    %s13 = sadd.s32 1, %s9
  $region7: #{_lambda_.14} parent=0 // loop_footer_branch
    %8 = sbr.rel target = $region3
  $region8: #{_lambda_.14} parent=0 // loop_exit
    _

// kernel: _lambda_.15
$region0: #{_lambda_.15}
  #allocation0 [shape = 'u32[]', space=smem, size = 0x4, offset = 0x4, fixed_abs, tag = 'smem constant byte address 0x4 - core index']
  #allocation1 [shape = 'u32[72,128]{1,0:T(1,128)}', space=vmem, size = 0x9000, scoped, tag = 'internal scratch']
  %s0 = inlined_call_operand.vmem [shape: bf16[1,2048,128], index: 0, kind: input, shape index: {}]
  %s1 = inlined_call_operand.vmem [shape: bf16[1,128,128], index: 1, kind: input, shape index: {}]
  %s2 = inlined_call_operand.vmem [shape: f32[1,128], index: 2, kind: input, shape index: {}]
  %s3 = inlined_call_operand.vmem [shape: bf16[1,2048,128], index: 3, kind: output, shape index: {}]
  %s4 = sld [smem:[#allocation0]]
  $region45: #{_lambda_.15} parent=0
    _
  %s6 = ssub.s32 1, %s4
  %s7 = scalar_select 0, %s6, %s4
  loop: start=0, step=1, limit=6
  $region2: #{_lambda_.15} parent=0 // loop_pre_header
    _
  $region3: #{_lambda_.15} parent=0 // loop_header
    %s9 = sphi 0, %s13
    %p10 = scmp.ge.s32.totalorder %s9, 6
    %s16 = sphi 0, %s28
    %s17 = sphi 0, %s24
    %s18 = sphi 0, %s16
    %s19 = sphi 0, %s17
    %s20 = sphi 0, %s18
    %s21 = sphi 0, %s19
    %s33 = sphi 0, %s35
    %s36 = sphi 0, %s33
    %s37 = sphi 0, %s36
    %s53 = sphi 0, %s37
    %s59 = sphi 0, %s61
    %s62 = sphi 0, %s59
    %s63 = sphi 0, %s62
    %s79 = sphi 0, %s63
    %s83 = sphi 0, %s83
    %s85 = sphi 0, %s83
    %s86 = sphi 0, %s85
    %s100 = sphi 0, %s86
    %s108 = sphi 0, %s110
    %s111 = sphi 0, %s108
    %s112 = sphi 0, %s111
    %s128 = sphi 0, %s112
  $region4: #{_lambda_.15} parent=0 // loop_header_branch
    %12 = sbr.rel (%p10) target = $region8
  $region5: #{_lambda_.15} parent=0 // loop_body
    %s14 = ssub.s32 %s9, 1
    %s15 = ssub.s32 %s9, 2
    %s22 = sadd.s32 1, %s17
    %p23 = scmp.ge.s32.totalorder %s22, 4
    %s24 = scalar_select %p23, 0, %s22
    %s25 = sadd.s32 1, %s16
    %s26 = scalar_select %p23, %s25, %s16
    %p27 = scmp.ge.s32.totalorder %s26, 1
    %s28 = scalar_select %p27, 0, %s26
    %s29 = ssub.s32 %s16, %s28
    %s30 = ssub.s32 %s17, %s24
    %s31 = sor.u32 %s29, %s30
    %p32 = scmp.eq.s32.totalorder %s31, 0
    %s34 = sadd.s32 %s33, 1
    %s35 = scalar_select %p32, %s33, %s34
    %p38 = pneg %p32
    %p39 = scmp.eq.s32.totalorder %s9, 3
    %p40 = por %p38, %p39
    %p41 = scmp.ne.s32.totalorder %s33, %s36
    %p42 = scmp.eq.s32.totalorder %s9, 0
    %p43 = por %p41, %p42
    %p44 = scmp.ne.s32.totalorder %s33, %s36
    %p45 = scmp.eq.s32.totalorder %s14, 3
    %p46 = por %p44, %p45
    %p47 = scmp.ne.s32.totalorder %s36, %s37
    %p48 = scmp.eq.s32.totalorder %s14, 0
    %p49 = por %p47, %p48
    %p50 = scmp.ne.s32.totalorder %s36, %s37
    %p51 = scmp.eq.s32.totalorder %s15, 3
    %p52 = por %p50, %p51
    %p54 = scmp.ne.s32.totalorder %s37, %s53
    %p55 = scmp.eq.s32.totalorder %s15, 0
    %p56 = por %p54, %p55
    %s57 = ssub.s32 %s16, %s28
    %p58 = scmp.eq.s32.totalorder %s57, 0
    %s60 = sadd.s32 %s59, 1
    %s61 = scalar_select %p58, %s59, %s60
    %p64 = pneg %p58
    %p65 = scmp.eq.s32.totalorder %s9, 3
    %p66 = por %p64, %p65
    %p67 = scmp.ne.s32.totalorder %s59, %s62
    %p68 = scmp.eq.s32.totalorder %s9, 0
    %p69 = por %p67, %p68
    %p70 = scmp.ne.s32.totalorder %s59, %s62
    %p71 = scmp.eq.s32.totalorder %s14, 3
    %p72 = por %p70, %p71
    %p73 = scmp.ne.s32.totalorder %s62, %s63
    %p74 = scmp.eq.s32.totalorder %s14, 0
    %p75 = por %p73, %p74
    %p76 = scmp.ne.s32.totalorder %s62, %s63
    %p77 = scmp.eq.s32.totalorder %s15, 3
    %p78 = por %p76, %p77
    %p80 = scmp.ne.s32.totalorder %s63, %s79
    %p81 = scmp.eq.s32.totalorder %s15, 0
    %p82 = por %p80, %p81
    %s84 = sadd.s32 %s83, 1
    %p87 = scmp.eq.s32.totalorder %s9, 3
    %p88 = scmp.ne.s32.totalorder %s83, %s85
    %p89 = scmp.eq.s32.totalorder %s9, 0
    %p90 = por %p88, %p89
    %p91 = scmp.ne.s32.totalorder %s83, %s85
    %p92 = scmp.eq.s32.totalorder %s14, 3
    %p93 = por %p91, %p92
    %p94 = scmp.ne.s32.totalorder %s85, %s86
    %p95 = scmp.eq.s32.totalorder %s14, 0
    %p96 = por %p94, %p95
    %p97 = scmp.ne.s32.totalorder %s85, %s86
    %p98 = scmp.eq.s32.totalorder %s15, 3
    %p99 = por %p97, %p98
    %p101 = scmp.ne.s32.totalorder %s86, %s100
    %p102 = scmp.eq.s32.totalorder %s15, 0
    %p103 = por %p101, %p102
    %s104 = ssub.s32 %s16, %s28
    %s105 = ssub.s32 %s17, %s24
    %s106 = sor.u32 %s104, %s105
    %p107 = scmp.eq.s32.totalorder %s106, 0
    %s109 = sadd.s32 %s108, 1
    %s110 = scalar_select %p107, %s108, %s109
    %p113 = pneg %p107
    %p114 = scmp.eq.s32.totalorder %s9, 3
    %p115 = por %p113, %p114
    %p116 = scmp.ne.s32.totalorder %s108, %s111
    %p117 = scmp.eq.s32.totalorder %s9, 0
    %p118 = por %p116, %p117
    %p119 = scmp.ne.s32.totalorder %s108, %s111
    %p120 = scmp.eq.s32.totalorder %s14, 3
    %p121 = por %p119, %p120
    %p122 = scmp.ne.s32.totalorder %s111, %s112
    %p123 = scmp.eq.s32.totalorder %s14, 0
    %p124 = por %p122, %p123
    %p125 = scmp.ne.s32.totalorder %s111, %s112
    %p126 = scmp.eq.s32.totalorder %s15, 3
    %p127 = por %p125, %p126
    %p129 = scmp.ne.s32.totalorder %s112, %s128
    %p130 = scmp.eq.s32.totalorder %s15, 0
    %p131 = por %p129, %p130
    %p132 = scmp.le.s32.totalorder 1, %s9
    %p133 = scmp.lt.s32.totalorder %s9, 5
    %p134 = pnand %p132, %p133
    %p135 = pneg %p134
    // Predicated region
    $region9: #{_lambda_.15} parent=5 // pred_check
      _
    $region10: #{_lambda_.15} parent=5 // pred_check_branch
      %137 = sbr.rel (%p134) target = $region12
    $region11: #{_lambda_.15} parent=5 // pred_region
      %s138 = ssub.s32 %s9, 1
      // Predicated region
      $region13: #{_lambda_.15} parent=11 // pred_check
        %p139 = pneg %p75
      $region14: #{_lambda_.15} parent=11 // pred_check_branch
        %141 = sbr.rel (%p139) target = $region16
      $region15: #{_lambda_.15} parent=11 // pred_region
        %p142 = scmp.lt.s32.totalorder %s18, 0
        %s143 = scalar_select %p142, %s18, 0
        %s144 = smul.addr %s143, 16
        %s145 = smul.addr %s144, 4
        %s146 = scalar_lea.vmem %s1, %s145
      $region16: #{_lambda_.15} parent=11 // pred_fallthru
        _
      // Predicated region
      $region17: #{_lambda_.15} parent=11 // pred_check
        %p147 = pneg %p96
      $region18: #{_lambda_.15} parent=11 // pred_check_branch
        %149 = sbr.rel (%p147) target = $region20
      $region19: #{_lambda_.15} parent=11 // pred_region
        _
      $region20: #{_lambda_.15} parent=11 // pred_fallthru
        _
    $region12: #{_lambda_.15} parent=5 // pred_fallthru
      _
    %p150 = scmp.lt.s32.totalorder %s9, 4
    // Predicated region
    $region21: #{_lambda_.15} parent=5 // pred_check
      %p151 = pneg %p150
    $region22: #{_lambda_.15} parent=5 // pred_check_branch
      %153 = sbr.rel (%p151) target = $region24
    $region23: #{_lambda_.15} parent=5 // pred_region
      // Predicated region
      $region25: #{_lambda_.15} parent=23 // pred_check
        %p154 = pneg %p43
      $region26: #{_lambda_.15} parent=23 // pred_check_branch
        %156 = sbr.rel (%p154) target = $region28
      $region27: #{_lambda_.15} parent=23 // pred_region
        %s157 = smul.u32 64, %s17
        %p158 = scmp.lt.s32.totalorder %s16, 0
        %s159 = scalar_select %p158, %s16, 0
        %p160 = scmp.lt.s32.totalorder %s157, 255
        %s161 = scalar_select %p160, %s157, 255
        %s162 = smul.addr %s159, 256
        %s163 = sadd.s32 %s161, %s162
        %s164 = smul.addr %s163, 4
        %s165 = scalar_lea.vmem %s0, %s164
        %s166 = smul.u32 64, %s17
      $region28: #{_lambda_.15} parent=23 // pred_fallthru
        _
    $region24: #{_lambda_.15} parent=5 // pred_fallthru
      _
    %p167 = scmp.le.s32.totalorder 1, %s9
    %p168 = scmp.lt.s32.totalorder %s9, 5
    %p169 = pnand %p167, %p168
    %p170 = pneg %p169
    // Predicated region
    $region29: #{_lambda_.15} parent=5 // pred_check
      _
    $region30: #{_lambda_.15} parent=5 // pred_check_branch
      %172 = sbr.rel (%p169) target = $region32
    $region31: #{_lambda_.15} parent=5 // pred_region
      %s173 = ssub.s32 %s9, 1
      %s174 = smul.u32 64, %s19
      %p175 = scmp.lt.s32.totalorder %s18, 0
      %s176 = scalar_select %p175, %s18, 0
      %p177 = scmp.lt.s32.totalorder %s174, 255
      %s178 = scalar_select %p177, %s174, 255
      %s179 = smul.addr %s176, 256
      %s180 = sadd.s32 %s178, %s179
      %s181 = smul.addr %s180, 4
      %s182 = scalar_lea.vmem %s0, %s181
      %p183 = pneg %p49
      %p184 = pneg %p46
      %p185 = scmp.lt.s32.totalorder %s18, 0
      %s186 = scalar_select %p185, %s18, 0
      %s187 = smul.addr %s186, 16
      %s188 = smul.addr %s187, 4
      %s189 = scalar_lea.vmem %s1, %s188
      %p190 = pneg %p75
      %p191 = pneg %p72
      %p192 = pneg %p96
      %p193 = pneg %p93
      %p194 = pneg %p124
      %p195 = pneg %p121
      %s196 = smul.u32 64, %s19
      %p197 = scmp.lt.s32.totalorder %s18, 0
      %s198 = scalar_select %p197, %s18, 0
      %p199 = scmp.lt.s32.totalorder %s196, 255
      %s200 = scalar_select %p199, %s196, 255
      %s201 = smul.addr %s198, 256
      %s202 = sadd.s32 %s200, %s201
      %s203 = smul.addr %s202, 4
      %s204 = scalar_lea.vmem %s3, %s203
      %s205 = smul.u32 64, %s19
      %p206 = scmp.lt.s32.totalorder %s18, 0
      %s207 = scalar_select %p206, %s18, 0
      %p208 = scmp.lt.s32.totalorder %s205, 255
      %s209 = scalar_select %p208, %s205, 255
      %s210 = smul.addr %s207, 256
      %s211 = sadd.s32 %s209, %s210
      %s212 = smul.addr %s211, 4
      %s213 = scalar_lea.vmem %s0, %s212
      %s214 = smul.u32 64, %s19
      %p215 = scmp.lt.s32.totalorder %s18, 0
      %s216 = scalar_select %p215, %s18, 0
      %s217 = smul.addr %s216, 16
      %s218 = smul.addr %s217, 4
      %s219 = scalar_lea.vmem %s1, %s218
      %s220 = smul.u32 64, %s19
      %p221 = scmp.lt.s32.totalorder %s18, 0
      %s222 = scalar_select %p221, %s18, 0
      %p223 = scmp.lt.s32.totalorder %s220, 255
      %s224 = scalar_select %p223, %s220, 255
      %s225 = smul.addr %s222, 256
      %s226 = sadd.s32 %s224, %s225
      %s227 = smul.addr %s226, 4
      %s228 = scalar_lea.vmem %s3, %s227
      %s229 = smul.u32 64, %s19
      %v230 = vld [vmem:[%s213] sm:$0xf]
      %v231 = vld [vmem:[%s213 + $0x4] sm:$0xf]
      %v232 = vld [vmem:[%s213 + $0x8] sm:$0xf]
      %v233 = vld [vmem:[%s213 + $0xc] sm:$0xf]
      %v234 = vld [vmem:[%s213 + $0x10] sm:$0xf]
      %v235 = vld [vmem:[%s213 + $0x14] sm:$0xf]
      %v236 = vld [vmem:[%s213 + $0x18] sm:$0xf]
      %v237 = vld [vmem:[%s213 + $0x1c] sm:$0xf]
      %v238 = vld [vmem:[%s213 + $0x20] sm:$0xf]
      %v239 = vld [vmem:[%s213 + $0x24] sm:$0xf]
      %v240 = vld [vmem:[%s213 + $0x28] sm:$0xf]
      %v241 = vld [vmem:[%s213 + $0x2c] sm:$0xf]
      %v242 = vld [vmem:[%s213 + $0x30] sm:$0xf]
      %v243 = vld [vmem:[%s213 + $0x34] sm:$0xf]
      %v244 = vld [vmem:[%s213 + $0x38] sm:$0xf]
      %v245 = vld [vmem:[%s213 + $0x3c] sm:$0xf]
      %v246 = vld [vmem:[%s213 + $0x40] sm:$0xf]
      %v247 = vld [vmem:[%s213 + $0x44] sm:$0xf]
      %v248 = vld [vmem:[%s213 + $0x48] sm:$0xf]
      %v249 = vld [vmem:[%s213 + $0x4c] sm:$0xf]
      %v250 = vld [vmem:[%s213 + $0x50] sm:$0xf]
      %v251 = vld [vmem:[%s213 + $0x54] sm:$0xf]
      %v252 = vld [vmem:[%s213 + $0x58] sm:$0xf]
      %v253 = vld [vmem:[%s213 + $0x5c] sm:$0xf]
      %v254 = vld [vmem:[%s213 + $0x60] sm:$0xf]
      %v255 = vld [vmem:[%s213 + $0x64] sm:$0xf]
      %v256 = vld [vmem:[%s213 + $0x68] sm:$0xf]
      %v257 = vld [vmem:[%s213 + $0x6c] sm:$0xf]
      %v258 = vld [vmem:[%s213 + $0x70] sm:$0xf]
      %v259 = vld [vmem:[%s213 + $0x74] sm:$0xf]
      %v260 = vld [vmem:[%s213 + $0x78] sm:$0xf]
      %v261 = vld [vmem:[%s213 + $0x7c] sm:$0xf]
      %v262 = vld [vmem:[%s213 + $0x80] sm:$0xf]
      %v263 = vld [vmem:[%s213 + $0x84] sm:$0xf]
      %v264 = vld [vmem:[%s213 + $0x88] sm:$0xf]
      %v265 = vld [vmem:[%s213 + $0x8c] sm:$0xf]
      %v266 = vld [vmem:[%s213 + $0x90] sm:$0xf]
      %v267 = vld [vmem:[%s213 + $0x94] sm:$0xf]
      %v268 = vld [vmem:[%s213 + $0x98] sm:$0xf]
      %v269 = vld [vmem:[%s213 + $0x9c] sm:$0xf]
      %v270 = vld [vmem:[%s213 + $0xa0] sm:$0xf]
      %v271 = vld [vmem:[%s213 + $0xa4] sm:$0xf]
      %v272 = vld [vmem:[%s213 + $0xa8] sm:$0xf]
      %v273 = vld [vmem:[%s213 + $0xac] sm:$0xf]
      %v274 = vld [vmem:[%s213 + $0xb0] sm:$0xf]
      %v275 = vld [vmem:[%s213 + $0xb4] sm:$0xf]
      %v276 = vld [vmem:[%s213 + $0xb8] sm:$0xf]
      %v277 = vld [vmem:[%s213 + $0xbc] sm:$0xf]
      %v278 = vld [vmem:[%s213 + $0xc0] sm:$0xf]
      %v279 = vld [vmem:[%s213 + $0xc4] sm:$0xf]
      %v280 = vld [vmem:[%s213 + $0xc8] sm:$0xf]
      %v281 = vld [vmem:[%s213 + $0xcc] sm:$0xf]
      %v282 = vld [vmem:[%s213 + $0xd0] sm:$0xf]
      %v283 = vld [vmem:[%s213 + $0xd4] sm:$0xf]
      %v284 = vld [vmem:[%s213 + $0xd8] sm:$0xf]
      %v285 = vld [vmem:[%s213 + $0xdc] sm:$0xf]
      %v286 = vld [vmem:[%s213 + $0xe0] sm:$0xf]
      %v287 = vld [vmem:[%s213 + $0xe4] sm:$0xf]
      %v288 = vld [vmem:[%s213 + $0xe8] sm:$0xf]
      %v289 = vld [vmem:[%s213 + $0xec] sm:$0xf]
      %v290 = vld [vmem:[%s213 + $0xf0] sm:$0xf]
      %v291 = vld [vmem:[%s213 + $0xf4] sm:$0xf]
      %v292 = vld [vmem:[%s213 + $0xf8] sm:$0xf]
      %v293 = vld [vmem:[%s213 + $0xfc] sm:$0xf]
      %v294 = vld [vmem:[%s219] sm:$0xf]
      %v295 = vld [vmem:[%s219 + $0x4] sm:$0xf]
      %v296 = vld [vmem:[%s219 + $0x8] sm:$0xf]
      %v297 = vld [vmem:[%s219 + $0xc] sm:$0xf]
      %v298 = vld [vmem:[%s219 + $0x10] sm:$0xf]
      %v299 = vld [vmem:[%s219 + $0x14] sm:$0xf]
      %v300 = vld [vmem:[%s219 + $0x18] sm:$0xf]
      %v301 = vld [vmem:[%s219 + $0x1c] sm:$0xf]
      %v302 = vld [vmem:[%s219 + $0x20] sm:$0xf]
      %v303 = vld [vmem:[%s219 + $0x24] sm:$0xf]
      %v304 = vld [vmem:[%s219 + $0x28] sm:$0xf]
      %v305 = vld [vmem:[%s219 + $0x2c] sm:$0xf]
      %v306 = vld [vmem:[%s219 + $0x30] sm:$0xf]
      %v307 = vld [vmem:[%s219 + $0x34] sm:$0xf]
      %v308 = vld [vmem:[%s219 + $0x38] sm:$0xf]
      %v309 = vld [vmem:[%s219 + $0x3c] sm:$0xf]
      %v310 = vld [vmem:[%s2] sm:$0x1]
      %v312 = vperm.slane %v310, 0
      %v378 = vunpack.c.l.b16 %v230
      %v379 = vunpack.c.l.b16 %v231
      %v380 = vunpack.c.l.b16 %v232
      %v381 = vunpack.c.l.b16 %v233
      %v382 = vunpack.c.l.b16 %v234
      %v383 = vunpack.c.l.b16 %v235
      %v384 = vunpack.c.l.b16 %v236
      %v385 = vunpack.c.l.b16 %v237
      %v386 = vunpack.c.l.b16 %v238
      %v387 = vunpack.c.l.b16 %v239
      %v388 = vunpack.c.l.b16 %v240
      %v389 = vunpack.c.l.b16 %v241
      %v390 = vunpack.c.l.b16 %v242
      %v391 = vunpack.c.l.b16 %v243
      %v392 = vunpack.c.l.b16 %v244
      %v393 = vunpack.c.l.b16 %v245
      %v394 = vunpack.c.l.b16 %v246
      %v395 = vunpack.c.l.b16 %v247
      %v396 = vunpack.c.l.b16 %v248
      %v397 = vunpack.c.l.b16 %v249
      %v398 = vunpack.c.l.b16 %v250
      %v399 = vunpack.c.l.b16 %v251
      %v400 = vunpack.c.l.b16 %v252
      %v401 = vunpack.c.l.b16 %v253
      %v402 = vunpack.c.l.b16 %v254
      %v403 = vunpack.c.l.b16 %v255
      %v404 = vunpack.c.l.b16 %v256
      %v405 = vunpack.c.l.b16 %v257
      %v406 = vunpack.c.l.b16 %v258
      %v407 = vunpack.c.l.b16 %v259
      %v408 = vunpack.c.l.b16 %v260
      %v409 = vunpack.c.l.b16 %v261
      %v410 = vunpack.c.l.b16 %v262
      %v411 = vunpack.c.l.b16 %v263
      %v412 = vunpack.c.l.b16 %v264
      %v413 = vunpack.c.l.b16 %v265
      %v414 = vunpack.c.l.b16 %v266
      %v415 = vunpack.c.l.b16 %v267
      %v416 = vunpack.c.l.b16 %v268
      %v417 = vunpack.c.l.b16 %v269
      %v418 = vunpack.c.l.b16 %v270
      %v419 = vunpack.c.l.b16 %v271
      %v420 = vunpack.c.l.b16 %v272
      %v421 = vunpack.c.l.b16 %v273
      %v422 = vunpack.c.l.b16 %v274
      %v423 = vunpack.c.l.b16 %v275
      %v424 = vunpack.c.l.b16 %v276
      %v425 = vunpack.c.l.b16 %v277
      %v426 = vunpack.c.l.b16 %v278
      %v427 = vunpack.c.l.b16 %v279
      %v428 = vunpack.c.l.b16 %v280
      %v429 = vunpack.c.l.b16 %v281
      %v430 = vunpack.c.l.b16 %v282
      %v431 = vunpack.c.l.b16 %v283
      %v432 = vunpack.c.l.b16 %v284
      %v433 = vunpack.c.l.b16 %v285
      %v434 = vunpack.c.l.b16 %v286
      %v435 = vunpack.c.l.b16 %v287
      %v436 = vunpack.c.l.b16 %v288
      %v437 = vunpack.c.l.b16 %v289
      %v438 = vunpack.c.l.b16 %v290
      %v439 = vunpack.c.l.b16 %v291
      %v440 = vunpack.c.l.b16 %v292
      %v441 = vunpack.c.l.b16 %v293
      %v442 = vpack.c.b16 %v379, %v378
      %v443 = vpack.c.b16 %v381, %v380
      %v444 = vpack.c.b16 %v383, %v382
      %v445 = vpack.c.b16 %v385, %v384
      %v446 = vpack.c.b16 %v387, %v386
      %v447 = vpack.c.b16 %v389, %v388
      %v448 = vpack.c.b16 %v391, %v390
      %v449 = vpack.c.b16 %v393, %v392
      %v450 = vpack.c.b16 %v395, %v394
      %v451 = vpack.c.b16 %v397, %v396
      %v452 = vpack.c.b16 %v399, %v398
      %v453 = vpack.c.b16 %v401, %v400
      %v454 = vpack.c.b16 %v403, %v402
      %v455 = vpack.c.b16 %v405, %v404
      %v456 = vpack.c.b16 %v407, %v406
      %v457 = vpack.c.b16 %v409, %v408
      %v458 = vpack.c.b16 %v411, %v410
      %v459 = vpack.c.b16 %v413, %v412
      %v460 = vpack.c.b16 %v415, %v414
      %v461 = vpack.c.b16 %v417, %v416
      %v462 = vpack.c.b16 %v419, %v418
      %v463 = vpack.c.b16 %v421, %v420
      %v464 = vpack.c.b16 %v423, %v422
      %v465 = vpack.c.b16 %v425, %v424
      %v466 = vpack.c.b16 %v427, %v426
      %v467 = vpack.c.b16 %v429, %v428
      %v468 = vpack.c.b16 %v431, %v430
      %v469 = vpack.c.b16 %v433, %v432
      %v470 = vpack.c.b16 %v435, %v434
      %v471 = vpack.c.b16 %v437, %v436
      %v472 = vpack.c.b16 %v439, %v438
      %v473 = vpack.c.b16 %v441, %v440
      %v522 = vunpack.c.l.b16 %v294
      %v523 = vunpack.c.l.b16 %v295
      %v524 = vunpack.c.l.b16 %v296
      %v525 = vunpack.c.l.b16 %v297
      %v526 = vunpack.c.l.b16 %v298
      %v527 = vunpack.c.l.b16 %v299
      %v528 = vunpack.c.l.b16 %v300
      %v529 = vunpack.c.l.b16 %v301
      %v530 = vunpack.c.l.b16 %v302
      %v531 = vunpack.c.l.b16 %v303
      %v532 = vunpack.c.l.b16 %v304
      %v533 = vunpack.c.l.b16 %v305
      %v534 = vunpack.c.l.b16 %v306
      %v535 = vunpack.c.l.b16 %v307
      %v536 = vunpack.c.l.b16 %v308
      %v537 = vunpack.c.l.b16 %v309
      %v538 = vpack.c.b16 %v523, %v522
      %v539 = vpack.c.b16 %v525, %v524
      %v540 = vpack.c.b16 %v527, %v526
      %v541 = vpack.c.b16 %v529, %v528
      %v542 = vpack.c.b16 %v531, %v530
      %v543 = vpack.c.b16 %v533, %v532
      %v544 = vpack.c.b16 %v535, %v534
      %v545 = vpack.c.b16 %v537, %v536
      %554 = vmatpush.bf16.msra.mxu0 %v545
      %555 = vmatpush.bf16.msra.mxu0 %v544
      %556 = vmatpush.bf16.msra.mxu0 %v543
      %557 = vmatpush.bf16.msra.mxu0 %v542
      %558 = vmatpush.bf16.msra.mxu0 %v541
      %559 = vmatpush.bf16.msra.mxu0 %v540
      %560 = vmatpush.bf16.msra.mxu0 %v539
      %561 = vmatpush.bf16.msra.mxu0 %v538
      %562 = vmatmul.bf16.gmra.mxu0 %v442
      %v563 = vpop.f32.mrf.mxu0
      %v564 = vadd.f32 %v312, %v563
      %v565 = vpop.f32.mrf.mxu0
      %v566 = vadd.f32 %v312, %v565
      %567 = vmatmul.bf16.gmra.mxu0 %v443
      %v568 = vpop.f32.mrf.mxu0
      %v569 = vadd.f32 %v312, %v568
      %v570 = vpop.f32.mrf.mxu0
      %v571 = vadd.f32 %v312, %v570
      %572 = vmatmul.bf16.gmra.mxu0 %v444
      %v573 = vpop.f32.mrf.mxu0
      %v574 = vadd.f32 %v312, %v573
      %v575 = vpop.f32.mrf.mxu0
      %v576 = vadd.f32 %v312, %v575
      %577 = vmatmul.bf16.gmra.mxu0 %v445
      %v578 = vpop.f32.mrf.mxu0
      %v579 = vadd.f32 %v312, %v578
      %v580 = vpop.f32.mrf.mxu0
      %v581 = vadd.f32 %v312, %v580
      %582 = vmatmul.bf16.gmra.mxu0 %v446
      %v583 = vpop.f32.mrf.mxu0
      %v584 = vadd.f32 %v312, %v583
      %v585 = vpop.f32.mrf.mxu0
      %v586 = vadd.f32 %v312, %v585
      %587 = vmatmul.bf16.gmra.mxu0 %v447
      %v588 = vpop.f32.mrf.mxu0
      %v589 = vadd.f32 %v312, %v588
      %v590 = vpop.f32.mrf.mxu0
      %v591 = vadd.f32 %v312, %v590
      %592 = vmatmul.bf16.gmra.mxu0 %v448
      %v593 = vpop.f32.mrf.mxu0
      %v594 = vadd.f32 %v312, %v593
      %v595 = vpop.f32.mrf.mxu0
      %v596 = vadd.f32 %v312, %v595
      %597 = vmatmul.bf16.gmra.mxu0 %v449
      %v598 = vpop.f32.mrf.mxu0
      %v599 = vadd.f32 %v312, %v598
      %v600 = vpop.f32.mrf.mxu0
      %v601 = vadd.f32 %v312, %v600
      %602 = vmatmul.bf16.gmra.mxu0 %v450
      %v603 = vpop.f32.mrf.mxu0
      %v604 = vadd.f32 %v312, %v603
      %v605 = vpop.f32.mrf.mxu0
      %v606 = vadd.f32 %v312, %v605
      %607 = vmatmul.bf16.gmra.mxu0 %v451
      %v608 = vpop.f32.mrf.mxu0
      %v609 = vadd.f32 %v312, %v608
      %v610 = vpop.f32.mrf.mxu0
      %v611 = vadd.f32 %v312, %v610
      %612 = vmatmul.bf16.gmra.mxu0 %v452
      %v613 = vpop.f32.mrf.mxu0
      %v614 = vadd.f32 %v312, %v613
      %v615 = vpop.f32.mrf.mxu0
      %v616 = vadd.f32 %v312, %v615
      %617 = vmatmul.bf16.gmra.mxu0 %v453
      %v618 = vpop.f32.mrf.mxu0
      %v619 = vadd.f32 %v312, %v618
      %v620 = vpop.f32.mrf.mxu0
      %v621 = vadd.f32 %v312, %v620
      %622 = vmatmul.bf16.gmra.mxu0 %v454
      %v623 = vpop.f32.mrf.mxu0
      %v624 = vadd.f32 %v312, %v623
      %v625 = vpop.f32.mrf.mxu0
      %v626 = vadd.f32 %v312, %v625
      %627 = vmatmul.bf16.gmra.mxu0 %v455
      %v628 = vpop.f32.mrf.mxu0
      %v629 = vadd.f32 %v312, %v628
      %v630 = vpop.f32.mrf.mxu0
      %v631 = vadd.f32 %v312, %v630
      %632 = vmatmul.bf16.gmra.mxu0 %v456
      %v633 = vpop.f32.mrf.mxu0
      %v634 = vadd.f32 %v312, %v633
      %v635 = vpop.f32.mrf.mxu0
      %v636 = vadd.f32 %v312, %v635
      %637 = vmatmul.bf16.gmra.mxu0 %v457
      %v638 = vpop.f32.mrf.mxu0
      %v639 = vadd.f32 %v312, %v638
      %v640 = vpop.f32.mrf.mxu0
      %v641 = vadd.f32 %v312, %v640
      %642 = vmatmul.bf16.gmra.mxu0 %v458
      %v643 = vpop.f32.mrf.mxu0
      %v644 = vadd.f32 %v312, %v643
      %v645 = vpop.f32.mrf.mxu0
      %v646 = vadd.f32 %v312, %v645
      %647 = vmatmul.bf16.gmra.mxu0 %v459
      %v648 = vpop.f32.mrf.mxu0
      %v649 = vadd.f32 %v312, %v648
      %v650 = vpop.f32.mrf.mxu0
      %v651 = vadd.f32 %v312, %v650
      %652 = vmatmul.bf16.gmra.mxu0 %v460
      %v653 = vpop.f32.mrf.mxu0
      %v654 = vadd.f32 %v312, %v653
      %v655 = vpop.f32.mrf.mxu0
      %v656 = vadd.f32 %v312, %v655
      %657 = vmatmul.bf16.gmra.mxu0 %v461
      %v658 = vpop.f32.mrf.mxu0
      %v659 = vadd.f32 %v312, %v658
      %v660 = vpop.f32.mrf.mxu0
      %v661 = vadd.f32 %v312, %v660
      %662 = vmatmul.bf16.gmra.mxu0 %v462
      %v663 = vpop.f32.mrf.mxu0
      %v664 = vadd.f32 %v312, %v663
      %v665 = vpop.f32.mrf.mxu0
      %v666 = vadd.f32 %v312, %v665
      %667 = vmatmul.bf16.gmra.mxu0 %v463
      %v668 = vpop.f32.mrf.mxu0
      %v669 = vadd.f32 %v312, %v668
      %v670 = vpop.f32.mrf.mxu0
      %v671 = vadd.f32 %v312, %v670
      %672 = vmatmul.bf16.gmra.mxu0 %v464
      %v673 = vpop.f32.mrf.mxu0
      %v674 = vadd.f32 %v312, %v673
      %v675 = vpop.f32.mrf.mxu0
      %v676 = vadd.f32 %v312, %v675
      %677 = vmatmul.bf16.gmra.mxu0 %v465
      %v678 = vpop.f32.mrf.mxu0
      %v679 = vadd.f32 %v312, %v678
      %v680 = vpop.f32.mrf.mxu0
      %v681 = vadd.f32 %v312, %v680
      %682 = vmatmul.bf16.gmra.mxu0 %v466
      %v683 = vpop.f32.mrf.mxu0
      %v684 = vadd.f32 %v312, %v683
      %v685 = vpop.f32.mrf.mxu0
      %v686 = vadd.f32 %v312, %v685
      %687 = vmatmul.bf16.gmra.mxu0 %v467
      %v688 = vpop.f32.mrf.mxu0
      %v689 = vadd.f32 %v312, %v688
      %v690 = vpop.f32.mrf.mxu0
      %v691 = vadd.f32 %v312, %v690
      %692 = vmatmul.bf16.gmra.mxu0 %v468
      %v693 = vpop.f32.mrf.mxu0
      %v694 = vadd.f32 %v312, %v693
      %v695 = vpop.f32.mrf.mxu0
      %v696 = vadd.f32 %v312, %v695
      %697 = vmatmul.bf16.gmra.mxu0 %v469
      %v698 = vpop.f32.mrf.mxu0
      %v699 = vadd.f32 %v312, %v698
      %v700 = vpop.f32.mrf.mxu0
      %v701 = vadd.f32 %v312, %v700
      %702 = vmatmul.bf16.gmra.mxu0 %v470
      %v703 = vpop.f32.mrf.mxu0
      %v704 = vadd.f32 %v312, %v703
      %v705 = vpop.f32.mrf.mxu0
      %v706 = vadd.f32 %v312, %v705
      %707 = vmatmul.bf16.gmra.mxu0 %v471
      %v708 = vpop.f32.mrf.mxu0
      %v709 = vadd.f32 %v312, %v708
      %v710 = vpop.f32.mrf.mxu0
      %v711 = vadd.f32 %v312, %v710
      %712 = vmatmul.bf16.gmra.mxu0 %v472
      %v713 = vpop.f32.mrf.mxu0
      %v714 = vadd.f32 %v312, %v713
      %v715 = vpop.f32.mrf.mxu0
      %v716 = vadd.f32 %v312, %v715
      %717 = vmatmul.bf16.gmra.mxu0 %v473
      %v718 = vpop.f32.mrf.mxu0
      %v719 = vadd.f32 %v312, %v718
      %v720 = vpop.f32.mrf.mxu0
      %v721 = vadd.f32 %v312, %v720
      %722 = vdwg.mxu0
      %vm723 = vcmp.gt.f32.partialorder %v564, 0.0
      %vm724 = vcmp.gt.f32.partialorder %v566, 0.0
      %vm725 = vcmp.gt.f32.partialorder %v569, 0.0
      %vm726 = vcmp.gt.f32.partialorder %v571, 0.0
      %vm727 = vcmp.gt.f32.partialorder %v574, 0.0
      %vm728 = vcmp.gt.f32.partialorder %v576, 0.0
      %vm729 = vcmp.gt.f32.partialorder %v579, 0.0
      %vm730 = vcmp.gt.f32.partialorder %v581, 0.0
      %vm731 = vcmp.gt.f32.partialorder %v584, 0.0
      %vm732 = vcmp.gt.f32.partialorder %v586, 0.0
      %vm733 = vcmp.gt.f32.partialorder %v589, 0.0
      %vm734 = vcmp.gt.f32.partialorder %v591, 0.0
      %vm735 = vcmp.gt.f32.partialorder %v594, 0.0
      %vm736 = vcmp.gt.f32.partialorder %v596, 0.0
      %vm737 = vcmp.gt.f32.partialorder %v599, 0.0
      %vm738 = vcmp.gt.f32.partialorder %v601, 0.0
      %vm739 = vcmp.gt.f32.partialorder %v604, 0.0
      %vm740 = vcmp.gt.f32.partialorder %v606, 0.0
      %vm741 = vcmp.gt.f32.partialorder %v609, 0.0
      %vm742 = vcmp.gt.f32.partialorder %v611, 0.0
      %vm743 = vcmp.gt.f32.partialorder %v614, 0.0
      %vm744 = vcmp.gt.f32.partialorder %v616, 0.0
      %vm745 = vcmp.gt.f32.partialorder %v619, 0.0
      %vm746 = vcmp.gt.f32.partialorder %v621, 0.0
      %vm747 = vcmp.gt.f32.partialorder %v624, 0.0
      %vm748 = vcmp.gt.f32.partialorder %v626, 0.0
      %vm749 = vcmp.gt.f32.partialorder %v629, 0.0
      %vm750 = vcmp.gt.f32.partialorder %v631, 0.0
      %vm751 = vcmp.gt.f32.partialorder %v634, 0.0
      %vm752 = vcmp.gt.f32.partialorder %v636, 0.0
      %vm753 = vcmp.gt.f32.partialorder %v639, 0.0
      %vm754 = vcmp.gt.f32.partialorder %v641, 0.0
      %vm755 = vcmp.gt.f32.partialorder %v644, 0.0
      %vm756 = vcmp.gt.f32.partialorder %v646, 0.0
      %vm757 = vcmp.gt.f32.partialorder %v649, 0.0
      %vm758 = vcmp.gt.f32.partialorder %v651, 0.0
      %vm759 = vcmp.gt.f32.partialorder %v654, 0.0
      %vm760 = vcmp.gt.f32.partialorder %v656, 0.0
      %vm761 = vcmp.gt.f32.partialorder %v659, 0.0
      %vm762 = vcmp.gt.f32.partialorder %v661, 0.0
      %vm763 = vcmp.gt.f32.partialorder %v664, 0.0
      %vm764 = vcmp.gt.f32.partialorder %v666, 0.0
      %vm765 = vcmp.gt.f32.partialorder %v669, 0.0
      %vm766 = vcmp.gt.f32.partialorder %v671, 0.0
      %vm767 = vcmp.gt.f32.partialorder %v674, 0.0
      %vm768 = vcmp.gt.f32.partialorder %v676, 0.0
      %vm769 = vcmp.gt.f32.partialorder %v679, 0.0
      %vm770 = vcmp.gt.f32.partialorder %v681, 0.0
      %vm771 = vcmp.gt.f32.partialorder %v684, 0.0
      %vm772 = vcmp.gt.f32.partialorder %v686, 0.0
      %vm773 = vcmp.gt.f32.partialorder %v689, 0.0
      %vm774 = vcmp.gt.f32.partialorder %v691, 0.0
      %vm775 = vcmp.gt.f32.partialorder %v694, 0.0
      %vm776 = vcmp.gt.f32.partialorder %v696, 0.0
      %vm777 = vcmp.gt.f32.partialorder %v699, 0.0
      %vm778 = vcmp.gt.f32.partialorder %v701, 0.0
      %vm779 = vcmp.gt.f32.partialorder %v704, 0.0
      %vm780 = vcmp.gt.f32.partialorder %v706, 0.0
      %vm781 = vcmp.gt.f32.partialorder %v709, 0.0
      %vm782 = vcmp.gt.f32.partialorder %v711, 0.0
      %vm783 = vcmp.gt.f32.partialorder %v714, 0.0
      %vm784 = vcmp.gt.f32.partialorder %v716, 0.0
      %vm785 = vcmp.gt.f32.partialorder %v719, 0.0
      %vm786 = vcmp.gt.f32.partialorder %v721, 0.0
      %v787 = vmul.f32 %v564, 0.2
      %v788 = vmul.f32 %v566, 0.2
      %v789 = vmul.f32 %v569, 0.2
      %v790 = vmul.f32 %v571, 0.2
      %v791 = vmul.f32 %v574, 0.2
      %v792 = vmul.f32 %v576, 0.2
      %v793 = vmul.f32 %v579, 0.2
      %v794 = vmul.f32 %v581, 0.2
      %v795 = vmul.f32 %v584, 0.2
      %v796 = vmul.f32 %v586, 0.2
      %v797 = vmul.f32 %v589, 0.2
      %v798 = vmul.f32 %v591, 0.2
      %v799 = vmul.f32 %v594, 0.2
      %v800 = vmul.f32 %v596, 0.2
      %v801 = vmul.f32 %v599, 0.2
      %v802 = vmul.f32 %v601, 0.2
      %v803 = vmul.f32 %v604, 0.2
      %v804 = vmul.f32 %v606, 0.2
      %v805 = vmul.f32 %v609, 0.2
      %v806 = vmul.f32 %v611, 0.2
      %v807 = vmul.f32 %v614, 0.2
      %v808 = vmul.f32 %v616, 0.2
      %v809 = vmul.f32 %v619, 0.2
      %v810 = vmul.f32 %v621, 0.2
      %v811 = vmul.f32 %v624, 0.2
      %v812 = vmul.f32 %v626, 0.2
      %v813 = vmul.f32 %v629, 0.2
      %v814 = vmul.f32 %v631, 0.2
      %v815 = vmul.f32 %v634, 0.2
      %v816 = vmul.f32 %v636, 0.2
      %v817 = vmul.f32 %v639, 0.2
      %v818 = vmul.f32 %v641, 0.2
      %v819 = vmul.f32 %v644, 0.2
      %v820 = vmul.f32 %v646, 0.2
      %v821 = vmul.f32 %v649, 0.2
      %v822 = vmul.f32 %v651, 0.2
      %v823 = vmul.f32 %v654, 0.2
      %v824 = vmul.f32 %v656, 0.2
      %v825 = vmul.f32 %v659, 0.2
      %v826 = vmul.f32 %v661, 0.2
      %v827 = vmul.f32 %v664, 0.2
      %v828 = vmul.f32 %v666, 0.2
      %v829 = vmul.f32 %v669, 0.2
      %v830 = vmul.f32 %v671, 0.2
      %v831 = vmul.f32 %v674, 0.2
      %v832 = vmul.f32 %v676, 0.2
      %v833 = vmul.f32 %v679, 0.2
      %v834 = vmul.f32 %v681, 0.2
      %v835 = vmul.f32 %v684, 0.2
      %v836 = vmul.f32 %v686, 0.2
      %v837 = vmul.f32 %v689, 0.2
      %v838 = vmul.f32 %v691, 0.2
      %v839 = vmul.f32 %v694, 0.2
      %v840 = vmul.f32 %v696, 0.2
      %v841 = vmul.f32 %v699, 0.2
      %v842 = vmul.f32 %v701, 0.2
      %v843 = vmul.f32 %v704, 0.2
      %v844 = vmul.f32 %v706, 0.2
      %v845 = vmul.f32 %v709, 0.2
      %v846 = vmul.f32 %v711, 0.2
      %v847 = vmul.f32 %v714, 0.2
      %v848 = vmul.f32 %v716, 0.2
      %v849 = vmul.f32 %v719, 0.2
      %v850 = vmul.f32 %v721, 0.2
      %v851 = vsel %vm723, %v564, %v787
      %v852 = vsel %vm724, %v566, %v788
      %v853 = vsel %vm725, %v569, %v789
      %v854 = vsel %vm726, %v571, %v790
      %v855 = vsel %vm727, %v574, %v791
      %v856 = vsel %vm728, %v576, %v792
      %v857 = vsel %vm729, %v579, %v793
      %v858 = vsel %vm730, %v581, %v794
      %v859 = vsel %vm731, %v584, %v795
      %v860 = vsel %vm732, %v586, %v796
      %v861 = vsel %vm733, %v589, %v797
      %v862 = vsel %vm734, %v591, %v798
      %v863 = vsel %vm735, %v594, %v799
      %v864 = vsel %vm736, %v596, %v800
      %v865 = vsel %vm737, %v599, %v801
      %v866 = vsel %vm738, %v601, %v802
      %v867 = vsel %vm739, %v604, %v803
      %v868 = vsel %vm740, %v606, %v804
      %v869 = vsel %vm741, %v609, %v805
      %v870 = vsel %vm742, %v611, %v806
      %v871 = vsel %vm743, %v614, %v807
      %v872 = vsel %vm744, %v616, %v808
      %v873 = vsel %vm745, %v619, %v809
      %v874 = vsel %vm746, %v621, %v810
      %v875 = vsel %vm747, %v624, %v811
      %v876 = vsel %vm748, %v626, %v812
      %v877 = vsel %vm749, %v629, %v813
      %v878 = vsel %vm750, %v631, %v814
      %v879 = vsel %vm751, %v634, %v815
      %v880 = vsel %vm752, %v636, %v816
      %v881 = vsel %vm753, %v639, %v817
      %v882 = vsel %vm754, %v641, %v818
      %v883 = vsel %vm755, %v644, %v819
      %v884 = vsel %vm756, %v646, %v820
      %v885 = vsel %vm757, %v649, %v821
      %v886 = vsel %vm758, %v651, %v822
      %v887 = vsel %vm759, %v654, %v823
      %v888 = vsel %vm760, %v656, %v824
      %v889 = vsel %vm761, %v659, %v825
      %v890 = vsel %vm762, %v661, %v826
      %v891 = vsel %vm763, %v664, %v827
      %v892 = vsel %vm764, %v666, %v828
      %v893 = vsel %vm765, %v669, %v829
      %v894 = vsel %vm766, %v671, %v830
      %v895 = vsel %vm767, %v674, %v831
      %v896 = vsel %vm768, %v676, %v832
      %v897 = vsel %vm769, %v679, %v833
      %v898 = vsel %vm770, %v681, %v834
      %v899 = vsel %vm771, %v684, %v835
      %v900 = vsel %vm772, %v686, %v836
      %v901 = vsel %vm773, %v689, %v837
      %v902 = vsel %vm774, %v691, %v838
      %v903 = vsel %vm775, %v694, %v839
      %v904 = vsel %vm776, %v696, %v840
      %v905 = vsel %vm777, %v699, %v841
      %v906 = vsel %vm778, %v701, %v842
      %v907 = vsel %vm779, %v704, %v843
      %v908 = vsel %vm780, %v706, %v844
      %v909 = vsel %vm781, %v709, %v845
      %v910 = vsel %vm782, %v711, %v846
      %v911 = vsel %vm783, %v714, %v847
      %v912 = vsel %vm784, %v716, %v848
      %v913 = vsel %vm785, %v719, %v849
      %v914 = vsel %vm786, %v721, %v850
      %v915 = vpack.c.bf16 %v851, %v851
      %v916 = vpack.c.bf16 %v852, %v852
      %v917 = vpack.c.bf16 %v853, %v853
      %v918 = vpack.c.bf16 %v854, %v854
      %v919 = vpack.c.bf16 %v855, %v855
      %v920 = vpack.c.bf16 %v856, %v856
      %v921 = vpack.c.bf16 %v857, %v857
      %v922 = vpack.c.bf16 %v858, %v858
      %v923 = vpack.c.bf16 %v859, %v859
      %v924 = vpack.c.bf16 %v860, %v860
      %v925 = vpack.c.bf16 %v861, %v861
      %v926 = vpack.c.bf16 %v862, %v862
      %v927 = vpack.c.bf16 %v863, %v863
      %v928 = vpack.c.bf16 %v864, %v864
      %v929 = vpack.c.bf16 %v865, %v865
      %v930 = vpack.c.bf16 %v866, %v866
      %v931 = vpack.c.bf16 %v867, %v867
      %v932 = vpack.c.bf16 %v868, %v868
      %v933 = vpack.c.bf16 %v869, %v869
      %v934 = vpack.c.bf16 %v870, %v870
      %v935 = vpack.c.bf16 %v871, %v871
      %v936 = vpack.c.bf16 %v872, %v872
      %v937 = vpack.c.bf16 %v873, %v873
      %v938 = vpack.c.bf16 %v874, %v874
      %v939 = vpack.c.bf16 %v875, %v875
      %v940 = vpack.c.bf16 %v876, %v876
      %v941 = vpack.c.bf16 %v877, %v877
      %v942 = vpack.c.bf16 %v878, %v878
      %v943 = vpack.c.bf16 %v879, %v879
      %v944 = vpack.c.bf16 %v880, %v880
      %v945 = vpack.c.bf16 %v881, %v881
      %v946 = vpack.c.bf16 %v882, %v882
      %v947 = vpack.c.bf16 %v883, %v883
      %v948 = vpack.c.bf16 %v884, %v884
      %v949 = vpack.c.bf16 %v885, %v885
      %v950 = vpack.c.bf16 %v886, %v886
      %v951 = vpack.c.bf16 %v887, %v887
      %v952 = vpack.c.bf16 %v888, %v888
      %v953 = vpack.c.bf16 %v889, %v889
      %v954 = vpack.c.bf16 %v890, %v890
      %v955 = vpack.c.bf16 %v891, %v891
      %v956 = vpack.c.bf16 %v892, %v892
      %v957 = vpack.c.bf16 %v893, %v893
      %v958 = vpack.c.bf16 %v894, %v894
      %v959 = vpack.c.bf16 %v895, %v895
      %v960 = vpack.c.bf16 %v896, %v896
      %v961 = vpack.c.bf16 %v897, %v897
      %v962 = vpack.c.bf16 %v898, %v898
      %v963 = vpack.c.bf16 %v899, %v899
      %v964 = vpack.c.bf16 %v900, %v900
      %v965 = vpack.c.bf16 %v901, %v901
      %v966 = vpack.c.bf16 %v902, %v902
      %v967 = vpack.c.bf16 %v903, %v903
      %v968 = vpack.c.bf16 %v904, %v904
      %v969 = vpack.c.bf16 %v905, %v905
      %v970 = vpack.c.bf16 %v906, %v906
      %v971 = vpack.c.bf16 %v907, %v907
      %v972 = vpack.c.bf16 %v908, %v908
      %v973 = vpack.c.bf16 %v909, %v909
      %v974 = vpack.c.bf16 %v910, %v910
      %v975 = vpack.c.bf16 %v911, %v911
      %v976 = vpack.c.bf16 %v912, %v912
      %v977 = vpack.c.bf16 %v913, %v913
      %v978 = vpack.c.bf16 %v914, %v914
      %979 = vst [vmem:[%s228] sm:$0xf] %v915
      %980 = vst [vmem:[%s228 + $0x4] sm:$0xf] %v916
      %981 = vst [vmem:[%s228 + $0x8] sm:$0xf] %v917
      %982 = vst [vmem:[%s228 + $0xc] sm:$0xf] %v918
      %983 = vst [vmem:[%s228 + $0x10] sm:$0xf] %v919
      %984 = vst [vmem:[%s228 + $0x14] sm:$0xf] %v920
      %985 = vst [vmem:[%s228 + $0x18] sm:$0xf] %v921
      %986 = vst [vmem:[%s228 + $0x1c] sm:$0xf] %v922
      %987 = vst [vmem:[%s228 + $0x20] sm:$0xf] %v923
      %988 = vst [vmem:[%s228 + $0x24] sm:$0xf] %v924
      %989 = vst [vmem:[%s228 + $0x28] sm:$0xf] %v925
      %990 = vst [vmem:[%s228 + $0x2c] sm:$0xf] %v926
      %991 = vst [vmem:[%s228 + $0x30] sm:$0xf] %v927
      %992 = vst [vmem:[%s228 + $0x34] sm:$0xf] %v928
      %993 = vst [vmem:[%s228 + $0x38] sm:$0xf] %v929
      %994 = vst [vmem:[%s228 + $0x3c] sm:$0xf] %v930
      %995 = vst [vmem:[%s228 + $0x40] sm:$0xf] %v931
      %996 = vst [vmem:[%s228 + $0x44] sm:$0xf] %v932
      %997 = vst [vmem:[%s228 + $0x48] sm:$0xf] %v933
      %998 = vst [vmem:[%s228 + $0x4c] sm:$0xf] %v934
      %999 = vst [vmem:[%s228 + $0x50] sm:$0xf] %v935
      %1000 = vst [vmem:[%s228 + $0x54] sm:$0xf] %v936
      %1001 = vst [vmem:[%s228 + $0x58] sm:$0xf] %v937
      %1002 = vst [vmem:[%s228 + $0x5c] sm:$0xf] %v938
      %1003 = vst [vmem:[%s228 + $0x60] sm:$0xf] %v939
      %1004 = vst [vmem:[%s228 + $0x64] sm:$0xf] %v940
      %1005 = vst [vmem:[%s228 + $0x68] sm:$0xf] %v941
      %1006 = vst [vmem:[%s228 + $0x6c] sm:$0xf] %v942
      %1007 = vst [vmem:[%s228 + $0x70] sm:$0xf] %v943
      %1008 = vst [vmem:[%s228 + $0x74] sm:$0xf] %v944
      %1009 = vst [vmem:[%s228 + $0x78] sm:$0xf] %v945
      %1010 = vst [vmem:[%s228 + $0x7c] sm:$0xf] %v946
      %1011 = vst [vmem:[%s228 + $0x80] sm:$0xf] %v947
      %1012 = vst [vmem:[%s228 + $0x84] sm:$0xf] %v948
      %1013 = vst [vmem:[%s228 + $0x88] sm:$0xf] %v949
      %1014 = vst [vmem:[%s228 + $0x8c] sm:$0xf] %v950
      %1015 = vst [vmem:[%s228 + $0x90] sm:$0xf] %v951
      %1016 = vst [vmem:[%s228 + $0x94] sm:$0xf] %v952
      %1017 = vst [vmem:[%s228 + $0x98] sm:$0xf] %v953
      %1018 = vst [vmem:[%s228 + $0x9c] sm:$0xf] %v954
      %1019 = vst [vmem:[%s228 + $0xa0] sm:$0xf] %v955
      %1020 = vst [vmem:[%s228 + $0xa4] sm:$0xf] %v956
      %1021 = vst [vmem:[%s228 + $0xa8] sm:$0xf] %v957
      %1022 = vst [vmem:[%s228 + $0xac] sm:$0xf] %v958
      %1023 = vst [vmem:[%s228 + $0xb0] sm:$0xf] %v959
      %1024 = vst [vmem:[%s228 + $0xb4] sm:$0xf] %v960
      %1025 = vst [vmem:[%s228 + $0xb8] sm:$0xf] %v961
      %1026 = vst [vmem:[%s228 + $0xbc] sm:$0xf] %v962
      %1027 = vst [vmem:[%s228 + $0xc0] sm:$0xf] %v963
      %1028 = vst [vmem:[%s228 + $0xc4] sm:$0xf] %v964
      %1029 = vst [vmem:[%s228 + $0xc8] sm:$0xf] %v965
      %1030 = vst [vmem:[%s228 + $0xcc] sm:$0xf] %v966
      %1031 = vst [vmem:[%s228 + $0xd0] sm:$0xf] %v967
      %1032 = vst [vmem:[%s228 + $0xd4] sm:$0xf] %v968
      %1033 = vst [vmem:[%s228 + $0xd8] sm:$0xf] %v969
      %1034 = vst [vmem:[%s228 + $0xdc] sm:$0xf] %v970
      %1035 = vst [vmem:[%s228 + $0xe0] sm:$0xf] %v971
      %1036 = vst [vmem:[%s228 + $0xe4] sm:$0xf] %v972
      %1037 = vst [vmem:[%s228 + $0xe8] sm:$0xf] %v973
      %1038 = vst [vmem:[%s228 + $0xec] sm:$0xf] %v974
      %1039 = vst [vmem:[%s228 + $0xf0] sm:$0xf] %v975
      %1040 = vst [vmem:[%s228 + $0xf4] sm:$0xf] %v976
      %1041 = vst [vmem:[%s228 + $0xf8] sm:$0xf] %v977
      %1042 = vst [vmem:[%s228 + $0xfc] sm:$0xf] %v978
      %s1043 = smul.u32 64, %s19
      %p1044 = scmp.lt.s32.totalorder %s18, 0
      %s1045 = scalar_select %p1044, %s18, 0
      %p1046 = scmp.lt.s32.totalorder %s1043, 255
      %s1047 = scalar_select %p1046, %s1043, 255
      %s1048 = smul.addr %s1045, 256
      %s1049 = sadd.s32 %s1047, %s1048
      %s1050 = smul.addr %s1049, 4
      %s1051 = scalar_lea.vmem %s3, %s1050
      // Predicated region
      $region33: #{_lambda_.15} parent=31 // pred_check
        %p1052 = pneg %p121
      $region34: #{_lambda_.15} parent=31 // pred_check_branch
        %1054 = sbr.rel (%p1052) target = $region36
      $region35: #{_lambda_.15} parent=31 // pred_region
        %s1055 = smul.u32 64, %s19
      $region36: #{_lambda_.15} parent=31 // pred_fallthru
        _
    $region32: #{_lambda_.15} parent=5 // pred_fallthru
      _
    %p1056 = scmp.le.s32.totalorder 2, %s9
    // Predicated region
    $region37: #{_lambda_.15} parent=5 // pred_check
      %p1057 = pneg %p1056
    $region38: #{_lambda_.15} parent=5 // pred_check_branch
      %1059 = sbr.rel (%p1057) target = $region40
    $region39: #{_lambda_.15} parent=5 // pred_region
      %s1060 = ssub.s32 %s9, 2
      // Predicated region
      $region41: #{_lambda_.15} parent=39 // pred_check
        %p1061 = pneg %p127
      $region42: #{_lambda_.15} parent=39 // pred_check_branch
        %1063 = sbr.rel (%p1061) target = $region44
      $region43: #{_lambda_.15} parent=39 // pred_region
        %s1064 = smul.u32 64, %s21
        %p1065 = scmp.lt.s32.totalorder %s20, 0
        %s1066 = scalar_select %p1065, %s20, 0
        %p1067 = scmp.lt.s32.totalorder %s1064, 255
        %s1068 = scalar_select %p1067, %s1064, 255
        %s1069 = smul.addr %s1066, 256
        %s1070 = sadd.s32 %s1068, %s1069
        %s1071 = smul.addr %s1070, 4
        %s1072 = scalar_lea.vmem %s3, %s1071
      $region44: #{_lambda_.15} parent=39 // pred_fallthru
        _
    $region40: #{_lambda_.15} parent=5 // pred_fallthru
      _
  $region6: #{_lambda_.15} parent=0 // loop_footer
    %s13 = sadd.s32 1, %s9
  $region7: #{_lambda_.15} parent=0 // loop_footer_branch
    %8 = sbr.rel target = $region3
  $region8: #{_lambda_.15} parent=0 // loop_exit
    _

// kernel: _lambda_.16
$region0: #{_lambda_.16}
  #allocation0 [shape = 'u32[]', space=smem, size = 0x4, offset = 0x4, fixed_abs, tag = 'smem constant byte address 0x4 - core index']
  #allocation1 [shape = 'u32[72,128]{1,0:T(1,128)}', space=vmem, size = 0x9000, scoped, tag = 'internal scratch']
  %s0 = inlined_call_operand.vmem [shape: bf16[1,512,256], index: 0, kind: input, shape index: {}]
  %s1 = inlined_call_operand.vmem [shape: bf16[1,256,128], index: 1, kind: input, shape index: {}]
  %s2 = inlined_call_operand.vmem [shape: f32[1,128], index: 2, kind: input, shape index: {}]
  %s3 = inlined_call_operand.vmem [shape: bf16[1,512,128], index: 3, kind: output, shape index: {}]
  %s4 = sld [smem:[#allocation0]]
  $region22: #{_lambda_.16} parent=0
    _
  %s6 = ssub.s32 1, %s4
  %s7 = scalar_select 0, %s6, %s4
  // Predicated region
  $region2: #{_lambda_.16} parent=0 // pred_check
    _
  $region3: #{_lambda_.16} parent=0 // pred_check_branch
    %9 = sbr.rel (0) target = $region5
  $region4: #{_lambda_.16} parent=0 // pred_region
    _
  $region5: #{_lambda_.16} parent=0 // pred_fallthru
    _
  // Predicated region
  $region6: #{_lambda_.16} parent=0 // pred_check
    _
  $region7: #{_lambda_.16} parent=0 // pred_check_branch
    %11 = sbr.rel (0) target = $region9
  $region8: #{_lambda_.16} parent=0 // pred_region
    _
  $region9: #{_lambda_.16} parent=0 // pred_fallthru
    _
  // Predicated region
  $region10: #{_lambda_.16} parent=0 // pred_check
    _
  $region11: #{_lambda_.16} parent=0 // pred_check_branch
    %13 = sbr.rel (0) target = $region13
  $region12: #{_lambda_.16} parent=0 // pred_region
    _
  $region13: #{_lambda_.16} parent=0 // pred_fallthru
    _
  %v14 = vld [vmem:[%s0] sm:$0xff]
  %v15 = vld [vmem:[%s0 + $0x8] sm:$0xff]
  %v16 = vld [vmem:[%s0 + $0x10] sm:$0xff]
  %v17 = vld [vmem:[%s0 + $0x18] sm:$0xff]
  %v18 = vld [vmem:[%s0 + $0x20] sm:$0xff]
  %v19 = vld [vmem:[%s0 + $0x28] sm:$0xff]
  %v20 = vld [vmem:[%s0 + $0x30] sm:$0xff]
  %v21 = vld [vmem:[%s0 + $0x38] sm:$0xff]
  %v22 = vld [vmem:[%s0 + $0x40] sm:$0xff]
  %v23 = vld [vmem:[%s0 + $0x48] sm:$0xff]
  %v24 = vld [vmem:[%s0 + $0x50] sm:$0xff]
  %v25 = vld [vmem:[%s0 + $0x58] sm:$0xff]
  %v26 = vld [vmem:[%s0 + $0x60] sm:$0xff]
  %v27 = vld [vmem:[%s0 + $0x68] sm:$0xff]
  %v28 = vld [vmem:[%s0 + $0x70] sm:$0xff]
  %v29 = vld [vmem:[%s0 + $0x78] sm:$0xff]
  %v30 = vld [vmem:[%s0 + $0x80] sm:$0xff]
  %v31 = vld [vmem:[%s0 + $0x88] sm:$0xff]
  %v32 = vld [vmem:[%s0 + $0x90] sm:$0xff]
  %v33 = vld [vmem:[%s0 + $0x98] sm:$0xff]
  %v34 = vld [vmem:[%s0 + $0xa0] sm:$0xff]
  %v35 = vld [vmem:[%s0 + $0xa8] sm:$0xff]
  %v36 = vld [vmem:[%s0 + $0xb0] sm:$0xff]
  %v37 = vld [vmem:[%s0 + $0xb8] sm:$0xff]
  %v38 = vld [vmem:[%s0 + $0xc0] sm:$0xff]
  %v39 = vld [vmem:[%s0 + $0xc8] sm:$0xff]
  %v40 = vld [vmem:[%s0 + $0xd0] sm:$0xff]
  %v41 = vld [vmem:[%s0 + $0xd8] sm:$0xff]
  %v42 = vld [vmem:[%s0 + $0xe0] sm:$0xff]
  %v43 = vld [vmem:[%s0 + $0xe8] sm:$0xff]
  %v44 = vld [vmem:[%s0 + $0xf0] sm:$0xff]
  %v45 = vld [vmem:[%s0 + $0xf8] sm:$0xff]
  %v46 = vld [vmem:[%s0 + $0x100] sm:$0xff]
  %v47 = vld [vmem:[%s0 + $0x108] sm:$0xff]
  %v48 = vld [vmem:[%s0 + $0x110] sm:$0xff]
  %v49 = vld [vmem:[%s0 + $0x118] sm:$0xff]
  %v50 = vld [vmem:[%s0 + $0x120] sm:$0xff]
  %v51 = vld [vmem:[%s0 + $0x128] sm:$0xff]
  %v52 = vld [vmem:[%s0 + $0x130] sm:$0xff]
  %v53 = vld [vmem:[%s0 + $0x138] sm:$0xff]
  %v54 = vld [vmem:[%s0 + $0x140] sm:$0xff]
  %v55 = vld [vmem:[%s0 + $0x148] sm:$0xff]
  %v56 = vld [vmem:[%s0 + $0x150] sm:$0xff]
  %v57 = vld [vmem:[%s0 + $0x158] sm:$0xff]
  %v58 = vld [vmem:[%s0 + $0x160] sm:$0xff]
  %v59 = vld [vmem:[%s0 + $0x168] sm:$0xff]
  %v60 = vld [vmem:[%s0 + $0x170] sm:$0xff]
  %v61 = vld [vmem:[%s0 + $0x178] sm:$0xff]
  %v62 = vld [vmem:[%s0 + $0x180] sm:$0xff]
  %v63 = vld [vmem:[%s0 + $0x188] sm:$0xff]
  %v64 = vld [vmem:[%s0 + $0x190] sm:$0xff]
  %v65 = vld [vmem:[%s0 + $0x198] sm:$0xff]
  %v66 = vld [vmem:[%s0 + $0x1a0] sm:$0xff]
  %v67 = vld [vmem:[%s0 + $0x1a8] sm:$0xff]
  %v68 = vld [vmem:[%s0 + $0x1b0] sm:$0xff]
  %v69 = vld [vmem:[%s0 + $0x1b8] sm:$0xff]
  %v70 = vld [vmem:[%s0 + $0x1c0] sm:$0xff]
  %v71 = vld [vmem:[%s0 + $0x1c8] sm:$0xff]
  %v72 = vld [vmem:[%s0 + $0x1d0] sm:$0xff]
  %v73 = vld [vmem:[%s0 + $0x1d8] sm:$0xff]
  %v74 = vld [vmem:[%s0 + $0x1e0] sm:$0xff]
  %v75 = vld [vmem:[%s0 + $0x1e8] sm:$0xff]
  %v76 = vld [vmem:[%s0 + $0x1f0] sm:$0xff]
  %v77 = vld [vmem:[%s0 + $0x1f8] sm:$0xff]
  %v78 = vld [vmem:[%s1] sm:$0xf]
  %v79 = vld [vmem:[%s1 + $0x4] sm:$0xf]
  %v80 = vld [vmem:[%s1 + $0x8] sm:$0xf]
  %v81 = vld [vmem:[%s1 + $0xc] sm:$0xf]
  %v82 = vld [vmem:[%s1 + $0x10] sm:$0xf]
  %v83 = vld [vmem:[%s1 + $0x14] sm:$0xf]
  %v84 = vld [vmem:[%s1 + $0x18] sm:$0xf]
  %v85 = vld [vmem:[%s1 + $0x1c] sm:$0xf]
  %v86 = vld [vmem:[%s1 + $0x20] sm:$0xf]
  %v87 = vld [vmem:[%s1 + $0x24] sm:$0xf]
  %v88 = vld [vmem:[%s1 + $0x28] sm:$0xf]
  %v89 = vld [vmem:[%s1 + $0x2c] sm:$0xf]
  %v90 = vld [vmem:[%s1 + $0x30] sm:$0xf]
  %v91 = vld [vmem:[%s1 + $0x34] sm:$0xf]
  %v92 = vld [vmem:[%s1 + $0x38] sm:$0xf]
  %v93 = vld [vmem:[%s1 + $0x3c] sm:$0xf]
  %v94 = vld [vmem:[%s1 + $0x40] sm:$0xf]
  %v95 = vld [vmem:[%s1 + $0x44] sm:$0xf]
  %v96 = vld [vmem:[%s1 + $0x48] sm:$0xf]
  %v97 = vld [vmem:[%s1 + $0x4c] sm:$0xf]
  %v98 = vld [vmem:[%s1 + $0x50] sm:$0xf]
  %v99 = vld [vmem:[%s1 + $0x54] sm:$0xf]
  %v100 = vld [vmem:[%s1 + $0x58] sm:$0xf]
  %v101 = vld [vmem:[%s1 + $0x5c] sm:$0xf]
  %v102 = vld [vmem:[%s1 + $0x60] sm:$0xf]
  %v103 = vld [vmem:[%s1 + $0x64] sm:$0xf]
  %v104 = vld [vmem:[%s1 + $0x68] sm:$0xf]
  %v105 = vld [vmem:[%s1 + $0x6c] sm:$0xf]
  %v106 = vld [vmem:[%s1 + $0x70] sm:$0xf]
  %v107 = vld [vmem:[%s1 + $0x74] sm:$0xf]
  %v108 = vld [vmem:[%s1 + $0x78] sm:$0xf]
  %v109 = vld [vmem:[%s1 + $0x7c] sm:$0xf]
  %v110 = vld [vmem:[%s2] sm:$0x1]
  %v112 = vperm.slane %v110, 0
  %v178 = vunpack.c.l.b16 %v14
  %v179 = vunpack.c.h.b16 %v14
  %v180 = vunpack.c.l.b16 %v15
  %v181 = vunpack.c.h.b16 %v15
  %v182 = vunpack.c.l.b16 %v16
  %v183 = vunpack.c.h.b16 %v16
  %v184 = vunpack.c.l.b16 %v17
  %v185 = vunpack.c.h.b16 %v17
  %v186 = vunpack.c.l.b16 %v18
  %v187 = vunpack.c.h.b16 %v18
  %v188 = vunpack.c.l.b16 %v19
  %v189 = vunpack.c.h.b16 %v19
  %v190 = vunpack.c.l.b16 %v20
  %v191 = vunpack.c.h.b16 %v20
  %v192 = vunpack.c.l.b16 %v21
  %v193 = vunpack.c.h.b16 %v21
  %v194 = vunpack.c.l.b16 %v22
  %v195 = vunpack.c.h.b16 %v22
  %v196 = vunpack.c.l.b16 %v23
  %v197 = vunpack.c.h.b16 %v23
  %v198 = vunpack.c.l.b16 %v24
  %v199 = vunpack.c.h.b16 %v24
  %v200 = vunpack.c.l.b16 %v25
  %v201 = vunpack.c.h.b16 %v25
  %v202 = vunpack.c.l.b16 %v26
  %v203 = vunpack.c.h.b16 %v26
  %v204 = vunpack.c.l.b16 %v27
  %v205 = vunpack.c.h.b16 %v27
  %v206 = vunpack.c.l.b16 %v28
  %v207 = vunpack.c.h.b16 %v28
  %v208 = vunpack.c.l.b16 %v29
  %v209 = vunpack.c.h.b16 %v29
  %v210 = vunpack.c.l.b16 %v30
  %v211 = vunpack.c.h.b16 %v30
  %v212 = vunpack.c.l.b16 %v31
  %v213 = vunpack.c.h.b16 %v31
  %v214 = vunpack.c.l.b16 %v32
  %v215 = vunpack.c.h.b16 %v32
  %v216 = vunpack.c.l.b16 %v33
  %v217 = vunpack.c.h.b16 %v33
  %v218 = vunpack.c.l.b16 %v34
  %v219 = vunpack.c.h.b16 %v34
  %v220 = vunpack.c.l.b16 %v35
  %v221 = vunpack.c.h.b16 %v35
  %v222 = vunpack.c.l.b16 %v36
  %v223 = vunpack.c.h.b16 %v36
  %v224 = vunpack.c.l.b16 %v37
  %v225 = vunpack.c.h.b16 %v37
  %v226 = vunpack.c.l.b16 %v38
  %v227 = vunpack.c.h.b16 %v38
  %v228 = vunpack.c.l.b16 %v39
  %v229 = vunpack.c.h.b16 %v39
  %v230 = vunpack.c.l.b16 %v40
  %v231 = vunpack.c.h.b16 %v40
  %v232 = vunpack.c.l.b16 %v41
  %v233 = vunpack.c.h.b16 %v41
  %v234 = vunpack.c.l.b16 %v42
  %v235 = vunpack.c.h.b16 %v42
  %v236 = vunpack.c.l.b16 %v43
  %v237 = vunpack.c.h.b16 %v43
  %v238 = vunpack.c.l.b16 %v44
  %v239 = vunpack.c.h.b16 %v44
  %v240 = vunpack.c.l.b16 %v45
  %v241 = vunpack.c.h.b16 %v45
  %v242 = vunpack.c.l.b16 %v46
  %v243 = vunpack.c.h.b16 %v46
  %v244 = vunpack.c.l.b16 %v47
  %v245 = vunpack.c.h.b16 %v47
  %v246 = vunpack.c.l.b16 %v48
  %v247 = vunpack.c.h.b16 %v48
  %v248 = vunpack.c.l.b16 %v49
  %v249 = vunpack.c.h.b16 %v49
  %v250 = vunpack.c.l.b16 %v50
  %v251 = vunpack.c.h.b16 %v50
  %v252 = vunpack.c.l.b16 %v51
  %v253 = vunpack.c.h.b16 %v51
  %v254 = vunpack.c.l.b16 %v52
  %v255 = vunpack.c.h.b16 %v52
  %v256 = vunpack.c.l.b16 %v53
  %v257 = vunpack.c.h.b16 %v53
  %v258 = vunpack.c.l.b16 %v54
  %v259 = vunpack.c.h.b16 %v54
  %v260 = vunpack.c.l.b16 %v55
  %v261 = vunpack.c.h.b16 %v55
  %v262 = vunpack.c.l.b16 %v56
  %v263 = vunpack.c.h.b16 %v56
  %v264 = vunpack.c.l.b16 %v57
  %v265 = vunpack.c.h.b16 %v57
  %v266 = vunpack.c.l.b16 %v58
  %v267 = vunpack.c.h.b16 %v58
  %v268 = vunpack.c.l.b16 %v59
  %v269 = vunpack.c.h.b16 %v59
  %v270 = vunpack.c.l.b16 %v60
  %v271 = vunpack.c.h.b16 %v60
  %v272 = vunpack.c.l.b16 %v61
  %v273 = vunpack.c.h.b16 %v61
  %v274 = vunpack.c.l.b16 %v62
  %v275 = vunpack.c.h.b16 %v62
  %v276 = vunpack.c.l.b16 %v63
  %v277 = vunpack.c.h.b16 %v63
  %v278 = vunpack.c.l.b16 %v64
  %v279 = vunpack.c.h.b16 %v64
  %v280 = vunpack.c.l.b16 %v65
  %v281 = vunpack.c.h.b16 %v65
  %v282 = vunpack.c.l.b16 %v66
  %v283 = vunpack.c.h.b16 %v66
  %v284 = vunpack.c.l.b16 %v67
  %v285 = vunpack.c.h.b16 %v67
  %v286 = vunpack.c.l.b16 %v68
  %v287 = vunpack.c.h.b16 %v68
  %v288 = vunpack.c.l.b16 %v69
  %v289 = vunpack.c.h.b16 %v69
  %v290 = vunpack.c.l.b16 %v70
  %v291 = vunpack.c.h.b16 %v70
  %v292 = vunpack.c.l.b16 %v71
  %v293 = vunpack.c.h.b16 %v71
  %v294 = vunpack.c.l.b16 %v72
  %v295 = vunpack.c.h.b16 %v72
  %v296 = vunpack.c.l.b16 %v73
  %v297 = vunpack.c.h.b16 %v73
  %v298 = vunpack.c.l.b16 %v74
  %v299 = vunpack.c.h.b16 %v74
  %v300 = vunpack.c.l.b16 %v75
  %v301 = vunpack.c.h.b16 %v75
  %v302 = vunpack.c.l.b16 %v76
  %v303 = vunpack.c.h.b16 %v76
  %v304 = vunpack.c.l.b16 %v77
  %v305 = vunpack.c.h.b16 %v77
  %v306 = vpack.c.b16 %v180, %v178
  %v307 = vpack.c.b16 %v181, %v179
  %v308 = vpack.c.b16 %v184, %v182
  %v309 = vpack.c.b16 %v185, %v183
  %v310 = vpack.c.b16 %v188, %v186
  %v311 = vpack.c.b16 %v189, %v187
  %v312 = vpack.c.b16 %v192, %v190
  %v313 = vpack.c.b16 %v193, %v191
  %v314 = vpack.c.b16 %v196, %v194
  %v315 = vpack.c.b16 %v197, %v195
  %v316 = vpack.c.b16 %v200, %v198
  %v317 = vpack.c.b16 %v201, %v199
  %v318 = vpack.c.b16 %v204, %v202
  %v319 = vpack.c.b16 %v205, %v203
  %v320 = vpack.c.b16 %v208, %v206
  %v321 = vpack.c.b16 %v209, %v207
  %v322 = vpack.c.b16 %v212, %v210
  %v323 = vpack.c.b16 %v213, %v211
  %v324 = vpack.c.b16 %v216, %v214
  %v325 = vpack.c.b16 %v217, %v215
  %v326 = vpack.c.b16 %v220, %v218
  %v327 = vpack.c.b16 %v221, %v219
  %v328 = vpack.c.b16 %v224, %v222
  %v329 = vpack.c.b16 %v225, %v223
  %v330 = vpack.c.b16 %v228, %v226
  %v331 = vpack.c.b16 %v229, %v227
  %v332 = vpack.c.b16 %v232, %v230
  %v333 = vpack.c.b16 %v233, %v231
  %v334 = vpack.c.b16 %v236, %v234
  %v335 = vpack.c.b16 %v237, %v235
  %v336 = vpack.c.b16 %v240, %v238
  %v337 = vpack.c.b16 %v241, %v239
  %v338 = vpack.c.b16 %v244, %v242
  %v339 = vpack.c.b16 %v245, %v243
  %v340 = vpack.c.b16 %v248, %v246
  %v341 = vpack.c.b16 %v249, %v247
  %v342 = vpack.c.b16 %v252, %v250
  %v343 = vpack.c.b16 %v253, %v251
  %v344 = vpack.c.b16 %v256, %v254
  %v345 = vpack.c.b16 %v257, %v255
  %v346 = vpack.c.b16 %v260, %v258
  %v347 = vpack.c.b16 %v261, %v259
  %v348 = vpack.c.b16 %v264, %v262
  %v349 = vpack.c.b16 %v265, %v263
  %v350 = vpack.c.b16 %v268, %v266
  %v351 = vpack.c.b16 %v269, %v267
  %v352 = vpack.c.b16 %v272, %v270
  %v353 = vpack.c.b16 %v273, %v271
  %v354 = vpack.c.b16 %v276, %v274
  %v355 = vpack.c.b16 %v277, %v275
  %v356 = vpack.c.b16 %v280, %v278
  %v357 = vpack.c.b16 %v281, %v279
  %v358 = vpack.c.b16 %v284, %v282
  %v359 = vpack.c.b16 %v285, %v283
  %v360 = vpack.c.b16 %v288, %v286
  %v361 = vpack.c.b16 %v289, %v287
  %v362 = vpack.c.b16 %v292, %v290
  %v363 = vpack.c.b16 %v293, %v291
  %v364 = vpack.c.b16 %v296, %v294
  %v365 = vpack.c.b16 %v297, %v295
  %v366 = vpack.c.b16 %v300, %v298
  %v367 = vpack.c.b16 %v301, %v299
  %v368 = vpack.c.b16 %v304, %v302
  %v369 = vpack.c.b16 %v305, %v303
  %v466 = vunpack.c.l.b16 %v78
  %v467 = vunpack.c.l.b16 %v79
  %v468 = vunpack.c.l.b16 %v80
  %v469 = vunpack.c.l.b16 %v81
  %v470 = vunpack.c.l.b16 %v82
  %v471 = vunpack.c.l.b16 %v83
  %v472 = vunpack.c.l.b16 %v84
  %v473 = vunpack.c.l.b16 %v85
  %v474 = vunpack.c.l.b16 %v86
  %v475 = vunpack.c.l.b16 %v87
  %v476 = vunpack.c.l.b16 %v88
  %v477 = vunpack.c.l.b16 %v89
  %v478 = vunpack.c.l.b16 %v90
  %v479 = vunpack.c.l.b16 %v91
  %v480 = vunpack.c.l.b16 %v92
  %v481 = vunpack.c.l.b16 %v93
  %v482 = vunpack.c.l.b16 %v94
  %v483 = vunpack.c.l.b16 %v95
  %v484 = vunpack.c.l.b16 %v96
  %v485 = vunpack.c.l.b16 %v97
  %v486 = vunpack.c.l.b16 %v98
  %v487 = vunpack.c.l.b16 %v99
  %v488 = vunpack.c.l.b16 %v100
  %v489 = vunpack.c.l.b16 %v101
  %v490 = vunpack.c.l.b16 %v102
  %v491 = vunpack.c.l.b16 %v103
  %v492 = vunpack.c.l.b16 %v104
  %v493 = vunpack.c.l.b16 %v105
  %v494 = vunpack.c.l.b16 %v106
  %v495 = vunpack.c.l.b16 %v107
  %v496 = vunpack.c.l.b16 %v108
  %v497 = vunpack.c.l.b16 %v109
  %v498 = vpack.c.b16 %v467, %v466
  %v499 = vpack.c.b16 %v469, %v468
  %v500 = vpack.c.b16 %v471, %v470
  %v501 = vpack.c.b16 %v473, %v472
  %v502 = vpack.c.b16 %v475, %v474
  %v503 = vpack.c.b16 %v477, %v476
  %v504 = vpack.c.b16 %v479, %v478
  %v505 = vpack.c.b16 %v481, %v480
  %v506 = vpack.c.b16 %v483, %v482
  %v507 = vpack.c.b16 %v485, %v484
  %v508 = vpack.c.b16 %v487, %v486
  %v509 = vpack.c.b16 %v489, %v488
  %v510 = vpack.c.b16 %v491, %v490
  %v511 = vpack.c.b16 %v493, %v492
  %v512 = vpack.c.b16 %v495, %v494
  %v513 = vpack.c.b16 %v497, %v496
  %530 = vmatpush.bf16.msra.mxu0 %v505
  %531 = vmatpush.bf16.msra.mxu0 %v504
  %532 = vmatpush.bf16.msra.mxu0 %v503
  %533 = vmatpush.bf16.msra.mxu0 %v502
  %534 = vmatpush.bf16.msra.mxu0 %v501
  %535 = vmatpush.bf16.msra.mxu0 %v500
  %536 = vmatpush.bf16.msra.mxu0 %v499
  %537 = vmatpush.bf16.msra.mxu0 %v498
  %538 = vmatmul.bf16.gmra.mxu0 %v306
  %v539 = vpop.f32.mrf.mxu0
  %v540 = vadd.f32 %v112, %v539
  %v541 = vpop.f32.mrf.mxu0
  %v542 = vadd.f32 %v112, %v541
  %543 = vmatmul.bf16.gmra.mxu0 %v308
  %v544 = vpop.f32.mrf.mxu0
  %v545 = vadd.f32 %v112, %v544
  %v546 = vpop.f32.mrf.mxu0
  %v547 = vadd.f32 %v112, %v546
  %548 = vmatmul.bf16.gmra.mxu0 %v310
  %v549 = vpop.f32.mrf.mxu0
  %v550 = vadd.f32 %v112, %v549
  %v551 = vpop.f32.mrf.mxu0
  %v552 = vadd.f32 %v112, %v551
  %553 = vmatmul.bf16.gmra.mxu0 %v312
  %v554 = vpop.f32.mrf.mxu0
  %v555 = vadd.f32 %v112, %v554
  %v556 = vpop.f32.mrf.mxu0
  %v557 = vadd.f32 %v112, %v556
  %558 = vmatmul.bf16.gmra.mxu0 %v314
  %v559 = vpop.f32.mrf.mxu0
  %v560 = vadd.f32 %v112, %v559
  %v561 = vpop.f32.mrf.mxu0
  %v562 = vadd.f32 %v112, %v561
  %563 = vmatmul.bf16.gmra.mxu0 %v316
  %v564 = vpop.f32.mrf.mxu0
  %v565 = vadd.f32 %v112, %v564
  %v566 = vpop.f32.mrf.mxu0
  %v567 = vadd.f32 %v112, %v566
  %568 = vmatmul.bf16.gmra.mxu0 %v318
  %v569 = vpop.f32.mrf.mxu0
  %v570 = vadd.f32 %v112, %v569
  %v571 = vpop.f32.mrf.mxu0
  %v572 = vadd.f32 %v112, %v571
  %573 = vmatmul.bf16.gmra.mxu0 %v320
  %v574 = vpop.f32.mrf.mxu0
  %v575 = vadd.f32 %v112, %v574
  %v576 = vpop.f32.mrf.mxu0
  %v577 = vadd.f32 %v112, %v576
  %578 = vmatmul.bf16.gmra.mxu0 %v322
  %v579 = vpop.f32.mrf.mxu0
  %v580 = vadd.f32 %v112, %v579
  %v581 = vpop.f32.mrf.mxu0
  %v582 = vadd.f32 %v112, %v581
  %583 = vmatmul.bf16.gmra.mxu0 %v324
  %v584 = vpop.f32.mrf.mxu0
  %v585 = vadd.f32 %v112, %v584
  %v586 = vpop.f32.mrf.mxu0
  %v587 = vadd.f32 %v112, %v586
  %588 = vmatmul.bf16.gmra.mxu0 %v326
  %v589 = vpop.f32.mrf.mxu0
  %v590 = vadd.f32 %v112, %v589
  %v591 = vpop.f32.mrf.mxu0
  %v592 = vadd.f32 %v112, %v591
  %593 = vmatmul.bf16.gmra.mxu0 %v328
  %v594 = vpop.f32.mrf.mxu0
  %v595 = vadd.f32 %v112, %v594
  %v596 = vpop.f32.mrf.mxu0
  %v597 = vadd.f32 %v112, %v596
  %598 = vmatmul.bf16.gmra.mxu0 %v330
  %v599 = vpop.f32.mrf.mxu0
  %v600 = vadd.f32 %v112, %v599
  %v601 = vpop.f32.mrf.mxu0
  %v602 = vadd.f32 %v112, %v601
  %603 = vmatmul.bf16.gmra.mxu0 %v332
  %v604 = vpop.f32.mrf.mxu0
  %v605 = vadd.f32 %v112, %v604
  %v606 = vpop.f32.mrf.mxu0
  %v607 = vadd.f32 %v112, %v606
  %608 = vmatmul.bf16.gmra.mxu0 %v334
  %v609 = vpop.f32.mrf.mxu0
  %v610 = vadd.f32 %v112, %v609
  %v611 = vpop.f32.mrf.mxu0
  %v612 = vadd.f32 %v112, %v611
  %613 = vmatmul.bf16.gmra.mxu0 %v336
  %v614 = vpop.f32.mrf.mxu0
  %v615 = vadd.f32 %v112, %v614
  %v616 = vpop.f32.mrf.mxu0
  %v617 = vadd.f32 %v112, %v616
  %618 = vmatmul.bf16.gmra.mxu0 %v338
  %v619 = vpop.f32.mrf.mxu0
  %v620 = vadd.f32 %v112, %v619
  %v621 = vpop.f32.mrf.mxu0
  %v622 = vadd.f32 %v112, %v621
  %623 = vmatmul.bf16.gmra.mxu0 %v340
  %v624 = vpop.f32.mrf.mxu0
  %v625 = vadd.f32 %v112, %v624
  %v626 = vpop.f32.mrf.mxu0
  %v627 = vadd.f32 %v112, %v626
  %628 = vmatmul.bf16.gmra.mxu0 %v342
  %v629 = vpop.f32.mrf.mxu0
  %v630 = vadd.f32 %v112, %v629
  %v631 = vpop.f32.mrf.mxu0
  %v632 = vadd.f32 %v112, %v631
  %633 = vmatmul.bf16.gmra.mxu0 %v344
  %v634 = vpop.f32.mrf.mxu0
  %v635 = vadd.f32 %v112, %v634
  %v636 = vpop.f32.mrf.mxu0
  %v637 = vadd.f32 %v112, %v636
  %638 = vmatmul.bf16.gmra.mxu0 %v346
  %v639 = vpop.f32.mrf.mxu0
  %v640 = vadd.f32 %v112, %v639
  %v641 = vpop.f32.mrf.mxu0
  %v642 = vadd.f32 %v112, %v641
  %643 = vmatmul.bf16.gmra.mxu0 %v348
  %v644 = vpop.f32.mrf.mxu0
  %v645 = vadd.f32 %v112, %v644
  %v646 = vpop.f32.mrf.mxu0
  %v647 = vadd.f32 %v112, %v646
  %648 = vmatmul.bf16.gmra.mxu0 %v350
  %v649 = vpop.f32.mrf.mxu0
  %v650 = vadd.f32 %v112, %v649
  %v651 = vpop.f32.mrf.mxu0
  %v652 = vadd.f32 %v112, %v651
  %653 = vmatmul.bf16.gmra.mxu0 %v352
  %v654 = vpop.f32.mrf.mxu0
  %v655 = vadd.f32 %v112, %v654
  %v656 = vpop.f32.mrf.mxu0
  %v657 = vadd.f32 %v112, %v656
  %658 = vmatmul.bf16.gmra.mxu0 %v354
  %v659 = vpop.f32.mrf.mxu0
  %v660 = vadd.f32 %v112, %v659
  %v661 = vpop.f32.mrf.mxu0
  %v662 = vadd.f32 %v112, %v661
  %663 = vmatmul.bf16.gmra.mxu0 %v356
  %v664 = vpop.f32.mrf.mxu0
  %v665 = vadd.f32 %v112, %v664
  %v666 = vpop.f32.mrf.mxu0
  %v667 = vadd.f32 %v112, %v666
  %668 = vmatmul.bf16.gmra.mxu0 %v358
  %v669 = vpop.f32.mrf.mxu0
  %v670 = vadd.f32 %v112, %v669
  %v671 = vpop.f32.mrf.mxu0
  %v672 = vadd.f32 %v112, %v671
  %673 = vmatmul.bf16.gmra.mxu0 %v360
  %v674 = vpop.f32.mrf.mxu0
  %v675 = vadd.f32 %v112, %v674
  %v676 = vpop.f32.mrf.mxu0
  %v677 = vadd.f32 %v112, %v676
  %678 = vmatmul.bf16.gmra.mxu0 %v362
  %v679 = vpop.f32.mrf.mxu0
  %v680 = vadd.f32 %v112, %v679
  %v681 = vpop.f32.mrf.mxu0
  %v682 = vadd.f32 %v112, %v681
  %683 = vmatmul.bf16.gmra.mxu0 %v364
  %v684 = vpop.f32.mrf.mxu0
  %v685 = vadd.f32 %v112, %v684
  %v686 = vpop.f32.mrf.mxu0
  %v687 = vadd.f32 %v112, %v686
  %688 = vmatmul.bf16.gmra.mxu0 %v366
  %v689 = vpop.f32.mrf.mxu0
  %v690 = vadd.f32 %v112, %v689
  %v691 = vpop.f32.mrf.mxu0
  %v692 = vadd.f32 %v112, %v691
  %693 = vmatmul.bf16.gmra.mxu0 %v368
  %v694 = vpop.f32.mrf.mxu0
  %v695 = vadd.f32 %v112, %v694
  %v696 = vpop.f32.mrf.mxu0
  %v697 = vadd.f32 %v112, %v696
  %698 = vdwg.mxu0
  %699 = vmatpush.bf16.msra.mxu0 %v513
  %700 = vmatpush.bf16.msra.mxu0 %v512
  %701 = vmatpush.bf16.msra.mxu0 %v511
  %702 = vmatpush.bf16.msra.mxu0 %v510
  %703 = vmatpush.bf16.msra.mxu0 %v509
  %704 = vmatpush.bf16.msra.mxu0 %v508
  %705 = vmatpush.bf16.msra.mxu0 %v507
  %706 = vmatpush.bf16.msra.mxu0 %v506
  %707 = vmatmul.bf16.gmra.mxu0 %v307
  %v708 = vpop.f32.mrf.mxu0
  %v709 = vadd.f32 %v540, %v708
  %v710 = vpop.f32.mrf.mxu0
  %v711 = vadd.f32 %v542, %v710
  %712 = vmatmul.bf16.gmra.mxu0 %v309
  %v713 = vpop.f32.mrf.mxu0
  %v714 = vadd.f32 %v545, %v713
  %v715 = vpop.f32.mrf.mxu0
  %v716 = vadd.f32 %v547, %v715
  %717 = vmatmul.bf16.gmra.mxu0 %v311
  %v718 = vpop.f32.mrf.mxu0
  %v719 = vadd.f32 %v550, %v718
  %v720 = vpop.f32.mrf.mxu0
  %v721 = vadd.f32 %v552, %v720
  %722 = vmatmul.bf16.gmra.mxu0 %v313
  %v723 = vpop.f32.mrf.mxu0
  %v724 = vadd.f32 %v555, %v723
  %v725 = vpop.f32.mrf.mxu0
  %v726 = vadd.f32 %v557, %v725
  %727 = vmatmul.bf16.gmra.mxu0 %v315
  %v728 = vpop.f32.mrf.mxu0
  %v729 = vadd.f32 %v560, %v728
  %v730 = vpop.f32.mrf.mxu0
  %v731 = vadd.f32 %v562, %v730
  %732 = vmatmul.bf16.gmra.mxu0 %v317
  %v733 = vpop.f32.mrf.mxu0
  %v734 = vadd.f32 %v565, %v733
  %v735 = vpop.f32.mrf.mxu0
  %v736 = vadd.f32 %v567, %v735
  %737 = vmatmul.bf16.gmra.mxu0 %v319
  %v738 = vpop.f32.mrf.mxu0
  %v739 = vadd.f32 %v570, %v738
  %v740 = vpop.f32.mrf.mxu0
  %v741 = vadd.f32 %v572, %v740
  %742 = vmatmul.bf16.gmra.mxu0 %v321
  %v743 = vpop.f32.mrf.mxu0
  %v744 = vadd.f32 %v575, %v743
  %v745 = vpop.f32.mrf.mxu0
  %v746 = vadd.f32 %v577, %v745
  %747 = vmatmul.bf16.gmra.mxu0 %v323
  %v748 = vpop.f32.mrf.mxu0
  %v749 = vadd.f32 %v580, %v748
  %v750 = vpop.f32.mrf.mxu0
  %v751 = vadd.f32 %v582, %v750
  %752 = vmatmul.bf16.gmra.mxu0 %v325
  %v753 = vpop.f32.mrf.mxu0
  %v754 = vadd.f32 %v585, %v753
  %v755 = vpop.f32.mrf.mxu0
  %v756 = vadd.f32 %v587, %v755
  %757 = vmatmul.bf16.gmra.mxu0 %v327
  %v758 = vpop.f32.mrf.mxu0
  %v759 = vadd.f32 %v590, %v758
  %v760 = vpop.f32.mrf.mxu0
  %v761 = vadd.f32 %v592, %v760
  %762 = vmatmul.bf16.gmra.mxu0 %v329
  %v763 = vpop.f32.mrf.mxu0
  %v764 = vadd.f32 %v595, %v763
  %v765 = vpop.f32.mrf.mxu0
  %v766 = vadd.f32 %v597, %v765
  %767 = vmatmul.bf16.gmra.mxu0 %v331
  %v768 = vpop.f32.mrf.mxu0
  %v769 = vadd.f32 %v600, %v768
  %v770 = vpop.f32.mrf.mxu0
  %v771 = vadd.f32 %v602, %v770
  %772 = vmatmul.bf16.gmra.mxu0 %v333
  %v773 = vpop.f32.mrf.mxu0
  %v774 = vadd.f32 %v605, %v773
  %v775 = vpop.f32.mrf.mxu0
  %v776 = vadd.f32 %v607, %v775
  %777 = vmatmul.bf16.gmra.mxu0 %v335
  %v778 = vpop.f32.mrf.mxu0
  %v779 = vadd.f32 %v610, %v778
  %v780 = vpop.f32.mrf.mxu0
  %v781 = vadd.f32 %v612, %v780
  %782 = vmatmul.bf16.gmra.mxu0 %v337
  %v783 = vpop.f32.mrf.mxu0
  %v784 = vadd.f32 %v615, %v783
  %v785 = vpop.f32.mrf.mxu0
  %v786 = vadd.f32 %v617, %v785
  %787 = vmatmul.bf16.gmra.mxu0 %v339
  %v788 = vpop.f32.mrf.mxu0
  %v789 = vadd.f32 %v620, %v788
  %v790 = vpop.f32.mrf.mxu0
  %v791 = vadd.f32 %v622, %v790
  %792 = vmatmul.bf16.gmra.mxu0 %v341
  %v793 = vpop.f32.mrf.mxu0
  %v794 = vadd.f32 %v625, %v793
  %v795 = vpop.f32.mrf.mxu0
  %v796 = vadd.f32 %v627, %v795
  %797 = vmatmul.bf16.gmra.mxu0 %v343
  %v798 = vpop.f32.mrf.mxu0
  %v799 = vadd.f32 %v630, %v798
  %v800 = vpop.f32.mrf.mxu0
  %v801 = vadd.f32 %v632, %v800
  %802 = vmatmul.bf16.gmra.mxu0 %v345
  %v803 = vpop.f32.mrf.mxu0
  %v804 = vadd.f32 %v635, %v803
  %v805 = vpop.f32.mrf.mxu0
  %v806 = vadd.f32 %v637, %v805
  %807 = vmatmul.bf16.gmra.mxu0 %v347
  %v808 = vpop.f32.mrf.mxu0
  %v809 = vadd.f32 %v640, %v808
  %v810 = vpop.f32.mrf.mxu0
  %v811 = vadd.f32 %v642, %v810
  %812 = vmatmul.bf16.gmra.mxu0 %v349
  %v813 = vpop.f32.mrf.mxu0
  %v814 = vadd.f32 %v645, %v813
  %v815 = vpop.f32.mrf.mxu0
  %v816 = vadd.f32 %v647, %v815
  %817 = vmatmul.bf16.gmra.mxu0 %v351
  %v818 = vpop.f32.mrf.mxu0
  %v819 = vadd.f32 %v650, %v818
  %v820 = vpop.f32.mrf.mxu0
  %v821 = vadd.f32 %v652, %v820
  %822 = vmatmul.bf16.gmra.mxu0 %v353
  %v823 = vpop.f32.mrf.mxu0
  %v824 = vadd.f32 %v655, %v823
  %v825 = vpop.f32.mrf.mxu0
  %v826 = vadd.f32 %v657, %v825
  %827 = vmatmul.bf16.gmra.mxu0 %v355
  %v828 = vpop.f32.mrf.mxu0
  %v829 = vadd.f32 %v660, %v828
  %v830 = vpop.f32.mrf.mxu0
  %v831 = vadd.f32 %v662, %v830
  %832 = vmatmul.bf16.gmra.mxu0 %v357
  %v833 = vpop.f32.mrf.mxu0
  %v834 = vadd.f32 %v665, %v833
  %v835 = vpop.f32.mrf.mxu0
  %v836 = vadd.f32 %v667, %v835
  %837 = vmatmul.bf16.gmra.mxu0 %v359
  %v838 = vpop.f32.mrf.mxu0
  %v839 = vadd.f32 %v670, %v838
  %v840 = vpop.f32.mrf.mxu0
  %v841 = vadd.f32 %v672, %v840
  %842 = vmatmul.bf16.gmra.mxu0 %v361
  %v843 = vpop.f32.mrf.mxu0
  %v844 = vadd.f32 %v675, %v843
  %v845 = vpop.f32.mrf.mxu0
  %v846 = vadd.f32 %v677, %v845
  %847 = vmatmul.bf16.gmra.mxu0 %v363
  %v848 = vpop.f32.mrf.mxu0
  %v849 = vadd.f32 %v680, %v848
  %v850 = vpop.f32.mrf.mxu0
  %v851 = vadd.f32 %v682, %v850
  %852 = vmatmul.bf16.gmra.mxu0 %v365
  %v853 = vpop.f32.mrf.mxu0
  %v854 = vadd.f32 %v685, %v853
  %v855 = vpop.f32.mrf.mxu0
  %v856 = vadd.f32 %v687, %v855
  %857 = vmatmul.bf16.gmra.mxu0 %v367
  %v858 = vpop.f32.mrf.mxu0
  %v859 = vadd.f32 %v690, %v858
  %v860 = vpop.f32.mrf.mxu0
  %v861 = vadd.f32 %v692, %v860
  %862 = vmatmul.bf16.gmra.mxu0 %v369
  %v863 = vpop.f32.mrf.mxu0
  %v864 = vadd.f32 %v695, %v863
  %v865 = vpop.f32.mrf.mxu0
  %v866 = vadd.f32 %v697, %v865
  %867 = vdwg.mxu0
  %vm868 = vcmp.gt.f32.partialorder %v709, 0.0
  %vm869 = vcmp.gt.f32.partialorder %v711, 0.0
  %vm870 = vcmp.gt.f32.partialorder %v714, 0.0
  %vm871 = vcmp.gt.f32.partialorder %v716, 0.0
  %vm872 = vcmp.gt.f32.partialorder %v719, 0.0
  %vm873 = vcmp.gt.f32.partialorder %v721, 0.0
  %vm874 = vcmp.gt.f32.partialorder %v724, 0.0
  %vm875 = vcmp.gt.f32.partialorder %v726, 0.0
  %vm876 = vcmp.gt.f32.partialorder %v729, 0.0
  %vm877 = vcmp.gt.f32.partialorder %v731, 0.0
  %vm878 = vcmp.gt.f32.partialorder %v734, 0.0
  %vm879 = vcmp.gt.f32.partialorder %v736, 0.0
  %vm880 = vcmp.gt.f32.partialorder %v739, 0.0
  %vm881 = vcmp.gt.f32.partialorder %v741, 0.0
  %vm882 = vcmp.gt.f32.partialorder %v744, 0.0
  %vm883 = vcmp.gt.f32.partialorder %v746, 0.0
  %vm884 = vcmp.gt.f32.partialorder %v749, 0.0
  %vm885 = vcmp.gt.f32.partialorder %v751, 0.0
  %vm886 = vcmp.gt.f32.partialorder %v754, 0.0
  %vm887 = vcmp.gt.f32.partialorder %v756, 0.0
  %vm888 = vcmp.gt.f32.partialorder %v759, 0.0
  %vm889 = vcmp.gt.f32.partialorder %v761, 0.0
  %vm890 = vcmp.gt.f32.partialorder %v764, 0.0
  %vm891 = vcmp.gt.f32.partialorder %v766, 0.0
  %vm892 = vcmp.gt.f32.partialorder %v769, 0.0
  %vm893 = vcmp.gt.f32.partialorder %v771, 0.0
  %vm894 = vcmp.gt.f32.partialorder %v774, 0.0
  %vm895 = vcmp.gt.f32.partialorder %v776, 0.0
  %vm896 = vcmp.gt.f32.partialorder %v779, 0.0
  %vm897 = vcmp.gt.f32.partialorder %v781, 0.0
  %vm898 = vcmp.gt.f32.partialorder %v784, 0.0
  %vm899 = vcmp.gt.f32.partialorder %v786, 0.0
  %vm900 = vcmp.gt.f32.partialorder %v789, 0.0
  %vm901 = vcmp.gt.f32.partialorder %v791, 0.0
  %vm902 = vcmp.gt.f32.partialorder %v794, 0.0
  %vm903 = vcmp.gt.f32.partialorder %v796, 0.0
  %vm904 = vcmp.gt.f32.partialorder %v799, 0.0
  %vm905 = vcmp.gt.f32.partialorder %v801, 0.0
  %vm906 = vcmp.gt.f32.partialorder %v804, 0.0
  %vm907 = vcmp.gt.f32.partialorder %v806, 0.0
  %vm908 = vcmp.gt.f32.partialorder %v809, 0.0
  %vm909 = vcmp.gt.f32.partialorder %v811, 0.0
  %vm910 = vcmp.gt.f32.partialorder %v814, 0.0
  %vm911 = vcmp.gt.f32.partialorder %v816, 0.0
  %vm912 = vcmp.gt.f32.partialorder %v819, 0.0
  %vm913 = vcmp.gt.f32.partialorder %v821, 0.0
  %vm914 = vcmp.gt.f32.partialorder %v824, 0.0
  %vm915 = vcmp.gt.f32.partialorder %v826, 0.0
  %vm916 = vcmp.gt.f32.partialorder %v829, 0.0
  %vm917 = vcmp.gt.f32.partialorder %v831, 0.0
  %vm918 = vcmp.gt.f32.partialorder %v834, 0.0
  %vm919 = vcmp.gt.f32.partialorder %v836, 0.0
  %vm920 = vcmp.gt.f32.partialorder %v839, 0.0
  %vm921 = vcmp.gt.f32.partialorder %v841, 0.0
  %vm922 = vcmp.gt.f32.partialorder %v844, 0.0
  %vm923 = vcmp.gt.f32.partialorder %v846, 0.0
  %vm924 = vcmp.gt.f32.partialorder %v849, 0.0
  %vm925 = vcmp.gt.f32.partialorder %v851, 0.0
  %vm926 = vcmp.gt.f32.partialorder %v854, 0.0
  %vm927 = vcmp.gt.f32.partialorder %v856, 0.0
  %vm928 = vcmp.gt.f32.partialorder %v859, 0.0
  %vm929 = vcmp.gt.f32.partialorder %v861, 0.0
  %vm930 = vcmp.gt.f32.partialorder %v864, 0.0
  %vm931 = vcmp.gt.f32.partialorder %v866, 0.0
  %v932 = vmul.f32 %v709, 0.2
  %v933 = vmul.f32 %v711, 0.2
  %v934 = vmul.f32 %v714, 0.2
  %v935 = vmul.f32 %v716, 0.2
  %v936 = vmul.f32 %v719, 0.2
  %v937 = vmul.f32 %v721, 0.2
  %v938 = vmul.f32 %v724, 0.2
  %v939 = vmul.f32 %v726, 0.2
  %v940 = vmul.f32 %v729, 0.2
  %v941 = vmul.f32 %v731, 0.2
  %v942 = vmul.f32 %v734, 0.2
  %v943 = vmul.f32 %v736, 0.2
  %v944 = vmul.f32 %v739, 0.2
  %v945 = vmul.f32 %v741, 0.2
  %v946 = vmul.f32 %v744, 0.2
  %v947 = vmul.f32 %v746, 0.2
  %v948 = vmul.f32 %v749, 0.2
  %v949 = vmul.f32 %v751, 0.2
  %v950 = vmul.f32 %v754, 0.2
  %v951 = vmul.f32 %v756, 0.2
  %v952 = vmul.f32 %v759, 0.2
  %v953 = vmul.f32 %v761, 0.2
  %v954 = vmul.f32 %v764, 0.2
  %v955 = vmul.f32 %v766, 0.2
  %v956 = vmul.f32 %v769, 0.2
  %v957 = vmul.f32 %v771, 0.2
  %v958 = vmul.f32 %v774, 0.2
  %v959 = vmul.f32 %v776, 0.2
  %v960 = vmul.f32 %v779, 0.2
  %v961 = vmul.f32 %v781, 0.2
  %v962 = vmul.f32 %v784, 0.2
  %v963 = vmul.f32 %v786, 0.2
  %v964 = vmul.f32 %v789, 0.2
  %v965 = vmul.f32 %v791, 0.2
  %v966 = vmul.f32 %v794, 0.2
  %v967 = vmul.f32 %v796, 0.2
  %v968 = vmul.f32 %v799, 0.2
  %v969 = vmul.f32 %v801, 0.2
  %v970 = vmul.f32 %v804, 0.2
  %v971 = vmul.f32 %v806, 0.2
  %v972 = vmul.f32 %v809, 0.2
  %v973 = vmul.f32 %v811, 0.2
  %v974 = vmul.f32 %v814, 0.2
  %v975 = vmul.f32 %v816, 0.2
  %v976 = vmul.f32 %v819, 0.2
  %v977 = vmul.f32 %v821, 0.2
  %v978 = vmul.f32 %v824, 0.2
  %v979 = vmul.f32 %v826, 0.2
  %v980 = vmul.f32 %v829, 0.2
  %v981 = vmul.f32 %v831, 0.2
  %v982 = vmul.f32 %v834, 0.2
  %v983 = vmul.f32 %v836, 0.2
  %v984 = vmul.f32 %v839, 0.2
  %v985 = vmul.f32 %v841, 0.2
  %v986 = vmul.f32 %v844, 0.2
  %v987 = vmul.f32 %v846, 0.2
  %v988 = vmul.f32 %v849, 0.2
  %v989 = vmul.f32 %v851, 0.2
  %v990 = vmul.f32 %v854, 0.2
  %v991 = vmul.f32 %v856, 0.2
  %v992 = vmul.f32 %v859, 0.2
  %v993 = vmul.f32 %v861, 0.2
  %v994 = vmul.f32 %v864, 0.2
  %v995 = vmul.f32 %v866, 0.2
  %v996 = vsel %vm868, %v709, %v932
  %v997 = vsel %vm869, %v711, %v933
  %v998 = vsel %vm870, %v714, %v934
  %v999 = vsel %vm871, %v716, %v935
  %v1000 = vsel %vm872, %v719, %v936
  %v1001 = vsel %vm873, %v721, %v937
  %v1002 = vsel %vm874, %v724, %v938
  %v1003 = vsel %vm875, %v726, %v939
  %v1004 = vsel %vm876, %v729, %v940
  %v1005 = vsel %vm877, %v731, %v941
  %v1006 = vsel %vm878, %v734, %v942
  %v1007 = vsel %vm879, %v736, %v943
  %v1008 = vsel %vm880, %v739, %v944
  %v1009 = vsel %vm881, %v741, %v945
  %v1010 = vsel %vm882, %v744, %v946
  %v1011 = vsel %vm883, %v746, %v947
  %v1012 = vsel %vm884, %v749, %v948
  %v1013 = vsel %vm885, %v751, %v949
  %v1014 = vsel %vm886, %v754, %v950
  %v1015 = vsel %vm887, %v756, %v951
  %v1016 = vsel %vm888, %v759, %v952
  %v1017 = vsel %vm889, %v761, %v953
  %v1018 = vsel %vm890, %v764, %v954
  %v1019 = vsel %vm891, %v766, %v955
  %v1020 = vsel %vm892, %v769, %v956
  %v1021 = vsel %vm893, %v771, %v957
  %v1022 = vsel %vm894, %v774, %v958
  %v1023 = vsel %vm895, %v776, %v959
  %v1024 = vsel %vm896, %v779, %v960
  %v1025 = vsel %vm897, %v781, %v961
  %v1026 = vsel %vm898, %v784, %v962
  %v1027 = vsel %vm899, %v786, %v963
  %v1028 = vsel %vm900, %v789, %v964
  %v1029 = vsel %vm901, %v791, %v965
  %v1030 = vsel %vm902, %v794, %v966
  %v1031 = vsel %vm903, %v796, %v967
  %v1032 = vsel %vm904, %v799, %v968
  %v1033 = vsel %vm905, %v801, %v969
  %v1034 = vsel %vm906, %v804, %v970
  %v1035 = vsel %vm907, %v806, %v971
  %v1036 = vsel %vm908, %v809, %v972
  %v1037 = vsel %vm909, %v811, %v973
  %v1038 = vsel %vm910, %v814, %v974
  %v1039 = vsel %vm911, %v816, %v975
  %v1040 = vsel %vm912, %v819, %v976
  %v1041 = vsel %vm913, %v821, %v977
  %v1042 = vsel %vm914, %v824, %v978
  %v1043 = vsel %vm915, %v826, %v979
  %v1044 = vsel %vm916, %v829, %v980
  %v1045 = vsel %vm917, %v831, %v981
  %v1046 = vsel %vm918, %v834, %v982
  %v1047 = vsel %vm919, %v836, %v983
  %v1048 = vsel %vm920, %v839, %v984
  %v1049 = vsel %vm921, %v841, %v985
  %v1050 = vsel %vm922, %v844, %v986
  %v1051 = vsel %vm923, %v846, %v987
  %v1052 = vsel %vm924, %v849, %v988
  %v1053 = vsel %vm925, %v851, %v989
  %v1054 = vsel %vm926, %v854, %v990
  %v1055 = vsel %vm927, %v856, %v991
  %v1056 = vsel %vm928, %v859, %v992
  %v1057 = vsel %vm929, %v861, %v993
  %v1058 = vsel %vm930, %v864, %v994
  %v1059 = vsel %vm931, %v866, %v995
  %v1060 = vpack.c.bf16 %v996, %v996
  %v1061 = vpack.c.bf16 %v997, %v997
  %v1062 = vpack.c.bf16 %v998, %v998
  %v1063 = vpack.c.bf16 %v999, %v999
  %v1064 = vpack.c.bf16 %v1000, %v1000
  %v1065 = vpack.c.bf16 %v1001, %v1001
  %v1066 = vpack.c.bf16 %v1002, %v1002
  %v1067 = vpack.c.bf16 %v1003, %v1003
  %v1068 = vpack.c.bf16 %v1004, %v1004
  %v1069 = vpack.c.bf16 %v1005, %v1005
  %v1070 = vpack.c.bf16 %v1006, %v1006
  %v1071 = vpack.c.bf16 %v1007, %v1007
  %v1072 = vpack.c.bf16 %v1008, %v1008
  %v1073 = vpack.c.bf16 %v1009, %v1009
  %v1074 = vpack.c.bf16 %v1010, %v1010
  %v1075 = vpack.c.bf16 %v1011, %v1011
  %v1076 = vpack.c.bf16 %v1012, %v1012
  %v1077 = vpack.c.bf16 %v1013, %v1013
  %v1078 = vpack.c.bf16 %v1014, %v1014
  %v1079 = vpack.c.bf16 %v1015, %v1015
  %v1080 = vpack.c.bf16 %v1016, %v1016
  %v1081 = vpack.c.bf16 %v1017, %v1017
  %v1082 = vpack.c.bf16 %v1018, %v1018
  %v1083 = vpack.c.bf16 %v1019, %v1019
  %v1084 = vpack.c.bf16 %v1020, %v1020
  %v1085 = vpack.c.bf16 %v1021, %v1021
  %v1086 = vpack.c.bf16 %v1022, %v1022
  %v1087 = vpack.c.bf16 %v1023, %v1023
  %v1088 = vpack.c.bf16 %v1024, %v1024
  %v1089 = vpack.c.bf16 %v1025, %v1025
  %v1090 = vpack.c.bf16 %v1026, %v1026
  %v1091 = vpack.c.bf16 %v1027, %v1027
  %v1092 = vpack.c.bf16 %v1028, %v1028
  %v1093 = vpack.c.bf16 %v1029, %v1029
  %v1094 = vpack.c.bf16 %v1030, %v1030
  %v1095 = vpack.c.bf16 %v1031, %v1031
  %v1096 = vpack.c.bf16 %v1032, %v1032
  %v1097 = vpack.c.bf16 %v1033, %v1033
  %v1098 = vpack.c.bf16 %v1034, %v1034
  %v1099 = vpack.c.bf16 %v1035, %v1035
  %v1100 = vpack.c.bf16 %v1036, %v1036
  %v1101 = vpack.c.bf16 %v1037, %v1037
  %v1102 = vpack.c.bf16 %v1038, %v1038
  %v1103 = vpack.c.bf16 %v1039, %v1039
  %v1104 = vpack.c.bf16 %v1040, %v1040
  %v1105 = vpack.c.bf16 %v1041, %v1041
  %v1106 = vpack.c.bf16 %v1042, %v1042
  %v1107 = vpack.c.bf16 %v1043, %v1043
  %v1108 = vpack.c.bf16 %v1044, %v1044
  %v1109 = vpack.c.bf16 %v1045, %v1045
  %v1110 = vpack.c.bf16 %v1046, %v1046
  %v1111 = vpack.c.bf16 %v1047, %v1047
  %v1112 = vpack.c.bf16 %v1048, %v1048
  %v1113 = vpack.c.bf16 %v1049, %v1049
  %v1114 = vpack.c.bf16 %v1050, %v1050
  %v1115 = vpack.c.bf16 %v1051, %v1051
  %v1116 = vpack.c.bf16 %v1052, %v1052
  %v1117 = vpack.c.bf16 %v1053, %v1053
  %v1118 = vpack.c.bf16 %v1054, %v1054
  %v1119 = vpack.c.bf16 %v1055, %v1055
  %v1120 = vpack.c.bf16 %v1056, %v1056
  %v1121 = vpack.c.bf16 %v1057, %v1057
  %v1122 = vpack.c.bf16 %v1058, %v1058
  %v1123 = vpack.c.bf16 %v1059, %v1059
  %1124 = vst [vmem:[%s3] sm:$0xf] %v1060
  %1125 = vst [vmem:[%s3 + $0x4] sm:$0xf] %v1061
  %1126 = vst [vmem:[%s3 + $0x8] sm:$0xf] %v1062
  %1127 = vst [vmem:[%s3 + $0xc] sm:$0xf] %v1063
  %1128 = vst [vmem:[%s3 + $0x10] sm:$0xf] %v1064
  %1129 = vst [vmem:[%s3 + $0x14] sm:$0xf] %v1065
  %1130 = vst [vmem:[%s3 + $0x18] sm:$0xf] %v1066
  %1131 = vst [vmem:[%s3 + $0x1c] sm:$0xf] %v1067
  %1132 = vst [vmem:[%s3 + $0x20] sm:$0xf] %v1068
  %1133 = vst [vmem:[%s3 + $0x24] sm:$0xf] %v1069
  %1134 = vst [vmem:[%s3 + $0x28] sm:$0xf] %v1070
  %1135 = vst [vmem:[%s3 + $0x2c] sm:$0xf] %v1071
  %1136 = vst [vmem:[%s3 + $0x30] sm:$0xf] %v1072
  %1137 = vst [vmem:[%s3 + $0x34] sm:$0xf] %v1073
  %1138 = vst [vmem:[%s3 + $0x38] sm:$0xf] %v1074
  %1139 = vst [vmem:[%s3 + $0x3c] sm:$0xf] %v1075
  %1140 = vst [vmem:[%s3 + $0x40] sm:$0xf] %v1076
  %1141 = vst [vmem:[%s3 + $0x44] sm:$0xf] %v1077
  %1142 = vst [vmem:[%s3 + $0x48] sm:$0xf] %v1078
  %1143 = vst [vmem:[%s3 + $0x4c] sm:$0xf] %v1079
  %1144 = vst [vmem:[%s3 + $0x50] sm:$0xf] %v1080
  %1145 = vst [vmem:[%s3 + $0x54] sm:$0xf] %v1081
  %1146 = vst [vmem:[%s3 + $0x58] sm:$0xf] %v1082
  %1147 = vst [vmem:[%s3 + $0x5c] sm:$0xf] %v1083
  %1148 = vst [vmem:[%s3 + $0x60] sm:$0xf] %v1084
  %1149 = vst [vmem:[%s3 + $0x64] sm:$0xf] %v1085
  %1150 = vst [vmem:[%s3 + $0x68] sm:$0xf] %v1086
  %1151 = vst [vmem:[%s3 + $0x6c] sm:$0xf] %v1087
  %1152 = vst [vmem:[%s3 + $0x70] sm:$0xf] %v1088
  %1153 = vst [vmem:[%s3 + $0x74] sm:$0xf] %v1089
  %1154 = vst [vmem:[%s3 + $0x78] sm:$0xf] %v1090
  %1155 = vst [vmem:[%s3 + $0x7c] sm:$0xf] %v1091
  %1156 = vst [vmem:[%s3 + $0x80] sm:$0xf] %v1092
  %1157 = vst [vmem:[%s3 + $0x84] sm:$0xf] %v1093
  %1158 = vst [vmem:[%s3 + $0x88] sm:$0xf] %v1094
  %1159 = vst [vmem:[%s3 + $0x8c] sm:$0xf] %v1095
  %1160 = vst [vmem:[%s3 + $0x90] sm:$0xf] %v1096
  %1161 = vst [vmem:[%s3 + $0x94] sm:$0xf] %v1097
  %1162 = vst [vmem:[%s3 + $0x98] sm:$0xf] %v1098
  %1163 = vst [vmem:[%s3 + $0x9c] sm:$0xf] %v1099
  %1164 = vst [vmem:[%s3 + $0xa0] sm:$0xf] %v1100
  %1165 = vst [vmem:[%s3 + $0xa4] sm:$0xf] %v1101
  %1166 = vst [vmem:[%s3 + $0xa8] sm:$0xf] %v1102
  %1167 = vst [vmem:[%s3 + $0xac] sm:$0xf] %v1103
  %1168 = vst [vmem:[%s3 + $0xb0] sm:$0xf] %v1104
  %1169 = vst [vmem:[%s3 + $0xb4] sm:$0xf] %v1105
  %1170 = vst [vmem:[%s3 + $0xb8] sm:$0xf] %v1106
  %1171 = vst [vmem:[%s3 + $0xbc] sm:$0xf] %v1107
  %1172 = vst [vmem:[%s3 + $0xc0] sm:$0xf] %v1108
  %1173 = vst [vmem:[%s3 + $0xc4] sm:$0xf] %v1109
  %1174 = vst [vmem:[%s3 + $0xc8] sm:$0xf] %v1110
  %1175 = vst [vmem:[%s3 + $0xcc] sm:$0xf] %v1111
  %1176 = vst [vmem:[%s3 + $0xd0] sm:$0xf] %v1112
  %1177 = vst [vmem:[%s3 + $0xd4] sm:$0xf] %v1113
  %1178 = vst [vmem:[%s3 + $0xd8] sm:$0xf] %v1114
  %1179 = vst [vmem:[%s3 + $0xdc] sm:$0xf] %v1115
  %1180 = vst [vmem:[%s3 + $0xe0] sm:$0xf] %v1116
  %1181 = vst [vmem:[%s3 + $0xe4] sm:$0xf] %v1117
  %1182 = vst [vmem:[%s3 + $0xe8] sm:$0xf] %v1118
  %1183 = vst [vmem:[%s3 + $0xec] sm:$0xf] %v1119
  %1184 = vst [vmem:[%s3 + $0xf0] sm:$0xf] %v1120
  %1185 = vst [vmem:[%s3 + $0xf4] sm:$0xf] %v1121
  %1186 = vst [vmem:[%s3 + $0xf8] sm:$0xf] %v1122
  %1187 = vst [vmem:[%s3 + $0xfc] sm:$0xf] %v1123
  // Predicated region
  $region14: #{_lambda_.16} parent=0 // pred_check
    _
  $region15: #{_lambda_.16} parent=0 // pred_check_branch
    %1189 = sbr.rel (0) target = $region17
  $region16: #{_lambda_.16} parent=0 // pred_region
    _
  $region17: #{_lambda_.16} parent=0 // pred_fallthru
    _
  // Predicated region
  $region18: #{_lambda_.16} parent=0 // pred_check
    _
  $region19: #{_lambda_.16} parent=0 // pred_check_branch
    %1191 = sbr.rel (0) target = $region21
  $region20: #{_lambda_.16} parent=0 // pred_region
    _
  $region21: #{_lambda_.16} parent=0 // pred_fallthru
    _

// kernel: _lambda_.17
$region0: #{_lambda_.17}
  #allocation0 [shape = 'u32[]', space=smem, size = 0x4, offset = 0x4, fixed_abs, tag = 'smem constant byte address 0x4 - core index']
  #allocation1 [shape = 'u32[72,128]{1,0:T(1,128)}', space=vmem, size = 0x9000, scoped, tag = 'internal scratch']
  %s0 = inlined_call_operand.vmem [shape: bf16[1,128,512], index: 0, kind: input, shape index: {}]
  %s1 = inlined_call_operand.vmem [shape: bf16[1,512,128], index: 1, kind: input, shape index: {}]
  %s2 = inlined_call_operand.vmem [shape: f32[1,128], index: 2, kind: input, shape index: {}]
  %s3 = inlined_call_operand.vmem [shape: bf16[1,128,128], index: 3, kind: output, shape index: {}]
  %s4 = sld [smem:[#allocation0]]
  $region22: #{_lambda_.17} parent=0
    _
  %s6 = ssub.s32 1, %s4
  %s7 = scalar_select 0, %s6, %s4
  // Predicated region
  $region2: #{_lambda_.17} parent=0 // pred_check
    _
  $region3: #{_lambda_.17} parent=0 // pred_check_branch
    %9 = sbr.rel (0) target = $region5
  $region4: #{_lambda_.17} parent=0 // pred_region
    _
  $region5: #{_lambda_.17} parent=0 // pred_fallthru
    _
  // Predicated region
  $region6: #{_lambda_.17} parent=0 // pred_check
    _
  $region7: #{_lambda_.17} parent=0 // pred_check_branch
    %11 = sbr.rel (0) target = $region9
  $region8: #{_lambda_.17} parent=0 // pred_region
    _
  $region9: #{_lambda_.17} parent=0 // pred_fallthru
    _
  // Predicated region
  $region10: #{_lambda_.17} parent=0 // pred_check
    _
  $region11: #{_lambda_.17} parent=0 // pred_check_branch
    %13 = sbr.rel (0) target = $region13
  $region12: #{_lambda_.17} parent=0 // pred_region
    _
  $region13: #{_lambda_.17} parent=0 // pred_fallthru
    _
  %v14 = vld [vmem:[%s0] sm:$0xff]
  %v15 = vld [vmem:[%s0 + $0x8] sm:$0xff]
  %v16 = vld [vmem:[%s0 + $0x10] sm:$0xff]
  %v17 = vld [vmem:[%s0 + $0x18] sm:$0xff]
  %v18 = vld [vmem:[%s0 + $0x20] sm:$0xff]
  %v19 = vld [vmem:[%s0 + $0x28] sm:$0xff]
  %v20 = vld [vmem:[%s0 + $0x30] sm:$0xff]
  %v21 = vld [vmem:[%s0 + $0x38] sm:$0xff]
  %v22 = vld [vmem:[%s0 + $0x40] sm:$0xff]
  %v23 = vld [vmem:[%s0 + $0x48] sm:$0xff]
  %v24 = vld [vmem:[%s0 + $0x50] sm:$0xff]
  %v25 = vld [vmem:[%s0 + $0x58] sm:$0xff]
  %v26 = vld [vmem:[%s0 + $0x60] sm:$0xff]
  %v27 = vld [vmem:[%s0 + $0x68] sm:$0xff]
  %v28 = vld [vmem:[%s0 + $0x70] sm:$0xff]
  %v29 = vld [vmem:[%s0 + $0x78] sm:$0xff]
  %v30 = vld [vmem:[%s0 + $0x80] sm:$0xff]
  %v31 = vld [vmem:[%s0 + $0x88] sm:$0xff]
  %v32 = vld [vmem:[%s0 + $0x90] sm:$0xff]
  %v33 = vld [vmem:[%s0 + $0x98] sm:$0xff]
  %v34 = vld [vmem:[%s0 + $0xa0] sm:$0xff]
  %v35 = vld [vmem:[%s0 + $0xa8] sm:$0xff]
  %v36 = vld [vmem:[%s0 + $0xb0] sm:$0xff]
  %v37 = vld [vmem:[%s0 + $0xb8] sm:$0xff]
  %v38 = vld [vmem:[%s0 + $0xc0] sm:$0xff]
  %v39 = vld [vmem:[%s0 + $0xc8] sm:$0xff]
  %v40 = vld [vmem:[%s0 + $0xd0] sm:$0xff]
  %v41 = vld [vmem:[%s0 + $0xd8] sm:$0xff]
  %v42 = vld [vmem:[%s0 + $0xe0] sm:$0xff]
  %v43 = vld [vmem:[%s0 + $0xe8] sm:$0xff]
  %v44 = vld [vmem:[%s0 + $0xf0] sm:$0xff]
  %v45 = vld [vmem:[%s0 + $0xf8] sm:$0xff]
  %v46 = vld [vmem:[%s1] sm:$0xf]
  %v47 = vld [vmem:[%s1 + $0x4] sm:$0xf]
  %v48 = vld [vmem:[%s1 + $0x8] sm:$0xf]
  %v49 = vld [vmem:[%s1 + $0xc] sm:$0xf]
  %v50 = vld [vmem:[%s1 + $0x10] sm:$0xf]
  %v51 = vld [vmem:[%s1 + $0x14] sm:$0xf]
  %v52 = vld [vmem:[%s1 + $0x18] sm:$0xf]
  %v53 = vld [vmem:[%s1 + $0x1c] sm:$0xf]
  %v54 = vld [vmem:[%s1 + $0x20] sm:$0xf]
  %v55 = vld [vmem:[%s1 + $0x24] sm:$0xf]
  %v56 = vld [vmem:[%s1 + $0x28] sm:$0xf]
  %v57 = vld [vmem:[%s1 + $0x2c] sm:$0xf]
  %v58 = vld [vmem:[%s1 + $0x30] sm:$0xf]
  %v59 = vld [vmem:[%s1 + $0x34] sm:$0xf]
  %v60 = vld [vmem:[%s1 + $0x38] sm:$0xf]
  %v61 = vld [vmem:[%s1 + $0x3c] sm:$0xf]
  %v62 = vld [vmem:[%s1 + $0x40] sm:$0xf]
  %v63 = vld [vmem:[%s1 + $0x44] sm:$0xf]
  %v64 = vld [vmem:[%s1 + $0x48] sm:$0xf]
  %v65 = vld [vmem:[%s1 + $0x4c] sm:$0xf]
  %v66 = vld [vmem:[%s1 + $0x50] sm:$0xf]
  %v67 = vld [vmem:[%s1 + $0x54] sm:$0xf]
  %v68 = vld [vmem:[%s1 + $0x58] sm:$0xf]
  %v69 = vld [vmem:[%s1 + $0x5c] sm:$0xf]
  %v70 = vld [vmem:[%s1 + $0x60] sm:$0xf]
  %v71 = vld [vmem:[%s1 + $0x64] sm:$0xf]
  %v72 = vld [vmem:[%s1 + $0x68] sm:$0xf]
  %v73 = vld [vmem:[%s1 + $0x6c] sm:$0xf]
  %v74 = vld [vmem:[%s1 + $0x70] sm:$0xf]
  %v75 = vld [vmem:[%s1 + $0x74] sm:$0xf]
  %v76 = vld [vmem:[%s1 + $0x78] sm:$0xf]
  %v77 = vld [vmem:[%s1 + $0x7c] sm:$0xf]
  %v78 = vld [vmem:[%s1 + $0x80] sm:$0xf]
  %v79 = vld [vmem:[%s1 + $0x84] sm:$0xf]
  %v80 = vld [vmem:[%s1 + $0x88] sm:$0xf]
  %v81 = vld [vmem:[%s1 + $0x8c] sm:$0xf]
  %v82 = vld [vmem:[%s1 + $0x90] sm:$0xf]
  %v83 = vld [vmem:[%s1 + $0x94] sm:$0xf]
  %v84 = vld [vmem:[%s1 + $0x98] sm:$0xf]
  %v85 = vld [vmem:[%s1 + $0x9c] sm:$0xf]
  %v86 = vld [vmem:[%s1 + $0xa0] sm:$0xf]
  %v87 = vld [vmem:[%s1 + $0xa4] sm:$0xf]
  %v88 = vld [vmem:[%s1 + $0xa8] sm:$0xf]
  %v89 = vld [vmem:[%s1 + $0xac] sm:$0xf]
  %v90 = vld [vmem:[%s1 + $0xb0] sm:$0xf]
  %v91 = vld [vmem:[%s1 + $0xb4] sm:$0xf]
  %v92 = vld [vmem:[%s1 + $0xb8] sm:$0xf]
  %v93 = vld [vmem:[%s1 + $0xbc] sm:$0xf]
  %v94 = vld [vmem:[%s1 + $0xc0] sm:$0xf]
  %v95 = vld [vmem:[%s1 + $0xc4] sm:$0xf]
  %v96 = vld [vmem:[%s1 + $0xc8] sm:$0xf]
  %v97 = vld [vmem:[%s1 + $0xcc] sm:$0xf]
  %v98 = vld [vmem:[%s1 + $0xd0] sm:$0xf]
  %v99 = vld [vmem:[%s1 + $0xd4] sm:$0xf]
  %v100 = vld [vmem:[%s1 + $0xd8] sm:$0xf]
  %v101 = vld [vmem:[%s1 + $0xdc] sm:$0xf]
  %v102 = vld [vmem:[%s1 + $0xe0] sm:$0xf]
  %v103 = vld [vmem:[%s1 + $0xe4] sm:$0xf]
  %v104 = vld [vmem:[%s1 + $0xe8] sm:$0xf]
  %v105 = vld [vmem:[%s1 + $0xec] sm:$0xf]
  %v106 = vld [vmem:[%s1 + $0xf0] sm:$0xf]
  %v107 = vld [vmem:[%s1 + $0xf4] sm:$0xf]
  %v108 = vld [vmem:[%s1 + $0xf8] sm:$0xf]
  %v109 = vld [vmem:[%s1 + $0xfc] sm:$0xf]
  %v110 = vld [vmem:[%s2] sm:$0x1]
  %v112 = vperm.slane %v110, 0
  %v146 = vunpack.c.l.b16 %v14
  %v147 = vunpack.c.h.b16 %v14
  %v148 = vunpack.c.l.b16 %v15
  %v149 = vunpack.c.h.b16 %v15
  %v150 = vunpack.c.l.b16 %v16
  %v151 = vunpack.c.h.b16 %v16
  %v152 = vunpack.c.l.b16 %v17
  %v153 = vunpack.c.h.b16 %v17
  %v154 = vunpack.c.l.b16 %v18
  %v155 = vunpack.c.h.b16 %v18
  %v156 = vunpack.c.l.b16 %v19
  %v157 = vunpack.c.h.b16 %v19
  %v158 = vunpack.c.l.b16 %v20
  %v159 = vunpack.c.h.b16 %v20
  %v160 = vunpack.c.l.b16 %v21
  %v161 = vunpack.c.h.b16 %v21
  %v162 = vunpack.c.l.b16 %v22
  %v163 = vunpack.c.h.b16 %v22
  %v164 = vunpack.c.l.b16 %v23
  %v165 = vunpack.c.h.b16 %v23
  %v166 = vunpack.c.l.b16 %v24
  %v167 = vunpack.c.h.b16 %v24
  %v168 = vunpack.c.l.b16 %v25
  %v169 = vunpack.c.h.b16 %v25
  %v170 = vunpack.c.l.b16 %v26
  %v171 = vunpack.c.h.b16 %v26
  %v172 = vunpack.c.l.b16 %v27
  %v173 = vunpack.c.h.b16 %v27
  %v174 = vunpack.c.l.b16 %v28
  %v175 = vunpack.c.h.b16 %v28
  %v176 = vunpack.c.l.b16 %v29
  %v177 = vunpack.c.h.b16 %v29
  %v178 = vunpack.c.l.b16 %v30
  %v179 = vunpack.c.h.b16 %v30
  %v180 = vunpack.c.l.b16 %v31
  %v181 = vunpack.c.h.b16 %v31
  %v182 = vunpack.c.l.b16 %v32
  %v183 = vunpack.c.h.b16 %v32
  %v184 = vunpack.c.l.b16 %v33
  %v185 = vunpack.c.h.b16 %v33
  %v186 = vunpack.c.l.b16 %v34
  %v187 = vunpack.c.h.b16 %v34
  %v188 = vunpack.c.l.b16 %v35
  %v189 = vunpack.c.h.b16 %v35
  %v190 = vunpack.c.l.b16 %v36
  %v191 = vunpack.c.h.b16 %v36
  %v192 = vunpack.c.l.b16 %v37
  %v193 = vunpack.c.h.b16 %v37
  %v194 = vunpack.c.l.b16 %v38
  %v195 = vunpack.c.h.b16 %v38
  %v196 = vunpack.c.l.b16 %v39
  %v197 = vunpack.c.h.b16 %v39
  %v198 = vunpack.c.l.b16 %v40
  %v199 = vunpack.c.h.b16 %v40
  %v200 = vunpack.c.l.b16 %v41
  %v201 = vunpack.c.h.b16 %v41
  %v202 = vunpack.c.l.b16 %v42
  %v203 = vunpack.c.h.b16 %v42
  %v204 = vunpack.c.l.b16 %v43
  %v205 = vunpack.c.h.b16 %v43
  %v206 = vunpack.c.l.b16 %v44
  %v207 = vunpack.c.h.b16 %v44
  %v208 = vunpack.c.l.b16 %v45
  %v209 = vunpack.c.h.b16 %v45
  %v210 = vpack.c.b16 %v150, %v146
  %v211 = vpack.c.b16 %v151, %v147
  %v212 = vpack.c.b16 %v152, %v148
  %v213 = vpack.c.b16 %v153, %v149
  %v214 = vpack.c.b16 %v158, %v154
  %v215 = vpack.c.b16 %v159, %v155
  %v216 = vpack.c.b16 %v160, %v156
  %v217 = vpack.c.b16 %v161, %v157
  %v218 = vpack.c.b16 %v166, %v162
  %v219 = vpack.c.b16 %v167, %v163
  %v220 = vpack.c.b16 %v168, %v164
  %v221 = vpack.c.b16 %v169, %v165
  %v222 = vpack.c.b16 %v174, %v170
  %v223 = vpack.c.b16 %v175, %v171
  %v224 = vpack.c.b16 %v176, %v172
  %v225 = vpack.c.b16 %v177, %v173
  %v226 = vpack.c.b16 %v182, %v178
  %v227 = vpack.c.b16 %v183, %v179
  %v228 = vpack.c.b16 %v184, %v180
  %v229 = vpack.c.b16 %v185, %v181
  %v230 = vpack.c.b16 %v190, %v186
  %v231 = vpack.c.b16 %v191, %v187
  %v232 = vpack.c.b16 %v192, %v188
  %v233 = vpack.c.b16 %v193, %v189
  %v234 = vpack.c.b16 %v198, %v194
  %v235 = vpack.c.b16 %v199, %v195
  %v236 = vpack.c.b16 %v200, %v196
  %v237 = vpack.c.b16 %v201, %v197
  %v238 = vpack.c.b16 %v206, %v202
  %v239 = vpack.c.b16 %v207, %v203
  %v240 = vpack.c.b16 %v208, %v204
  %v241 = vpack.c.b16 %v209, %v205
  %v338 = vunpack.c.l.b16 %v46
  %v339 = vunpack.c.l.b16 %v47
  %v340 = vunpack.c.l.b16 %v48
  %v341 = vunpack.c.l.b16 %v49
  %v342 = vunpack.c.l.b16 %v50
  %v343 = vunpack.c.l.b16 %v51
  %v344 = vunpack.c.l.b16 %v52
  %v345 = vunpack.c.l.b16 %v53
  %v346 = vunpack.c.l.b16 %v54
  %v347 = vunpack.c.l.b16 %v55
  %v348 = vunpack.c.l.b16 %v56
  %v349 = vunpack.c.l.b16 %v57
  %v350 = vunpack.c.l.b16 %v58
  %v351 = vunpack.c.l.b16 %v59
  %v352 = vunpack.c.l.b16 %v60
  %v353 = vunpack.c.l.b16 %v61
  %v354 = vunpack.c.l.b16 %v62
  %v355 = vunpack.c.l.b16 %v63
  %v356 = vunpack.c.l.b16 %v64
  %v357 = vunpack.c.l.b16 %v65
  %v358 = vunpack.c.l.b16 %v66
  %v359 = vunpack.c.l.b16 %v67
  %v360 = vunpack.c.l.b16 %v68
  %v361 = vunpack.c.l.b16 %v69
  %v362 = vunpack.c.l.b16 %v70
  %v363 = vunpack.c.l.b16 %v71
  %v364 = vunpack.c.l.b16 %v72
  %v365 = vunpack.c.l.b16 %v73
  %v366 = vunpack.c.l.b16 %v74
  %v367 = vunpack.c.l.b16 %v75
  %v368 = vunpack.c.l.b16 %v76
  %v369 = vunpack.c.l.b16 %v77
  %v370 = vunpack.c.l.b16 %v78
  %v371 = vunpack.c.l.b16 %v79
  %v372 = vunpack.c.l.b16 %v80
  %v373 = vunpack.c.l.b16 %v81
  %v374 = vunpack.c.l.b16 %v82
  %v375 = vunpack.c.l.b16 %v83
  %v376 = vunpack.c.l.b16 %v84
  %v377 = vunpack.c.l.b16 %v85
  %v378 = vunpack.c.l.b16 %v86
  %v379 = vunpack.c.l.b16 %v87
  %v380 = vunpack.c.l.b16 %v88
  %v381 = vunpack.c.l.b16 %v89
  %v382 = vunpack.c.l.b16 %v90
  %v383 = vunpack.c.l.b16 %v91
  %v384 = vunpack.c.l.b16 %v92
  %v385 = vunpack.c.l.b16 %v93
  %v386 = vunpack.c.l.b16 %v94
  %v387 = vunpack.c.l.b16 %v95
  %v388 = vunpack.c.l.b16 %v96
  %v389 = vunpack.c.l.b16 %v97
  %v390 = vunpack.c.l.b16 %v98
  %v391 = vunpack.c.l.b16 %v99
  %v392 = vunpack.c.l.b16 %v100
  %v393 = vunpack.c.l.b16 %v101
  %v394 = vunpack.c.l.b16 %v102
  %v395 = vunpack.c.l.b16 %v103
  %v396 = vunpack.c.l.b16 %v104
  %v397 = vunpack.c.l.b16 %v105
  %v398 = vunpack.c.l.b16 %v106
  %v399 = vunpack.c.l.b16 %v107
  %v400 = vunpack.c.l.b16 %v108
  %v401 = vunpack.c.l.b16 %v109
  %v402 = vpack.c.b16 %v339, %v338
  %v403 = vpack.c.b16 %v341, %v340
  %v404 = vpack.c.b16 %v343, %v342
  %v405 = vpack.c.b16 %v345, %v344
  %v406 = vpack.c.b16 %v347, %v346
  %v407 = vpack.c.b16 %v349, %v348
  %v408 = vpack.c.b16 %v351, %v350
  %v409 = vpack.c.b16 %v353, %v352
  %v410 = vpack.c.b16 %v355, %v354
  %v411 = vpack.c.b16 %v357, %v356
  %v412 = vpack.c.b16 %v359, %v358
  %v413 = vpack.c.b16 %v361, %v360
  %v414 = vpack.c.b16 %v363, %v362
  %v415 = vpack.c.b16 %v365, %v364
  %v416 = vpack.c.b16 %v367, %v366
  %v417 = vpack.c.b16 %v369, %v368
  %v418 = vpack.c.b16 %v371, %v370
  %v419 = vpack.c.b16 %v373, %v372
  %v420 = vpack.c.b16 %v375, %v374
  %v421 = vpack.c.b16 %v377, %v376
  %v422 = vpack.c.b16 %v379, %v378
  %v423 = vpack.c.b16 %v381, %v380
  %v424 = vpack.c.b16 %v383, %v382
  %v425 = vpack.c.b16 %v385, %v384
  %v426 = vpack.c.b16 %v387, %v386
  %v427 = vpack.c.b16 %v389, %v388
  %v428 = vpack.c.b16 %v391, %v390
  %v429 = vpack.c.b16 %v393, %v392
  %v430 = vpack.c.b16 %v395, %v394
  %v431 = vpack.c.b16 %v397, %v396
  %v432 = vpack.c.b16 %v399, %v398
  %v433 = vpack.c.b16 %v401, %v400
  %466 = vmatpush.bf16.msra.mxu0 %v409
  %467 = vmatpush.bf16.msra.mxu0 %v408
  %468 = vmatpush.bf16.msra.mxu0 %v407
  %469 = vmatpush.bf16.msra.mxu0 %v406
  %470 = vmatpush.bf16.msra.mxu0 %v405
  %471 = vmatpush.bf16.msra.mxu0 %v404
  %472 = vmatpush.bf16.msra.mxu0 %v403
  %473 = vmatpush.bf16.msra.mxu0 %v402
  %474 = vmatmul.bf16.gmra.mxu0 %v210
  %v475 = vpop.f32.mrf.mxu0
  %v476 = vadd.f32 %v112, %v475
  %v477 = vpop.f32.mrf.mxu0
  %v478 = vadd.f32 %v112, %v477
  %479 = vmatmul.bf16.gmra.mxu0 %v214
  %v480 = vpop.f32.mrf.mxu0
  %v481 = vadd.f32 %v112, %v480
  %v482 = vpop.f32.mrf.mxu0
  %v483 = vadd.f32 %v112, %v482
  %484 = vmatmul.bf16.gmra.mxu0 %v218
  %v485 = vpop.f32.mrf.mxu0
  %v486 = vadd.f32 %v112, %v485
  %v487 = vpop.f32.mrf.mxu0
  %v488 = vadd.f32 %v112, %v487
  %489 = vmatmul.bf16.gmra.mxu0 %v222
  %v490 = vpop.f32.mrf.mxu0
  %v491 = vadd.f32 %v112, %v490
  %v492 = vpop.f32.mrf.mxu0
  %v493 = vadd.f32 %v112, %v492
  %494 = vmatmul.bf16.gmra.mxu0 %v226
  %v495 = vpop.f32.mrf.mxu0
  %v496 = vadd.f32 %v112, %v495
  %v497 = vpop.f32.mrf.mxu0
  %v498 = vadd.f32 %v112, %v497
  %499 = vmatmul.bf16.gmra.mxu0 %v230
  %v500 = vpop.f32.mrf.mxu0
  %v501 = vadd.f32 %v112, %v500
  %v502 = vpop.f32.mrf.mxu0
  %v503 = vadd.f32 %v112, %v502
  %504 = vmatmul.bf16.gmra.mxu0 %v234
  %v505 = vpop.f32.mrf.mxu0
  %v506 = vadd.f32 %v112, %v505
  %v507 = vpop.f32.mrf.mxu0
  %v508 = vadd.f32 %v112, %v507
  %509 = vmatmul.bf16.gmra.mxu0 %v238
  %v510 = vpop.f32.mrf.mxu0
  %v511 = vadd.f32 %v112, %v510
  %v512 = vpop.f32.mrf.mxu0
  %v513 = vadd.f32 %v112, %v512
  %514 = vdwg.mxu0
  %515 = vmatpush.bf16.msra.mxu0 %v417
  %516 = vmatpush.bf16.msra.mxu0 %v416
  %517 = vmatpush.bf16.msra.mxu0 %v415
  %518 = vmatpush.bf16.msra.mxu0 %v414
  %519 = vmatpush.bf16.msra.mxu0 %v413
  %520 = vmatpush.bf16.msra.mxu0 %v412
  %521 = vmatpush.bf16.msra.mxu0 %v411
  %522 = vmatpush.bf16.msra.mxu0 %v410
  %523 = vmatmul.bf16.gmra.mxu0 %v211
  %v524 = vpop.f32.mrf.mxu0
  %v525 = vadd.f32 %v476, %v524
  %v526 = vpop.f32.mrf.mxu0
  %v527 = vadd.f32 %v478, %v526
  %528 = vmatmul.bf16.gmra.mxu0 %v215
  %v529 = vpop.f32.mrf.mxu0
  %v530 = vadd.f32 %v481, %v529
  %v531 = vpop.f32.mrf.mxu0
  %v532 = vadd.f32 %v483, %v531
  %533 = vmatmul.bf16.gmra.mxu0 %v219
  %v534 = vpop.f32.mrf.mxu0
  %v535 = vadd.f32 %v486, %v534
  %v536 = vpop.f32.mrf.mxu0
  %v537 = vadd.f32 %v488, %v536
  %538 = vmatmul.bf16.gmra.mxu0 %v223
  %v539 = vpop.f32.mrf.mxu0
  %v540 = vadd.f32 %v491, %v539
  %v541 = vpop.f32.mrf.mxu0
  %v542 = vadd.f32 %v493, %v541
  %543 = vmatmul.bf16.gmra.mxu0 %v227
  %v544 = vpop.f32.mrf.mxu0
  %v545 = vadd.f32 %v496, %v544
  %v546 = vpop.f32.mrf.mxu0
  %v547 = vadd.f32 %v498, %v546
  %548 = vmatmul.bf16.gmra.mxu0 %v231
  %v549 = vpop.f32.mrf.mxu0
  %v550 = vadd.f32 %v501, %v549
  %v551 = vpop.f32.mrf.mxu0
  %v552 = vadd.f32 %v503, %v551
  %553 = vmatmul.bf16.gmra.mxu0 %v235
  %v554 = vpop.f32.mrf.mxu0
  %v555 = vadd.f32 %v506, %v554
  %v556 = vpop.f32.mrf.mxu0
  %v557 = vadd.f32 %v508, %v556
  %558 = vmatmul.bf16.gmra.mxu0 %v239
  %v559 = vpop.f32.mrf.mxu0
  %v560 = vadd.f32 %v511, %v559
  %v561 = vpop.f32.mrf.mxu0
  %v562 = vadd.f32 %v513, %v561
  %563 = vdwg.mxu0
  %564 = vmatpush.bf16.msra.mxu0 %v425
  %565 = vmatpush.bf16.msra.mxu0 %v424
  %566 = vmatpush.bf16.msra.mxu0 %v423
  %567 = vmatpush.bf16.msra.mxu0 %v422
  %568 = vmatpush.bf16.msra.mxu0 %v421
  %569 = vmatpush.bf16.msra.mxu0 %v420
  %570 = vmatpush.bf16.msra.mxu0 %v419
  %571 = vmatpush.bf16.msra.mxu0 %v418
  %572 = vmatmul.bf16.gmra.mxu0 %v212
  %v573 = vpop.f32.mrf.mxu0
  %v574 = vadd.f32 %v525, %v573
  %v575 = vpop.f32.mrf.mxu0
  %v576 = vadd.f32 %v527, %v575
  %577 = vmatmul.bf16.gmra.mxu0 %v216
  %v578 = vpop.f32.mrf.mxu0
  %v579 = vadd.f32 %v530, %v578
  %v580 = vpop.f32.mrf.mxu0
  %v581 = vadd.f32 %v532, %v580
  %582 = vmatmul.bf16.gmra.mxu0 %v220
  %v583 = vpop.f32.mrf.mxu0
  %v584 = vadd.f32 %v535, %v583
  %v585 = vpop.f32.mrf.mxu0
  %v586 = vadd.f32 %v537, %v585
  %587 = vmatmul.bf16.gmra.mxu0 %v224
  %v588 = vpop.f32.mrf.mxu0
  %v589 = vadd.f32 %v540, %v588
  %v590 = vpop.f32.mrf.mxu0
  %v591 = vadd.f32 %v542, %v590
  %592 = vmatmul.bf16.gmra.mxu0 %v228
  %v593 = vpop.f32.mrf.mxu0
  %v594 = vadd.f32 %v545, %v593
  %v595 = vpop.f32.mrf.mxu0
  %v596 = vadd.f32 %v547, %v595
  %597 = vmatmul.bf16.gmra.mxu0 %v232
  %v598 = vpop.f32.mrf.mxu0
  %v599 = vadd.f32 %v550, %v598
  %v600 = vpop.f32.mrf.mxu0
  %v601 = vadd.f32 %v552, %v600
  %602 = vmatmul.bf16.gmra.mxu0 %v236
  %v603 = vpop.f32.mrf.mxu0
  %v604 = vadd.f32 %v555, %v603
  %v605 = vpop.f32.mrf.mxu0
  %v606 = vadd.f32 %v557, %v605
  %607 = vmatmul.bf16.gmra.mxu0 %v240
  %v608 = vpop.f32.mrf.mxu0
  %v609 = vadd.f32 %v560, %v608
  %v610 = vpop.f32.mrf.mxu0
  %v611 = vadd.f32 %v562, %v610
  %612 = vdwg.mxu0
  %613 = vmatpush.bf16.msra.mxu0 %v433
  %614 = vmatpush.bf16.msra.mxu0 %v432
  %615 = vmatpush.bf16.msra.mxu0 %v431
  %616 = vmatpush.bf16.msra.mxu0 %v430
  %617 = vmatpush.bf16.msra.mxu0 %v429
  %618 = vmatpush.bf16.msra.mxu0 %v428
  %619 = vmatpush.bf16.msra.mxu0 %v427
  %620 = vmatpush.bf16.msra.mxu0 %v426
  %621 = vmatmul.bf16.gmra.mxu0 %v213
  %v622 = vpop.f32.mrf.mxu0
  %v623 = vadd.f32 %v574, %v622
  %v624 = vpop.f32.mrf.mxu0
  %v625 = vadd.f32 %v576, %v624
  %626 = vmatmul.bf16.gmra.mxu0 %v217
  %v627 = vpop.f32.mrf.mxu0
  %v628 = vadd.f32 %v579, %v627
  %v629 = vpop.f32.mrf.mxu0
  %v630 = vadd.f32 %v581, %v629
  %631 = vmatmul.bf16.gmra.mxu0 %v221
  %v632 = vpop.f32.mrf.mxu0
  %v633 = vadd.f32 %v584, %v632
  %v634 = vpop.f32.mrf.mxu0
  %v635 = vadd.f32 %v586, %v634
  %636 = vmatmul.bf16.gmra.mxu0 %v225
  %v637 = vpop.f32.mrf.mxu0
  %v638 = vadd.f32 %v589, %v637
  %v639 = vpop.f32.mrf.mxu0
  %v640 = vadd.f32 %v591, %v639
  %641 = vmatmul.bf16.gmra.mxu0 %v229
  %v642 = vpop.f32.mrf.mxu0
  %v643 = vadd.f32 %v594, %v642
  %v644 = vpop.f32.mrf.mxu0
  %v645 = vadd.f32 %v596, %v644
  %646 = vmatmul.bf16.gmra.mxu0 %v233
  %v647 = vpop.f32.mrf.mxu0
  %v648 = vadd.f32 %v599, %v647
  %v649 = vpop.f32.mrf.mxu0
  %v650 = vadd.f32 %v601, %v649
  %651 = vmatmul.bf16.gmra.mxu0 %v237
  %v652 = vpop.f32.mrf.mxu0
  %v653 = vadd.f32 %v604, %v652
  %v654 = vpop.f32.mrf.mxu0
  %v655 = vadd.f32 %v606, %v654
  %656 = vmatmul.bf16.gmra.mxu0 %v241
  %v657 = vpop.f32.mrf.mxu0
  %v658 = vadd.f32 %v609, %v657
  %v659 = vpop.f32.mrf.mxu0
  %v660 = vadd.f32 %v611, %v659
  %661 = vdwg.mxu0
  %vm662 = vcmp.gt.f32.partialorder %v623, 0.0
  %vm663 = vcmp.gt.f32.partialorder %v625, 0.0
  %vm664 = vcmp.gt.f32.partialorder %v628, 0.0
  %vm665 = vcmp.gt.f32.partialorder %v630, 0.0
  %vm666 = vcmp.gt.f32.partialorder %v633, 0.0
  %vm667 = vcmp.gt.f32.partialorder %v635, 0.0
  %vm668 = vcmp.gt.f32.partialorder %v638, 0.0
  %vm669 = vcmp.gt.f32.partialorder %v640, 0.0
  %vm670 = vcmp.gt.f32.partialorder %v643, 0.0
  %vm671 = vcmp.gt.f32.partialorder %v645, 0.0
  %vm672 = vcmp.gt.f32.partialorder %v648, 0.0
  %vm673 = vcmp.gt.f32.partialorder %v650, 0.0
  %vm674 = vcmp.gt.f32.partialorder %v653, 0.0
  %vm675 = vcmp.gt.f32.partialorder %v655, 0.0
  %vm676 = vcmp.gt.f32.partialorder %v658, 0.0
  %vm677 = vcmp.gt.f32.partialorder %v660, 0.0
  %v678 = vmul.f32 %v623, 0.2
  %v679 = vmul.f32 %v625, 0.2
  %v680 = vmul.f32 %v628, 0.2
  %v681 = vmul.f32 %v630, 0.2
  %v682 = vmul.f32 %v633, 0.2
  %v683 = vmul.f32 %v635, 0.2
  %v684 = vmul.f32 %v638, 0.2
  %v685 = vmul.f32 %v640, 0.2
  %v686 = vmul.f32 %v643, 0.2
  %v687 = vmul.f32 %v645, 0.2
  %v688 = vmul.f32 %v648, 0.2
  %v689 = vmul.f32 %v650, 0.2
  %v690 = vmul.f32 %v653, 0.2
  %v691 = vmul.f32 %v655, 0.2
  %v692 = vmul.f32 %v658, 0.2
  %v693 = vmul.f32 %v660, 0.2
  %v694 = vsel %vm662, %v623, %v678
  %v695 = vsel %vm663, %v625, %v679
  %v696 = vsel %vm664, %v628, %v680
  %v697 = vsel %vm665, %v630, %v681
  %v698 = vsel %vm666, %v633, %v682
  %v699 = vsel %vm667, %v635, %v683
  %v700 = vsel %vm668, %v638, %v684
  %v701 = vsel %vm669, %v640, %v685
  %v702 = vsel %vm670, %v643, %v686
  %v703 = vsel %vm671, %v645, %v687
  %v704 = vsel %vm672, %v648, %v688
  %v705 = vsel %vm673, %v650, %v689
  %v706 = vsel %vm674, %v653, %v690
  %v707 = vsel %vm675, %v655, %v691
  %v708 = vsel %vm676, %v658, %v692
  %v709 = vsel %vm677, %v660, %v693
  %v710 = vpack.c.bf16 %v694, %v694
  %v711 = vpack.c.bf16 %v695, %v695
  %v712 = vpack.c.bf16 %v696, %v696
  %v713 = vpack.c.bf16 %v697, %v697
  %v714 = vpack.c.bf16 %v698, %v698
  %v715 = vpack.c.bf16 %v699, %v699
  %v716 = vpack.c.bf16 %v700, %v700
  %v717 = vpack.c.bf16 %v701, %v701
  %v718 = vpack.c.bf16 %v702, %v702
  %v719 = vpack.c.bf16 %v703, %v703
  %v720 = vpack.c.bf16 %v704, %v704
  %v721 = vpack.c.bf16 %v705, %v705
  %v722 = vpack.c.bf16 %v706, %v706
  %v723 = vpack.c.bf16 %v707, %v707
  %v724 = vpack.c.bf16 %v708, %v708
  %v725 = vpack.c.bf16 %v709, %v709
  %726 = vst [vmem:[%s3] sm:$0xf] %v710
  %727 = vst [vmem:[%s3 + $0x4] sm:$0xf] %v711
  %728 = vst [vmem:[%s3 + $0x8] sm:$0xf] %v712
  %729 = vst [vmem:[%s3 + $0xc] sm:$0xf] %v713
  %730 = vst [vmem:[%s3 + $0x10] sm:$0xf] %v714
  %731 = vst [vmem:[%s3 + $0x14] sm:$0xf] %v715
  %732 = vst [vmem:[%s3 + $0x18] sm:$0xf] %v716
  %733 = vst [vmem:[%s3 + $0x1c] sm:$0xf] %v717
  %734 = vst [vmem:[%s3 + $0x20] sm:$0xf] %v718
  %735 = vst [vmem:[%s3 + $0x24] sm:$0xf] %v719
  %736 = vst [vmem:[%s3 + $0x28] sm:$0xf] %v720
  %737 = vst [vmem:[%s3 + $0x2c] sm:$0xf] %v721
  %738 = vst [vmem:[%s3 + $0x30] sm:$0xf] %v722
  %739 = vst [vmem:[%s3 + $0x34] sm:$0xf] %v723
  %740 = vst [vmem:[%s3 + $0x38] sm:$0xf] %v724
  %741 = vst [vmem:[%s3 + $0x3c] sm:$0xf] %v725
  // Predicated region
  $region14: #{_lambda_.17} parent=0 // pred_check
    _
  $region15: #{_lambda_.17} parent=0 // pred_check_branch
    %743 = sbr.rel (0) target = $region17
  $region16: #{_lambda_.17} parent=0 // pred_region
    _
  $region17: #{_lambda_.17} parent=0 // pred_fallthru
    _
  // Predicated region
  $region18: #{_lambda_.17} parent=0 // pred_check
    _
  $region19: #{_lambda_.17} parent=0 // pred_check_branch
    %745 = sbr.rel (0) target = $region21
  $region20: #{_lambda_.17} parent=0 // pred_region
    _
  $region21: #{_lambda_.17} parent=0 // pred_fallthru
    _

// kernel: _lambda_.18
$region0: #{_lambda_.18}
  #allocation0 [shape = 'u32[]', space=smem, size = 0x4, offset = 0x4, fixed_abs, tag = 'smem constant byte address 0x4 - core index']
  #allocation1 [shape = 'u32[72,128]{1,0:T(1,128)}', space=vmem, size = 0x9000, scoped, tag = 'internal scratch']
  %s0 = inlined_call_operand.vmem [shape: bf16[1,32,1024], index: 0, kind: input, shape index: {}]
  %s1 = inlined_call_operand.vmem [shape: bf16[1,1024,128], index: 1, kind: input, shape index: {}]
  %s2 = inlined_call_operand.vmem [shape: f32[1,128], index: 2, kind: input, shape index: {}]
  %s3 = inlined_call_operand.vmem [shape: bf16[1,32,128], index: 3, kind: output, shape index: {}]
  %s4 = sld [smem:[#allocation0]]
  $region22: #{_lambda_.18} parent=0
    _
  %s6 = ssub.s32 1, %s4
  %s7 = scalar_select 0, %s6, %s4
  // Predicated region
  $region2: #{_lambda_.18} parent=0 // pred_check
    _
  $region3: #{_lambda_.18} parent=0 // pred_check_branch
    %9 = sbr.rel (0) target = $region5
  $region4: #{_lambda_.18} parent=0 // pred_region
    _
  $region5: #{_lambda_.18} parent=0 // pred_fallthru
    _
  // Predicated region
  $region6: #{_lambda_.18} parent=0 // pred_check
    _
  $region7: #{_lambda_.18} parent=0 // pred_check_branch
    %11 = sbr.rel (0) target = $region9
  $region8: #{_lambda_.18} parent=0 // pred_region
    _
  $region9: #{_lambda_.18} parent=0 // pred_fallthru
    _
  // Predicated region
  $region10: #{_lambda_.18} parent=0 // pred_check
    _
  $region11: #{_lambda_.18} parent=0 // pred_check_branch
    %13 = sbr.rel (0) target = $region13
  $region12: #{_lambda_.18} parent=0 // pred_region
    _
  $region13: #{_lambda_.18} parent=0 // pred_fallthru
    _
  %v14 = vld [vmem:[%s0] sm:$0xff]
  %v15 = vld [vmem:[%s0 + $0x8] sm:$0xff]
  %v16 = vld [vmem:[%s0 + $0x10] sm:$0xff]
  %v17 = vld [vmem:[%s0 + $0x18] sm:$0xff]
  %v18 = vld [vmem:[%s0 + $0x20] sm:$0xff]
  %v19 = vld [vmem:[%s0 + $0x28] sm:$0xff]
  %v20 = vld [vmem:[%s0 + $0x30] sm:$0xff]
  %v21 = vld [vmem:[%s0 + $0x38] sm:$0xff]
  %v22 = vld [vmem:[%s0 + $0x40] sm:$0xff]
  %v23 = vld [vmem:[%s0 + $0x48] sm:$0xff]
  %v24 = vld [vmem:[%s0 + $0x50] sm:$0xff]
  %v25 = vld [vmem:[%s0 + $0x58] sm:$0xff]
  %v26 = vld [vmem:[%s0 + $0x60] sm:$0xff]
  %v27 = vld [vmem:[%s0 + $0x68] sm:$0xff]
  %v28 = vld [vmem:[%s0 + $0x70] sm:$0xff]
  %v29 = vld [vmem:[%s0 + $0x78] sm:$0xff]
  %v30 = vld [vmem:[%s1] sm:$0xf]
  %v31 = vld [vmem:[%s1 + $0x4] sm:$0xf]
  %v32 = vld [vmem:[%s1 + $0x8] sm:$0xf]
  %v33 = vld [vmem:[%s1 + $0xc] sm:$0xf]
  %v34 = vld [vmem:[%s1 + $0x10] sm:$0xf]
  %v35 = vld [vmem:[%s1 + $0x14] sm:$0xf]
  %v36 = vld [vmem:[%s1 + $0x18] sm:$0xf]
  %v37 = vld [vmem:[%s1 + $0x1c] sm:$0xf]
  %v38 = vld [vmem:[%s1 + $0x20] sm:$0xf]
  %v39 = vld [vmem:[%s1 + $0x24] sm:$0xf]
  %v40 = vld [vmem:[%s1 + $0x28] sm:$0xf]
  %v41 = vld [vmem:[%s1 + $0x2c] sm:$0xf]
  %v42 = vld [vmem:[%s1 + $0x30] sm:$0xf]
  %v43 = vld [vmem:[%s1 + $0x34] sm:$0xf]
  %v44 = vld [vmem:[%s1 + $0x38] sm:$0xf]
  %v45 = vld [vmem:[%s1 + $0x3c] sm:$0xf]
  %v46 = vld [vmem:[%s1 + $0x40] sm:$0xf]
  %v47 = vld [vmem:[%s1 + $0x44] sm:$0xf]
  %v48 = vld [vmem:[%s1 + $0x48] sm:$0xf]
  %v49 = vld [vmem:[%s1 + $0x4c] sm:$0xf]
  %v50 = vld [vmem:[%s1 + $0x50] sm:$0xf]
  %v51 = vld [vmem:[%s1 + $0x54] sm:$0xf]
  %v52 = vld [vmem:[%s1 + $0x58] sm:$0xf]
  %v53 = vld [vmem:[%s1 + $0x5c] sm:$0xf]
  %v54 = vld [vmem:[%s1 + $0x60] sm:$0xf]
  %v55 = vld [vmem:[%s1 + $0x64] sm:$0xf]
  %v56 = vld [vmem:[%s1 + $0x68] sm:$0xf]
  %v57 = vld [vmem:[%s1 + $0x6c] sm:$0xf]
  %v58 = vld [vmem:[%s1 + $0x70] sm:$0xf]
  %v59 = vld [vmem:[%s1 + $0x74] sm:$0xf]
  %v60 = vld [vmem:[%s1 + $0x78] sm:$0xf]
  %v61 = vld [vmem:[%s1 + $0x7c] sm:$0xf]
  %v62 = vld [vmem:[%s1 + $0x80] sm:$0xf]
  %v63 = vld [vmem:[%s1 + $0x84] sm:$0xf]
  %v64 = vld [vmem:[%s1 + $0x88] sm:$0xf]
  %v65 = vld [vmem:[%s1 + $0x8c] sm:$0xf]
  %v66 = vld [vmem:[%s1 + $0x90] sm:$0xf]
  %v67 = vld [vmem:[%s1 + $0x94] sm:$0xf]
  %v68 = vld [vmem:[%s1 + $0x98] sm:$0xf]
  %v69 = vld [vmem:[%s1 + $0x9c] sm:$0xf]
  %v70 = vld [vmem:[%s1 + $0xa0] sm:$0xf]
  %v71 = vld [vmem:[%s1 + $0xa4] sm:$0xf]
  %v72 = vld [vmem:[%s1 + $0xa8] sm:$0xf]
  %v73 = vld [vmem:[%s1 + $0xac] sm:$0xf]
  %v74 = vld [vmem:[%s1 + $0xb0] sm:$0xf]
  %v75 = vld [vmem:[%s1 + $0xb4] sm:$0xf]
  %v76 = vld [vmem:[%s1 + $0xb8] sm:$0xf]
  %v77 = vld [vmem:[%s1 + $0xbc] sm:$0xf]
  %v78 = vld [vmem:[%s1 + $0xc0] sm:$0xf]
  %v79 = vld [vmem:[%s1 + $0xc4] sm:$0xf]
  %v80 = vld [vmem:[%s1 + $0xc8] sm:$0xf]
  %v81 = vld [vmem:[%s1 + $0xcc] sm:$0xf]
  %v82 = vld [vmem:[%s1 + $0xd0] sm:$0xf]
  %v83 = vld [vmem:[%s1 + $0xd4] sm:$0xf]
  %v84 = vld [vmem:[%s1 + $0xd8] sm:$0xf]
  %v85 = vld [vmem:[%s1 + $0xdc] sm:$0xf]
  %v86 = vld [vmem:[%s1 + $0xe0] sm:$0xf]
  %v87 = vld [vmem:[%s1 + $0xe4] sm:$0xf]
  %v88 = vld [vmem:[%s1 + $0xe8] sm:$0xf]
  %v89 = vld [vmem:[%s1 + $0xec] sm:$0xf]
  %v90 = vld [vmem:[%s1 + $0xf0] sm:$0xf]
  %v91 = vld [vmem:[%s1 + $0xf4] sm:$0xf]
  %v92 = vld [vmem:[%s1 + $0xf8] sm:$0xf]
  %v93 = vld [vmem:[%s1 + $0xfc] sm:$0xf]
  %v94 = vld [vmem:[%s1 + $0x100] sm:$0xf]
  %v95 = vld [vmem:[%s1 + $0x104] sm:$0xf]
  %v96 = vld [vmem:[%s1 + $0x108] sm:$0xf]
  %v97 = vld [vmem:[%s1 + $0x10c] sm:$0xf]
  %v98 = vld [vmem:[%s1 + $0x110] sm:$0xf]
  %v99 = vld [vmem:[%s1 + $0x114] sm:$0xf]
  %v100 = vld [vmem:[%s1 + $0x118] sm:$0xf]
  %v101 = vld [vmem:[%s1 + $0x11c] sm:$0xf]
  %v102 = vld [vmem:[%s1 + $0x120] sm:$0xf]
  %v103 = vld [vmem:[%s1 + $0x124] sm:$0xf]
  %v104 = vld [vmem:[%s1 + $0x128] sm:$0xf]
  %v105 = vld [vmem:[%s1 + $0x12c] sm:$0xf]
  %v106 = vld [vmem:[%s1 + $0x130] sm:$0xf]
  %v107 = vld [vmem:[%s1 + $0x134] sm:$0xf]
  %v108 = vld [vmem:[%s1 + $0x138] sm:$0xf]
  %v109 = vld [vmem:[%s1 + $0x13c] sm:$0xf]
  %v110 = vld [vmem:[%s1 + $0x140] sm:$0xf]
  %v111 = vld [vmem:[%s1 + $0x144] sm:$0xf]
  %v112 = vld [vmem:[%s1 + $0x148] sm:$0xf]
  %v113 = vld [vmem:[%s1 + $0x14c] sm:$0xf]
  %v114 = vld [vmem:[%s1 + $0x150] sm:$0xf]
  %v115 = vld [vmem:[%s1 + $0x154] sm:$0xf]
  %v116 = vld [vmem:[%s1 + $0x158] sm:$0xf]
  %v117 = vld [vmem:[%s1 + $0x15c] sm:$0xf]
  %v118 = vld [vmem:[%s1 + $0x160] sm:$0xf]
  %v119 = vld [vmem:[%s1 + $0x164] sm:$0xf]
  %v120 = vld [vmem:[%s1 + $0x168] sm:$0xf]
  %v121 = vld [vmem:[%s1 + $0x16c] sm:$0xf]
  %v122 = vld [vmem:[%s1 + $0x170] sm:$0xf]
  %v123 = vld [vmem:[%s1 + $0x174] sm:$0xf]
  %v124 = vld [vmem:[%s1 + $0x178] sm:$0xf]
  %v125 = vld [vmem:[%s1 + $0x17c] sm:$0xf]
  %v126 = vld [vmem:[%s1 + $0x180] sm:$0xf]
  %v127 = vld [vmem:[%s1 + $0x184] sm:$0xf]
  %v128 = vld [vmem:[%s1 + $0x188] sm:$0xf]
  %v129 = vld [vmem:[%s1 + $0x18c] sm:$0xf]
  %v130 = vld [vmem:[%s1 + $0x190] sm:$0xf]
  %v131 = vld [vmem:[%s1 + $0x194] sm:$0xf]
  %v132 = vld [vmem:[%s1 + $0x198] sm:$0xf]
  %v133 = vld [vmem:[%s1 + $0x19c] sm:$0xf]
  %v134 = vld [vmem:[%s1 + $0x1a0] sm:$0xf]
  %v135 = vld [vmem:[%s1 + $0x1a4] sm:$0xf]
  %v136 = vld [vmem:[%s1 + $0x1a8] sm:$0xf]
  %v137 = vld [vmem:[%s1 + $0x1ac] sm:$0xf]
  %v138 = vld [vmem:[%s1 + $0x1b0] sm:$0xf]
  %v139 = vld [vmem:[%s1 + $0x1b4] sm:$0xf]
  %v140 = vld [vmem:[%s1 + $0x1b8] sm:$0xf]
  %v141 = vld [vmem:[%s1 + $0x1bc] sm:$0xf]
  %v142 = vld [vmem:[%s1 + $0x1c0] sm:$0xf]
  %v143 = vld [vmem:[%s1 + $0x1c4] sm:$0xf]
  %v144 = vld [vmem:[%s1 + $0x1c8] sm:$0xf]
  %v145 = vld [vmem:[%s1 + $0x1cc] sm:$0xf]
  %v146 = vld [vmem:[%s1 + $0x1d0] sm:$0xf]
  %v147 = vld [vmem:[%s1 + $0x1d4] sm:$0xf]
  %v148 = vld [vmem:[%s1 + $0x1d8] sm:$0xf]
  %v149 = vld [vmem:[%s1 + $0x1dc] sm:$0xf]
  %v150 = vld [vmem:[%s1 + $0x1e0] sm:$0xf]
  %v151 = vld [vmem:[%s1 + $0x1e4] sm:$0xf]
  %v152 = vld [vmem:[%s1 + $0x1e8] sm:$0xf]
  %v153 = vld [vmem:[%s1 + $0x1ec] sm:$0xf]
  %v154 = vld [vmem:[%s1 + $0x1f0] sm:$0xf]
  %v155 = vld [vmem:[%s1 + $0x1f4] sm:$0xf]
  %v156 = vld [vmem:[%s1 + $0x1f8] sm:$0xf]
  %v157 = vld [vmem:[%s1 + $0x1fc] sm:$0xf]
  %v158 = vld [vmem:[%s2] sm:$0x1]
  %v160 = vperm.slane %v158, 0
  %v178 = vunpack.c.l.b16 %v14
  %v179 = vunpack.c.h.b16 %v14
  %v180 = vunpack.c.l.b16 %v15
  %v181 = vunpack.c.h.b16 %v15
  %v182 = vunpack.c.l.b16 %v16
  %v183 = vunpack.c.h.b16 %v16
  %v184 = vunpack.c.l.b16 %v17
  %v185 = vunpack.c.h.b16 %v17
  %v186 = vunpack.c.l.b16 %v18
  %v187 = vunpack.c.h.b16 %v18
  %v188 = vunpack.c.l.b16 %v19
  %v189 = vunpack.c.h.b16 %v19
  %v190 = vunpack.c.l.b16 %v20
  %v191 = vunpack.c.h.b16 %v20
  %v192 = vunpack.c.l.b16 %v21
  %v193 = vunpack.c.h.b16 %v21
  %v194 = vunpack.c.l.b16 %v22
  %v195 = vunpack.c.h.b16 %v22
  %v196 = vunpack.c.l.b16 %v23
  %v197 = vunpack.c.h.b16 %v23
  %v198 = vunpack.c.l.b16 %v24
  %v199 = vunpack.c.h.b16 %v24
  %v200 = vunpack.c.l.b16 %v25
  %v201 = vunpack.c.h.b16 %v25
  %v202 = vunpack.c.l.b16 %v26
  %v203 = vunpack.c.h.b16 %v26
  %v204 = vunpack.c.l.b16 %v27
  %v205 = vunpack.c.h.b16 %v27
  %v206 = vunpack.c.l.b16 %v28
  %v207 = vunpack.c.h.b16 %v28
  %v208 = vunpack.c.l.b16 %v29
  %v209 = vunpack.c.h.b16 %v29
  %v210 = vpack.c.b16 %v186, %v178
  %v211 = vpack.c.b16 %v187, %v179
  %v212 = vpack.c.b16 %v188, %v180
  %v213 = vpack.c.b16 %v189, %v181
  %v214 = vpack.c.b16 %v190, %v182
  %v215 = vpack.c.b16 %v191, %v183
  %v216 = vpack.c.b16 %v192, %v184
  %v217 = vpack.c.b16 %v193, %v185
  %v218 = vpack.c.b16 %v202, %v194
  %v219 = vpack.c.b16 %v203, %v195
  %v220 = vpack.c.b16 %v204, %v196
  %v221 = vpack.c.b16 %v205, %v197
  %v222 = vpack.c.b16 %v206, %v198
  %v223 = vpack.c.b16 %v207, %v199
  %v224 = vpack.c.b16 %v208, %v200
  %v225 = vpack.c.b16 %v209, %v201
  %v370 = vunpack.c.l.b16 %v30
  %v371 = vunpack.c.l.b16 %v31
  %v372 = vunpack.c.l.b16 %v32
  %v373 = vunpack.c.l.b16 %v33
  %v374 = vunpack.c.l.b16 %v34
  %v375 = vunpack.c.l.b16 %v35
  %v376 = vunpack.c.l.b16 %v36
  %v377 = vunpack.c.l.b16 %v37
  %v378 = vunpack.c.l.b16 %v38
  %v379 = vunpack.c.l.b16 %v39
  %v380 = vunpack.c.l.b16 %v40
  %v381 = vunpack.c.l.b16 %v41
  %v382 = vunpack.c.l.b16 %v42
  %v383 = vunpack.c.l.b16 %v43
  %v384 = vunpack.c.l.b16 %v44
  %v385 = vunpack.c.l.b16 %v45
  %v386 = vunpack.c.l.b16 %v46
  %v387 = vunpack.c.l.b16 %v47
  %v388 = vunpack.c.l.b16 %v48
  %v389 = vunpack.c.l.b16 %v49
  %v390 = vunpack.c.l.b16 %v50
  %v391 = vunpack.c.l.b16 %v51
  %v392 = vunpack.c.l.b16 %v52
  %v393 = vunpack.c.l.b16 %v53
  %v394 = vunpack.c.l.b16 %v54
  %v395 = vunpack.c.l.b16 %v55
  %v396 = vunpack.c.l.b16 %v56
  %v397 = vunpack.c.l.b16 %v57
  %v398 = vunpack.c.l.b16 %v58
  %v399 = vunpack.c.l.b16 %v59
  %v400 = vunpack.c.l.b16 %v60
  %v401 = vunpack.c.l.b16 %v61
  %v402 = vunpack.c.l.b16 %v62
  %v403 = vunpack.c.l.b16 %v63
  %v404 = vunpack.c.l.b16 %v64
  %v405 = vunpack.c.l.b16 %v65
  %v406 = vunpack.c.l.b16 %v66
  %v407 = vunpack.c.l.b16 %v67
  %v408 = vunpack.c.l.b16 %v68
  %v409 = vunpack.c.l.b16 %v69
  %v410 = vunpack.c.l.b16 %v70
  %v411 = vunpack.c.l.b16 %v71
  %v412 = vunpack.c.l.b16 %v72
  %v413 = vunpack.c.l.b16 %v73
  %v414 = vunpack.c.l.b16 %v74
  %v415 = vunpack.c.l.b16 %v75
  %v416 = vunpack.c.l.b16 %v76
  %v417 = vunpack.c.l.b16 %v77
  %v418 = vunpack.c.l.b16 %v78
  %v419 = vunpack.c.l.b16 %v79
  %v420 = vunpack.c.l.b16 %v80
  %v421 = vunpack.c.l.b16 %v81
  %v422 = vunpack.c.l.b16 %v82
  %v423 = vunpack.c.l.b16 %v83
  %v424 = vunpack.c.l.b16 %v84
  %v425 = vunpack.c.l.b16 %v85
  %v426 = vunpack.c.l.b16 %v86
  %v427 = vunpack.c.l.b16 %v87
  %v428 = vunpack.c.l.b16 %v88
  %v429 = vunpack.c.l.b16 %v89
  %v430 = vunpack.c.l.b16 %v90
  %v431 = vunpack.c.l.b16 %v91
  %v432 = vunpack.c.l.b16 %v92
  %v433 = vunpack.c.l.b16 %v93
  %v434 = vunpack.c.l.b16 %v94
  %v435 = vunpack.c.l.b16 %v95
  %v436 = vunpack.c.l.b16 %v96
  %v437 = vunpack.c.l.b16 %v97
  %v438 = vunpack.c.l.b16 %v98
  %v439 = vunpack.c.l.b16 %v99
  %v440 = vunpack.c.l.b16 %v100
  %v441 = vunpack.c.l.b16 %v101
  %v442 = vunpack.c.l.b16 %v102
  %v443 = vunpack.c.l.b16 %v103
  %v444 = vunpack.c.l.b16 %v104
  %v445 = vunpack.c.l.b16 %v105
  %v446 = vunpack.c.l.b16 %v106
  %v447 = vunpack.c.l.b16 %v107
  %v448 = vunpack.c.l.b16 %v108
  %v449 = vunpack.c.l.b16 %v109
  %v450 = vunpack.c.l.b16 %v110
  %v451 = vunpack.c.l.b16 %v111
  %v452 = vunpack.c.l.b16 %v112
  %v453 = vunpack.c.l.b16 %v113
  %v454 = vunpack.c.l.b16 %v114
  %v455 = vunpack.c.l.b16 %v115
  %v456 = vunpack.c.l.b16 %v116
  %v457 = vunpack.c.l.b16 %v117
  %v458 = vunpack.c.l.b16 %v118
  %v459 = vunpack.c.l.b16 %v119
  %v460 = vunpack.c.l.b16 %v120
  %v461 = vunpack.c.l.b16 %v121
  %v462 = vunpack.c.l.b16 %v122
  %v463 = vunpack.c.l.b16 %v123
  %v464 = vunpack.c.l.b16 %v124
  %v465 = vunpack.c.l.b16 %v125
  %v466 = vunpack.c.l.b16 %v126
  %v467 = vunpack.c.l.b16 %v127
  %v468 = vunpack.c.l.b16 %v128
  %v469 = vunpack.c.l.b16 %v129
  %v470 = vunpack.c.l.b16 %v130
  %v471 = vunpack.c.l.b16 %v131
  %v472 = vunpack.c.l.b16 %v132
  %v473 = vunpack.c.l.b16 %v133
  %v474 = vunpack.c.l.b16 %v134
  %v475 = vunpack.c.l.b16 %v135
  %v476 = vunpack.c.l.b16 %v136
  %v477 = vunpack.c.l.b16 %v137
  %v478 = vunpack.c.l.b16 %v138
  %v479 = vunpack.c.l.b16 %v139
  %v480 = vunpack.c.l.b16 %v140
  %v481 = vunpack.c.l.b16 %v141
  %v482 = vunpack.c.l.b16 %v142
  %v483 = vunpack.c.l.b16 %v143
  %v484 = vunpack.c.l.b16 %v144
  %v485 = vunpack.c.l.b16 %v145
  %v486 = vunpack.c.l.b16 %v146
  %v487 = vunpack.c.l.b16 %v147
  %v488 = vunpack.c.l.b16 %v148
  %v489 = vunpack.c.l.b16 %v149
  %v490 = vunpack.c.l.b16 %v150
  %v491 = vunpack.c.l.b16 %v151
  %v492 = vunpack.c.l.b16 %v152
  %v493 = vunpack.c.l.b16 %v153
  %v494 = vunpack.c.l.b16 %v154
  %v495 = vunpack.c.l.b16 %v155
  %v496 = vunpack.c.l.b16 %v156
  %v497 = vunpack.c.l.b16 %v157
  %v498 = vpack.c.b16 %v371, %v370
  %v499 = vpack.c.b16 %v373, %v372
  %v500 = vpack.c.b16 %v375, %v374
  %v501 = vpack.c.b16 %v377, %v376
  %v502 = vpack.c.b16 %v379, %v378
  %v503 = vpack.c.b16 %v381, %v380
  %v504 = vpack.c.b16 %v383, %v382
  %v505 = vpack.c.b16 %v385, %v384
  %v506 = vpack.c.b16 %v387, %v386
  %v507 = vpack.c.b16 %v389, %v388
  %v508 = vpack.c.b16 %v391, %v390
  %v509 = vpack.c.b16 %v393, %v392
  %v510 = vpack.c.b16 %v395, %v394
  %v511 = vpack.c.b16 %v397, %v396
  %v512 = vpack.c.b16 %v399, %v398
  %v513 = vpack.c.b16 %v401, %v400
  %v514 = vpack.c.b16 %v403, %v402
  %v515 = vpack.c.b16 %v405, %v404
  %v516 = vpack.c.b16 %v407, %v406
  %v517 = vpack.c.b16 %v409, %v408
  %v518 = vpack.c.b16 %v411, %v410
  %v519 = vpack.c.b16 %v413, %v412
  %v520 = vpack.c.b16 %v415, %v414
  %v521 = vpack.c.b16 %v417, %v416
  %v522 = vpack.c.b16 %v419, %v418
  %v523 = vpack.c.b16 %v421, %v420
  %v524 = vpack.c.b16 %v423, %v422
  %v525 = vpack.c.b16 %v425, %v424
  %v526 = vpack.c.b16 %v427, %v426
  %v527 = vpack.c.b16 %v429, %v428
  %v528 = vpack.c.b16 %v431, %v430
  %v529 = vpack.c.b16 %v433, %v432
  %v530 = vpack.c.b16 %v435, %v434
  %v531 = vpack.c.b16 %v437, %v436
  %v532 = vpack.c.b16 %v439, %v438
  %v533 = vpack.c.b16 %v441, %v440
  %v534 = vpack.c.b16 %v443, %v442
  %v535 = vpack.c.b16 %v445, %v444
  %v536 = vpack.c.b16 %v447, %v446
  %v537 = vpack.c.b16 %v449, %v448
  %v538 = vpack.c.b16 %v451, %v450
  %v539 = vpack.c.b16 %v453, %v452
  %v540 = vpack.c.b16 %v455, %v454
  %v541 = vpack.c.b16 %v457, %v456
  %v542 = vpack.c.b16 %v459, %v458
  %v543 = vpack.c.b16 %v461, %v460
  %v544 = vpack.c.b16 %v463, %v462
  %v545 = vpack.c.b16 %v465, %v464
  %v546 = vpack.c.b16 %v467, %v466
  %v547 = vpack.c.b16 %v469, %v468
  %v548 = vpack.c.b16 %v471, %v470
  %v549 = vpack.c.b16 %v473, %v472
  %v550 = vpack.c.b16 %v475, %v474
  %v551 = vpack.c.b16 %v477, %v476
  %v552 = vpack.c.b16 %v479, %v478
  %v553 = vpack.c.b16 %v481, %v480
  %v554 = vpack.c.b16 %v483, %v482
  %v555 = vpack.c.b16 %v485, %v484
  %v556 = vpack.c.b16 %v487, %v486
  %v557 = vpack.c.b16 %v489, %v488
  %v558 = vpack.c.b16 %v491, %v490
  %v559 = vpack.c.b16 %v493, %v492
  %v560 = vpack.c.b16 %v495, %v494
  %v561 = vpack.c.b16 %v497, %v496
  %626 = vmatpush.bf16.msra.mxu0 %v505
  %627 = vmatpush.bf16.msra.mxu0 %v504
  %628 = vmatpush.bf16.msra.mxu0 %v503
  %629 = vmatpush.bf16.msra.mxu0 %v502
  %630 = vmatpush.bf16.msra.mxu0 %v501
  %631 = vmatpush.bf16.msra.mxu0 %v500
  %632 = vmatpush.bf16.msra.mxu0 %v499
  %633 = vmatpush.bf16.msra.mxu0 %v498
  %634 = vmatmul.bf16.gmra.mxu0 %v210
  %v635 = vpop.f32.mrf.mxu0
  %v636 = vadd.f32 %v160, %v635
  %v637 = vpop.f32.mrf.mxu0
  %v638 = vadd.f32 %v160, %v637
  %639 = vmatmul.bf16.gmra.mxu0 %v218
  %v640 = vpop.f32.mrf.mxu0
  %v641 = vadd.f32 %v160, %v640
  %v642 = vpop.f32.mrf.mxu0
  %v643 = vadd.f32 %v160, %v642
  %644 = vdwg.mxu0
  %645 = vmatpush.bf16.msra.mxu0 %v513
  %646 = vmatpush.bf16.msra.mxu0 %v512
  %647 = vmatpush.bf16.msra.mxu0 %v511
  %648 = vmatpush.bf16.msra.mxu0 %v510
  %649 = vmatpush.bf16.msra.mxu0 %v509
  %650 = vmatpush.bf16.msra.mxu0 %v508
  %651 = vmatpush.bf16.msra.mxu0 %v507
  %652 = vmatpush.bf16.msra.mxu0 %v506
  %653 = vmatmul.bf16.gmra.mxu0 %v211
  %v654 = vpop.f32.mrf.mxu0
  %v655 = vadd.f32 %v636, %v654
  %v656 = vpop.f32.mrf.mxu0
  %v657 = vadd.f32 %v638, %v656
  %658 = vmatmul.bf16.gmra.mxu0 %v219
  %v659 = vpop.f32.mrf.mxu0
  %v660 = vadd.f32 %v641, %v659
  %v661 = vpop.f32.mrf.mxu0
  %v662 = vadd.f32 %v643, %v661
  %663 = vdwg.mxu0
  %664 = vmatpush.bf16.msra.mxu0 %v521
  %665 = vmatpush.bf16.msra.mxu0 %v520
  %666 = vmatpush.bf16.msra.mxu0 %v519
  %667 = vmatpush.bf16.msra.mxu0 %v518
  %668 = vmatpush.bf16.msra.mxu0 %v517
  %669 = vmatpush.bf16.msra.mxu0 %v516
  %670 = vmatpush.bf16.msra.mxu0 %v515
  %671 = vmatpush.bf16.msra.mxu0 %v514
  %672 = vmatmul.bf16.gmra.mxu0 %v212
  %v673 = vpop.f32.mrf.mxu0
  %v674 = vadd.f32 %v655, %v673
  %v675 = vpop.f32.mrf.mxu0
  %v676 = vadd.f32 %v657, %v675
  %677 = vmatmul.bf16.gmra.mxu0 %v220
  %v678 = vpop.f32.mrf.mxu0
  %v679 = vadd.f32 %v660, %v678
  %v680 = vpop.f32.mrf.mxu0
  %v681 = vadd.f32 %v662, %v680
  %682 = vdwg.mxu0
  %683 = vmatpush.bf16.msra.mxu0 %v529
  %684 = vmatpush.bf16.msra.mxu0 %v528
  %685 = vmatpush.bf16.msra.mxu0 %v527
  %686 = vmatpush.bf16.msra.mxu0 %v526
  %687 = vmatpush.bf16.msra.mxu0 %v525
  %688 = vmatpush.bf16.msra.mxu0 %v524
  %689 = vmatpush.bf16.msra.mxu0 %v523
  %690 = vmatpush.bf16.msra.mxu0 %v522
  %691 = vmatmul.bf16.gmra.mxu0 %v213
  %v692 = vpop.f32.mrf.mxu0
  %v693 = vadd.f32 %v674, %v692
  %v694 = vpop.f32.mrf.mxu0
  %v695 = vadd.f32 %v676, %v694
  %696 = vmatmul.bf16.gmra.mxu0 %v221
  %v697 = vpop.f32.mrf.mxu0
  %v698 = vadd.f32 %v679, %v697
  %v699 = vpop.f32.mrf.mxu0
  %v700 = vadd.f32 %v681, %v699
  %701 = vdwg.mxu0
  %702 = vmatpush.bf16.msra.mxu0 %v537
  %703 = vmatpush.bf16.msra.mxu0 %v536
  %704 = vmatpush.bf16.msra.mxu0 %v535
  %705 = vmatpush.bf16.msra.mxu0 %v534
  %706 = vmatpush.bf16.msra.mxu0 %v533
  %707 = vmatpush.bf16.msra.mxu0 %v532
  %708 = vmatpush.bf16.msra.mxu0 %v531
  %709 = vmatpush.bf16.msra.mxu0 %v530
  %710 = vmatmul.bf16.gmra.mxu0 %v214
  %v711 = vpop.f32.mrf.mxu0
  %v712 = vadd.f32 %v693, %v711
  %v713 = vpop.f32.mrf.mxu0
  %v714 = vadd.f32 %v695, %v713
  %715 = vmatmul.bf16.gmra.mxu0 %v222
  %v716 = vpop.f32.mrf.mxu0
  %v717 = vadd.f32 %v698, %v716
  %v718 = vpop.f32.mrf.mxu0
  %v719 = vadd.f32 %v700, %v718
  %720 = vdwg.mxu0
  %721 = vmatpush.bf16.msra.mxu0 %v545
  %722 = vmatpush.bf16.msra.mxu0 %v544
  %723 = vmatpush.bf16.msra.mxu0 %v543
  %724 = vmatpush.bf16.msra.mxu0 %v542
  %725 = vmatpush.bf16.msra.mxu0 %v541
  %726 = vmatpush.bf16.msra.mxu0 %v540
  %727 = vmatpush.bf16.msra.mxu0 %v539
  %728 = vmatpush.bf16.msra.mxu0 %v538
  %729 = vmatmul.bf16.gmra.mxu0 %v215
  %v730 = vpop.f32.mrf.mxu0
  %v731 = vadd.f32 %v712, %v730
  %v732 = vpop.f32.mrf.mxu0
  %v733 = vadd.f32 %v714, %v732
  %734 = vmatmul.bf16.gmra.mxu0 %v223
  %v735 = vpop.f32.mrf.mxu0
  %v736 = vadd.f32 %v717, %v735
  %v737 = vpop.f32.mrf.mxu0
  %v738 = vadd.f32 %v719, %v737
  %739 = vdwg.mxu0
  %740 = vmatpush.bf16.msra.mxu0 %v553
  %741 = vmatpush.bf16.msra.mxu0 %v552
  %742 = vmatpush.bf16.msra.mxu0 %v551
  %743 = vmatpush.bf16.msra.mxu0 %v550
  %744 = vmatpush.bf16.msra.mxu0 %v549
  %745 = vmatpush.bf16.msra.mxu0 %v548
  %746 = vmatpush.bf16.msra.mxu0 %v547
  %747 = vmatpush.bf16.msra.mxu0 %v546
  %748 = vmatmul.bf16.gmra.mxu0 %v216
  %v749 = vpop.f32.mrf.mxu0
  %v750 = vadd.f32 %v731, %v749
  %v751 = vpop.f32.mrf.mxu0
  %v752 = vadd.f32 %v733, %v751
  %753 = vmatmul.bf16.gmra.mxu0 %v224
  %v754 = vpop.f32.mrf.mxu0
  %v755 = vadd.f32 %v736, %v754
  %v756 = vpop.f32.mrf.mxu0
  %v757 = vadd.f32 %v738, %v756
  %758 = vdwg.mxu0
  %759 = vmatpush.bf16.msra.mxu0 %v561
  %760 = vmatpush.bf16.msra.mxu0 %v560
  %761 = vmatpush.bf16.msra.mxu0 %v559
  %762 = vmatpush.bf16.msra.mxu0 %v558
  %763 = vmatpush.bf16.msra.mxu0 %v557
  %764 = vmatpush.bf16.msra.mxu0 %v556
  %765 = vmatpush.bf16.msra.mxu0 %v555
  %766 = vmatpush.bf16.msra.mxu0 %v554
  %767 = vmatmul.bf16.gmra.mxu0 %v217
  %v768 = vpop.f32.mrf.mxu0
  %v769 = vadd.f32 %v750, %v768
  %v770 = vpop.f32.mrf.mxu0
  %v771 = vadd.f32 %v752, %v770
  %772 = vmatmul.bf16.gmra.mxu0 %v225
  %v773 = vpop.f32.mrf.mxu0
  %v774 = vadd.f32 %v755, %v773
  %v775 = vpop.f32.mrf.mxu0
  %v776 = vadd.f32 %v757, %v775
  %777 = vdwg.mxu0
  %vm778 = vcmp.gt.f32.partialorder %v769, 0.0
  %vm779 = vcmp.gt.f32.partialorder %v771, 0.0
  %vm780 = vcmp.gt.f32.partialorder %v774, 0.0
  %vm781 = vcmp.gt.f32.partialorder %v776, 0.0
  %v782 = vmul.f32 %v769, 0.2
  %v783 = vmul.f32 %v771, 0.2
  %v784 = vmul.f32 %v774, 0.2
  %v785 = vmul.f32 %v776, 0.2
  %v786 = vsel %vm778, %v769, %v782
  %v787 = vsel %vm779, %v771, %v783
  %v788 = vsel %vm780, %v774, %v784
  %v789 = vsel %vm781, %v776, %v785
  %v790 = vpack.c.bf16 %v786, %v786
  %v791 = vpack.c.bf16 %v787, %v787
  %v792 = vpack.c.bf16 %v788, %v788
  %v793 = vpack.c.bf16 %v789, %v789
  %794 = vst [vmem:[%s3] sm:$0xf] %v790
  %795 = vst [vmem:[%s3 + $0x4] sm:$0xf] %v791
  %796 = vst [vmem:[%s3 + $0x8] sm:$0xf] %v792
  %797 = vst [vmem:[%s3 + $0xc] sm:$0xf] %v793
  // Predicated region
  $region14: #{_lambda_.18} parent=0 // pred_check
    _
  $region15: #{_lambda_.18} parent=0 // pred_check_branch
    %799 = sbr.rel (0) target = $region17
  $region16: #{_lambda_.18} parent=0 // pred_region
    _
  $region17: #{_lambda_.18} parent=0 // pred_fallthru
    _
  // Predicated region
  $region18: #{_lambda_.18} parent=0 // pred_check
    _
  $region19: #{_lambda_.18} parent=0 // pred_check_branch
    %801 = sbr.rel (0) target = $region21
  $region20: #{_lambda_.18} parent=0 // pred_region
    _
  $region21: #{_lambda_.18} parent=0 // pred_fallthru
    _

// kernel: _lambda_.19
$region0: #{_lambda_.19}
  #allocation0 [shape = 'u32[]', space=smem, size = 0x4, offset = 0x4, fixed_abs, tag = 'smem constant byte address 0x4 - core index']
  #allocation1 [shape = 'u32[72,128]{1,0:T(1,128)}', space=vmem, size = 0x9000, scoped, tag = 'internal scratch']
  %s0 = inlined_call_operand.vmem [shape: bf16[1,8,1024], index: 0, kind: input, shape index: {}]
  %s1 = inlined_call_operand.vmem [shape: bf16[1,1024,128], index: 1, kind: input, shape index: {}]
  %s2 = inlined_call_operand.vmem [shape: f32[1,128], index: 2, kind: input, shape index: {}]
  %s3 = inlined_call_operand.vmem [shape: bf16[1,8,128], index: 3, kind: output, shape index: {}]
  %s4 = sld [smem:[#allocation0]]
  $region22: #{_lambda_.19} parent=0
    _
  %s6 = ssub.s32 1, %s4
  %s7 = scalar_select 0, %s6, %s4
  // Predicated region
  $region2: #{_lambda_.19} parent=0 // pred_check
    _
  $region3: #{_lambda_.19} parent=0 // pred_check_branch
    %9 = sbr.rel (0) target = $region5
  $region4: #{_lambda_.19} parent=0 // pred_region
    _
  $region5: #{_lambda_.19} parent=0 // pred_fallthru
    _
  // Predicated region
  $region6: #{_lambda_.19} parent=0 // pred_check
    _
  $region7: #{_lambda_.19} parent=0 // pred_check_branch
    %11 = sbr.rel (0) target = $region9
  $region8: #{_lambda_.19} parent=0 // pred_region
    _
  $region9: #{_lambda_.19} parent=0 // pred_fallthru
    _
  // Predicated region
  $region10: #{_lambda_.19} parent=0 // pred_check
    _
  $region11: #{_lambda_.19} parent=0 // pred_check_branch
    %13 = sbr.rel (0) target = $region13
  $region12: #{_lambda_.19} parent=0 // pred_region
    _
  $region13: #{_lambda_.19} parent=0 // pred_fallthru
    _
  %v14 = vld [vmem:[%s0] sm:$0xff]
  %v15 = vld [vmem:[%s0 + $0x8] sm:$0xff]
  %v16 = vld [vmem:[%s0 + $0x10] sm:$0xff]
  %v17 = vld [vmem:[%s0 + $0x18] sm:$0xff]
  %v18 = vld [vmem:[%s1] sm:$0xf]
  %v19 = vld [vmem:[%s1 + $0x4] sm:$0xf]
  %v20 = vld [vmem:[%s1 + $0x8] sm:$0xf]
  %v21 = vld [vmem:[%s1 + $0xc] sm:$0xf]
  %v22 = vld [vmem:[%s1 + $0x10] sm:$0xf]
  %v23 = vld [vmem:[%s1 + $0x14] sm:$0xf]
  %v24 = vld [vmem:[%s1 + $0x18] sm:$0xf]
  %v25 = vld [vmem:[%s1 + $0x1c] sm:$0xf]
  %v26 = vld [vmem:[%s1 + $0x20] sm:$0xf]
  %v27 = vld [vmem:[%s1 + $0x24] sm:$0xf]
  %v28 = vld [vmem:[%s1 + $0x28] sm:$0xf]
  %v29 = vld [vmem:[%s1 + $0x2c] sm:$0xf]
  %v30 = vld [vmem:[%s1 + $0x30] sm:$0xf]
  %v31 = vld [vmem:[%s1 + $0x34] sm:$0xf]
  %v32 = vld [vmem:[%s1 + $0x38] sm:$0xf]
  %v33 = vld [vmem:[%s1 + $0x3c] sm:$0xf]
  %v34 = vld [vmem:[%s1 + $0x40] sm:$0xf]
  %v35 = vld [vmem:[%s1 + $0x44] sm:$0xf]
  %v36 = vld [vmem:[%s1 + $0x48] sm:$0xf]
  %v37 = vld [vmem:[%s1 + $0x4c] sm:$0xf]
  %v38 = vld [vmem:[%s1 + $0x50] sm:$0xf]
  %v39 = vld [vmem:[%s1 + $0x54] sm:$0xf]
  %v40 = vld [vmem:[%s1 + $0x58] sm:$0xf]
  %v41 = vld [vmem:[%s1 + $0x5c] sm:$0xf]
  %v42 = vld [vmem:[%s1 + $0x60] sm:$0xf]
  %v43 = vld [vmem:[%s1 + $0x64] sm:$0xf]
  %v44 = vld [vmem:[%s1 + $0x68] sm:$0xf]
  %v45 = vld [vmem:[%s1 + $0x6c] sm:$0xf]
  %v46 = vld [vmem:[%s1 + $0x70] sm:$0xf]
  %v47 = vld [vmem:[%s1 + $0x74] sm:$0xf]
  %v48 = vld [vmem:[%s1 + $0x78] sm:$0xf]
  %v49 = vld [vmem:[%s1 + $0x7c] sm:$0xf]
  %v50 = vld [vmem:[%s1 + $0x80] sm:$0xf]
  %v51 = vld [vmem:[%s1 + $0x84] sm:$0xf]
  %v52 = vld [vmem:[%s1 + $0x88] sm:$0xf]
  %v53 = vld [vmem:[%s1 + $0x8c] sm:$0xf]
  %v54 = vld [vmem:[%s1 + $0x90] sm:$0xf]
  %v55 = vld [vmem:[%s1 + $0x94] sm:$0xf]
  %v56 = vld [vmem:[%s1 + $0x98] sm:$0xf]
  %v57 = vld [vmem:[%s1 + $0x9c] sm:$0xf]
  %v58 = vld [vmem:[%s1 + $0xa0] sm:$0xf]
  %v59 = vld [vmem:[%s1 + $0xa4] sm:$0xf]
  %v60 = vld [vmem:[%s1 + $0xa8] sm:$0xf]
  %v61 = vld [vmem:[%s1 + $0xac] sm:$0xf]
  %v62 = vld [vmem:[%s1 + $0xb0] sm:$0xf]
  %v63 = vld [vmem:[%s1 + $0xb4] sm:$0xf]
  %v64 = vld [vmem:[%s1 + $0xb8] sm:$0xf]
  %v65 = vld [vmem:[%s1 + $0xbc] sm:$0xf]
  %v66 = vld [vmem:[%s1 + $0xc0] sm:$0xf]
  %v67 = vld [vmem:[%s1 + $0xc4] sm:$0xf]
  %v68 = vld [vmem:[%s1 + $0xc8] sm:$0xf]
  %v69 = vld [vmem:[%s1 + $0xcc] sm:$0xf]
  %v70 = vld [vmem:[%s1 + $0xd0] sm:$0xf]
  %v71 = vld [vmem:[%s1 + $0xd4] sm:$0xf]
  %v72 = vld [vmem:[%s1 + $0xd8] sm:$0xf]
  %v73 = vld [vmem:[%s1 + $0xdc] sm:$0xf]
  %v74 = vld [vmem:[%s1 + $0xe0] sm:$0xf]
  %v75 = vld [vmem:[%s1 + $0xe4] sm:$0xf]
  %v76 = vld [vmem:[%s1 + $0xe8] sm:$0xf]
  %v77 = vld [vmem:[%s1 + $0xec] sm:$0xf]
  %v78 = vld [vmem:[%s1 + $0xf0] sm:$0xf]
  %v79 = vld [vmem:[%s1 + $0xf4] sm:$0xf]
  %v80 = vld [vmem:[%s1 + $0xf8] sm:$0xf]
  %v81 = vld [vmem:[%s1 + $0xfc] sm:$0xf]
  %v82 = vld [vmem:[%s1 + $0x100] sm:$0xf]
  %v83 = vld [vmem:[%s1 + $0x104] sm:$0xf]
  %v84 = vld [vmem:[%s1 + $0x108] sm:$0xf]
  %v85 = vld [vmem:[%s1 + $0x10c] sm:$0xf]
  %v86 = vld [vmem:[%s1 + $0x110] sm:$0xf]
  %v87 = vld [vmem:[%s1 + $0x114] sm:$0xf]
  %v88 = vld [vmem:[%s1 + $0x118] sm:$0xf]
  %v89 = vld [vmem:[%s1 + $0x11c] sm:$0xf]
  %v90 = vld [vmem:[%s1 + $0x120] sm:$0xf]
  %v91 = vld [vmem:[%s1 + $0x124] sm:$0xf]
  %v92 = vld [vmem:[%s1 + $0x128] sm:$0xf]
  %v93 = vld [vmem:[%s1 + $0x12c] sm:$0xf]
  %v94 = vld [vmem:[%s1 + $0x130] sm:$0xf]
  %v95 = vld [vmem:[%s1 + $0x134] sm:$0xf]
  %v96 = vld [vmem:[%s1 + $0x138] sm:$0xf]
  %v97 = vld [vmem:[%s1 + $0x13c] sm:$0xf]
  %v98 = vld [vmem:[%s1 + $0x140] sm:$0xf]
  %v99 = vld [vmem:[%s1 + $0x144] sm:$0xf]
  %v100 = vld [vmem:[%s1 + $0x148] sm:$0xf]
  %v101 = vld [vmem:[%s1 + $0x14c] sm:$0xf]
  %v102 = vld [vmem:[%s1 + $0x150] sm:$0xf]
  %v103 = vld [vmem:[%s1 + $0x154] sm:$0xf]
  %v104 = vld [vmem:[%s1 + $0x158] sm:$0xf]
  %v105 = vld [vmem:[%s1 + $0x15c] sm:$0xf]
  %v106 = vld [vmem:[%s1 + $0x160] sm:$0xf]
  %v107 = vld [vmem:[%s1 + $0x164] sm:$0xf]
  %v108 = vld [vmem:[%s1 + $0x168] sm:$0xf]
  %v109 = vld [vmem:[%s1 + $0x16c] sm:$0xf]
  %v110 = vld [vmem:[%s1 + $0x170] sm:$0xf]
  %v111 = vld [vmem:[%s1 + $0x174] sm:$0xf]
  %v112 = vld [vmem:[%s1 + $0x178] sm:$0xf]
  %v113 = vld [vmem:[%s1 + $0x17c] sm:$0xf]
  %v114 = vld [vmem:[%s1 + $0x180] sm:$0xf]
  %v115 = vld [vmem:[%s1 + $0x184] sm:$0xf]
  %v116 = vld [vmem:[%s1 + $0x188] sm:$0xf]
  %v117 = vld [vmem:[%s1 + $0x18c] sm:$0xf]
  %v118 = vld [vmem:[%s1 + $0x190] sm:$0xf]
  %v119 = vld [vmem:[%s1 + $0x194] sm:$0xf]
  %v120 = vld [vmem:[%s1 + $0x198] sm:$0xf]
  %v121 = vld [vmem:[%s1 + $0x19c] sm:$0xf]
  %v122 = vld [vmem:[%s1 + $0x1a0] sm:$0xf]
  %v123 = vld [vmem:[%s1 + $0x1a4] sm:$0xf]
  %v124 = vld [vmem:[%s1 + $0x1a8] sm:$0xf]
  %v125 = vld [vmem:[%s1 + $0x1ac] sm:$0xf]
  %v126 = vld [vmem:[%s1 + $0x1b0] sm:$0xf]
  %v127 = vld [vmem:[%s1 + $0x1b4] sm:$0xf]
  %v128 = vld [vmem:[%s1 + $0x1b8] sm:$0xf]
  %v129 = vld [vmem:[%s1 + $0x1bc] sm:$0xf]
  %v130 = vld [vmem:[%s1 + $0x1c0] sm:$0xf]
  %v131 = vld [vmem:[%s1 + $0x1c4] sm:$0xf]
  %v132 = vld [vmem:[%s1 + $0x1c8] sm:$0xf]
  %v133 = vld [vmem:[%s1 + $0x1cc] sm:$0xf]
  %v134 = vld [vmem:[%s1 + $0x1d0] sm:$0xf]
  %v135 = vld [vmem:[%s1 + $0x1d4] sm:$0xf]
  %v136 = vld [vmem:[%s1 + $0x1d8] sm:$0xf]
  %v137 = vld [vmem:[%s1 + $0x1dc] sm:$0xf]
  %v138 = vld [vmem:[%s1 + $0x1e0] sm:$0xf]
  %v139 = vld [vmem:[%s1 + $0x1e4] sm:$0xf]
  %v140 = vld [vmem:[%s1 + $0x1e8] sm:$0xf]
  %v141 = vld [vmem:[%s1 + $0x1ec] sm:$0xf]
  %v142 = vld [vmem:[%s1 + $0x1f0] sm:$0xf]
  %v143 = vld [vmem:[%s1 + $0x1f4] sm:$0xf]
  %v144 = vld [vmem:[%s1 + $0x1f8] sm:$0xf]
  %v145 = vld [vmem:[%s1 + $0x1fc] sm:$0xf]
  %v146 = vld [vmem:[%s2] sm:$0x1]
  %v148 = vperm.slane %v146, 0
  %v154 = vunpack.c.l.b16 %v14
  %v155 = vunpack.c.h.b16 %v14
  %v156 = vunpack.c.l.b16 %v15
  %v157 = vunpack.c.h.b16 %v15
  %v158 = vunpack.c.l.b16 %v16
  %v159 = vunpack.c.h.b16 %v16
  %v160 = vunpack.c.l.b16 %v17
  %v161 = vunpack.c.h.b16 %v17
  %v162 = vpack.c.b16 %v154, %v154
  %v163 = vpack.c.b16 %v155, %v155
  %v164 = vpack.c.b16 %v156, %v156
  %v165 = vpack.c.b16 %v157, %v157
  %v166 = vpack.c.b16 %v158, %v158
  %v167 = vpack.c.b16 %v159, %v159
  %v168 = vpack.c.b16 %v160, %v160
  %v169 = vpack.c.b16 %v161, %v161
  %v306 = vunpack.c.l.b16 %v18
  %v307 = vunpack.c.l.b16 %v19
  %v308 = vunpack.c.l.b16 %v20
  %v309 = vunpack.c.l.b16 %v21
  %v310 = vunpack.c.l.b16 %v22
  %v311 = vunpack.c.l.b16 %v23
  %v312 = vunpack.c.l.b16 %v24
  %v313 = vunpack.c.l.b16 %v25
  %v314 = vunpack.c.l.b16 %v26
  %v315 = vunpack.c.l.b16 %v27
  %v316 = vunpack.c.l.b16 %v28
  %v317 = vunpack.c.l.b16 %v29
  %v318 = vunpack.c.l.b16 %v30
  %v319 = vunpack.c.l.b16 %v31
  %v320 = vunpack.c.l.b16 %v32
  %v321 = vunpack.c.l.b16 %v33
  %v322 = vunpack.c.l.b16 %v34
  %v323 = vunpack.c.l.b16 %v35
  %v324 = vunpack.c.l.b16 %v36
  %v325 = vunpack.c.l.b16 %v37
  %v326 = vunpack.c.l.b16 %v38
  %v327 = vunpack.c.l.b16 %v39
  %v328 = vunpack.c.l.b16 %v40
  %v329 = vunpack.c.l.b16 %v41
  %v330 = vunpack.c.l.b16 %v42
  %v331 = vunpack.c.l.b16 %v43
  %v332 = vunpack.c.l.b16 %v44
  %v333 = vunpack.c.l.b16 %v45
  %v334 = vunpack.c.l.b16 %v46
  %v335 = vunpack.c.l.b16 %v47
  %v336 = vunpack.c.l.b16 %v48
  %v337 = vunpack.c.l.b16 %v49
  %v338 = vunpack.c.l.b16 %v50
  %v339 = vunpack.c.l.b16 %v51
  %v340 = vunpack.c.l.b16 %v52
  %v341 = vunpack.c.l.b16 %v53
  %v342 = vunpack.c.l.b16 %v54
  %v343 = vunpack.c.l.b16 %v55
  %v344 = vunpack.c.l.b16 %v56
  %v345 = vunpack.c.l.b16 %v57
  %v346 = vunpack.c.l.b16 %v58
  %v347 = vunpack.c.l.b16 %v59
  %v348 = vunpack.c.l.b16 %v60
  %v349 = vunpack.c.l.b16 %v61
  %v350 = vunpack.c.l.b16 %v62
  %v351 = vunpack.c.l.b16 %v63
  %v352 = vunpack.c.l.b16 %v64
  %v353 = vunpack.c.l.b16 %v65
  %v354 = vunpack.c.l.b16 %v66
  %v355 = vunpack.c.l.b16 %v67
  %v356 = vunpack.c.l.b16 %v68
  %v357 = vunpack.c.l.b16 %v69
  %v358 = vunpack.c.l.b16 %v70
  %v359 = vunpack.c.l.b16 %v71
  %v360 = vunpack.c.l.b16 %v72
  %v361 = vunpack.c.l.b16 %v73
  %v362 = vunpack.c.l.b16 %v74
  %v363 = vunpack.c.l.b16 %v75
  %v364 = vunpack.c.l.b16 %v76
  %v365 = vunpack.c.l.b16 %v77
  %v366 = vunpack.c.l.b16 %v78
  %v367 = vunpack.c.l.b16 %v79
  %v368 = vunpack.c.l.b16 %v80
  %v369 = vunpack.c.l.b16 %v81
  %v370 = vunpack.c.l.b16 %v82
  %v371 = vunpack.c.l.b16 %v83
  %v372 = vunpack.c.l.b16 %v84
  %v373 = vunpack.c.l.b16 %v85
  %v374 = vunpack.c.l.b16 %v86
  %v375 = vunpack.c.l.b16 %v87
  %v376 = vunpack.c.l.b16 %v88
  %v377 = vunpack.c.l.b16 %v89
  %v378 = vunpack.c.l.b16 %v90
  %v379 = vunpack.c.l.b16 %v91
  %v380 = vunpack.c.l.b16 %v92
  %v381 = vunpack.c.l.b16 %v93
  %v382 = vunpack.c.l.b16 %v94
  %v383 = vunpack.c.l.b16 %v95
  %v384 = vunpack.c.l.b16 %v96
  %v385 = vunpack.c.l.b16 %v97
  %v386 = vunpack.c.l.b16 %v98
  %v387 = vunpack.c.l.b16 %v99
  %v388 = vunpack.c.l.b16 %v100
  %v389 = vunpack.c.l.b16 %v101
  %v390 = vunpack.c.l.b16 %v102
  %v391 = vunpack.c.l.b16 %v103
  %v392 = vunpack.c.l.b16 %v104
  %v393 = vunpack.c.l.b16 %v105
  %v394 = vunpack.c.l.b16 %v106
  %v395 = vunpack.c.l.b16 %v107
  %v396 = vunpack.c.l.b16 %v108
  %v397 = vunpack.c.l.b16 %v109
  %v398 = vunpack.c.l.b16 %v110
  %v399 = vunpack.c.l.b16 %v111
  %v400 = vunpack.c.l.b16 %v112
  %v401 = vunpack.c.l.b16 %v113
  %v402 = vunpack.c.l.b16 %v114
  %v403 = vunpack.c.l.b16 %v115
  %v404 = vunpack.c.l.b16 %v116
  %v405 = vunpack.c.l.b16 %v117
  %v406 = vunpack.c.l.b16 %v118
  %v407 = vunpack.c.l.b16 %v119
  %v408 = vunpack.c.l.b16 %v120
  %v409 = vunpack.c.l.b16 %v121
  %v410 = vunpack.c.l.b16 %v122
  %v411 = vunpack.c.l.b16 %v123
  %v412 = vunpack.c.l.b16 %v124
  %v413 = vunpack.c.l.b16 %v125
  %v414 = vunpack.c.l.b16 %v126
  %v415 = vunpack.c.l.b16 %v127
  %v416 = vunpack.c.l.b16 %v128
  %v417 = vunpack.c.l.b16 %v129
  %v418 = vunpack.c.l.b16 %v130
  %v419 = vunpack.c.l.b16 %v131
  %v420 = vunpack.c.l.b16 %v132
  %v421 = vunpack.c.l.b16 %v133
  %v422 = vunpack.c.l.b16 %v134
  %v423 = vunpack.c.l.b16 %v135
  %v424 = vunpack.c.l.b16 %v136
  %v425 = vunpack.c.l.b16 %v137
  %v426 = vunpack.c.l.b16 %v138
  %v427 = vunpack.c.l.b16 %v139
  %v428 = vunpack.c.l.b16 %v140
  %v429 = vunpack.c.l.b16 %v141
  %v430 = vunpack.c.l.b16 %v142
  %v431 = vunpack.c.l.b16 %v143
  %v432 = vunpack.c.l.b16 %v144
  %v433 = vunpack.c.l.b16 %v145
  %v434 = vpack.c.b16 %v307, %v306
  %v435 = vpack.c.b16 %v309, %v308
  %v436 = vpack.c.b16 %v311, %v310
  %v437 = vpack.c.b16 %v313, %v312
  %v438 = vpack.c.b16 %v315, %v314
  %v439 = vpack.c.b16 %v317, %v316
  %v440 = vpack.c.b16 %v319, %v318
  %v441 = vpack.c.b16 %v321, %v320
  %v442 = vpack.c.b16 %v323, %v322
  %v443 = vpack.c.b16 %v325, %v324
  %v444 = vpack.c.b16 %v327, %v326
  %v445 = vpack.c.b16 %v329, %v328
  %v446 = vpack.c.b16 %v331, %v330
  %v447 = vpack.c.b16 %v333, %v332
  %v448 = vpack.c.b16 %v335, %v334
  %v449 = vpack.c.b16 %v337, %v336
  %v450 = vpack.c.b16 %v339, %v338
  %v451 = vpack.c.b16 %v341, %v340
  %v452 = vpack.c.b16 %v343, %v342
  %v453 = vpack.c.b16 %v345, %v344
  %v454 = vpack.c.b16 %v347, %v346
  %v455 = vpack.c.b16 %v349, %v348
  %v456 = vpack.c.b16 %v351, %v350
  %v457 = vpack.c.b16 %v353, %v352
  %v458 = vpack.c.b16 %v355, %v354
  %v459 = vpack.c.b16 %v357, %v356
  %v460 = vpack.c.b16 %v359, %v358
  %v461 = vpack.c.b16 %v361, %v360
  %v462 = vpack.c.b16 %v363, %v362
  %v463 = vpack.c.b16 %v365, %v364
  %v464 = vpack.c.b16 %v367, %v366
  %v465 = vpack.c.b16 %v369, %v368
  %v466 = vpack.c.b16 %v371, %v370
  %v467 = vpack.c.b16 %v373, %v372
  %v468 = vpack.c.b16 %v375, %v374
  %v469 = vpack.c.b16 %v377, %v376
  %v470 = vpack.c.b16 %v379, %v378
  %v471 = vpack.c.b16 %v381, %v380
  %v472 = vpack.c.b16 %v383, %v382
  %v473 = vpack.c.b16 %v385, %v384
  %v474 = vpack.c.b16 %v387, %v386
  %v475 = vpack.c.b16 %v389, %v388
  %v476 = vpack.c.b16 %v391, %v390
  %v477 = vpack.c.b16 %v393, %v392
  %v478 = vpack.c.b16 %v395, %v394
  %v479 = vpack.c.b16 %v397, %v396
  %v480 = vpack.c.b16 %v399, %v398
  %v481 = vpack.c.b16 %v401, %v400
  %v482 = vpack.c.b16 %v403, %v402
  %v483 = vpack.c.b16 %v405, %v404
  %v484 = vpack.c.b16 %v407, %v406
  %v485 = vpack.c.b16 %v409, %v408
  %v486 = vpack.c.b16 %v411, %v410
  %v487 = vpack.c.b16 %v413, %v412
  %v488 = vpack.c.b16 %v415, %v414
  %v489 = vpack.c.b16 %v417, %v416
  %v490 = vpack.c.b16 %v419, %v418
  %v491 = vpack.c.b16 %v421, %v420
  %v492 = vpack.c.b16 %v423, %v422
  %v493 = vpack.c.b16 %v425, %v424
  %v494 = vpack.c.b16 %v427, %v426
  %v495 = vpack.c.b16 %v429, %v428
  %v496 = vpack.c.b16 %v431, %v430
  %v497 = vpack.c.b16 %v433, %v432
  %562 = vmatpush.bf16.msra.mxu0 %v441
  %563 = vmatpush.bf16.msra.mxu0 %v440
  %564 = vmatpush.bf16.msra.mxu0 %v439
  %565 = vmatpush.bf16.msra.mxu0 %v438
  %566 = vmatpush.bf16.msra.mxu0 %v437
  %567 = vmatpush.bf16.msra.mxu0 %v436
  %568 = vmatpush.bf16.msra.mxu0 %v435
  %569 = vmatpush.bf16.msra.mxu0 %v434
  %570 = vmatmul.bf16.gmra.mxu0 %v162
  %v571 = vpop.f32.mrf.mxu0
  %v572 = vadd.f32 %v148, %v571
  %v573 = vpop.f32.mrf.mxu0
  %574 = vdwg.mxu0
  %575 = vmatpush.bf16.msra.mxu0 %v449
  %576 = vmatpush.bf16.msra.mxu0 %v448
  %577 = vmatpush.bf16.msra.mxu0 %v447
  %578 = vmatpush.bf16.msra.mxu0 %v446
  %579 = vmatpush.bf16.msra.mxu0 %v445
  %580 = vmatpush.bf16.msra.mxu0 %v444
  %581 = vmatpush.bf16.msra.mxu0 %v443
  %582 = vmatpush.bf16.msra.mxu0 %v442
  %583 = vmatmul.bf16.gmra.mxu0 %v163
  %v584 = vpop.f32.mrf.mxu0
  %v585 = vadd.f32 %v572, %v584
  %v586 = vpop.f32.mrf.mxu0
  %587 = vdwg.mxu0
  %588 = vmatpush.bf16.msra.mxu0 %v457
  %589 = vmatpush.bf16.msra.mxu0 %v456
  %590 = vmatpush.bf16.msra.mxu0 %v455
  %591 = vmatpush.bf16.msra.mxu0 %v454
  %592 = vmatpush.bf16.msra.mxu0 %v453
  %593 = vmatpush.bf16.msra.mxu0 %v452
  %594 = vmatpush.bf16.msra.mxu0 %v451
  %595 = vmatpush.bf16.msra.mxu0 %v450
  %596 = vmatmul.bf16.gmra.mxu0 %v164
  %v597 = vpop.f32.mrf.mxu0
  %v598 = vadd.f32 %v585, %v597
  %v599 = vpop.f32.mrf.mxu0
  %600 = vdwg.mxu0
  %601 = vmatpush.bf16.msra.mxu0 %v465
  %602 = vmatpush.bf16.msra.mxu0 %v464
  %603 = vmatpush.bf16.msra.mxu0 %v463
  %604 = vmatpush.bf16.msra.mxu0 %v462
  %605 = vmatpush.bf16.msra.mxu0 %v461
  %606 = vmatpush.bf16.msra.mxu0 %v460
  %607 = vmatpush.bf16.msra.mxu0 %v459
  %608 = vmatpush.bf16.msra.mxu0 %v458
  %609 = vmatmul.bf16.gmra.mxu0 %v165
  %v610 = vpop.f32.mrf.mxu0
  %v611 = vadd.f32 %v598, %v610
  %v612 = vpop.f32.mrf.mxu0
  %613 = vdwg.mxu0
  %614 = vmatpush.bf16.msra.mxu0 %v473
  %615 = vmatpush.bf16.msra.mxu0 %v472
  %616 = vmatpush.bf16.msra.mxu0 %v471
  %617 = vmatpush.bf16.msra.mxu0 %v470
  %618 = vmatpush.bf16.msra.mxu0 %v469
  %619 = vmatpush.bf16.msra.mxu0 %v468
  %620 = vmatpush.bf16.msra.mxu0 %v467
  %621 = vmatpush.bf16.msra.mxu0 %v466
  %622 = vmatmul.bf16.gmra.mxu0 %v166
  %v623 = vpop.f32.mrf.mxu0
  %v624 = vadd.f32 %v611, %v623
  %v625 = vpop.f32.mrf.mxu0
  %626 = vdwg.mxu0
  %627 = vmatpush.bf16.msra.mxu0 %v481
  %628 = vmatpush.bf16.msra.mxu0 %v480
  %629 = vmatpush.bf16.msra.mxu0 %v479
  %630 = vmatpush.bf16.msra.mxu0 %v478
  %631 = vmatpush.bf16.msra.mxu0 %v477
  %632 = vmatpush.bf16.msra.mxu0 %v476
  %633 = vmatpush.bf16.msra.mxu0 %v475
  %634 = vmatpush.bf16.msra.mxu0 %v474
  %635 = vmatmul.bf16.gmra.mxu0 %v167
  %v636 = vpop.f32.mrf.mxu0
  %v637 = vadd.f32 %v624, %v636
  %v638 = vpop.f32.mrf.mxu0
  %639 = vdwg.mxu0
  %640 = vmatpush.bf16.msra.mxu0 %v489
  %641 = vmatpush.bf16.msra.mxu0 %v488
  %642 = vmatpush.bf16.msra.mxu0 %v487
  %643 = vmatpush.bf16.msra.mxu0 %v486
  %644 = vmatpush.bf16.msra.mxu0 %v485
  %645 = vmatpush.bf16.msra.mxu0 %v484
  %646 = vmatpush.bf16.msra.mxu0 %v483
  %647 = vmatpush.bf16.msra.mxu0 %v482
  %648 = vmatmul.bf16.gmra.mxu0 %v168
  %v649 = vpop.f32.mrf.mxu0
  %v650 = vadd.f32 %v637, %v649
  %v651 = vpop.f32.mrf.mxu0
  %652 = vdwg.mxu0
  %653 = vmatpush.bf16.msra.mxu0 %v497
  %654 = vmatpush.bf16.msra.mxu0 %v496
  %655 = vmatpush.bf16.msra.mxu0 %v495
  %656 = vmatpush.bf16.msra.mxu0 %v494
  %657 = vmatpush.bf16.msra.mxu0 %v493
  %658 = vmatpush.bf16.msra.mxu0 %v492
  %659 = vmatpush.bf16.msra.mxu0 %v491
  %660 = vmatpush.bf16.msra.mxu0 %v490
  %661 = vmatmul.bf16.gmra.mxu0 %v169
  %v662 = vpop.f32.mrf.mxu0
  %v663 = vadd.f32 %v650, %v662
  %v664 = vpop.f32.mrf.mxu0
  %665 = vdwg.mxu0
  %vm666 = vcmp.gt.f32.partialorder %v663, 0.0
  %v667 = vmul.f32 %v663, 0.2
  %v668 = vsel %vm666, %v663, %v667
  %v669 = vpack.c.bf16 %v668, %v668
  %670 = vst [vmem:[%s3] sm:$0xf] %v669
  // Predicated region
  $region14: #{_lambda_.19} parent=0 // pred_check
    _
  $region15: #{_lambda_.19} parent=0 // pred_check_branch
    %672 = sbr.rel (0) target = $region17
  $region16: #{_lambda_.19} parent=0 // pred_region
    _
  $region17: #{_lambda_.19} parent=0 // pred_fallthru
    _
  // Predicated region
  $region18: #{_lambda_.19} parent=0 // pred_check
    _
  $region19: #{_lambda_.19} parent=0 // pred_check_branch
    %674 = sbr.rel (0) target = $region21
  $region20: #{_lambda_.19} parent=0 // pred_region
    _
  $region21: #{_lambda_.19} parent=0 // pred_fallthru
    _

// kernel: _lambda_.20
$region0: #{_lambda_.20}
  #allocation0 [shape = 'u32[]', space=smem, size = 0x4, offset = 0x4, fixed_abs, tag = 'smem constant byte address 0x4 - core index']
  #allocation1 [shape = 'u32[72,128]{1,0:T(1,128)}', space=vmem, size = 0x9000, scoped, tag = 'internal scratch']
  %s0 = inlined_call_operand.vmem [shape: bf16[1,8,1024], index: 0, kind: input, shape index: {}]
  %s1 = inlined_call_operand.vmem [shape: bf16[1,1024,128], index: 1, kind: input, shape index: {}]
  %s2 = inlined_call_operand.vmem [shape: f32[1,128], index: 2, kind: input, shape index: {}]
  %s3 = inlined_call_operand.vmem [shape: bf16[1,8,128], index: 3, kind: output, shape index: {}]
  %s4 = sld [smem:[#allocation0]]
  $region22: #{_lambda_.20} parent=0
    _
  %s6 = ssub.s32 1, %s4
  %s7 = scalar_select 0, %s6, %s4
  // Predicated region
  $region2: #{_lambda_.20} parent=0 // pred_check
    _
  $region3: #{_lambda_.20} parent=0 // pred_check_branch
    %9 = sbr.rel (0) target = $region5
  $region4: #{_lambda_.20} parent=0 // pred_region
    _
  $region5: #{_lambda_.20} parent=0 // pred_fallthru
    _
  // Predicated region
  $region6: #{_lambda_.20} parent=0 // pred_check
    _
  $region7: #{_lambda_.20} parent=0 // pred_check_branch
    %11 = sbr.rel (0) target = $region9
  $region8: #{_lambda_.20} parent=0 // pred_region
    _
  $region9: #{_lambda_.20} parent=0 // pred_fallthru
    _
  // Predicated region
  $region10: #{_lambda_.20} parent=0 // pred_check
    _
  $region11: #{_lambda_.20} parent=0 // pred_check_branch
    %13 = sbr.rel (0) target = $region13
  $region12: #{_lambda_.20} parent=0 // pred_region
    _
  $region13: #{_lambda_.20} parent=0 // pred_fallthru
    _
  %v14 = vld [vmem:[%s0] sm:$0xff]
  %v15 = vld [vmem:[%s0 + $0x8] sm:$0xff]
  %v16 = vld [vmem:[%s0 + $0x10] sm:$0xff]
  %v17 = vld [vmem:[%s0 + $0x18] sm:$0xff]
  %v18 = vld [vmem:[%s1] sm:$0xf]
  %v19 = vld [vmem:[%s1 + $0x4] sm:$0xf]
  %v20 = vld [vmem:[%s1 + $0x8] sm:$0xf]
  %v21 = vld [vmem:[%s1 + $0xc] sm:$0xf]
  %v22 = vld [vmem:[%s1 + $0x10] sm:$0xf]
  %v23 = vld [vmem:[%s1 + $0x14] sm:$0xf]
  %v24 = vld [vmem:[%s1 + $0x18] sm:$0xf]
  %v25 = vld [vmem:[%s1 + $0x1c] sm:$0xf]
  %v26 = vld [vmem:[%s1 + $0x20] sm:$0xf]
  %v27 = vld [vmem:[%s1 + $0x24] sm:$0xf]
  %v28 = vld [vmem:[%s1 + $0x28] sm:$0xf]
  %v29 = vld [vmem:[%s1 + $0x2c] sm:$0xf]
  %v30 = vld [vmem:[%s1 + $0x30] sm:$0xf]
  %v31 = vld [vmem:[%s1 + $0x34] sm:$0xf]
  %v32 = vld [vmem:[%s1 + $0x38] sm:$0xf]
  %v33 = vld [vmem:[%s1 + $0x3c] sm:$0xf]
  %v34 = vld [vmem:[%s1 + $0x40] sm:$0xf]
  %v35 = vld [vmem:[%s1 + $0x44] sm:$0xf]
  %v36 = vld [vmem:[%s1 + $0x48] sm:$0xf]
  %v37 = vld [vmem:[%s1 + $0x4c] sm:$0xf]
  %v38 = vld [vmem:[%s1 + $0x50] sm:$0xf]
  %v39 = vld [vmem:[%s1 + $0x54] sm:$0xf]
  %v40 = vld [vmem:[%s1 + $0x58] sm:$0xf]
  %v41 = vld [vmem:[%s1 + $0x5c] sm:$0xf]
  %v42 = vld [vmem:[%s1 + $0x60] sm:$0xf]
  %v43 = vld [vmem:[%s1 + $0x64] sm:$0xf]
  %v44 = vld [vmem:[%s1 + $0x68] sm:$0xf]
  %v45 = vld [vmem:[%s1 + $0x6c] sm:$0xf]
  %v46 = vld [vmem:[%s1 + $0x70] sm:$0xf]
  %v47 = vld [vmem:[%s1 + $0x74] sm:$0xf]
  %v48 = vld [vmem:[%s1 + $0x78] sm:$0xf]
  %v49 = vld [vmem:[%s1 + $0x7c] sm:$0xf]
  %v50 = vld [vmem:[%s1 + $0x80] sm:$0xf]
  %v51 = vld [vmem:[%s1 + $0x84] sm:$0xf]
  %v52 = vld [vmem:[%s1 + $0x88] sm:$0xf]
  %v53 = vld [vmem:[%s1 + $0x8c] sm:$0xf]
  %v54 = vld [vmem:[%s1 + $0x90] sm:$0xf]
  %v55 = vld [vmem:[%s1 + $0x94] sm:$0xf]
  %v56 = vld [vmem:[%s1 + $0x98] sm:$0xf]
  %v57 = vld [vmem:[%s1 + $0x9c] sm:$0xf]
  %v58 = vld [vmem:[%s1 + $0xa0] sm:$0xf]
  %v59 = vld [vmem:[%s1 + $0xa4] sm:$0xf]
  %v60 = vld [vmem:[%s1 + $0xa8] sm:$0xf]
  %v61 = vld [vmem:[%s1 + $0xac] sm:$0xf]
  %v62 = vld [vmem:[%s1 + $0xb0] sm:$0xf]
  %v63 = vld [vmem:[%s1 + $0xb4] sm:$0xf]
  %v64 = vld [vmem:[%s1 + $0xb8] sm:$0xf]
  %v65 = vld [vmem:[%s1 + $0xbc] sm:$0xf]
  %v66 = vld [vmem:[%s1 + $0xc0] sm:$0xf]
  %v67 = vld [vmem:[%s1 + $0xc4] sm:$0xf]
  %v68 = vld [vmem:[%s1 + $0xc8] sm:$0xf]
  %v69 = vld [vmem:[%s1 + $0xcc] sm:$0xf]
  %v70 = vld [vmem:[%s1 + $0xd0] sm:$0xf]
  %v71 = vld [vmem:[%s1 + $0xd4] sm:$0xf]
  %v72 = vld [vmem:[%s1 + $0xd8] sm:$0xf]
  %v73 = vld [vmem:[%s1 + $0xdc] sm:$0xf]
  %v74 = vld [vmem:[%s1 + $0xe0] sm:$0xf]
  %v75 = vld [vmem:[%s1 + $0xe4] sm:$0xf]
  %v76 = vld [vmem:[%s1 + $0xe8] sm:$0xf]
  %v77 = vld [vmem:[%s1 + $0xec] sm:$0xf]
  %v78 = vld [vmem:[%s1 + $0xf0] sm:$0xf]
  %v79 = vld [vmem:[%s1 + $0xf4] sm:$0xf]
  %v80 = vld [vmem:[%s1 + $0xf8] sm:$0xf]
  %v81 = vld [vmem:[%s1 + $0xfc] sm:$0xf]
  %v82 = vld [vmem:[%s1 + $0x100] sm:$0xf]
  %v83 = vld [vmem:[%s1 + $0x104] sm:$0xf]
  %v84 = vld [vmem:[%s1 + $0x108] sm:$0xf]
  %v85 = vld [vmem:[%s1 + $0x10c] sm:$0xf]
  %v86 = vld [vmem:[%s1 + $0x110] sm:$0xf]
  %v87 = vld [vmem:[%s1 + $0x114] sm:$0xf]
  %v88 = vld [vmem:[%s1 + $0x118] sm:$0xf]
  %v89 = vld [vmem:[%s1 + $0x11c] sm:$0xf]
  %v90 = vld [vmem:[%s1 + $0x120] sm:$0xf]
  %v91 = vld [vmem:[%s1 + $0x124] sm:$0xf]
  %v92 = vld [vmem:[%s1 + $0x128] sm:$0xf]
  %v93 = vld [vmem:[%s1 + $0x12c] sm:$0xf]
  %v94 = vld [vmem:[%s1 + $0x130] sm:$0xf]
  %v95 = vld [vmem:[%s1 + $0x134] sm:$0xf]
  %v96 = vld [vmem:[%s1 + $0x138] sm:$0xf]
  %v97 = vld [vmem:[%s1 + $0x13c] sm:$0xf]
  %v98 = vld [vmem:[%s1 + $0x140] sm:$0xf]
  %v99 = vld [vmem:[%s1 + $0x144] sm:$0xf]
  %v100 = vld [vmem:[%s1 + $0x148] sm:$0xf]
  %v101 = vld [vmem:[%s1 + $0x14c] sm:$0xf]
  %v102 = vld [vmem:[%s1 + $0x150] sm:$0xf]
  %v103 = vld [vmem:[%s1 + $0x154] sm:$0xf]
  %v104 = vld [vmem:[%s1 + $0x158] sm:$0xf]
  %v105 = vld [vmem:[%s1 + $0x15c] sm:$0xf]
  %v106 = vld [vmem:[%s1 + $0x160] sm:$0xf]
  %v107 = vld [vmem:[%s1 + $0x164] sm:$0xf]
  %v108 = vld [vmem:[%s1 + $0x168] sm:$0xf]
  %v109 = vld [vmem:[%s1 + $0x16c] sm:$0xf]
  %v110 = vld [vmem:[%s1 + $0x170] sm:$0xf]
  %v111 = vld [vmem:[%s1 + $0x174] sm:$0xf]
  %v112 = vld [vmem:[%s1 + $0x178] sm:$0xf]
  %v113 = vld [vmem:[%s1 + $0x17c] sm:$0xf]
  %v114 = vld [vmem:[%s1 + $0x180] sm:$0xf]
  %v115 = vld [vmem:[%s1 + $0x184] sm:$0xf]
  %v116 = vld [vmem:[%s1 + $0x188] sm:$0xf]
  %v117 = vld [vmem:[%s1 + $0x18c] sm:$0xf]
  %v118 = vld [vmem:[%s1 + $0x190] sm:$0xf]
  %v119 = vld [vmem:[%s1 + $0x194] sm:$0xf]
  %v120 = vld [vmem:[%s1 + $0x198] sm:$0xf]
  %v121 = vld [vmem:[%s1 + $0x19c] sm:$0xf]
  %v122 = vld [vmem:[%s1 + $0x1a0] sm:$0xf]
  %v123 = vld [vmem:[%s1 + $0x1a4] sm:$0xf]
  %v124 = vld [vmem:[%s1 + $0x1a8] sm:$0xf]
  %v125 = vld [vmem:[%s1 + $0x1ac] sm:$0xf]
  %v126 = vld [vmem:[%s1 + $0x1b0] sm:$0xf]
  %v127 = vld [vmem:[%s1 + $0x1b4] sm:$0xf]
  %v128 = vld [vmem:[%s1 + $0x1b8] sm:$0xf]
  %v129 = vld [vmem:[%s1 + $0x1bc] sm:$0xf]
  %v130 = vld [vmem:[%s1 + $0x1c0] sm:$0xf]
  %v131 = vld [vmem:[%s1 + $0x1c4] sm:$0xf]
  %v132 = vld [vmem:[%s1 + $0x1c8] sm:$0xf]
  %v133 = vld [vmem:[%s1 + $0x1cc] sm:$0xf]
  %v134 = vld [vmem:[%s1 + $0x1d0] sm:$0xf]
  %v135 = vld [vmem:[%s1 + $0x1d4] sm:$0xf]
  %v136 = vld [vmem:[%s1 + $0x1d8] sm:$0xf]
  %v137 = vld [vmem:[%s1 + $0x1dc] sm:$0xf]
  %v138 = vld [vmem:[%s1 + $0x1e0] sm:$0xf]
  %v139 = vld [vmem:[%s1 + $0x1e4] sm:$0xf]
  %v140 = vld [vmem:[%s1 + $0x1e8] sm:$0xf]
  %v141 = vld [vmem:[%s1 + $0x1ec] sm:$0xf]
  %v142 = vld [vmem:[%s1 + $0x1f0] sm:$0xf]
  %v143 = vld [vmem:[%s1 + $0x1f4] sm:$0xf]
  %v144 = vld [vmem:[%s1 + $0x1f8] sm:$0xf]
  %v145 = vld [vmem:[%s1 + $0x1fc] sm:$0xf]
  %v146 = vld [vmem:[%s2] sm:$0x1]
  %v148 = vperm.slane %v146, 0
  %v154 = vunpack.c.l.b16 %v14
  %v155 = vunpack.c.h.b16 %v14
  %v156 = vunpack.c.l.b16 %v15
  %v157 = vunpack.c.h.b16 %v15
  %v158 = vunpack.c.l.b16 %v16
  %v159 = vunpack.c.h.b16 %v16
  %v160 = vunpack.c.l.b16 %v17
  %v161 = vunpack.c.h.b16 %v17
  %v162 = vpack.c.b16 %v154, %v154
  %v163 = vpack.c.b16 %v155, %v155
  %v164 = vpack.c.b16 %v156, %v156
  %v165 = vpack.c.b16 %v157, %v157
  %v166 = vpack.c.b16 %v158, %v158
  %v167 = vpack.c.b16 %v159, %v159
  %v168 = vpack.c.b16 %v160, %v160
  %v169 = vpack.c.b16 %v161, %v161
  %v306 = vunpack.c.l.b16 %v18
  %v307 = vunpack.c.l.b16 %v19
  %v308 = vunpack.c.l.b16 %v20
  %v309 = vunpack.c.l.b16 %v21
  %v310 = vunpack.c.l.b16 %v22
  %v311 = vunpack.c.l.b16 %v23
  %v312 = vunpack.c.l.b16 %v24
  %v313 = vunpack.c.l.b16 %v25
  %v314 = vunpack.c.l.b16 %v26
  %v315 = vunpack.c.l.b16 %v27
  %v316 = vunpack.c.l.b16 %v28
  %v317 = vunpack.c.l.b16 %v29
  %v318 = vunpack.c.l.b16 %v30
  %v319 = vunpack.c.l.b16 %v31
  %v320 = vunpack.c.l.b16 %v32
  %v321 = vunpack.c.l.b16 %v33
  %v322 = vunpack.c.l.b16 %v34
  %v323 = vunpack.c.l.b16 %v35
  %v324 = vunpack.c.l.b16 %v36
  %v325 = vunpack.c.l.b16 %v37
  %v326 = vunpack.c.l.b16 %v38
  %v327 = vunpack.c.l.b16 %v39
  %v328 = vunpack.c.l.b16 %v40
  %v329 = vunpack.c.l.b16 %v41
  %v330 = vunpack.c.l.b16 %v42
  %v331 = vunpack.c.l.b16 %v43
  %v332 = vunpack.c.l.b16 %v44
  %v333 = vunpack.c.l.b16 %v45
  %v334 = vunpack.c.l.b16 %v46
  %v335 = vunpack.c.l.b16 %v47
  %v336 = vunpack.c.l.b16 %v48
  %v337 = vunpack.c.l.b16 %v49
  %v338 = vunpack.c.l.b16 %v50
  %v339 = vunpack.c.l.b16 %v51
  %v340 = vunpack.c.l.b16 %v52
  %v341 = vunpack.c.l.b16 %v53
  %v342 = vunpack.c.l.b16 %v54
  %v343 = vunpack.c.l.b16 %v55
  %v344 = vunpack.c.l.b16 %v56
  %v345 = vunpack.c.l.b16 %v57
  %v346 = vunpack.c.l.b16 %v58
  %v347 = vunpack.c.l.b16 %v59
  %v348 = vunpack.c.l.b16 %v60
  %v349 = vunpack.c.l.b16 %v61
  %v350 = vunpack.c.l.b16 %v62
  %v351 = vunpack.c.l.b16 %v63
  %v352 = vunpack.c.l.b16 %v64
  %v353 = vunpack.c.l.b16 %v65
  %v354 = vunpack.c.l.b16 %v66
  %v355 = vunpack.c.l.b16 %v67
  %v356 = vunpack.c.l.b16 %v68
  %v357 = vunpack.c.l.b16 %v69
  %v358 = vunpack.c.l.b16 %v70
  %v359 = vunpack.c.l.b16 %v71
  %v360 = vunpack.c.l.b16 %v72
  %v361 = vunpack.c.l.b16 %v73
  %v362 = vunpack.c.l.b16 %v74
  %v363 = vunpack.c.l.b16 %v75
  %v364 = vunpack.c.l.b16 %v76
  %v365 = vunpack.c.l.b16 %v77
  %v366 = vunpack.c.l.b16 %v78
  %v367 = vunpack.c.l.b16 %v79
  %v368 = vunpack.c.l.b16 %v80
  %v369 = vunpack.c.l.b16 %v81
  %v370 = vunpack.c.l.b16 %v82
  %v371 = vunpack.c.l.b16 %v83
  %v372 = vunpack.c.l.b16 %v84
  %v373 = vunpack.c.l.b16 %v85
  %v374 = vunpack.c.l.b16 %v86
  %v375 = vunpack.c.l.b16 %v87
  %v376 = vunpack.c.l.b16 %v88
  %v377 = vunpack.c.l.b16 %v89
  %v378 = vunpack.c.l.b16 %v90
  %v379 = vunpack.c.l.b16 %v91
  %v380 = vunpack.c.l.b16 %v92
  %v381 = vunpack.c.l.b16 %v93
  %v382 = vunpack.c.l.b16 %v94
  %v383 = vunpack.c.l.b16 %v95
  %v384 = vunpack.c.l.b16 %v96
  %v385 = vunpack.c.l.b16 %v97
  %v386 = vunpack.c.l.b16 %v98
  %v387 = vunpack.c.l.b16 %v99
  %v388 = vunpack.c.l.b16 %v100
  %v389 = vunpack.c.l.b16 %v101
  %v390 = vunpack.c.l.b16 %v102
  %v391 = vunpack.c.l.b16 %v103
  %v392 = vunpack.c.l.b16 %v104
  %v393 = vunpack.c.l.b16 %v105
  %v394 = vunpack.c.l.b16 %v106
  %v395 = vunpack.c.l.b16 %v107
  %v396 = vunpack.c.l.b16 %v108
  %v397 = vunpack.c.l.b16 %v109
  %v398 = vunpack.c.l.b16 %v110
  %v399 = vunpack.c.l.b16 %v111
  %v400 = vunpack.c.l.b16 %v112
  %v401 = vunpack.c.l.b16 %v113
  %v402 = vunpack.c.l.b16 %v114
  %v403 = vunpack.c.l.b16 %v115
  %v404 = vunpack.c.l.b16 %v116
  %v405 = vunpack.c.l.b16 %v117
  %v406 = vunpack.c.l.b16 %v118
  %v407 = vunpack.c.l.b16 %v119
  %v408 = vunpack.c.l.b16 %v120
  %v409 = vunpack.c.l.b16 %v121
  %v410 = vunpack.c.l.b16 %v122
  %v411 = vunpack.c.l.b16 %v123
  %v412 = vunpack.c.l.b16 %v124
  %v413 = vunpack.c.l.b16 %v125
  %v414 = vunpack.c.l.b16 %v126
  %v415 = vunpack.c.l.b16 %v127
  %v416 = vunpack.c.l.b16 %v128
  %v417 = vunpack.c.l.b16 %v129
  %v418 = vunpack.c.l.b16 %v130
  %v419 = vunpack.c.l.b16 %v131
  %v420 = vunpack.c.l.b16 %v132
  %v421 = vunpack.c.l.b16 %v133
  %v422 = vunpack.c.l.b16 %v134
  %v423 = vunpack.c.l.b16 %v135
  %v424 = vunpack.c.l.b16 %v136
  %v425 = vunpack.c.l.b16 %v137
  %v426 = vunpack.c.l.b16 %v138
  %v427 = vunpack.c.l.b16 %v139
  %v428 = vunpack.c.l.b16 %v140
  %v429 = vunpack.c.l.b16 %v141
  %v430 = vunpack.c.l.b16 %v142
  %v431 = vunpack.c.l.b16 %v143
  %v432 = vunpack.c.l.b16 %v144
  %v433 = vunpack.c.l.b16 %v145
  %v434 = vpack.c.b16 %v307, %v306
  %v435 = vpack.c.b16 %v309, %v308
  %v436 = vpack.c.b16 %v311, %v310
  %v437 = vpack.c.b16 %v313, %v312
  %v438 = vpack.c.b16 %v315, %v314
  %v439 = vpack.c.b16 %v317, %v316
  %v440 = vpack.c.b16 %v319, %v318
  %v441 = vpack.c.b16 %v321, %v320
  %v442 = vpack.c.b16 %v323, %v322
  %v443 = vpack.c.b16 %v325, %v324
  %v444 = vpack.c.b16 %v327, %v326
  %v445 = vpack.c.b16 %v329, %v328
  %v446 = vpack.c.b16 %v331, %v330
  %v447 = vpack.c.b16 %v333, %v332
  %v448 = vpack.c.b16 %v335, %v334
  %v449 = vpack.c.b16 %v337, %v336
  %v450 = vpack.c.b16 %v339, %v338
  %v451 = vpack.c.b16 %v341, %v340
  %v452 = vpack.c.b16 %v343, %v342
  %v453 = vpack.c.b16 %v345, %v344
  %v454 = vpack.c.b16 %v347, %v346
  %v455 = vpack.c.b16 %v349, %v348
  %v456 = vpack.c.b16 %v351, %v350
  %v457 = vpack.c.b16 %v353, %v352
  %v458 = vpack.c.b16 %v355, %v354
  %v459 = vpack.c.b16 %v357, %v356
  %v460 = vpack.c.b16 %v359, %v358
  %v461 = vpack.c.b16 %v361, %v360
  %v462 = vpack.c.b16 %v363, %v362
  %v463 = vpack.c.b16 %v365, %v364
  %v464 = vpack.c.b16 %v367, %v366
  %v465 = vpack.c.b16 %v369, %v368
  %v466 = vpack.c.b16 %v371, %v370
  %v467 = vpack.c.b16 %v373, %v372
  %v468 = vpack.c.b16 %v375, %v374
  %v469 = vpack.c.b16 %v377, %v376
  %v470 = vpack.c.b16 %v379, %v378
  %v471 = vpack.c.b16 %v381, %v380
  %v472 = vpack.c.b16 %v383, %v382
  %v473 = vpack.c.b16 %v385, %v384
  %v474 = vpack.c.b16 %v387, %v386
  %v475 = vpack.c.b16 %v389, %v388
  %v476 = vpack.c.b16 %v391, %v390
  %v477 = vpack.c.b16 %v393, %v392
  %v478 = vpack.c.b16 %v395, %v394
  %v479 = vpack.c.b16 %v397, %v396
  %v480 = vpack.c.b16 %v399, %v398
  %v481 = vpack.c.b16 %v401, %v400
  %v482 = vpack.c.b16 %v403, %v402
  %v483 = vpack.c.b16 %v405, %v404
  %v484 = vpack.c.b16 %v407, %v406
  %v485 = vpack.c.b16 %v409, %v408
  %v486 = vpack.c.b16 %v411, %v410
  %v487 = vpack.c.b16 %v413, %v412
  %v488 = vpack.c.b16 %v415, %v414
  %v489 = vpack.c.b16 %v417, %v416
  %v490 = vpack.c.b16 %v419, %v418
  %v491 = vpack.c.b16 %v421, %v420
  %v492 = vpack.c.b16 %v423, %v422
  %v493 = vpack.c.b16 %v425, %v424
  %v494 = vpack.c.b16 %v427, %v426
  %v495 = vpack.c.b16 %v429, %v428
  %v496 = vpack.c.b16 %v431, %v430
  %v497 = vpack.c.b16 %v433, %v432
  %562 = vmatpush.bf16.msra.mxu0 %v441
  %563 = vmatpush.bf16.msra.mxu0 %v440
  %564 = vmatpush.bf16.msra.mxu0 %v439
  %565 = vmatpush.bf16.msra.mxu0 %v438
  %566 = vmatpush.bf16.msra.mxu0 %v437
  %567 = vmatpush.bf16.msra.mxu0 %v436
  %568 = vmatpush.bf16.msra.mxu0 %v435
  %569 = vmatpush.bf16.msra.mxu0 %v434
  %570 = vmatmul.bf16.gmra.mxu0 %v162
  %v571 = vpop.f32.mrf.mxu0
  %v572 = vadd.f32 %v148, %v571
  %v573 = vpop.f32.mrf.mxu0
  %574 = vdwg.mxu0
  %575 = vmatpush.bf16.msra.mxu0 %v449
  %576 = vmatpush.bf16.msra.mxu0 %v448
  %577 = vmatpush.bf16.msra.mxu0 %v447
  %578 = vmatpush.bf16.msra.mxu0 %v446
  %579 = vmatpush.bf16.msra.mxu0 %v445
  %580 = vmatpush.bf16.msra.mxu0 %v444
  %581 = vmatpush.bf16.msra.mxu0 %v443
  %582 = vmatpush.bf16.msra.mxu0 %v442
  %583 = vmatmul.bf16.gmra.mxu0 %v163
  %v584 = vpop.f32.mrf.mxu0
  %v585 = vadd.f32 %v572, %v584
  %v586 = vpop.f32.mrf.mxu0
  %587 = vdwg.mxu0
  %588 = vmatpush.bf16.msra.mxu0 %v457
  %589 = vmatpush.bf16.msra.mxu0 %v456
  %590 = vmatpush.bf16.msra.mxu0 %v455
  %591 = vmatpush.bf16.msra.mxu0 %v454
  %592 = vmatpush.bf16.msra.mxu0 %v453
  %593 = vmatpush.bf16.msra.mxu0 %v452
  %594 = vmatpush.bf16.msra.mxu0 %v451
  %595 = vmatpush.bf16.msra.mxu0 %v450
  %596 = vmatmul.bf16.gmra.mxu0 %v164
  %v597 = vpop.f32.mrf.mxu0
  %v598 = vadd.f32 %v585, %v597
  %v599 = vpop.f32.mrf.mxu0
  %600 = vdwg.mxu0
  %601 = vmatpush.bf16.msra.mxu0 %v465
  %602 = vmatpush.bf16.msra.mxu0 %v464
  %603 = vmatpush.bf16.msra.mxu0 %v463
  %604 = vmatpush.bf16.msra.mxu0 %v462
  %605 = vmatpush.bf16.msra.mxu0 %v461
  %606 = vmatpush.bf16.msra.mxu0 %v460
  %607 = vmatpush.bf16.msra.mxu0 %v459
  %608 = vmatpush.bf16.msra.mxu0 %v458
  %609 = vmatmul.bf16.gmra.mxu0 %v165
  %v610 = vpop.f32.mrf.mxu0
  %v611 = vadd.f32 %v598, %v610
  %v612 = vpop.f32.mrf.mxu0
  %613 = vdwg.mxu0
  %614 = vmatpush.bf16.msra.mxu0 %v473
  %615 = vmatpush.bf16.msra.mxu0 %v472
  %616 = vmatpush.bf16.msra.mxu0 %v471
  %617 = vmatpush.bf16.msra.mxu0 %v470
  %618 = vmatpush.bf16.msra.mxu0 %v469
  %619 = vmatpush.bf16.msra.mxu0 %v468
  %620 = vmatpush.bf16.msra.mxu0 %v467
  %621 = vmatpush.bf16.msra.mxu0 %v466
  %622 = vmatmul.bf16.gmra.mxu0 %v166
  %v623 = vpop.f32.mrf.mxu0
  %v624 = vadd.f32 %v611, %v623
  %v625 = vpop.f32.mrf.mxu0
  %626 = vdwg.mxu0
  %627 = vmatpush.bf16.msra.mxu0 %v481
  %628 = vmatpush.bf16.msra.mxu0 %v480
  %629 = vmatpush.bf16.msra.mxu0 %v479
  %630 = vmatpush.bf16.msra.mxu0 %v478
  %631 = vmatpush.bf16.msra.mxu0 %v477
  %632 = vmatpush.bf16.msra.mxu0 %v476
  %633 = vmatpush.bf16.msra.mxu0 %v475
  %634 = vmatpush.bf16.msra.mxu0 %v474
  %635 = vmatmul.bf16.gmra.mxu0 %v167
  %v636 = vpop.f32.mrf.mxu0
  %v637 = vadd.f32 %v624, %v636
  %v638 = vpop.f32.mrf.mxu0
  %639 = vdwg.mxu0
  %640 = vmatpush.bf16.msra.mxu0 %v489
  %641 = vmatpush.bf16.msra.mxu0 %v488
  %642 = vmatpush.bf16.msra.mxu0 %v487
  %643 = vmatpush.bf16.msra.mxu0 %v486
  %644 = vmatpush.bf16.msra.mxu0 %v485
  %645 = vmatpush.bf16.msra.mxu0 %v484
  %646 = vmatpush.bf16.msra.mxu0 %v483
  %647 = vmatpush.bf16.msra.mxu0 %v482
  %648 = vmatmul.bf16.gmra.mxu0 %v168
  %v649 = vpop.f32.mrf.mxu0
  %v650 = vadd.f32 %v637, %v649
  %v651 = vpop.f32.mrf.mxu0
  %652 = vdwg.mxu0
  %653 = vmatpush.bf16.msra.mxu0 %v497
  %654 = vmatpush.bf16.msra.mxu0 %v496
  %655 = vmatpush.bf16.msra.mxu0 %v495
  %656 = vmatpush.bf16.msra.mxu0 %v494
  %657 = vmatpush.bf16.msra.mxu0 %v493
  %658 = vmatpush.bf16.msra.mxu0 %v492
  %659 = vmatpush.bf16.msra.mxu0 %v491
  %660 = vmatpush.bf16.msra.mxu0 %v490
  %661 = vmatmul.bf16.gmra.mxu0 %v169
  %v662 = vpop.f32.mrf.mxu0
  %v663 = vadd.f32 %v650, %v662
  %v664 = vpop.f32.mrf.mxu0
  %665 = vdwg.mxu0
  %v666 = vmax.f32 %v663, 0.0
  %v667 = vpack.c.bf16 %v666, %v666
  %668 = vst [vmem:[%s3] sm:$0xf] %v667
  // Predicated region
  $region14: #{_lambda_.20} parent=0 // pred_check
    _
  $region15: #{_lambda_.20} parent=0 // pred_check_branch
    %670 = sbr.rel (0) target = $region17
  $region16: #{_lambda_.20} parent=0 // pred_region
    _
  $region17: #{_lambda_.20} parent=0 // pred_fallthru
    _
  // Predicated region
  $region18: #{_lambda_.20} parent=0 // pred_check
    _
  $region19: #{_lambda_.20} parent=0 // pred_check_branch
    %672 = sbr.rel (0) target = $region21
  $region20: #{_lambda_.20} parent=0 // pred_region
    _
  $region21: #{_lambda_.20} parent=0 // pred_fallthru
    _

// kernel: _lambda_.21
$region0: #{_lambda_.21}
  #allocation0 [shape = 'u32[]', space=smem, size = 0x4, offset = 0x4, fixed_abs, tag = 'smem constant byte address 0x4 - core index']
  #allocation1 [shape = 'u32[72,128]{1,0:T(1,128)}', space=vmem, size = 0x9000, scoped, tag = 'internal scratch']
  %s0 = inlined_call_operand.vmem [shape: bf16[4,8,256], index: 0, kind: input, shape index: {}]
  %s1 = inlined_call_operand.vmem [shape: bf16[4,256,128], index: 1, kind: input, shape index: {}]
  %s2 = inlined_call_operand.vmem [shape: f32[1,128], index: 2, kind: input, shape index: {}]
  %s3 = inlined_call_operand.vmem [shape: bf16[4,8,128], index: 3, kind: output, shape index: {}]
  %s4 = sld [smem:[#allocation0]]
  $region45: #{_lambda_.21} parent=0
    _
  %s6 = ssub.s32 1, %s4
  %s7 = scalar_select 0, %s6, %s4
  loop: start=0, step=1, limit=6
  $region2: #{_lambda_.21} parent=0 // loop_pre_header
    _
  $region3: #{_lambda_.21} parent=0 // loop_header
    %s9 = sphi 0, %s13
    %p10 = scmp.ge.s32.totalorder %s9, 6
    %s16 = sphi 0, %s28
    %s17 = sphi 0, %s24
    %s18 = sphi 0, %s16
    %s19 = sphi 0, %s17
    %s20 = sphi 0, %s18
    %s21 = sphi 0, %s19
    %s33 = sphi 0, %s35
    %s36 = sphi 0, %s33
    %s37 = sphi 0, %s36
    %s53 = sphi 0, %s37
    %s59 = sphi 0, %s61
    %s62 = sphi 0, %s59
    %s63 = sphi 0, %s62
    %s79 = sphi 0, %s63
    %s83 = sphi 0, %s83
    %s85 = sphi 0, %s83
    %s86 = sphi 0, %s85
    %s100 = sphi 0, %s86
    %s108 = sphi 0, %s110
    %s111 = sphi 0, %s108
    %s112 = sphi 0, %s111
    %s128 = sphi 0, %s112
  $region4: #{_lambda_.21} parent=0 // loop_header_branch
    %12 = sbr.rel (%p10) target = $region8
  $region5: #{_lambda_.21} parent=0 // loop_body
    %s14 = ssub.s32 %s9, 1
    %s15 = ssub.s32 %s9, 2
    %s22 = sadd.s32 1, %s17
    %p23 = scmp.ge.s32.totalorder %s22, 1
    %s24 = scalar_select %p23, 0, %s22
    %s25 = sadd.s32 1, %s16
    %s26 = scalar_select %p23, %s25, %s16
    %p27 = scmp.ge.s32.totalorder %s26, 4
    %s28 = scalar_select %p27, 0, %s26
    %s29 = ssub.s32 %s16, %s28
    %s30 = ssub.s32 %s17, %s24
    %s31 = sor.u32 %s29, %s30
    %p32 = scmp.eq.s32.totalorder %s31, 0
    %s34 = sadd.s32 %s33, 1
    %s35 = scalar_select %p32, %s33, %s34
    %p38 = pneg %p32
    %p39 = scmp.eq.s32.totalorder %s9, 3
    %p40 = por %p38, %p39
    %p41 = scmp.ne.s32.totalorder %s33, %s36
    %p42 = scmp.eq.s32.totalorder %s9, 0
    %p43 = por %p41, %p42
    %p44 = scmp.ne.s32.totalorder %s33, %s36
    %p45 = scmp.eq.s32.totalorder %s14, 3
    %p46 = por %p44, %p45
    %p47 = scmp.ne.s32.totalorder %s36, %s37
    %p48 = scmp.eq.s32.totalorder %s14, 0
    %p49 = por %p47, %p48
    %p50 = scmp.ne.s32.totalorder %s36, %s37
    %p51 = scmp.eq.s32.totalorder %s15, 3
    %p52 = por %p50, %p51
    %p54 = scmp.ne.s32.totalorder %s37, %s53
    %p55 = scmp.eq.s32.totalorder %s15, 0
    %p56 = por %p54, %p55
    %s57 = ssub.s32 %s16, %s28
    %p58 = scmp.eq.s32.totalorder %s57, 0
    %s60 = sadd.s32 %s59, 1
    %s61 = scalar_select %p58, %s59, %s60
    %p64 = pneg %p58
    %p65 = scmp.eq.s32.totalorder %s9, 3
    %p66 = por %p64, %p65
    %p67 = scmp.ne.s32.totalorder %s59, %s62
    %p68 = scmp.eq.s32.totalorder %s9, 0
    %p69 = por %p67, %p68
    %p70 = scmp.ne.s32.totalorder %s59, %s62
    %p71 = scmp.eq.s32.totalorder %s14, 3
    %p72 = por %p70, %p71
    %p73 = scmp.ne.s32.totalorder %s62, %s63
    %p74 = scmp.eq.s32.totalorder %s14, 0
    %p75 = por %p73, %p74
    %p76 = scmp.ne.s32.totalorder %s62, %s63
    %p77 = scmp.eq.s32.totalorder %s15, 3
    %p78 = por %p76, %p77
    %p80 = scmp.ne.s32.totalorder %s63, %s79
    %p81 = scmp.eq.s32.totalorder %s15, 0
    %p82 = por %p80, %p81
    %s84 = sadd.s32 %s83, 1
    %p87 = scmp.eq.s32.totalorder %s9, 3
    %p88 = scmp.ne.s32.totalorder %s83, %s85
    %p89 = scmp.eq.s32.totalorder %s9, 0
    %p90 = por %p88, %p89
    %p91 = scmp.ne.s32.totalorder %s83, %s85
    %p92 = scmp.eq.s32.totalorder %s14, 3
    %p93 = por %p91, %p92
    %p94 = scmp.ne.s32.totalorder %s85, %s86
    %p95 = scmp.eq.s32.totalorder %s14, 0
    %p96 = por %p94, %p95
    %p97 = scmp.ne.s32.totalorder %s85, %s86
    %p98 = scmp.eq.s32.totalorder %s15, 3
    %p99 = por %p97, %p98
    %p101 = scmp.ne.s32.totalorder %s86, %s100
    %p102 = scmp.eq.s32.totalorder %s15, 0
    %p103 = por %p101, %p102
    %s104 = ssub.s32 %s16, %s28
    %s105 = ssub.s32 %s17, %s24
    %s106 = sor.u32 %s104, %s105
    %p107 = scmp.eq.s32.totalorder %s106, 0
    %s109 = sadd.s32 %s108, 1
    %s110 = scalar_select %p107, %s108, %s109
    %p113 = pneg %p107
    %p114 = scmp.eq.s32.totalorder %s9, 3
    %p115 = por %p113, %p114
    %p116 = scmp.ne.s32.totalorder %s108, %s111
    %p117 = scmp.eq.s32.totalorder %s9, 0
    %p118 = por %p116, %p117
    %p119 = scmp.ne.s32.totalorder %s108, %s111
    %p120 = scmp.eq.s32.totalorder %s14, 3
    %p121 = por %p119, %p120
    %p122 = scmp.ne.s32.totalorder %s111, %s112
    %p123 = scmp.eq.s32.totalorder %s14, 0
    %p124 = por %p122, %p123
    %p125 = scmp.ne.s32.totalorder %s111, %s112
    %p126 = scmp.eq.s32.totalorder %s15, 3
    %p127 = por %p125, %p126
    %p129 = scmp.ne.s32.totalorder %s112, %s128
    %p130 = scmp.eq.s32.totalorder %s15, 0
    %p131 = por %p129, %p130
    %p132 = scmp.le.s32.totalorder 1, %s9
    %p133 = scmp.lt.s32.totalorder %s9, 5
    %p134 = pnand %p132, %p133
    %p135 = pneg %p134
    // Predicated region
    $region9: #{_lambda_.21} parent=5 // pred_check
      _
    $region10: #{_lambda_.21} parent=5 // pred_check_branch
      %137 = sbr.rel (%p134) target = $region12
    $region11: #{_lambda_.21} parent=5 // pred_region
      %s138 = ssub.s32 %s9, 1
      // Predicated region
      $region13: #{_lambda_.21} parent=11 // pred_check
        %p139 = pneg %p96
      $region14: #{_lambda_.21} parent=11 // pred_check_branch
        %141 = sbr.rel (%p139) target = $region16
      $region15: #{_lambda_.21} parent=11 // pred_region
        _
      $region16: #{_lambda_.21} parent=11 // pred_fallthru
        _
    $region12: #{_lambda_.21} parent=5 // pred_fallthru
      _
    %p142 = scmp.lt.s32.totalorder %s9, 4
    // Predicated region
    $region17: #{_lambda_.21} parent=5 // pred_check
      %p143 = pneg %p142
    $region18: #{_lambda_.21} parent=5 // pred_check_branch
      %145 = sbr.rel (%p143) target = $region20
    $region19: #{_lambda_.21} parent=5 // pred_region
      // Predicated region
      $region21: #{_lambda_.21} parent=19 // pred_check
        %p146 = pneg %p43
      $region22: #{_lambda_.21} parent=19 // pred_check_branch
        %148 = sbr.rel (%p146) target = $region24
      $region23: #{_lambda_.21} parent=19 // pred_region
        %p149 = scmp.lt.s32.totalorder %s16, 3
        %s150 = scalar_select %p149, %s16, 3
        %p151 = scmp.lt.s32.totalorder %s17, 0
        %s152 = scalar_select %p151, %s17, 0
        %s153 = smul.addr %s152, 2
        %s154 = smul.addr %s150, 2
        %s155 = sadd.s32 %s153, %s154
        %s156 = smul.addr %s155, 4
        %s157 = scalar_lea.vmem %s0, %s156
      $region24: #{_lambda_.21} parent=19 // pred_fallthru
        _
      // Predicated region
      $region25: #{_lambda_.21} parent=19 // pred_check
        %p158 = pneg %p69
      $region26: #{_lambda_.21} parent=19 // pred_check_branch
        %160 = sbr.rel (%p158) target = $region28
      $region27: #{_lambda_.21} parent=19 // pred_region
        %p161 = scmp.lt.s32.totalorder %s16, 3
        %s162 = scalar_select %p161, %s16, 3
        %s163 = smul.addr %s162, 32
        %s164 = smul.addr %s163, 4
        %s165 = scalar_lea.vmem %s1, %s164
      $region28: #{_lambda_.21} parent=19 // pred_fallthru
        _
    $region20: #{_lambda_.21} parent=5 // pred_fallthru
      _
    %p166 = scmp.le.s32.totalorder 1, %s9
    %p167 = scmp.lt.s32.totalorder %s9, 5
    %p168 = pnand %p166, %p167
    %p169 = pneg %p168
    // Predicated region
    $region29: #{_lambda_.21} parent=5 // pred_check
      _
    $region30: #{_lambda_.21} parent=5 // pred_check_branch
      %171 = sbr.rel (%p168) target = $region32
    $region31: #{_lambda_.21} parent=5 // pred_region
      %s172 = ssub.s32 %s9, 1
      %p173 = scmp.lt.s32.totalorder %s18, 3
      %s174 = scalar_select %p173, %s18, 3
      %p175 = scmp.lt.s32.totalorder %s19, 0
      %s176 = scalar_select %p175, %s19, 0
      %s177 = smul.addr %s176, 2
      %s178 = smul.addr %s174, 2
      %s179 = sadd.s32 %s177, %s178
      %s180 = smul.addr %s179, 4
      %s181 = scalar_lea.vmem %s0, %s180
      %p182 = pneg %p49
      %p183 = pneg %p46
      %p184 = scmp.lt.s32.totalorder %s18, 3
      %s185 = scalar_select %p184, %s18, 3
      %s186 = smul.addr %s185, 32
      %s187 = smul.addr %s186, 4
      %s188 = scalar_lea.vmem %s1, %s187
      %p189 = pneg %p75
      %p190 = pneg %p72
      %p191 = pneg %p96
      %p192 = pneg %p93
      %p193 = pneg %p124
      %p194 = pneg %p121
      %p195 = scmp.lt.s32.totalorder %s18, 3
      %s196 = scalar_select %p195, %s18, 3
      %p197 = scmp.lt.s32.totalorder %s19, 0
      %s198 = scalar_select %p197, %s19, 0
      %s199 = sadd.s32 %s198, %s196
      %s200 = smul.addr %s199, 4
      %s201 = scalar_lea.vmem %s3, %s200
      %p202 = scmp.lt.s32.totalorder %s18, 3
      %s203 = scalar_select %p202, %s18, 3
      %p204 = scmp.lt.s32.totalorder %s19, 0
      %s205 = scalar_select %p204, %s19, 0
      %s206 = smul.addr %s205, 2
      %s207 = smul.addr %s203, 2
      %s208 = sadd.s32 %s206, %s207
      %s209 = smul.addr %s208, 4
      %s210 = scalar_lea.vmem %s0, %s209
      %p211 = scmp.lt.s32.totalorder %s18, 3
      %s212 = scalar_select %p211, %s18, 3
      %s213 = smul.addr %s212, 32
      %s214 = smul.addr %s213, 4
      %s215 = scalar_lea.vmem %s1, %s214
      %p216 = scmp.lt.s32.totalorder %s18, 3
      %s217 = scalar_select %p216, %s18, 3
      %p218 = scmp.lt.s32.totalorder %s19, 0
      %s219 = scalar_select %p218, %s19, 0
      %s220 = sadd.s32 %s219, %s217
      %s221 = smul.addr %s220, 4
      %s222 = scalar_lea.vmem %s3, %s221
      %v223 = vld [vmem:[%s210] sm:$0xff]
      %v224 = vld [vmem:[%s215] sm:$0xf]
      %v225 = vld [vmem:[%s215 + $0x4] sm:$0xf]
      %v226 = vld [vmem:[%s215 + $0x8] sm:$0xf]
      %v227 = vld [vmem:[%s215 + $0xc] sm:$0xf]
      %v228 = vld [vmem:[%s215 + $0x10] sm:$0xf]
      %v229 = vld [vmem:[%s215 + $0x14] sm:$0xf]
      %v230 = vld [vmem:[%s215 + $0x18] sm:$0xf]
      %v231 = vld [vmem:[%s215 + $0x1c] sm:$0xf]
      %v232 = vld [vmem:[%s215 + $0x20] sm:$0xf]
      %v233 = vld [vmem:[%s215 + $0x24] sm:$0xf]
      %v234 = vld [vmem:[%s215 + $0x28] sm:$0xf]
      %v235 = vld [vmem:[%s215 + $0x2c] sm:$0xf]
      %v236 = vld [vmem:[%s215 + $0x30] sm:$0xf]
      %v237 = vld [vmem:[%s215 + $0x34] sm:$0xf]
      %v238 = vld [vmem:[%s215 + $0x38] sm:$0xf]
      %v239 = vld [vmem:[%s215 + $0x3c] sm:$0xf]
      %v240 = vld [vmem:[%s215 + $0x40] sm:$0xf]
      %v241 = vld [vmem:[%s215 + $0x44] sm:$0xf]
      %v242 = vld [vmem:[%s215 + $0x48] sm:$0xf]
      %v243 = vld [vmem:[%s215 + $0x4c] sm:$0xf]
      %v244 = vld [vmem:[%s215 + $0x50] sm:$0xf]
      %v245 = vld [vmem:[%s215 + $0x54] sm:$0xf]
      %v246 = vld [vmem:[%s215 + $0x58] sm:$0xf]
      %v247 = vld [vmem:[%s215 + $0x5c] sm:$0xf]
      %v248 = vld [vmem:[%s215 + $0x60] sm:$0xf]
      %v249 = vld [vmem:[%s215 + $0x64] sm:$0xf]
      %v250 = vld [vmem:[%s215 + $0x68] sm:$0xf]
      %v251 = vld [vmem:[%s215 + $0x6c] sm:$0xf]
      %v252 = vld [vmem:[%s215 + $0x70] sm:$0xf]
      %v253 = vld [vmem:[%s215 + $0x74] sm:$0xf]
      %v254 = vld [vmem:[%s215 + $0x78] sm:$0xf]
      %v255 = vld [vmem:[%s215 + $0x7c] sm:$0xf]
      %v256 = vld [vmem:[%s2] sm:$0x1]
      %v258 = vperm.slane %v256, 0
      %v261 = vunpack.c.l.b16 %v223
      %v262 = vunpack.c.h.b16 %v223
      %v263 = vpack.c.b16 %v261, %v261
      %v264 = vpack.c.b16 %v262, %v262
      %v299 = vunpack.c.l.b16 %v224
      %v300 = vunpack.c.l.b16 %v225
      %v301 = vunpack.c.l.b16 %v226
      %v302 = vunpack.c.l.b16 %v227
      %v303 = vunpack.c.l.b16 %v228
      %v304 = vunpack.c.l.b16 %v229
      %v305 = vunpack.c.l.b16 %v230
      %v306 = vunpack.c.l.b16 %v231
      %v307 = vunpack.c.l.b16 %v232
      %v308 = vunpack.c.l.b16 %v233
      %v309 = vunpack.c.l.b16 %v234
      %v310 = vunpack.c.l.b16 %v235
      %v311 = vunpack.c.l.b16 %v236
      %v312 = vunpack.c.l.b16 %v237
      %v313 = vunpack.c.l.b16 %v238
      %v314 = vunpack.c.l.b16 %v239
      %v315 = vunpack.c.l.b16 %v240
      %v316 = vunpack.c.l.b16 %v241
      %v317 = vunpack.c.l.b16 %v242
      %v318 = vunpack.c.l.b16 %v243
      %v319 = vunpack.c.l.b16 %v244
      %v320 = vunpack.c.l.b16 %v245
      %v321 = vunpack.c.l.b16 %v246
      %v322 = vunpack.c.l.b16 %v247
      %v323 = vunpack.c.l.b16 %v248
      %v324 = vunpack.c.l.b16 %v249
      %v325 = vunpack.c.l.b16 %v250
      %v326 = vunpack.c.l.b16 %v251
      %v327 = vunpack.c.l.b16 %v252
      %v328 = vunpack.c.l.b16 %v253
      %v329 = vunpack.c.l.b16 %v254
      %v330 = vunpack.c.l.b16 %v255
      %v331 = vpack.c.b16 %v300, %v299
      %v332 = vpack.c.b16 %v302, %v301
      %v333 = vpack.c.b16 %v304, %v303
      %v334 = vpack.c.b16 %v306, %v305
      %v335 = vpack.c.b16 %v308, %v307
      %v336 = vpack.c.b16 %v310, %v309
      %v337 = vpack.c.b16 %v312, %v311
      %v338 = vpack.c.b16 %v314, %v313
      %v339 = vpack.c.b16 %v316, %v315
      %v340 = vpack.c.b16 %v318, %v317
      %v341 = vpack.c.b16 %v320, %v319
      %v342 = vpack.c.b16 %v322, %v321
      %v343 = vpack.c.b16 %v324, %v323
      %v344 = vpack.c.b16 %v326, %v325
      %v345 = vpack.c.b16 %v328, %v327
      %v346 = vpack.c.b16 %v330, %v329
      %363 = vmatpush.bf16.msra.mxu0 %v338
      %364 = vmatpush.bf16.msra.mxu0 %v337
      %365 = vmatpush.bf16.msra.mxu0 %v336
      %366 = vmatpush.bf16.msra.mxu0 %v335
      %367 = vmatpush.bf16.msra.mxu0 %v334
      %368 = vmatpush.bf16.msra.mxu0 %v333
      %369 = vmatpush.bf16.msra.mxu0 %v332
      %370 = vmatpush.bf16.msra.mxu0 %v331
      %371 = vmatmul.bf16.gmra.mxu0 %v263
      %v372 = vpop.f32.mrf.mxu0
      %v373 = vadd.f32 %v258, %v372
      %v374 = vpop.f32.mrf.mxu0
      %375 = vdwg.mxu0
      %376 = vmatpush.bf16.msra.mxu0 %v346
      %377 = vmatpush.bf16.msra.mxu0 %v345
      %378 = vmatpush.bf16.msra.mxu0 %v344
      %379 = vmatpush.bf16.msra.mxu0 %v343
      %380 = vmatpush.bf16.msra.mxu0 %v342
      %381 = vmatpush.bf16.msra.mxu0 %v341
      %382 = vmatpush.bf16.msra.mxu0 %v340
      %383 = vmatpush.bf16.msra.mxu0 %v339
      %384 = vmatmul.bf16.gmra.mxu0 %v264
      %v385 = vpop.f32.mrf.mxu0
      %v386 = vadd.f32 %v373, %v385
      %v387 = vpop.f32.mrf.mxu0
      %388 = vdwg.mxu0
      %v389 = vmax.f32 %v386, 0.0
      %v390 = vpack.c.bf16 %v389, %v389
      %391 = vst [vmem:[%s222] sm:$0xf] %v390
      %p392 = scmp.lt.s32.totalorder %s18, 3
      %s393 = scalar_select %p392, %s18, 3
      %p394 = scmp.lt.s32.totalorder %s19, 0
      %s395 = scalar_select %p394, %s19, 0
      %s396 = sadd.s32 %s395, %s393
      %s397 = smul.addr %s396, 4
      %s398 = scalar_lea.vmem %s3, %s397
      // Predicated region
      $region33: #{_lambda_.21} parent=31 // pred_check
        %p399 = pneg %p121
      $region34: #{_lambda_.21} parent=31 // pred_check_branch
        %401 = sbr.rel (%p399) target = $region36
      $region35: #{_lambda_.21} parent=31 // pred_region
        _
      $region36: #{_lambda_.21} parent=31 // pred_fallthru
        _
    $region32: #{_lambda_.21} parent=5 // pred_fallthru
      _
    %p402 = scmp.le.s32.totalorder 2, %s9
    // Predicated region
    $region37: #{_lambda_.21} parent=5 // pred_check
      %p403 = pneg %p402
    $region38: #{_lambda_.21} parent=5 // pred_check_branch
      %405 = sbr.rel (%p403) target = $region40
    $region39: #{_lambda_.21} parent=5 // pred_region
      %s406 = ssub.s32 %s9, 2
      // Predicated region
      $region41: #{_lambda_.21} parent=39 // pred_check
        %p407 = pneg %p127
      $region42: #{_lambda_.21} parent=39 // pred_check_branch
        %409 = sbr.rel (%p407) target = $region44
      $region43: #{_lambda_.21} parent=39 // pred_region
        %p410 = scmp.lt.s32.totalorder %s20, 3
        %s411 = scalar_select %p410, %s20, 3
        %p412 = scmp.lt.s32.totalorder %s21, 0
        %s413 = scalar_select %p412, %s21, 0
        %s414 = sadd.s32 %s413, %s411
        %s415 = smul.addr %s414, 4
        %s416 = scalar_lea.vmem %s3, %s415
      $region44: #{_lambda_.21} parent=39 // pred_fallthru
        _
    $region40: #{_lambda_.21} parent=5 // pred_fallthru
      _
  $region6: #{_lambda_.21} parent=0 // loop_footer
    %s13 = sadd.s32 1, %s9
  $region7: #{_lambda_.21} parent=0 // loop_footer_branch
    %8 = sbr.rel target = $region3
  $region8: #{_lambda_.21} parent=0 // loop_exit
    _

// kernel: _lambda_.22
$region0: #{_lambda_.22}
  #allocation0 [shape = 'u32[]', space=smem, size = 0x4, offset = 0x4, fixed_abs, tag = 'smem constant byte address 0x4 - core index']
  #allocation1 [shape = 'u32[72,128]{1,0:T(1,128)}', space=vmem, size = 0x9000, scoped, tag = 'internal scratch']
  %s0 = inlined_call_operand.vmem [shape: bf16[4,8,512], index: 0, kind: input, shape index: {}]
  %s1 = inlined_call_operand.vmem [shape: bf16[4,512,128], index: 1, kind: input, shape index: {}]
  %s2 = inlined_call_operand.vmem [shape: f32[1,128], index: 2, kind: input, shape index: {}]
  %s3 = inlined_call_operand.vmem [shape: bf16[4,8,128], index: 3, kind: output, shape index: {}]
  %s4 = sld [smem:[#allocation0]]
  $region45: #{_lambda_.22} parent=0
    _
  %s6 = ssub.s32 1, %s4
  %s7 = scalar_select 0, %s6, %s4
  loop: start=0, step=1, limit=6
  $region2: #{_lambda_.22} parent=0 // loop_pre_header
    _
  $region3: #{_lambda_.22} parent=0 // loop_header
    %s9 = sphi 0, %s13
    %p10 = scmp.ge.s32.totalorder %s9, 6
    %s16 = sphi 0, %s28
    %s17 = sphi 0, %s24
    %s18 = sphi 0, %s16
    %s19 = sphi 0, %s17
    %s20 = sphi 0, %s18
    %s21 = sphi 0, %s19
    %s33 = sphi 0, %s35
    %s36 = sphi 0, %s33
    %s37 = sphi 0, %s36
    %s53 = sphi 0, %s37
    %s59 = sphi 0, %s61
    %s62 = sphi 0, %s59
    %s63 = sphi 0, %s62
    %s79 = sphi 0, %s63
    %s83 = sphi 0, %s83
    %s85 = sphi 0, %s83
    %s86 = sphi 0, %s85
    %s100 = sphi 0, %s86
    %s108 = sphi 0, %s110
    %s111 = sphi 0, %s108
    %s112 = sphi 0, %s111
    %s128 = sphi 0, %s112
  $region4: #{_lambda_.22} parent=0 // loop_header_branch
    %12 = sbr.rel (%p10) target = $region8
  $region5: #{_lambda_.22} parent=0 // loop_body
    %s14 = ssub.s32 %s9, 1
    %s15 = ssub.s32 %s9, 2
    %s22 = sadd.s32 1, %s17
    %p23 = scmp.ge.s32.totalorder %s22, 1
    %s24 = scalar_select %p23, 0, %s22
    %s25 = sadd.s32 1, %s16
    %s26 = scalar_select %p23, %s25, %s16
    %p27 = scmp.ge.s32.totalorder %s26, 4
    %s28 = scalar_select %p27, 0, %s26
    %s29 = ssub.s32 %s16, %s28
    %s30 = ssub.s32 %s17, %s24
    %s31 = sor.u32 %s29, %s30
    %p32 = scmp.eq.s32.totalorder %s31, 0
    %s34 = sadd.s32 %s33, 1
    %s35 = scalar_select %p32, %s33, %s34
    %p38 = pneg %p32
    %p39 = scmp.eq.s32.totalorder %s9, 3
    %p40 = por %p38, %p39
    %p41 = scmp.ne.s32.totalorder %s33, %s36
    %p42 = scmp.eq.s32.totalorder %s9, 0
    %p43 = por %p41, %p42
    %p44 = scmp.ne.s32.totalorder %s33, %s36
    %p45 = scmp.eq.s32.totalorder %s14, 3
    %p46 = por %p44, %p45
    %p47 = scmp.ne.s32.totalorder %s36, %s37
    %p48 = scmp.eq.s32.totalorder %s14, 0
    %p49 = por %p47, %p48
    %p50 = scmp.ne.s32.totalorder %s36, %s37
    %p51 = scmp.eq.s32.totalorder %s15, 3
    %p52 = por %p50, %p51
    %p54 = scmp.ne.s32.totalorder %s37, %s53
    %p55 = scmp.eq.s32.totalorder %s15, 0
    %p56 = por %p54, %p55
    %s57 = ssub.s32 %s16, %s28
    %p58 = scmp.eq.s32.totalorder %s57, 0
    %s60 = sadd.s32 %s59, 1
    %s61 = scalar_select %p58, %s59, %s60
    %p64 = pneg %p58
    %p65 = scmp.eq.s32.totalorder %s9, 3
    %p66 = por %p64, %p65
    %p67 = scmp.ne.s32.totalorder %s59, %s62
    %p68 = scmp.eq.s32.totalorder %s9, 0
    %p69 = por %p67, %p68
    %p70 = scmp.ne.s32.totalorder %s59, %s62
    %p71 = scmp.eq.s32.totalorder %s14, 3
    %p72 = por %p70, %p71
    %p73 = scmp.ne.s32.totalorder %s62, %s63
    %p74 = scmp.eq.s32.totalorder %s14, 0
    %p75 = por %p73, %p74
    %p76 = scmp.ne.s32.totalorder %s62, %s63
    %p77 = scmp.eq.s32.totalorder %s15, 3
    %p78 = por %p76, %p77
    %p80 = scmp.ne.s32.totalorder %s63, %s79
    %p81 = scmp.eq.s32.totalorder %s15, 0
    %p82 = por %p80, %p81
    %s84 = sadd.s32 %s83, 1
    %p87 = scmp.eq.s32.totalorder %s9, 3
    %p88 = scmp.ne.s32.totalorder %s83, %s85
    %p89 = scmp.eq.s32.totalorder %s9, 0
    %p90 = por %p88, %p89
    %p91 = scmp.ne.s32.totalorder %s83, %s85
    %p92 = scmp.eq.s32.totalorder %s14, 3
    %p93 = por %p91, %p92
    %p94 = scmp.ne.s32.totalorder %s85, %s86
    %p95 = scmp.eq.s32.totalorder %s14, 0
    %p96 = por %p94, %p95
    %p97 = scmp.ne.s32.totalorder %s85, %s86
    %p98 = scmp.eq.s32.totalorder %s15, 3
    %p99 = por %p97, %p98
    %p101 = scmp.ne.s32.totalorder %s86, %s100
    %p102 = scmp.eq.s32.totalorder %s15, 0
    %p103 = por %p101, %p102
    %s104 = ssub.s32 %s16, %s28
    %s105 = ssub.s32 %s17, %s24
    %s106 = sor.u32 %s104, %s105
    %p107 = scmp.eq.s32.totalorder %s106, 0
    %s109 = sadd.s32 %s108, 1
    %s110 = scalar_select %p107, %s108, %s109
    %p113 = pneg %p107
    %p114 = scmp.eq.s32.totalorder %s9, 3
    %p115 = por %p113, %p114
    %p116 = scmp.ne.s32.totalorder %s108, %s111
    %p117 = scmp.eq.s32.totalorder %s9, 0
    %p118 = por %p116, %p117
    %p119 = scmp.ne.s32.totalorder %s108, %s111
    %p120 = scmp.eq.s32.totalorder %s14, 3
    %p121 = por %p119, %p120
    %p122 = scmp.ne.s32.totalorder %s111, %s112
    %p123 = scmp.eq.s32.totalorder %s14, 0
    %p124 = por %p122, %p123
    %p125 = scmp.ne.s32.totalorder %s111, %s112
    %p126 = scmp.eq.s32.totalorder %s15, 3
    %p127 = por %p125, %p126
    %p129 = scmp.ne.s32.totalorder %s112, %s128
    %p130 = scmp.eq.s32.totalorder %s15, 0
    %p131 = por %p129, %p130
    %p132 = scmp.le.s32.totalorder 1, %s9
    %p133 = scmp.lt.s32.totalorder %s9, 5
    %p134 = pnand %p132, %p133
    %p135 = pneg %p134
    // Predicated region
    $region9: #{_lambda_.22} parent=5 // pred_check
      _
    $region10: #{_lambda_.22} parent=5 // pred_check_branch
      %137 = sbr.rel (%p134) target = $region12
    $region11: #{_lambda_.22} parent=5 // pred_region
      %s138 = ssub.s32 %s9, 1
      // Predicated region
      $region13: #{_lambda_.22} parent=11 // pred_check
        %p139 = pneg %p96
      $region14: #{_lambda_.22} parent=11 // pred_check_branch
        %141 = sbr.rel (%p139) target = $region16
      $region15: #{_lambda_.22} parent=11 // pred_region
        _
      $region16: #{_lambda_.22} parent=11 // pred_fallthru
        _
    $region12: #{_lambda_.22} parent=5 // pred_fallthru
      _
    %p142 = scmp.lt.s32.totalorder %s9, 4
    // Predicated region
    $region17: #{_lambda_.22} parent=5 // pred_check
      %p143 = pneg %p142
    $region18: #{_lambda_.22} parent=5 // pred_check_branch
      %145 = sbr.rel (%p143) target = $region20
    $region19: #{_lambda_.22} parent=5 // pred_region
      // Predicated region
      $region21: #{_lambda_.22} parent=19 // pred_check
        %p146 = pneg %p43
      $region22: #{_lambda_.22} parent=19 // pred_check_branch
        %148 = sbr.rel (%p146) target = $region24
      $region23: #{_lambda_.22} parent=19 // pred_region
        %p149 = scmp.lt.s32.totalorder %s16, 3
        %s150 = scalar_select %p149, %s16, 3
        %p151 = scmp.lt.s32.totalorder %s17, 0
        %s152 = scalar_select %p151, %s17, 0
        %s153 = smul.addr %s152, 4
        %s154 = smul.addr %s150, 4
        %s155 = sadd.s32 %s153, %s154
        %s156 = smul.addr %s155, 4
        %s157 = scalar_lea.vmem %s0, %s156
      $region24: #{_lambda_.22} parent=19 // pred_fallthru
        _
      // Predicated region
      $region25: #{_lambda_.22} parent=19 // pred_check
        %p158 = pneg %p69
      $region26: #{_lambda_.22} parent=19 // pred_check_branch
        %160 = sbr.rel (%p158) target = $region28
      $region27: #{_lambda_.22} parent=19 // pred_region
        %p161 = scmp.lt.s32.totalorder %s16, 3
        %s162 = scalar_select %p161, %s16, 3
        %s163 = smul.addr %s162, 64
        %s164 = smul.addr %s163, 4
        %s165 = scalar_lea.vmem %s1, %s164
      $region28: #{_lambda_.22} parent=19 // pred_fallthru
        _
    $region20: #{_lambda_.22} parent=5 // pred_fallthru
      _
    %p166 = scmp.le.s32.totalorder 1, %s9
    %p167 = scmp.lt.s32.totalorder %s9, 5
    %p168 = pnand %p166, %p167
    %p169 = pneg %p168
    // Predicated region
    $region29: #{_lambda_.22} parent=5 // pred_check
      _
    $region30: #{_lambda_.22} parent=5 // pred_check_branch
      %171 = sbr.rel (%p168) target = $region32
    $region31: #{_lambda_.22} parent=5 // pred_region
      %s172 = ssub.s32 %s9, 1
      %p173 = scmp.lt.s32.totalorder %s18, 3
      %s174 = scalar_select %p173, %s18, 3
      %p175 = scmp.lt.s32.totalorder %s19, 0
      %s176 = scalar_select %p175, %s19, 0
      %s177 = smul.addr %s176, 4
      %s178 = smul.addr %s174, 4
      %s179 = sadd.s32 %s177, %s178
      %s180 = smul.addr %s179, 4
      %s181 = scalar_lea.vmem %s0, %s180
      %p182 = pneg %p49
      %p183 = pneg %p46
      %p184 = scmp.lt.s32.totalorder %s18, 3
      %s185 = scalar_select %p184, %s18, 3
      %s186 = smul.addr %s185, 64
      %s187 = smul.addr %s186, 4
      %s188 = scalar_lea.vmem %s1, %s187
      %p189 = pneg %p75
      %p190 = pneg %p72
      %p191 = pneg %p96
      %p192 = pneg %p93
      %p193 = pneg %p124
      %p194 = pneg %p121
      %p195 = scmp.lt.s32.totalorder %s18, 3
      %s196 = scalar_select %p195, %s18, 3
      %p197 = scmp.lt.s32.totalorder %s19, 0
      %s198 = scalar_select %p197, %s19, 0
      %s199 = sadd.s32 %s198, %s196
      %s200 = smul.addr %s199, 4
      %s201 = scalar_lea.vmem %s3, %s200
      %p202 = scmp.lt.s32.totalorder %s18, 3
      %s203 = scalar_select %p202, %s18, 3
      %p204 = scmp.lt.s32.totalorder %s19, 0
      %s205 = scalar_select %p204, %s19, 0
      %s206 = smul.addr %s205, 4
      %s207 = smul.addr %s203, 4
      %s208 = sadd.s32 %s206, %s207
      %s209 = smul.addr %s208, 4
      %s210 = scalar_lea.vmem %s0, %s209
      %p211 = scmp.lt.s32.totalorder %s18, 3
      %s212 = scalar_select %p211, %s18, 3
      %s213 = smul.addr %s212, 64
      %s214 = smul.addr %s213, 4
      %s215 = scalar_lea.vmem %s1, %s214
      %p216 = scmp.lt.s32.totalorder %s18, 3
      %s217 = scalar_select %p216, %s18, 3
      %p218 = scmp.lt.s32.totalorder %s19, 0
      %s219 = scalar_select %p218, %s19, 0
      %s220 = sadd.s32 %s219, %s217
      %s221 = smul.addr %s220, 4
      %s222 = scalar_lea.vmem %s3, %s221
      %v223 = vld [vmem:[%s210] sm:$0xff]
      %v224 = vld [vmem:[%s210 + $0x8] sm:$0xff]
      %v225 = vld [vmem:[%s215] sm:$0xf]
      %v226 = vld [vmem:[%s215 + $0x4] sm:$0xf]
      %v227 = vld [vmem:[%s215 + $0x8] sm:$0xf]
      %v228 = vld [vmem:[%s215 + $0xc] sm:$0xf]
      %v229 = vld [vmem:[%s215 + $0x10] sm:$0xf]
      %v230 = vld [vmem:[%s215 + $0x14] sm:$0xf]
      %v231 = vld [vmem:[%s215 + $0x18] sm:$0xf]
      %v232 = vld [vmem:[%s215 + $0x1c] sm:$0xf]
      %v233 = vld [vmem:[%s215 + $0x20] sm:$0xf]
      %v234 = vld [vmem:[%s215 + $0x24] sm:$0xf]
      %v235 = vld [vmem:[%s215 + $0x28] sm:$0xf]
      %v236 = vld [vmem:[%s215 + $0x2c] sm:$0xf]
      %v237 = vld [vmem:[%s215 + $0x30] sm:$0xf]
      %v238 = vld [vmem:[%s215 + $0x34] sm:$0xf]
      %v239 = vld [vmem:[%s215 + $0x38] sm:$0xf]
      %v240 = vld [vmem:[%s215 + $0x3c] sm:$0xf]
      %v241 = vld [vmem:[%s215 + $0x40] sm:$0xf]
      %v242 = vld [vmem:[%s215 + $0x44] sm:$0xf]
      %v243 = vld [vmem:[%s215 + $0x48] sm:$0xf]
      %v244 = vld [vmem:[%s215 + $0x4c] sm:$0xf]
      %v245 = vld [vmem:[%s215 + $0x50] sm:$0xf]
      %v246 = vld [vmem:[%s215 + $0x54] sm:$0xf]
      %v247 = vld [vmem:[%s215 + $0x58] sm:$0xf]
      %v248 = vld [vmem:[%s215 + $0x5c] sm:$0xf]
      %v249 = vld [vmem:[%s215 + $0x60] sm:$0xf]
      %v250 = vld [vmem:[%s215 + $0x64] sm:$0xf]
      %v251 = vld [vmem:[%s215 + $0x68] sm:$0xf]
      %v252 = vld [vmem:[%s215 + $0x6c] sm:$0xf]
      %v253 = vld [vmem:[%s215 + $0x70] sm:$0xf]
      %v254 = vld [vmem:[%s215 + $0x74] sm:$0xf]
      %v255 = vld [vmem:[%s215 + $0x78] sm:$0xf]
      %v256 = vld [vmem:[%s215 + $0x7c] sm:$0xf]
      %v257 = vld [vmem:[%s215 + $0x80] sm:$0xf]
      %v258 = vld [vmem:[%s215 + $0x84] sm:$0xf]
      %v259 = vld [vmem:[%s215 + $0x88] sm:$0xf]
      %v260 = vld [vmem:[%s215 + $0x8c] sm:$0xf]
      %v261 = vld [vmem:[%s215 + $0x90] sm:$0xf]
      %v262 = vld [vmem:[%s215 + $0x94] sm:$0xf]
      %v263 = vld [vmem:[%s215 + $0x98] sm:$0xf]
      %v264 = vld [vmem:[%s215 + $0x9c] sm:$0xf]
      %v265 = vld [vmem:[%s215 + $0xa0] sm:$0xf]
      %v266 = vld [vmem:[%s215 + $0xa4] sm:$0xf]
      %v267 = vld [vmem:[%s215 + $0xa8] sm:$0xf]
      %v268 = vld [vmem:[%s215 + $0xac] sm:$0xf]
      %v269 = vld [vmem:[%s215 + $0xb0] sm:$0xf]
      %v270 = vld [vmem:[%s215 + $0xb4] sm:$0xf]
      %v271 = vld [vmem:[%s215 + $0xb8] sm:$0xf]
      %v272 = vld [vmem:[%s215 + $0xbc] sm:$0xf]
      %v273 = vld [vmem:[%s215 + $0xc0] sm:$0xf]
      %v274 = vld [vmem:[%s215 + $0xc4] sm:$0xf]
      %v275 = vld [vmem:[%s215 + $0xc8] sm:$0xf]
      %v276 = vld [vmem:[%s215 + $0xcc] sm:$0xf]
      %v277 = vld [vmem:[%s215 + $0xd0] sm:$0xf]
      %v278 = vld [vmem:[%s215 + $0xd4] sm:$0xf]
      %v279 = vld [vmem:[%s215 + $0xd8] sm:$0xf]
      %v280 = vld [vmem:[%s215 + $0xdc] sm:$0xf]
      %v281 = vld [vmem:[%s215 + $0xe0] sm:$0xf]
      %v282 = vld [vmem:[%s215 + $0xe4] sm:$0xf]
      %v283 = vld [vmem:[%s215 + $0xe8] sm:$0xf]
      %v284 = vld [vmem:[%s215 + $0xec] sm:$0xf]
      %v285 = vld [vmem:[%s215 + $0xf0] sm:$0xf]
      %v286 = vld [vmem:[%s215 + $0xf4] sm:$0xf]
      %v287 = vld [vmem:[%s215 + $0xf8] sm:$0xf]
      %v288 = vld [vmem:[%s215 + $0xfc] sm:$0xf]
      %v289 = vld [vmem:[%s2] sm:$0x1]
      %v291 = vperm.slane %v289, 0
      %v295 = vunpack.c.l.b16 %v223
      %v296 = vunpack.c.h.b16 %v223
      %v297 = vunpack.c.l.b16 %v224
      %v298 = vunpack.c.h.b16 %v224
      %v299 = vpack.c.b16 %v295, %v295
      %v300 = vpack.c.b16 %v296, %v296
      %v301 = vpack.c.b16 %v297, %v297
      %v302 = vpack.c.b16 %v298, %v298
      %v371 = vunpack.c.l.b16 %v225
      %v372 = vunpack.c.l.b16 %v226
      %v373 = vunpack.c.l.b16 %v227
      %v374 = vunpack.c.l.b16 %v228
      %v375 = vunpack.c.l.b16 %v229
      %v376 = vunpack.c.l.b16 %v230
      %v377 = vunpack.c.l.b16 %v231
      %v378 = vunpack.c.l.b16 %v232
      %v379 = vunpack.c.l.b16 %v233
      %v380 = vunpack.c.l.b16 %v234
      %v381 = vunpack.c.l.b16 %v235
      %v382 = vunpack.c.l.b16 %v236
      %v383 = vunpack.c.l.b16 %v237
      %v384 = vunpack.c.l.b16 %v238
      %v385 = vunpack.c.l.b16 %v239
      %v386 = vunpack.c.l.b16 %v240
      %v387 = vunpack.c.l.b16 %v241
      %v388 = vunpack.c.l.b16 %v242
      %v389 = vunpack.c.l.b16 %v243
      %v390 = vunpack.c.l.b16 %v244
      %v391 = vunpack.c.l.b16 %v245
      %v392 = vunpack.c.l.b16 %v246
      %v393 = vunpack.c.l.b16 %v247
      %v394 = vunpack.c.l.b16 %v248
      %v395 = vunpack.c.l.b16 %v249
      %v396 = vunpack.c.l.b16 %v250
      %v397 = vunpack.c.l.b16 %v251
      %v398 = vunpack.c.l.b16 %v252
      %v399 = vunpack.c.l.b16 %v253
      %v400 = vunpack.c.l.b16 %v254
      %v401 = vunpack.c.l.b16 %v255
      %v402 = vunpack.c.l.b16 %v256
      %v403 = vunpack.c.l.b16 %v257
      %v404 = vunpack.c.l.b16 %v258
      %v405 = vunpack.c.l.b16 %v259
      %v406 = vunpack.c.l.b16 %v260
      %v407 = vunpack.c.l.b16 %v261
      %v408 = vunpack.c.l.b16 %v262
      %v409 = vunpack.c.l.b16 %v263
      %v410 = vunpack.c.l.b16 %v264
      %v411 = vunpack.c.l.b16 %v265
      %v412 = vunpack.c.l.b16 %v266
      %v413 = vunpack.c.l.b16 %v267
      %v414 = vunpack.c.l.b16 %v268
      %v415 = vunpack.c.l.b16 %v269
      %v416 = vunpack.c.l.b16 %v270
      %v417 = vunpack.c.l.b16 %v271
      %v418 = vunpack.c.l.b16 %v272
      %v419 = vunpack.c.l.b16 %v273
      %v420 = vunpack.c.l.b16 %v274
      %v421 = vunpack.c.l.b16 %v275
      %v422 = vunpack.c.l.b16 %v276
      %v423 = vunpack.c.l.b16 %v277
      %v424 = vunpack.c.l.b16 %v278
      %v425 = vunpack.c.l.b16 %v279
      %v426 = vunpack.c.l.b16 %v280
      %v427 = vunpack.c.l.b16 %v281
      %v428 = vunpack.c.l.b16 %v282
      %v429 = vunpack.c.l.b16 %v283
      %v430 = vunpack.c.l.b16 %v284
      %v431 = vunpack.c.l.b16 %v285
      %v432 = vunpack.c.l.b16 %v286
      %v433 = vunpack.c.l.b16 %v287
      %v434 = vunpack.c.l.b16 %v288
      %v435 = vpack.c.b16 %v372, %v371
      %v436 = vpack.c.b16 %v374, %v373
      %v437 = vpack.c.b16 %v376, %v375
      %v438 = vpack.c.b16 %v378, %v377
      %v439 = vpack.c.b16 %v380, %v379
      %v440 = vpack.c.b16 %v382, %v381
      %v441 = vpack.c.b16 %v384, %v383
      %v442 = vpack.c.b16 %v386, %v385
      %v443 = vpack.c.b16 %v388, %v387
      %v444 = vpack.c.b16 %v390, %v389
      %v445 = vpack.c.b16 %v392, %v391
      %v446 = vpack.c.b16 %v394, %v393
      %v447 = vpack.c.b16 %v396, %v395
      %v448 = vpack.c.b16 %v398, %v397
      %v449 = vpack.c.b16 %v400, %v399
      %v450 = vpack.c.b16 %v402, %v401
      %v451 = vpack.c.b16 %v404, %v403
      %v452 = vpack.c.b16 %v406, %v405
      %v453 = vpack.c.b16 %v408, %v407
      %v454 = vpack.c.b16 %v410, %v409
      %v455 = vpack.c.b16 %v412, %v411
      %v456 = vpack.c.b16 %v414, %v413
      %v457 = vpack.c.b16 %v416, %v415
      %v458 = vpack.c.b16 %v418, %v417
      %v459 = vpack.c.b16 %v420, %v419
      %v460 = vpack.c.b16 %v422, %v421
      %v461 = vpack.c.b16 %v424, %v423
      %v462 = vpack.c.b16 %v426, %v425
      %v463 = vpack.c.b16 %v428, %v427
      %v464 = vpack.c.b16 %v430, %v429
      %v465 = vpack.c.b16 %v432, %v431
      %v466 = vpack.c.b16 %v434, %v433
      %499 = vmatpush.bf16.msra.mxu0 %v442
      %500 = vmatpush.bf16.msra.mxu0 %v441
      %501 = vmatpush.bf16.msra.mxu0 %v440
      %502 = vmatpush.bf16.msra.mxu0 %v439
      %503 = vmatpush.bf16.msra.mxu0 %v438
      %504 = vmatpush.bf16.msra.mxu0 %v437
      %505 = vmatpush.bf16.msra.mxu0 %v436
      %506 = vmatpush.bf16.msra.mxu0 %v435
      %507 = vmatmul.bf16.gmra.mxu0 %v299
      %v508 = vpop.f32.mrf.mxu0
      %v509 = vadd.f32 %v291, %v508
      %v510 = vpop.f32.mrf.mxu0
      %511 = vdwg.mxu0
      %512 = vmatpush.bf16.msra.mxu0 %v450
      %513 = vmatpush.bf16.msra.mxu0 %v449
      %514 = vmatpush.bf16.msra.mxu0 %v448
      %515 = vmatpush.bf16.msra.mxu0 %v447
      %516 = vmatpush.bf16.msra.mxu0 %v446
      %517 = vmatpush.bf16.msra.mxu0 %v445
      %518 = vmatpush.bf16.msra.mxu0 %v444
      %519 = vmatpush.bf16.msra.mxu0 %v443
      %520 = vmatmul.bf16.gmra.mxu0 %v300
      %v521 = vpop.f32.mrf.mxu0
      %v522 = vadd.f32 %v509, %v521
      %v523 = vpop.f32.mrf.mxu0
      %524 = vdwg.mxu0
      %525 = vmatpush.bf16.msra.mxu0 %v458
      %526 = vmatpush.bf16.msra.mxu0 %v457
      %527 = vmatpush.bf16.msra.mxu0 %v456
      %528 = vmatpush.bf16.msra.mxu0 %v455
      %529 = vmatpush.bf16.msra.mxu0 %v454
      %530 = vmatpush.bf16.msra.mxu0 %v453
      %531 = vmatpush.bf16.msra.mxu0 %v452
      %532 = vmatpush.bf16.msra.mxu0 %v451
      %533 = vmatmul.bf16.gmra.mxu0 %v301
      %v534 = vpop.f32.mrf.mxu0
      %v535 = vadd.f32 %v522, %v534
      %v536 = vpop.f32.mrf.mxu0
      %537 = vdwg.mxu0
      %538 = vmatpush.bf16.msra.mxu0 %v466
      %539 = vmatpush.bf16.msra.mxu0 %v465
      %540 = vmatpush.bf16.msra.mxu0 %v464
      %541 = vmatpush.bf16.msra.mxu0 %v463
      %542 = vmatpush.bf16.msra.mxu0 %v462
      %543 = vmatpush.bf16.msra.mxu0 %v461
      %544 = vmatpush.bf16.msra.mxu0 %v460
      %545 = vmatpush.bf16.msra.mxu0 %v459
      %546 = vmatmul.bf16.gmra.mxu0 %v302
      %v547 = vpop.f32.mrf.mxu0
      %v548 = vadd.f32 %v535, %v547
      %v549 = vpop.f32.mrf.mxu0
      %550 = vdwg.mxu0
      %v551 = vmax.f32 %v548, 0.0
      %v552 = vpack.c.bf16 %v551, %v551
      %553 = vst [vmem:[%s222] sm:$0xf] %v552
      %p554 = scmp.lt.s32.totalorder %s18, 3
      %s555 = scalar_select %p554, %s18, 3
      %p556 = scmp.lt.s32.totalorder %s19, 0
      %s557 = scalar_select %p556, %s19, 0
      %s558 = sadd.s32 %s557, %s555
      %s559 = smul.addr %s558, 4
      %s560 = scalar_lea.vmem %s3, %s559
      // Predicated region
      $region33: #{_lambda_.22} parent=31 // pred_check
        %p561 = pneg %p121
      $region34: #{_lambda_.22} parent=31 // pred_check_branch
        %563 = sbr.rel (%p561) target = $region36
      $region35: #{_lambda_.22} parent=31 // pred_region
        _
      $region36: #{_lambda_.22} parent=31 // pred_fallthru
        _
    $region32: #{_lambda_.22} parent=5 // pred_fallthru
      _
    %p564 = scmp.le.s32.totalorder 2, %s9
    // Predicated region
    $region37: #{_lambda_.22} parent=5 // pred_check
      %p565 = pneg %p564
    $region38: #{_lambda_.22} parent=5 // pred_check_branch
      %567 = sbr.rel (%p565) target = $region40
    $region39: #{_lambda_.22} parent=5 // pred_region
      %s568 = ssub.s32 %s9, 2
      // Predicated region
      $region41: #{_lambda_.22} parent=39 // pred_check
        %p569 = pneg %p127
      $region42: #{_lambda_.22} parent=39 // pred_check_branch
        %571 = sbr.rel (%p569) target = $region44
      $region43: #{_lambda_.22} parent=39 // pred_region
        %p572 = scmp.lt.s32.totalorder %s20, 3
        %s573 = scalar_select %p572, %s20, 3
        %p574 = scmp.lt.s32.totalorder %s21, 0
        %s575 = scalar_select %p574, %s21, 0
        %s576 = sadd.s32 %s575, %s573
        %s577 = smul.addr %s576, 4
        %s578 = scalar_lea.vmem %s3, %s577
      $region44: #{_lambda_.22} parent=39 // pred_fallthru
        _
    $region40: #{_lambda_.22} parent=5 // pred_fallthru
      _
  $region6: #{_lambda_.22} parent=0 // loop_footer
    %s13 = sadd.s32 1, %s9
  $region7: #{_lambda_.22} parent=0 // loop_footer_branch
    %8 = sbr.rel target = $region3
  $region8: #{_lambda_.22} parent=0 // loop_exit
    _

// kernel: _lambda_.23
$region0: #{_lambda_.23}
  #allocation0 [shape = 'u32[]', space=smem, size = 0x4, offset = 0x4, fixed_abs, tag = 'smem constant byte address 0x4 - core index']
  #allocation1 [shape = 'u32[72,128]{1,0:T(1,128)}', space=vmem, size = 0x9000, scoped, tag = 'internal scratch']
  %s0 = inlined_call_operand.vmem [shape: bf16[4,32,512], index: 0, kind: input, shape index: {}]
  %s1 = inlined_call_operand.vmem [shape: bf16[4,512,128], index: 1, kind: input, shape index: {}]
  %s2 = inlined_call_operand.vmem [shape: f32[1,128], index: 2, kind: input, shape index: {}]
  %s3 = inlined_call_operand.vmem [shape: bf16[4,32,128], index: 3, kind: output, shape index: {}]
  %s4 = sld [smem:[#allocation0]]
  $region45: #{_lambda_.23} parent=0
    _
  %s6 = ssub.s32 1, %s4
  %s7 = scalar_select 0, %s6, %s4
  loop: start=0, step=1, limit=6
  $region2: #{_lambda_.23} parent=0 // loop_pre_header
    _
  $region3: #{_lambda_.23} parent=0 // loop_header
    %s9 = sphi 0, %s13
    %p10 = scmp.ge.s32.totalorder %s9, 6
    %s16 = sphi 0, %s28
    %s17 = sphi 0, %s24
    %s18 = sphi 0, %s16
    %s19 = sphi 0, %s17
    %s20 = sphi 0, %s18
    %s21 = sphi 0, %s19
    %s33 = sphi 0, %s35
    %s36 = sphi 0, %s33
    %s37 = sphi 0, %s36
    %s53 = sphi 0, %s37
    %s59 = sphi 0, %s61
    %s62 = sphi 0, %s59
    %s63 = sphi 0, %s62
    %s79 = sphi 0, %s63
    %s83 = sphi 0, %s83
    %s85 = sphi 0, %s83
    %s86 = sphi 0, %s85
    %s100 = sphi 0, %s86
    %s108 = sphi 0, %s110
    %s111 = sphi 0, %s108
    %s112 = sphi 0, %s111
    %s128 = sphi 0, %s112
  $region4: #{_lambda_.23} parent=0 // loop_header_branch
    %12 = sbr.rel (%p10) target = $region8
  $region5: #{_lambda_.23} parent=0 // loop_body
    %s14 = ssub.s32 %s9, 1
    %s15 = ssub.s32 %s9, 2
    %s22 = sadd.s32 1, %s17
    %p23 = scmp.ge.s32.totalorder %s22, 1
    %s24 = scalar_select %p23, 0, %s22
    %s25 = sadd.s32 1, %s16
    %s26 = scalar_select %p23, %s25, %s16
    %p27 = scmp.ge.s32.totalorder %s26, 4
    %s28 = scalar_select %p27, 0, %s26
    %s29 = ssub.s32 %s16, %s28
    %s30 = ssub.s32 %s17, %s24
    %s31 = sor.u32 %s29, %s30
    %p32 = scmp.eq.s32.totalorder %s31, 0
    %s34 = sadd.s32 %s33, 1
    %s35 = scalar_select %p32, %s33, %s34
    %p38 = pneg %p32
    %p39 = scmp.eq.s32.totalorder %s9, 3
    %p40 = por %p38, %p39
    %p41 = scmp.ne.s32.totalorder %s33, %s36
    %p42 = scmp.eq.s32.totalorder %s9, 0
    %p43 = por %p41, %p42
    %p44 = scmp.ne.s32.totalorder %s33, %s36
    %p45 = scmp.eq.s32.totalorder %s14, 3
    %p46 = por %p44, %p45
    %p47 = scmp.ne.s32.totalorder %s36, %s37
    %p48 = scmp.eq.s32.totalorder %s14, 0
    %p49 = por %p47, %p48
    %p50 = scmp.ne.s32.totalorder %s36, %s37
    %p51 = scmp.eq.s32.totalorder %s15, 3
    %p52 = por %p50, %p51
    %p54 = scmp.ne.s32.totalorder %s37, %s53
    %p55 = scmp.eq.s32.totalorder %s15, 0
    %p56 = por %p54, %p55
    %s57 = ssub.s32 %s16, %s28
    %p58 = scmp.eq.s32.totalorder %s57, 0
    %s60 = sadd.s32 %s59, 1
    %s61 = scalar_select %p58, %s59, %s60
    %p64 = pneg %p58
    %p65 = scmp.eq.s32.totalorder %s9, 3
    %p66 = por %p64, %p65
    %p67 = scmp.ne.s32.totalorder %s59, %s62
    %p68 = scmp.eq.s32.totalorder %s9, 0
    %p69 = por %p67, %p68
    %p70 = scmp.ne.s32.totalorder %s59, %s62
    %p71 = scmp.eq.s32.totalorder %s14, 3
    %p72 = por %p70, %p71
    %p73 = scmp.ne.s32.totalorder %s62, %s63
    %p74 = scmp.eq.s32.totalorder %s14, 0
    %p75 = por %p73, %p74
    %p76 = scmp.ne.s32.totalorder %s62, %s63
    %p77 = scmp.eq.s32.totalorder %s15, 3
    %p78 = por %p76, %p77
    %p80 = scmp.ne.s32.totalorder %s63, %s79
    %p81 = scmp.eq.s32.totalorder %s15, 0
    %p82 = por %p80, %p81
    %s84 = sadd.s32 %s83, 1
    %p87 = scmp.eq.s32.totalorder %s9, 3
    %p88 = scmp.ne.s32.totalorder %s83, %s85
    %p89 = scmp.eq.s32.totalorder %s9, 0
    %p90 = por %p88, %p89
    %p91 = scmp.ne.s32.totalorder %s83, %s85
    %p92 = scmp.eq.s32.totalorder %s14, 3
    %p93 = por %p91, %p92
    %p94 = scmp.ne.s32.totalorder %s85, %s86
    %p95 = scmp.eq.s32.totalorder %s14, 0
    %p96 = por %p94, %p95
    %p97 = scmp.ne.s32.totalorder %s85, %s86
    %p98 = scmp.eq.s32.totalorder %s15, 3
    %p99 = por %p97, %p98
    %p101 = scmp.ne.s32.totalorder %s86, %s100
    %p102 = scmp.eq.s32.totalorder %s15, 0
    %p103 = por %p101, %p102
    %s104 = ssub.s32 %s16, %s28
    %s105 = ssub.s32 %s17, %s24
    %s106 = sor.u32 %s104, %s105
    %p107 = scmp.eq.s32.totalorder %s106, 0
    %s109 = sadd.s32 %s108, 1
    %s110 = scalar_select %p107, %s108, %s109
    %p113 = pneg %p107
    %p114 = scmp.eq.s32.totalorder %s9, 3
    %p115 = por %p113, %p114
    %p116 = scmp.ne.s32.totalorder %s108, %s111
    %p117 = scmp.eq.s32.totalorder %s9, 0
    %p118 = por %p116, %p117
    %p119 = scmp.ne.s32.totalorder %s108, %s111
    %p120 = scmp.eq.s32.totalorder %s14, 3
    %p121 = por %p119, %p120
    %p122 = scmp.ne.s32.totalorder %s111, %s112
    %p123 = scmp.eq.s32.totalorder %s14, 0
    %p124 = por %p122, %p123
    %p125 = scmp.ne.s32.totalorder %s111, %s112
    %p126 = scmp.eq.s32.totalorder %s15, 3
    %p127 = por %p125, %p126
    %p129 = scmp.ne.s32.totalorder %s112, %s128
    %p130 = scmp.eq.s32.totalorder %s15, 0
    %p131 = por %p129, %p130
    %p132 = scmp.le.s32.totalorder 1, %s9
    %p133 = scmp.lt.s32.totalorder %s9, 5
    %p134 = pnand %p132, %p133
    %p135 = pneg %p134
    // Predicated region
    $region9: #{_lambda_.23} parent=5 // pred_check
      _
    $region10: #{_lambda_.23} parent=5 // pred_check_branch
      %137 = sbr.rel (%p134) target = $region12
    $region11: #{_lambda_.23} parent=5 // pred_region
      %s138 = ssub.s32 %s9, 1
      // Predicated region
      $region13: #{_lambda_.23} parent=11 // pred_check
        %p139 = pneg %p96
      $region14: #{_lambda_.23} parent=11 // pred_check_branch
        %141 = sbr.rel (%p139) target = $region16
      $region15: #{_lambda_.23} parent=11 // pred_region
        _
      $region16: #{_lambda_.23} parent=11 // pred_fallthru
        _
    $region12: #{_lambda_.23} parent=5 // pred_fallthru
      _
    %p142 = scmp.lt.s32.totalorder %s9, 4
    // Predicated region
    $region17: #{_lambda_.23} parent=5 // pred_check
      %p143 = pneg %p142
    $region18: #{_lambda_.23} parent=5 // pred_check_branch
      %145 = sbr.rel (%p143) target = $region20
    $region19: #{_lambda_.23} parent=5 // pred_region
      // Predicated region
      $region21: #{_lambda_.23} parent=19 // pred_check
        %p146 = pneg %p43
      $region22: #{_lambda_.23} parent=19 // pred_check_branch
        %148 = sbr.rel (%p146) target = $region24
      $region23: #{_lambda_.23} parent=19 // pred_region
        %s149 = smul.u32 4, %s17
        %p150 = scmp.lt.s32.totalorder %s16, 3
        %s151 = scalar_select %p150, %s16, 3
        %p152 = scmp.lt.s32.totalorder %s149, 3
        %s153 = scalar_select %p152, %s149, 3
        %s154 = smul.addr %s153, 4
        %s155 = smul.addr %s151, 16
        %s156 = sadd.s32 %s154, %s155
        %s157 = smul.addr %s156, 4
        %s158 = scalar_lea.vmem %s0, %s157
        %s159 = smul.u32 4, %s17
      $region24: #{_lambda_.23} parent=19 // pred_fallthru
        _
      // Predicated region
      $region25: #{_lambda_.23} parent=19 // pred_check
        %p160 = pneg %p69
      $region26: #{_lambda_.23} parent=19 // pred_check_branch
        %162 = sbr.rel (%p160) target = $region28
      $region27: #{_lambda_.23} parent=19 // pred_region
        %p163 = scmp.lt.s32.totalorder %s16, 3
        %s164 = scalar_select %p163, %s16, 3
        %s165 = smul.addr %s164, 64
        %s166 = smul.addr %s165, 4
        %s167 = scalar_lea.vmem %s1, %s166
      $region28: #{_lambda_.23} parent=19 // pred_fallthru
        _
    $region20: #{_lambda_.23} parent=5 // pred_fallthru
      _
    %p168 = scmp.le.s32.totalorder 1, %s9
    %p169 = scmp.lt.s32.totalorder %s9, 5
    %p170 = pnand %p168, %p169
    %p171 = pneg %p170
    // Predicated region
    $region29: #{_lambda_.23} parent=5 // pred_check
      _
    $region30: #{_lambda_.23} parent=5 // pred_check_branch
      %173 = sbr.rel (%p170) target = $region32
    $region31: #{_lambda_.23} parent=5 // pred_region
      %s174 = ssub.s32 %s9, 1
      %s175 = smul.u32 4, %s19
      %p176 = scmp.lt.s32.totalorder %s18, 3
      %s177 = scalar_select %p176, %s18, 3
      %p178 = scmp.lt.s32.totalorder %s175, 3
      %s179 = scalar_select %p178, %s175, 3
      %s180 = smul.addr %s179, 4
      %s181 = smul.addr %s177, 16
      %s182 = sadd.s32 %s180, %s181
      %s183 = smul.addr %s182, 4
      %s184 = scalar_lea.vmem %s0, %s183
      %p185 = pneg %p49
      %p186 = pneg %p46
      %p187 = scmp.lt.s32.totalorder %s18, 3
      %s188 = scalar_select %p187, %s18, 3
      %s189 = smul.addr %s188, 64
      %s190 = smul.addr %s189, 4
      %s191 = scalar_lea.vmem %s1, %s190
      %p192 = pneg %p75
      %p193 = pneg %p72
      %p194 = pneg %p96
      %p195 = pneg %p93
      %p196 = pneg %p124
      %p197 = pneg %p121
      %s198 = smul.u32 4, %s19
      %p199 = scmp.lt.s32.totalorder %s18, 3
      %s200 = scalar_select %p199, %s18, 3
      %p201 = scmp.lt.s32.totalorder %s198, 3
      %s202 = scalar_select %p201, %s198, 3
      %s203 = smul.addr %s200, 4
      %s204 = sadd.s32 %s202, %s203
      %s205 = smul.addr %s204, 4
      %s206 = scalar_lea.vmem %s3, %s205
      %s207 = smul.u32 4, %s19
      %p208 = scmp.lt.s32.totalorder %s18, 3
      %s209 = scalar_select %p208, %s18, 3
      %p210 = scmp.lt.s32.totalorder %s207, 3
      %s211 = scalar_select %p210, %s207, 3
      %s212 = smul.addr %s211, 4
      %s213 = smul.addr %s209, 16
      %s214 = sadd.s32 %s212, %s213
      %s215 = smul.addr %s214, 4
      %s216 = scalar_lea.vmem %s0, %s215
      %s217 = smul.u32 4, %s19
      %p218 = scmp.lt.s32.totalorder %s18, 3
      %s219 = scalar_select %p218, %s18, 3
      %s220 = smul.addr %s219, 64
      %s221 = smul.addr %s220, 4
      %s222 = scalar_lea.vmem %s1, %s221
      %s223 = smul.u32 4, %s19
      %p224 = scmp.lt.s32.totalorder %s18, 3
      %s225 = scalar_select %p224, %s18, 3
      %p226 = scmp.lt.s32.totalorder %s223, 3
      %s227 = scalar_select %p226, %s223, 3
      %s228 = smul.addr %s225, 4
      %s229 = sadd.s32 %s227, %s228
      %s230 = smul.addr %s229, 4
      %s231 = scalar_lea.vmem %s3, %s230
      %s232 = smul.u32 4, %s19
      %v233 = vld [vmem:[%s216] sm:$0xff]
      %v234 = vld [vmem:[%s216 + $0x8] sm:$0xff]
      %v235 = vld [vmem:[%s216 + $0x10] sm:$0xff]
      %v236 = vld [vmem:[%s216 + $0x18] sm:$0xff]
      %v237 = vld [vmem:[%s216 + $0x20] sm:$0xff]
      %v238 = vld [vmem:[%s216 + $0x28] sm:$0xff]
      %v239 = vld [vmem:[%s216 + $0x30] sm:$0xff]
      %v240 = vld [vmem:[%s216 + $0x38] sm:$0xff]
      %v241 = vld [vmem:[%s222] sm:$0xf]
      %v242 = vld [vmem:[%s222 + $0x4] sm:$0xf]
      %v243 = vld [vmem:[%s222 + $0x8] sm:$0xf]
      %v244 = vld [vmem:[%s222 + $0xc] sm:$0xf]
      %v245 = vld [vmem:[%s222 + $0x10] sm:$0xf]
      %v246 = vld [vmem:[%s222 + $0x14] sm:$0xf]
      %v247 = vld [vmem:[%s222 + $0x18] sm:$0xf]
      %v248 = vld [vmem:[%s222 + $0x1c] sm:$0xf]
      %v249 = vld [vmem:[%s222 + $0x20] sm:$0xf]
      %v250 = vld [vmem:[%s222 + $0x24] sm:$0xf]
      %v251 = vld [vmem:[%s222 + $0x28] sm:$0xf]
      %v252 = vld [vmem:[%s222 + $0x2c] sm:$0xf]
      %v253 = vld [vmem:[%s222 + $0x30] sm:$0xf]
      %v254 = vld [vmem:[%s222 + $0x34] sm:$0xf]
      %v255 = vld [vmem:[%s222 + $0x38] sm:$0xf]
      %v256 = vld [vmem:[%s222 + $0x3c] sm:$0xf]
      %v257 = vld [vmem:[%s222 + $0x40] sm:$0xf]
      %v258 = vld [vmem:[%s222 + $0x44] sm:$0xf]
      %v259 = vld [vmem:[%s222 + $0x48] sm:$0xf]
      %v260 = vld [vmem:[%s222 + $0x4c] sm:$0xf]
      %v261 = vld [vmem:[%s222 + $0x50] sm:$0xf]
      %v262 = vld [vmem:[%s222 + $0x54] sm:$0xf]
      %v263 = vld [vmem:[%s222 + $0x58] sm:$0xf]
      %v264 = vld [vmem:[%s222 + $0x5c] sm:$0xf]
      %v265 = vld [vmem:[%s222 + $0x60] sm:$0xf]
      %v266 = vld [vmem:[%s222 + $0x64] sm:$0xf]
      %v267 = vld [vmem:[%s222 + $0x68] sm:$0xf]
      %v268 = vld [vmem:[%s222 + $0x6c] sm:$0xf]
      %v269 = vld [vmem:[%s222 + $0x70] sm:$0xf]
      %v270 = vld [vmem:[%s222 + $0x74] sm:$0xf]
      %v271 = vld [vmem:[%s222 + $0x78] sm:$0xf]
      %v272 = vld [vmem:[%s222 + $0x7c] sm:$0xf]
      %v273 = vld [vmem:[%s222 + $0x80] sm:$0xf]
      %v274 = vld [vmem:[%s222 + $0x84] sm:$0xf]
      %v275 = vld [vmem:[%s222 + $0x88] sm:$0xf]
      %v276 = vld [vmem:[%s222 + $0x8c] sm:$0xf]
      %v277 = vld [vmem:[%s222 + $0x90] sm:$0xf]
      %v278 = vld [vmem:[%s222 + $0x94] sm:$0xf]
      %v279 = vld [vmem:[%s222 + $0x98] sm:$0xf]
      %v280 = vld [vmem:[%s222 + $0x9c] sm:$0xf]
      %v281 = vld [vmem:[%s222 + $0xa0] sm:$0xf]
      %v282 = vld [vmem:[%s222 + $0xa4] sm:$0xf]
      %v283 = vld [vmem:[%s222 + $0xa8] sm:$0xf]
      %v284 = vld [vmem:[%s222 + $0xac] sm:$0xf]
      %v285 = vld [vmem:[%s222 + $0xb0] sm:$0xf]
      %v286 = vld [vmem:[%s222 + $0xb4] sm:$0xf]
      %v287 = vld [vmem:[%s222 + $0xb8] sm:$0xf]
      %v288 = vld [vmem:[%s222 + $0xbc] sm:$0xf]
      %v289 = vld [vmem:[%s222 + $0xc0] sm:$0xf]
      %v290 = vld [vmem:[%s222 + $0xc4] sm:$0xf]
      %v291 = vld [vmem:[%s222 + $0xc8] sm:$0xf]
      %v292 = vld [vmem:[%s222 + $0xcc] sm:$0xf]
      %v293 = vld [vmem:[%s222 + $0xd0] sm:$0xf]
      %v294 = vld [vmem:[%s222 + $0xd4] sm:$0xf]
      %v295 = vld [vmem:[%s222 + $0xd8] sm:$0xf]
      %v296 = vld [vmem:[%s222 + $0xdc] sm:$0xf]
      %v297 = vld [vmem:[%s222 + $0xe0] sm:$0xf]
      %v298 = vld [vmem:[%s222 + $0xe4] sm:$0xf]
      %v299 = vld [vmem:[%s222 + $0xe8] sm:$0xf]
      %v300 = vld [vmem:[%s222 + $0xec] sm:$0xf]
      %v301 = vld [vmem:[%s222 + $0xf0] sm:$0xf]
      %v302 = vld [vmem:[%s222 + $0xf4] sm:$0xf]
      %v303 = vld [vmem:[%s222 + $0xf8] sm:$0xf]
      %v304 = vld [vmem:[%s222 + $0xfc] sm:$0xf]
      %v305 = vld [vmem:[%s2] sm:$0x1]
      %v307 = vperm.slane %v305, 0
      %v317 = vunpack.c.l.b16 %v233
      %v318 = vunpack.c.h.b16 %v233
      %v319 = vunpack.c.l.b16 %v234
      %v320 = vunpack.c.h.b16 %v234
      %v321 = vunpack.c.l.b16 %v235
      %v322 = vunpack.c.h.b16 %v235
      %v323 = vunpack.c.l.b16 %v236
      %v324 = vunpack.c.h.b16 %v236
      %v325 = vunpack.c.l.b16 %v237
      %v326 = vunpack.c.h.b16 %v237
      %v327 = vunpack.c.l.b16 %v238
      %v328 = vunpack.c.h.b16 %v238
      %v329 = vunpack.c.l.b16 %v239
      %v330 = vunpack.c.h.b16 %v239
      %v331 = vunpack.c.l.b16 %v240
      %v332 = vunpack.c.h.b16 %v240
      %v333 = vpack.c.b16 %v321, %v317
      %v334 = vpack.c.b16 %v322, %v318
      %v335 = vpack.c.b16 %v323, %v319
      %v336 = vpack.c.b16 %v324, %v320
      %v337 = vpack.c.b16 %v329, %v325
      %v338 = vpack.c.b16 %v330, %v326
      %v339 = vpack.c.b16 %v331, %v327
      %v340 = vpack.c.b16 %v332, %v328
      %v413 = vunpack.c.l.b16 %v241
      %v414 = vunpack.c.l.b16 %v242
      %v415 = vunpack.c.l.b16 %v243
      %v416 = vunpack.c.l.b16 %v244
      %v417 = vunpack.c.l.b16 %v245
      %v418 = vunpack.c.l.b16 %v246
      %v419 = vunpack.c.l.b16 %v247
      %v420 = vunpack.c.l.b16 %v248
      %v421 = vunpack.c.l.b16 %v249
      %v422 = vunpack.c.l.b16 %v250
      %v423 = vunpack.c.l.b16 %v251
      %v424 = vunpack.c.l.b16 %v252
      %v425 = vunpack.c.l.b16 %v253
      %v426 = vunpack.c.l.b16 %v254
      %v427 = vunpack.c.l.b16 %v255
      %v428 = vunpack.c.l.b16 %v256
      %v429 = vunpack.c.l.b16 %v257
      %v430 = vunpack.c.l.b16 %v258
      %v431 = vunpack.c.l.b16 %v259
      %v432 = vunpack.c.l.b16 %v260
      %v433 = vunpack.c.l.b16 %v261
      %v434 = vunpack.c.l.b16 %v262
      %v435 = vunpack.c.l.b16 %v263
      %v436 = vunpack.c.l.b16 %v264
      %v437 = vunpack.c.l.b16 %v265
      %v438 = vunpack.c.l.b16 %v266
      %v439 = vunpack.c.l.b16 %v267
      %v440 = vunpack.c.l.b16 %v268
      %v441 = vunpack.c.l.b16 %v269
      %v442 = vunpack.c.l.b16 %v270
      %v443 = vunpack.c.l.b16 %v271
      %v444 = vunpack.c.l.b16 %v272
      %v445 = vunpack.c.l.b16 %v273
      %v446 = vunpack.c.l.b16 %v274
      %v447 = vunpack.c.l.b16 %v275
      %v448 = vunpack.c.l.b16 %v276
      %v449 = vunpack.c.l.b16 %v277
      %v450 = vunpack.c.l.b16 %v278
      %v451 = vunpack.c.l.b16 %v279
      %v452 = vunpack.c.l.b16 %v280
      %v453 = vunpack.c.l.b16 %v281
      %v454 = vunpack.c.l.b16 %v282
      %v455 = vunpack.c.l.b16 %v283
      %v456 = vunpack.c.l.b16 %v284
      %v457 = vunpack.c.l.b16 %v285
      %v458 = vunpack.c.l.b16 %v286
      %v459 = vunpack.c.l.b16 %v287
      %v460 = vunpack.c.l.b16 %v288
      %v461 = vunpack.c.l.b16 %v289
      %v462 = vunpack.c.l.b16 %v290
      %v463 = vunpack.c.l.b16 %v291
      %v464 = vunpack.c.l.b16 %v292
      %v465 = vunpack.c.l.b16 %v293
      %v466 = vunpack.c.l.b16 %v294
      %v467 = vunpack.c.l.b16 %v295
      %v468 = vunpack.c.l.b16 %v296
      %v469 = vunpack.c.l.b16 %v297
      %v470 = vunpack.c.l.b16 %v298
      %v471 = vunpack.c.l.b16 %v299
      %v472 = vunpack.c.l.b16 %v300
      %v473 = vunpack.c.l.b16 %v301
      %v474 = vunpack.c.l.b16 %v302
      %v475 = vunpack.c.l.b16 %v303
      %v476 = vunpack.c.l.b16 %v304
      %v477 = vpack.c.b16 %v414, %v413
      %v478 = vpack.c.b16 %v416, %v415
      %v479 = vpack.c.b16 %v418, %v417
      %v480 = vpack.c.b16 %v420, %v419
      %v481 = vpack.c.b16 %v422, %v421
      %v482 = vpack.c.b16 %v424, %v423
      %v483 = vpack.c.b16 %v426, %v425
      %v484 = vpack.c.b16 %v428, %v427
      %v485 = vpack.c.b16 %v430, %v429
      %v486 = vpack.c.b16 %v432, %v431
      %v487 = vpack.c.b16 %v434, %v433
      %v488 = vpack.c.b16 %v436, %v435
      %v489 = vpack.c.b16 %v438, %v437
      %v490 = vpack.c.b16 %v440, %v439
      %v491 = vpack.c.b16 %v442, %v441
      %v492 = vpack.c.b16 %v444, %v443
      %v493 = vpack.c.b16 %v446, %v445
      %v494 = vpack.c.b16 %v448, %v447
      %v495 = vpack.c.b16 %v450, %v449
      %v496 = vpack.c.b16 %v452, %v451
      %v497 = vpack.c.b16 %v454, %v453
      %v498 = vpack.c.b16 %v456, %v455
      %v499 = vpack.c.b16 %v458, %v457
      %v500 = vpack.c.b16 %v460, %v459
      %v501 = vpack.c.b16 %v462, %v461
      %v502 = vpack.c.b16 %v464, %v463
      %v503 = vpack.c.b16 %v466, %v465
      %v504 = vpack.c.b16 %v468, %v467
      %v505 = vpack.c.b16 %v470, %v469
      %v506 = vpack.c.b16 %v472, %v471
      %v507 = vpack.c.b16 %v474, %v473
      %v508 = vpack.c.b16 %v476, %v475
      %541 = vmatpush.bf16.msra.mxu0 %v484
      %542 = vmatpush.bf16.msra.mxu0 %v483
      %543 = vmatpush.bf16.msra.mxu0 %v482
      %544 = vmatpush.bf16.msra.mxu0 %v481
      %545 = vmatpush.bf16.msra.mxu0 %v480
      %546 = vmatpush.bf16.msra.mxu0 %v479
      %547 = vmatpush.bf16.msra.mxu0 %v478
      %548 = vmatpush.bf16.msra.mxu0 %v477
      %549 = vmatmul.bf16.gmra.mxu0 %v333
      %v550 = vpop.f32.mrf.mxu0
      %v551 = vadd.f32 %v307, %v550
      %v552 = vpop.f32.mrf.mxu0
      %v553 = vadd.f32 %v307, %v552
      %554 = vmatmul.bf16.gmra.mxu0 %v337
      %v555 = vpop.f32.mrf.mxu0
      %v556 = vadd.f32 %v307, %v555
      %v557 = vpop.f32.mrf.mxu0
      %v558 = vadd.f32 %v307, %v557
      %559 = vdwg.mxu0
      %560 = vmatpush.bf16.msra.mxu0 %v492
      %561 = vmatpush.bf16.msra.mxu0 %v491
      %562 = vmatpush.bf16.msra.mxu0 %v490
      %563 = vmatpush.bf16.msra.mxu0 %v489
      %564 = vmatpush.bf16.msra.mxu0 %v488
      %565 = vmatpush.bf16.msra.mxu0 %v487
      %566 = vmatpush.bf16.msra.mxu0 %v486
      %567 = vmatpush.bf16.msra.mxu0 %v485
      %568 = vmatmul.bf16.gmra.mxu0 %v334
      %v569 = vpop.f32.mrf.mxu0
      %v570 = vadd.f32 %v551, %v569
      %v571 = vpop.f32.mrf.mxu0
      %v572 = vadd.f32 %v553, %v571
      %573 = vmatmul.bf16.gmra.mxu0 %v338
      %v574 = vpop.f32.mrf.mxu0
      %v575 = vadd.f32 %v556, %v574
      %v576 = vpop.f32.mrf.mxu0
      %v577 = vadd.f32 %v558, %v576
      %578 = vdwg.mxu0
      %579 = vmatpush.bf16.msra.mxu0 %v500
      %580 = vmatpush.bf16.msra.mxu0 %v499
      %581 = vmatpush.bf16.msra.mxu0 %v498
      %582 = vmatpush.bf16.msra.mxu0 %v497
      %583 = vmatpush.bf16.msra.mxu0 %v496
      %584 = vmatpush.bf16.msra.mxu0 %v495
      %585 = vmatpush.bf16.msra.mxu0 %v494
      %586 = vmatpush.bf16.msra.mxu0 %v493
      %587 = vmatmul.bf16.gmra.mxu0 %v335
      %v588 = vpop.f32.mrf.mxu0
      %v589 = vadd.f32 %v570, %v588
      %v590 = vpop.f32.mrf.mxu0
      %v591 = vadd.f32 %v572, %v590
      %592 = vmatmul.bf16.gmra.mxu0 %v339
      %v593 = vpop.f32.mrf.mxu0
      %v594 = vadd.f32 %v575, %v593
      %v595 = vpop.f32.mrf.mxu0
      %v596 = vadd.f32 %v577, %v595
      %597 = vdwg.mxu0
      %598 = vmatpush.bf16.msra.mxu0 %v508
      %599 = vmatpush.bf16.msra.mxu0 %v507
      %600 = vmatpush.bf16.msra.mxu0 %v506
      %601 = vmatpush.bf16.msra.mxu0 %v505
      %602 = vmatpush.bf16.msra.mxu0 %v504
      %603 = vmatpush.bf16.msra.mxu0 %v503
      %604 = vmatpush.bf16.msra.mxu0 %v502
      %605 = vmatpush.bf16.msra.mxu0 %v501
      %606 = vmatmul.bf16.gmra.mxu0 %v336
      %v607 = vpop.f32.mrf.mxu0
      %v608 = vadd.f32 %v589, %v607
      %v609 = vpop.f32.mrf.mxu0
      %v610 = vadd.f32 %v591, %v609
      %611 = vmatmul.bf16.gmra.mxu0 %v340
      %v612 = vpop.f32.mrf.mxu0
      %v613 = vadd.f32 %v594, %v612
      %v614 = vpop.f32.mrf.mxu0
      %v615 = vadd.f32 %v596, %v614
      %616 = vdwg.mxu0
      %v617 = vmax.f32 %v608, 0.0
      %v618 = vmax.f32 %v610, 0.0
      %v619 = vmax.f32 %v613, 0.0
      %v620 = vmax.f32 %v615, 0.0
      %v621 = vpack.c.bf16 %v617, %v617
      %v622 = vpack.c.bf16 %v618, %v618
      %v623 = vpack.c.bf16 %v619, %v619
      %v624 = vpack.c.bf16 %v620, %v620
      %625 = vst [vmem:[%s231] sm:$0xf] %v621
      %626 = vst [vmem:[%s231 + $0x4] sm:$0xf] %v622
      %627 = vst [vmem:[%s231 + $0x8] sm:$0xf] %v623
      %628 = vst [vmem:[%s231 + $0xc] sm:$0xf] %v624
      %s629 = smul.u32 4, %s19
      %p630 = scmp.lt.s32.totalorder %s18, 3
      %s631 = scalar_select %p630, %s18, 3
      %p632 = scmp.lt.s32.totalorder %s629, 3
      %s633 = scalar_select %p632, %s629, 3
      %s634 = smul.addr %s631, 4
      %s635 = sadd.s32 %s633, %s634
      %s636 = smul.addr %s635, 4
      %s637 = scalar_lea.vmem %s3, %s636
      // Predicated region
      $region33: #{_lambda_.23} parent=31 // pred_check
        %p638 = pneg %p121
      $region34: #{_lambda_.23} parent=31 // pred_check_branch
        %640 = sbr.rel (%p638) target = $region36
      $region35: #{_lambda_.23} parent=31 // pred_region
        %s641 = smul.u32 4, %s19
      $region36: #{_lambda_.23} parent=31 // pred_fallthru
        _
    $region32: #{_lambda_.23} parent=5 // pred_fallthru
      _
    %p642 = scmp.le.s32.totalorder 2, %s9
    // Predicated region
    $region37: #{_lambda_.23} parent=5 // pred_check
      %p643 = pneg %p642
    $region38: #{_lambda_.23} parent=5 // pred_check_branch
      %645 = sbr.rel (%p643) target = $region40
    $region39: #{_lambda_.23} parent=5 // pred_region
      %s646 = ssub.s32 %s9, 2
      // Predicated region
      $region41: #{_lambda_.23} parent=39 // pred_check
        %p647 = pneg %p127
      $region42: #{_lambda_.23} parent=39 // pred_check_branch
        %649 = sbr.rel (%p647) target = $region44
      $region43: #{_lambda_.23} parent=39 // pred_region
        %s650 = smul.u32 4, %s21
        %p651 = scmp.lt.s32.totalorder %s20, 3
        %s652 = scalar_select %p651, %s20, 3
        %p653 = scmp.lt.s32.totalorder %s650, 3
        %s654 = scalar_select %p653, %s650, 3
        %s655 = smul.addr %s652, 4
        %s656 = sadd.s32 %s654, %s655
        %s657 = smul.addr %s656, 4
        %s658 = scalar_lea.vmem %s3, %s657
      $region44: #{_lambda_.23} parent=39 // pred_fallthru
        _
    $region40: #{_lambda_.23} parent=5 // pred_fallthru
      _
  $region6: #{_lambda_.23} parent=0 // loop_footer
    %s13 = sadd.s32 1, %s9
  $region7: #{_lambda_.23} parent=0 // loop_footer_branch
    %8 = sbr.rel target = $region3
  $region8: #{_lambda_.23} parent=0 // loop_exit
    _

// kernel: _lambda_.24
$region0: #{_lambda_.24}
  #allocation0 [shape = 'u32[]', space=smem, size = 0x4, offset = 0x4, fixed_abs, tag = 'smem constant byte address 0x4 - core index']
  #allocation1 [shape = 'u32[72,128]{1,0:T(1,128)}', space=vmem, size = 0x9000, scoped, tag = 'internal scratch']
  %s0 = inlined_call_operand.vmem [shape: bf16[4,128,512], index: 0, kind: input, shape index: {}]
  %s1 = inlined_call_operand.vmem [shape: bf16[4,512,128], index: 1, kind: input, shape index: {}]
  %s2 = inlined_call_operand.vmem [shape: f32[1,128], index: 2, kind: input, shape index: {}]
  %s3 = inlined_call_operand.vmem [shape: bf16[4,128,128], index: 3, kind: output, shape index: {}]
  %s4 = sld [smem:[#allocation0]]
  $region45: #{_lambda_.24} parent=0
    _
  %s6 = ssub.s32 1, %s4
  %s7 = scalar_select 0, %s6, %s4
  loop: start=0, step=1, limit=6
  $region2: #{_lambda_.24} parent=0 // loop_pre_header
    _
  $region3: #{_lambda_.24} parent=0 // loop_header
    %s9 = sphi 0, %s13
    %p10 = scmp.ge.s32.totalorder %s9, 6
    %s16 = sphi 0, %s28
    %s17 = sphi 0, %s24
    %s18 = sphi 0, %s16
    %s19 = sphi 0, %s17
    %s20 = sphi 0, %s18
    %s21 = sphi 0, %s19
    %s33 = sphi 0, %s35
    %s36 = sphi 0, %s33
    %s37 = sphi 0, %s36
    %s53 = sphi 0, %s37
    %s59 = sphi 0, %s61
    %s62 = sphi 0, %s59
    %s63 = sphi 0, %s62
    %s79 = sphi 0, %s63
    %s83 = sphi 0, %s83
    %s85 = sphi 0, %s83
    %s86 = sphi 0, %s85
    %s100 = sphi 0, %s86
    %s108 = sphi 0, %s110
    %s111 = sphi 0, %s108
    %s112 = sphi 0, %s111
    %s128 = sphi 0, %s112
  $region4: #{_lambda_.24} parent=0 // loop_header_branch
    %12 = sbr.rel (%p10) target = $region8
  $region5: #{_lambda_.24} parent=0 // loop_body
    %s14 = ssub.s32 %s9, 1
    %s15 = ssub.s32 %s9, 2
    %s22 = sadd.s32 1, %s17
    %p23 = scmp.ge.s32.totalorder %s22, 1
    %s24 = scalar_select %p23, 0, %s22
    %s25 = sadd.s32 1, %s16
    %s26 = scalar_select %p23, %s25, %s16
    %p27 = scmp.ge.s32.totalorder %s26, 4
    %s28 = scalar_select %p27, 0, %s26
    %s29 = ssub.s32 %s16, %s28
    %s30 = ssub.s32 %s17, %s24
    %s31 = sor.u32 %s29, %s30
    %p32 = scmp.eq.s32.totalorder %s31, 0
    %s34 = sadd.s32 %s33, 1
    %s35 = scalar_select %p32, %s33, %s34
    %p38 = pneg %p32
    %p39 = scmp.eq.s32.totalorder %s9, 3
    %p40 = por %p38, %p39
    %p41 = scmp.ne.s32.totalorder %s33, %s36
    %p42 = scmp.eq.s32.totalorder %s9, 0
    %p43 = por %p41, %p42
    %p44 = scmp.ne.s32.totalorder %s33, %s36
    %p45 = scmp.eq.s32.totalorder %s14, 3
    %p46 = por %p44, %p45
    %p47 = scmp.ne.s32.totalorder %s36, %s37
    %p48 = scmp.eq.s32.totalorder %s14, 0
    %p49 = por %p47, %p48
    %p50 = scmp.ne.s32.totalorder %s36, %s37
    %p51 = scmp.eq.s32.totalorder %s15, 3
    %p52 = por %p50, %p51
    %p54 = scmp.ne.s32.totalorder %s37, %s53
    %p55 = scmp.eq.s32.totalorder %s15, 0
    %p56 = por %p54, %p55
    %s57 = ssub.s32 %s16, %s28
    %p58 = scmp.eq.s32.totalorder %s57, 0
    %s60 = sadd.s32 %s59, 1
    %s61 = scalar_select %p58, %s59, %s60
    %p64 = pneg %p58
    %p65 = scmp.eq.s32.totalorder %s9, 3
    %p66 = por %p64, %p65
    %p67 = scmp.ne.s32.totalorder %s59, %s62
    %p68 = scmp.eq.s32.totalorder %s9, 0
    %p69 = por %p67, %p68
    %p70 = scmp.ne.s32.totalorder %s59, %s62
    %p71 = scmp.eq.s32.totalorder %s14, 3
    %p72 = por %p70, %p71
    %p73 = scmp.ne.s32.totalorder %s62, %s63
    %p74 = scmp.eq.s32.totalorder %s14, 0
    %p75 = por %p73, %p74
    %p76 = scmp.ne.s32.totalorder %s62, %s63
    %p77 = scmp.eq.s32.totalorder %s15, 3
    %p78 = por %p76, %p77
    %p80 = scmp.ne.s32.totalorder %s63, %s79
    %p81 = scmp.eq.s32.totalorder %s15, 0
    %p82 = por %p80, %p81
    %s84 = sadd.s32 %s83, 1
    %p87 = scmp.eq.s32.totalorder %s9, 3
    %p88 = scmp.ne.s32.totalorder %s83, %s85
    %p89 = scmp.eq.s32.totalorder %s9, 0
    %p90 = por %p88, %p89
    %p91 = scmp.ne.s32.totalorder %s83, %s85
    %p92 = scmp.eq.s32.totalorder %s14, 3
    %p93 = por %p91, %p92
    %p94 = scmp.ne.s32.totalorder %s85, %s86
    %p95 = scmp.eq.s32.totalorder %s14, 0
    %p96 = por %p94, %p95
    %p97 = scmp.ne.s32.totalorder %s85, %s86
    %p98 = scmp.eq.s32.totalorder %s15, 3
    %p99 = por %p97, %p98
    %p101 = scmp.ne.s32.totalorder %s86, %s100
    %p102 = scmp.eq.s32.totalorder %s15, 0
    %p103 = por %p101, %p102
    %s104 = ssub.s32 %s16, %s28
    %s105 = ssub.s32 %s17, %s24
    %s106 = sor.u32 %s104, %s105
    %p107 = scmp.eq.s32.totalorder %s106, 0
    %s109 = sadd.s32 %s108, 1
    %s110 = scalar_select %p107, %s108, %s109
    %p113 = pneg %p107
    %p114 = scmp.eq.s32.totalorder %s9, 3
    %p115 = por %p113, %p114
    %p116 = scmp.ne.s32.totalorder %s108, %s111
    %p117 = scmp.eq.s32.totalorder %s9, 0
    %p118 = por %p116, %p117
    %p119 = scmp.ne.s32.totalorder %s108, %s111
    %p120 = scmp.eq.s32.totalorder %s14, 3
    %p121 = por %p119, %p120
    %p122 = scmp.ne.s32.totalorder %s111, %s112
    %p123 = scmp.eq.s32.totalorder %s14, 0
    %p124 = por %p122, %p123
    %p125 = scmp.ne.s32.totalorder %s111, %s112
    %p126 = scmp.eq.s32.totalorder %s15, 3
    %p127 = por %p125, %p126
    %p129 = scmp.ne.s32.totalorder %s112, %s128
    %p130 = scmp.eq.s32.totalorder %s15, 0
    %p131 = por %p129, %p130
    %p132 = scmp.le.s32.totalorder 1, %s9
    %p133 = scmp.lt.s32.totalorder %s9, 5
    %p134 = pnand %p132, %p133
    %p135 = pneg %p134
    // Predicated region
    $region9: #{_lambda_.24} parent=5 // pred_check
      _
    $region10: #{_lambda_.24} parent=5 // pred_check_branch
      %137 = sbr.rel (%p134) target = $region12
    $region11: #{_lambda_.24} parent=5 // pred_region
      %s138 = ssub.s32 %s9, 1
      // Predicated region
      $region13: #{_lambda_.24} parent=11 // pred_check
        %p139 = pneg %p96
      $region14: #{_lambda_.24} parent=11 // pred_check_branch
        %141 = sbr.rel (%p139) target = $region16
      $region15: #{_lambda_.24} parent=11 // pred_region
        _
      $region16: #{_lambda_.24} parent=11 // pred_fallthru
        _
    $region12: #{_lambda_.24} parent=5 // pred_fallthru
      _
    %p142 = scmp.lt.s32.totalorder %s9, 4
    // Predicated region
    $region17: #{_lambda_.24} parent=5 // pred_check
      %p143 = pneg %p142
    $region18: #{_lambda_.24} parent=5 // pred_check_branch
      %145 = sbr.rel (%p143) target = $region20
    $region19: #{_lambda_.24} parent=5 // pred_region
      // Predicated region
      $region21: #{_lambda_.24} parent=19 // pred_check
        %p146 = pneg %p43
      $region22: #{_lambda_.24} parent=19 // pred_check_branch
        %148 = sbr.rel (%p146) target = $region24
      $region23: #{_lambda_.24} parent=19 // pred_region
        %s149 = smul.u32 16, %s17
        %p150 = scmp.lt.s32.totalorder %s16, 3
        %s151 = scalar_select %p150, %s16, 3
        %p152 = scmp.lt.s32.totalorder %s149, 15
        %s153 = scalar_select %p152, %s149, 15
        %s154 = smul.addr %s153, 4
        %s155 = smul.addr %s151, 64
        %s156 = sadd.s32 %s154, %s155
        %s157 = smul.addr %s156, 4
        %s158 = scalar_lea.vmem %s0, %s157
        %s159 = smul.u32 16, %s17
      $region24: #{_lambda_.24} parent=19 // pred_fallthru
        _
      // Predicated region
      $region25: #{_lambda_.24} parent=19 // pred_check
        %p160 = pneg %p69
      $region26: #{_lambda_.24} parent=19 // pred_check_branch
        %162 = sbr.rel (%p160) target = $region28
      $region27: #{_lambda_.24} parent=19 // pred_region
        %p163 = scmp.lt.s32.totalorder %s16, 3
        %s164 = scalar_select %p163, %s16, 3
        %s165 = smul.addr %s164, 64
        %s166 = smul.addr %s165, 4
        %s167 = scalar_lea.vmem %s1, %s166
      $region28: #{_lambda_.24} parent=19 // pred_fallthru
        _
    $region20: #{_lambda_.24} parent=5 // pred_fallthru
      _
    %p168 = scmp.le.s32.totalorder 1, %s9
    %p169 = scmp.lt.s32.totalorder %s9, 5
    %p170 = pnand %p168, %p169
    %p171 = pneg %p170
    // Predicated region
    $region29: #{_lambda_.24} parent=5 // pred_check
      _
    $region30: #{_lambda_.24} parent=5 // pred_check_branch
      %173 = sbr.rel (%p170) target = $region32
    $region31: #{_lambda_.24} parent=5 // pred_region
      %s174 = ssub.s32 %s9, 1
      %s175 = smul.u32 16, %s19
      %p176 = scmp.lt.s32.totalorder %s18, 3
      %s177 = scalar_select %p176, %s18, 3
      %p178 = scmp.lt.s32.totalorder %s175, 15
      %s179 = scalar_select %p178, %s175, 15
      %s180 = smul.addr %s179, 4
      %s181 = smul.addr %s177, 64
      %s182 = sadd.s32 %s180, %s181
      %s183 = smul.addr %s182, 4
      %s184 = scalar_lea.vmem %s0, %s183
      %p185 = pneg %p49
      %p186 = pneg %p46
      %p187 = scmp.lt.s32.totalorder %s18, 3
      %s188 = scalar_select %p187, %s18, 3
      %s189 = smul.addr %s188, 64
      %s190 = smul.addr %s189, 4
      %s191 = scalar_lea.vmem %s1, %s190
      %p192 = pneg %p75
      %p193 = pneg %p72
      %p194 = pneg %p96
      %p195 = pneg %p93
      %p196 = pneg %p124
      %p197 = pneg %p121
      %s198 = smul.u32 16, %s19
      %p199 = scmp.lt.s32.totalorder %s18, 3
      %s200 = scalar_select %p199, %s18, 3
      %p201 = scmp.lt.s32.totalorder %s198, 15
      %s202 = scalar_select %p201, %s198, 15
      %s203 = smul.addr %s200, 16
      %s204 = sadd.s32 %s202, %s203
      %s205 = smul.addr %s204, 4
      %s206 = scalar_lea.vmem %s3, %s205
      %s207 = smul.u32 16, %s19
      %p208 = scmp.lt.s32.totalorder %s18, 3
      %s209 = scalar_select %p208, %s18, 3
      %p210 = scmp.lt.s32.totalorder %s207, 15
      %s211 = scalar_select %p210, %s207, 15
      %s212 = smul.addr %s211, 4
      %s213 = smul.addr %s209, 64
      %s214 = sadd.s32 %s212, %s213
      %s215 = smul.addr %s214, 4
      %s216 = scalar_lea.vmem %s0, %s215
      %s217 = smul.u32 16, %s19
      %p218 = scmp.lt.s32.totalorder %s18, 3
      %s219 = scalar_select %p218, %s18, 3
      %s220 = smul.addr %s219, 64
      %s221 = smul.addr %s220, 4
      %s222 = scalar_lea.vmem %s1, %s221
      %s223 = smul.u32 16, %s19
      %p224 = scmp.lt.s32.totalorder %s18, 3
      %s225 = scalar_select %p224, %s18, 3
      %p226 = scmp.lt.s32.totalorder %s223, 15
      %s227 = scalar_select %p226, %s223, 15
      %s228 = smul.addr %s225, 16
      %s229 = sadd.s32 %s227, %s228
      %s230 = smul.addr %s229, 4
      %s231 = scalar_lea.vmem %s3, %s230
      %s232 = smul.u32 16, %s19
      %v233 = vld [vmem:[%s216] sm:$0xff]
      %v234 = vld [vmem:[%s216 + $0x8] sm:$0xff]
      %v235 = vld [vmem:[%s216 + $0x10] sm:$0xff]
      %v236 = vld [vmem:[%s216 + $0x18] sm:$0xff]
      %v237 = vld [vmem:[%s216 + $0x20] sm:$0xff]
      %v238 = vld [vmem:[%s216 + $0x28] sm:$0xff]
      %v239 = vld [vmem:[%s216 + $0x30] sm:$0xff]
      %v240 = vld [vmem:[%s216 + $0x38] sm:$0xff]
      %v241 = vld [vmem:[%s216 + $0x40] sm:$0xff]
      %v242 = vld [vmem:[%s216 + $0x48] sm:$0xff]
      %v243 = vld [vmem:[%s216 + $0x50] sm:$0xff]
      %v244 = vld [vmem:[%s216 + $0x58] sm:$0xff]
      %v245 = vld [vmem:[%s216 + $0x60] sm:$0xff]
      %v246 = vld [vmem:[%s216 + $0x68] sm:$0xff]
      %v247 = vld [vmem:[%s216 + $0x70] sm:$0xff]
      %v248 = vld [vmem:[%s216 + $0x78] sm:$0xff]
      %v249 = vld [vmem:[%s216 + $0x80] sm:$0xff]
      %v250 = vld [vmem:[%s216 + $0x88] sm:$0xff]
      %v251 = vld [vmem:[%s216 + $0x90] sm:$0xff]
      %v252 = vld [vmem:[%s216 + $0x98] sm:$0xff]
      %v253 = vld [vmem:[%s216 + $0xa0] sm:$0xff]
      %v254 = vld [vmem:[%s216 + $0xa8] sm:$0xff]
      %v255 = vld [vmem:[%s216 + $0xb0] sm:$0xff]
      %v256 = vld [vmem:[%s216 + $0xb8] sm:$0xff]
      %v257 = vld [vmem:[%s216 + $0xc0] sm:$0xff]
      %v258 = vld [vmem:[%s216 + $0xc8] sm:$0xff]
      %v259 = vld [vmem:[%s216 + $0xd0] sm:$0xff]
      %v260 = vld [vmem:[%s216 + $0xd8] sm:$0xff]
      %v261 = vld [vmem:[%s216 + $0xe0] sm:$0xff]
      %v262 = vld [vmem:[%s216 + $0xe8] sm:$0xff]
      %v263 = vld [vmem:[%s216 + $0xf0] sm:$0xff]
      %v264 = vld [vmem:[%s216 + $0xf8] sm:$0xff]
      %v265 = vld [vmem:[%s222] sm:$0xf]
      %v266 = vld [vmem:[%s222 + $0x4] sm:$0xf]
      %v267 = vld [vmem:[%s222 + $0x8] sm:$0xf]
      %v268 = vld [vmem:[%s222 + $0xc] sm:$0xf]
      %v269 = vld [vmem:[%s222 + $0x10] sm:$0xf]
      %v270 = vld [vmem:[%s222 + $0x14] sm:$0xf]
      %v271 = vld [vmem:[%s222 + $0x18] sm:$0xf]
      %v272 = vld [vmem:[%s222 + $0x1c] sm:$0xf]
      %v273 = vld [vmem:[%s222 + $0x20] sm:$0xf]
      %v274 = vld [vmem:[%s222 + $0x24] sm:$0xf]
      %v275 = vld [vmem:[%s222 + $0x28] sm:$0xf]
      %v276 = vld [vmem:[%s222 + $0x2c] sm:$0xf]
      %v277 = vld [vmem:[%s222 + $0x30] sm:$0xf]
      %v278 = vld [vmem:[%s222 + $0x34] sm:$0xf]
      %v279 = vld [vmem:[%s222 + $0x38] sm:$0xf]
      %v280 = vld [vmem:[%s222 + $0x3c] sm:$0xf]
      %v281 = vld [vmem:[%s222 + $0x40] sm:$0xf]
      %v282 = vld [vmem:[%s222 + $0x44] sm:$0xf]
      %v283 = vld [vmem:[%s222 + $0x48] sm:$0xf]
      %v284 = vld [vmem:[%s222 + $0x4c] sm:$0xf]
      %v285 = vld [vmem:[%s222 + $0x50] sm:$0xf]
      %v286 = vld [vmem:[%s222 + $0x54] sm:$0xf]
      %v287 = vld [vmem:[%s222 + $0x58] sm:$0xf]
      %v288 = vld [vmem:[%s222 + $0x5c] sm:$0xf]
      %v289 = vld [vmem:[%s222 + $0x60] sm:$0xf]
      %v290 = vld [vmem:[%s222 + $0x64] sm:$0xf]
      %v291 = vld [vmem:[%s222 + $0x68] sm:$0xf]
      %v292 = vld [vmem:[%s222 + $0x6c] sm:$0xf]
      %v293 = vld [vmem:[%s222 + $0x70] sm:$0xf]
      %v294 = vld [vmem:[%s222 + $0x74] sm:$0xf]
      %v295 = vld [vmem:[%s222 + $0x78] sm:$0xf]
      %v296 = vld [vmem:[%s222 + $0x7c] sm:$0xf]
      %v297 = vld [vmem:[%s222 + $0x80] sm:$0xf]
      %v298 = vld [vmem:[%s222 + $0x84] sm:$0xf]
      %v299 = vld [vmem:[%s222 + $0x88] sm:$0xf]
      %v300 = vld [vmem:[%s222 + $0x8c] sm:$0xf]
      %v301 = vld [vmem:[%s222 + $0x90] sm:$0xf]
      %v302 = vld [vmem:[%s222 + $0x94] sm:$0xf]
      %v303 = vld [vmem:[%s222 + $0x98] sm:$0xf]
      %v304 = vld [vmem:[%s222 + $0x9c] sm:$0xf]
      %v305 = vld [vmem:[%s222 + $0xa0] sm:$0xf]
      %v306 = vld [vmem:[%s222 + $0xa4] sm:$0xf]
      %v307 = vld [vmem:[%s222 + $0xa8] sm:$0xf]
      %v308 = vld [vmem:[%s222 + $0xac] sm:$0xf]
      %v309 = vld [vmem:[%s222 + $0xb0] sm:$0xf]
      %v310 = vld [vmem:[%s222 + $0xb4] sm:$0xf]
      %v311 = vld [vmem:[%s222 + $0xb8] sm:$0xf]
      %v312 = vld [vmem:[%s222 + $0xbc] sm:$0xf]
      %v313 = vld [vmem:[%s222 + $0xc0] sm:$0xf]
      %v314 = vld [vmem:[%s222 + $0xc4] sm:$0xf]
      %v315 = vld [vmem:[%s222 + $0xc8] sm:$0xf]
      %v316 = vld [vmem:[%s222 + $0xcc] sm:$0xf]
      %v317 = vld [vmem:[%s222 + $0xd0] sm:$0xf]
      %v318 = vld [vmem:[%s222 + $0xd4] sm:$0xf]
      %v319 = vld [vmem:[%s222 + $0xd8] sm:$0xf]
      %v320 = vld [vmem:[%s222 + $0xdc] sm:$0xf]
      %v321 = vld [vmem:[%s222 + $0xe0] sm:$0xf]
      %v322 = vld [vmem:[%s222 + $0xe4] sm:$0xf]
      %v323 = vld [vmem:[%s222 + $0xe8] sm:$0xf]
      %v324 = vld [vmem:[%s222 + $0xec] sm:$0xf]
      %v325 = vld [vmem:[%s222 + $0xf0] sm:$0xf]
      %v326 = vld [vmem:[%s222 + $0xf4] sm:$0xf]
      %v327 = vld [vmem:[%s222 + $0xf8] sm:$0xf]
      %v328 = vld [vmem:[%s222 + $0xfc] sm:$0xf]
      %v329 = vld [vmem:[%s2] sm:$0x1]
      %v331 = vperm.slane %v329, 0
      %v365 = vunpack.c.l.b16 %v233
      %v366 = vunpack.c.h.b16 %v233
      %v367 = vunpack.c.l.b16 %v234
      %v368 = vunpack.c.h.b16 %v234
      %v369 = vunpack.c.l.b16 %v235
      %v370 = vunpack.c.h.b16 %v235
      %v371 = vunpack.c.l.b16 %v236
      %v372 = vunpack.c.h.b16 %v236
      %v373 = vunpack.c.l.b16 %v237
      %v374 = vunpack.c.h.b16 %v237
      %v375 = vunpack.c.l.b16 %v238
      %v376 = vunpack.c.h.b16 %v238
      %v377 = vunpack.c.l.b16 %v239
      %v378 = vunpack.c.h.b16 %v239
      %v379 = vunpack.c.l.b16 %v240
      %v380 = vunpack.c.h.b16 %v240
      %v381 = vunpack.c.l.b16 %v241
      %v382 = vunpack.c.h.b16 %v241
      %v383 = vunpack.c.l.b16 %v242
      %v384 = vunpack.c.h.b16 %v242
      %v385 = vunpack.c.l.b16 %v243
      %v386 = vunpack.c.h.b16 %v243
      %v387 = vunpack.c.l.b16 %v244
      %v388 = vunpack.c.h.b16 %v244
      %v389 = vunpack.c.l.b16 %v245
      %v390 = vunpack.c.h.b16 %v245
      %v391 = vunpack.c.l.b16 %v246
      %v392 = vunpack.c.h.b16 %v246
      %v393 = vunpack.c.l.b16 %v247
      %v394 = vunpack.c.h.b16 %v247
      %v395 = vunpack.c.l.b16 %v248
      %v396 = vunpack.c.h.b16 %v248
      %v397 = vunpack.c.l.b16 %v249
      %v398 = vunpack.c.h.b16 %v249
      %v399 = vunpack.c.l.b16 %v250
      %v400 = vunpack.c.h.b16 %v250
      %v401 = vunpack.c.l.b16 %v251
      %v402 = vunpack.c.h.b16 %v251
      %v403 = vunpack.c.l.b16 %v252
      %v404 = vunpack.c.h.b16 %v252
      %v405 = vunpack.c.l.b16 %v253
      %v406 = vunpack.c.h.b16 %v253
      %v407 = vunpack.c.l.b16 %v254
      %v408 = vunpack.c.h.b16 %v254
      %v409 = vunpack.c.l.b16 %v255
      %v410 = vunpack.c.h.b16 %v255
      %v411 = vunpack.c.l.b16 %v256
      %v412 = vunpack.c.h.b16 %v256
      %v413 = vunpack.c.l.b16 %v257
      %v414 = vunpack.c.h.b16 %v257
      %v415 = vunpack.c.l.b16 %v258
      %v416 = vunpack.c.h.b16 %v258
      %v417 = vunpack.c.l.b16 %v259
      %v418 = vunpack.c.h.b16 %v259
      %v419 = vunpack.c.l.b16 %v260
      %v420 = vunpack.c.h.b16 %v260
      %v421 = vunpack.c.l.b16 %v261
      %v422 = vunpack.c.h.b16 %v261
      %v423 = vunpack.c.l.b16 %v262
      %v424 = vunpack.c.h.b16 %v262
      %v425 = vunpack.c.l.b16 %v263
      %v426 = vunpack.c.h.b16 %v263
      %v427 = vunpack.c.l.b16 %v264
      %v428 = vunpack.c.h.b16 %v264
      %v429 = vpack.c.b16 %v369, %v365
      %v430 = vpack.c.b16 %v370, %v366
      %v431 = vpack.c.b16 %v371, %v367
      %v432 = vpack.c.b16 %v372, %v368
      %v433 = vpack.c.b16 %v377, %v373
      %v434 = vpack.c.b16 %v378, %v374
      %v435 = vpack.c.b16 %v379, %v375
      %v436 = vpack.c.b16 %v380, %v376
      %v437 = vpack.c.b16 %v385, %v381
      %v438 = vpack.c.b16 %v386, %v382
      %v439 = vpack.c.b16 %v387, %v383
      %v440 = vpack.c.b16 %v388, %v384
      %v441 = vpack.c.b16 %v393, %v389
      %v442 = vpack.c.b16 %v394, %v390
      %v443 = vpack.c.b16 %v395, %v391
      %v444 = vpack.c.b16 %v396, %v392
      %v445 = vpack.c.b16 %v401, %v397
      %v446 = vpack.c.b16 %v402, %v398
      %v447 = vpack.c.b16 %v403, %v399
      %v448 = vpack.c.b16 %v404, %v400
      %v449 = vpack.c.b16 %v409, %v405
      %v450 = vpack.c.b16 %v410, %v406
      %v451 = vpack.c.b16 %v411, %v407
      %v452 = vpack.c.b16 %v412, %v408
      %v453 = vpack.c.b16 %v417, %v413
      %v454 = vpack.c.b16 %v418, %v414
      %v455 = vpack.c.b16 %v419, %v415
      %v456 = vpack.c.b16 %v420, %v416
      %v457 = vpack.c.b16 %v425, %v421
      %v458 = vpack.c.b16 %v426, %v422
      %v459 = vpack.c.b16 %v427, %v423
      %v460 = vpack.c.b16 %v428, %v424
      %v557 = vunpack.c.l.b16 %v265
      %v558 = vunpack.c.l.b16 %v266
      %v559 = vunpack.c.l.b16 %v267
      %v560 = vunpack.c.l.b16 %v268
      %v561 = vunpack.c.l.b16 %v269
      %v562 = vunpack.c.l.b16 %v270
      %v563 = vunpack.c.l.b16 %v271
      %v564 = vunpack.c.l.b16 %v272
      %v565 = vunpack.c.l.b16 %v273
      %v566 = vunpack.c.l.b16 %v274
      %v567 = vunpack.c.l.b16 %v275
      %v568 = vunpack.c.l.b16 %v276
      %v569 = vunpack.c.l.b16 %v277
      %v570 = vunpack.c.l.b16 %v278
      %v571 = vunpack.c.l.b16 %v279
      %v572 = vunpack.c.l.b16 %v280
      %v573 = vunpack.c.l.b16 %v281
      %v574 = vunpack.c.l.b16 %v282
      %v575 = vunpack.c.l.b16 %v283
      %v576 = vunpack.c.l.b16 %v284
      %v577 = vunpack.c.l.b16 %v285
      %v578 = vunpack.c.l.b16 %v286
      %v579 = vunpack.c.l.b16 %v287
      %v580 = vunpack.c.l.b16 %v288
      %v581 = vunpack.c.l.b16 %v289
      %v582 = vunpack.c.l.b16 %v290
      %v583 = vunpack.c.l.b16 %v291
      %v584 = vunpack.c.l.b16 %v292
      %v585 = vunpack.c.l.b16 %v293
      %v586 = vunpack.c.l.b16 %v294
      %v587 = vunpack.c.l.b16 %v295
      %v588 = vunpack.c.l.b16 %v296
      %v589 = vunpack.c.l.b16 %v297
      %v590 = vunpack.c.l.b16 %v298
      %v591 = vunpack.c.l.b16 %v299
      %v592 = vunpack.c.l.b16 %v300
      %v593 = vunpack.c.l.b16 %v301
      %v594 = vunpack.c.l.b16 %v302
      %v595 = vunpack.c.l.b16 %v303
      %v596 = vunpack.c.l.b16 %v304
      %v597 = vunpack.c.l.b16 %v305
      %v598 = vunpack.c.l.b16 %v306
      %v599 = vunpack.c.l.b16 %v307
      %v600 = vunpack.c.l.b16 %v308
      %v601 = vunpack.c.l.b16 %v309
      %v602 = vunpack.c.l.b16 %v310
      %v603 = vunpack.c.l.b16 %v311
      %v604 = vunpack.c.l.b16 %v312
      %v605 = vunpack.c.l.b16 %v313
      %v606 = vunpack.c.l.b16 %v314
      %v607 = vunpack.c.l.b16 %v315
      %v608 = vunpack.c.l.b16 %v316
      %v609 = vunpack.c.l.b16 %v317
      %v610 = vunpack.c.l.b16 %v318
      %v611 = vunpack.c.l.b16 %v319
      %v612 = vunpack.c.l.b16 %v320
      %v613 = vunpack.c.l.b16 %v321
      %v614 = vunpack.c.l.b16 %v322
      %v615 = vunpack.c.l.b16 %v323
      %v616 = vunpack.c.l.b16 %v324
      %v617 = vunpack.c.l.b16 %v325
      %v618 = vunpack.c.l.b16 %v326
      %v619 = vunpack.c.l.b16 %v327
      %v620 = vunpack.c.l.b16 %v328
      %v621 = vpack.c.b16 %v558, %v557
      %v622 = vpack.c.b16 %v560, %v559
      %v623 = vpack.c.b16 %v562, %v561
      %v624 = vpack.c.b16 %v564, %v563
      %v625 = vpack.c.b16 %v566, %v565
      %v626 = vpack.c.b16 %v568, %v567
      %v627 = vpack.c.b16 %v570, %v569
      %v628 = vpack.c.b16 %v572, %v571
      %v629 = vpack.c.b16 %v574, %v573
      %v630 = vpack.c.b16 %v576, %v575
      %v631 = vpack.c.b16 %v578, %v577
      %v632 = vpack.c.b16 %v580, %v579
      %v633 = vpack.c.b16 %v582, %v581
      %v634 = vpack.c.b16 %v584, %v583
      %v635 = vpack.c.b16 %v586, %v585
      %v636 = vpack.c.b16 %v588, %v587
      %v637 = vpack.c.b16 %v590, %v589
      %v638 = vpack.c.b16 %v592, %v591
      %v639 = vpack.c.b16 %v594, %v593
      %v640 = vpack.c.b16 %v596, %v595
      %v641 = vpack.c.b16 %v598, %v597
      %v642 = vpack.c.b16 %v600, %v599
      %v643 = vpack.c.b16 %v602, %v601
      %v644 = vpack.c.b16 %v604, %v603
      %v645 = vpack.c.b16 %v606, %v605
      %v646 = vpack.c.b16 %v608, %v607
      %v647 = vpack.c.b16 %v610, %v609
      %v648 = vpack.c.b16 %v612, %v611
      %v649 = vpack.c.b16 %v614, %v613
      %v650 = vpack.c.b16 %v616, %v615
      %v651 = vpack.c.b16 %v618, %v617
      %v652 = vpack.c.b16 %v620, %v619
      %685 = vmatpush.bf16.msra.mxu0 %v628
      %686 = vmatpush.bf16.msra.mxu0 %v627
      %687 = vmatpush.bf16.msra.mxu0 %v626
      %688 = vmatpush.bf16.msra.mxu0 %v625
      %689 = vmatpush.bf16.msra.mxu0 %v624
      %690 = vmatpush.bf16.msra.mxu0 %v623
      %691 = vmatpush.bf16.msra.mxu0 %v622
      %692 = vmatpush.bf16.msra.mxu0 %v621
      %693 = vmatmul.bf16.gmra.mxu0 %v429
      %v694 = vpop.f32.mrf.mxu0
      %v695 = vadd.f32 %v331, %v694
      %v696 = vpop.f32.mrf.mxu0
      %v697 = vadd.f32 %v331, %v696
      %698 = vmatmul.bf16.gmra.mxu0 %v433
      %v699 = vpop.f32.mrf.mxu0
      %v700 = vadd.f32 %v331, %v699
      %v701 = vpop.f32.mrf.mxu0
      %v702 = vadd.f32 %v331, %v701
      %703 = vmatmul.bf16.gmra.mxu0 %v437
      %v704 = vpop.f32.mrf.mxu0
      %v705 = vadd.f32 %v331, %v704
      %v706 = vpop.f32.mrf.mxu0
      %v707 = vadd.f32 %v331, %v706
      %708 = vmatmul.bf16.gmra.mxu0 %v441
      %v709 = vpop.f32.mrf.mxu0
      %v710 = vadd.f32 %v331, %v709
      %v711 = vpop.f32.mrf.mxu0
      %v712 = vadd.f32 %v331, %v711
      %713 = vmatmul.bf16.gmra.mxu0 %v445
      %v714 = vpop.f32.mrf.mxu0
      %v715 = vadd.f32 %v331, %v714
      %v716 = vpop.f32.mrf.mxu0
      %v717 = vadd.f32 %v331, %v716
      %718 = vmatmul.bf16.gmra.mxu0 %v449
      %v719 = vpop.f32.mrf.mxu0
      %v720 = vadd.f32 %v331, %v719
      %v721 = vpop.f32.mrf.mxu0
      %v722 = vadd.f32 %v331, %v721
      %723 = vmatmul.bf16.gmra.mxu0 %v453
      %v724 = vpop.f32.mrf.mxu0
      %v725 = vadd.f32 %v331, %v724
      %v726 = vpop.f32.mrf.mxu0
      %v727 = vadd.f32 %v331, %v726
      %728 = vmatmul.bf16.gmra.mxu0 %v457
      %v729 = vpop.f32.mrf.mxu0
      %v730 = vadd.f32 %v331, %v729
      %v731 = vpop.f32.mrf.mxu0
      %v732 = vadd.f32 %v331, %v731
      %733 = vdwg.mxu0
      %734 = vmatpush.bf16.msra.mxu0 %v636
      %735 = vmatpush.bf16.msra.mxu0 %v635
      %736 = vmatpush.bf16.msra.mxu0 %v634
      %737 = vmatpush.bf16.msra.mxu0 %v633
      %738 = vmatpush.bf16.msra.mxu0 %v632
      %739 = vmatpush.bf16.msra.mxu0 %v631
      %740 = vmatpush.bf16.msra.mxu0 %v630
      %741 = vmatpush.bf16.msra.mxu0 %v629
      %742 = vmatmul.bf16.gmra.mxu0 %v430
      %v743 = vpop.f32.mrf.mxu0
      %v744 = vadd.f32 %v695, %v743
      %v745 = vpop.f32.mrf.mxu0
      %v746 = vadd.f32 %v697, %v745
      %747 = vmatmul.bf16.gmra.mxu0 %v434
      %v748 = vpop.f32.mrf.mxu0
      %v749 = vadd.f32 %v700, %v748
      %v750 = vpop.f32.mrf.mxu0
      %v751 = vadd.f32 %v702, %v750
      %752 = vmatmul.bf16.gmra.mxu0 %v438
      %v753 = vpop.f32.mrf.mxu0
      %v754 = vadd.f32 %v705, %v753
      %v755 = vpop.f32.mrf.mxu0
      %v756 = vadd.f32 %v707, %v755
      %757 = vmatmul.bf16.gmra.mxu0 %v442
      %v758 = vpop.f32.mrf.mxu0
      %v759 = vadd.f32 %v710, %v758
      %v760 = vpop.f32.mrf.mxu0
      %v761 = vadd.f32 %v712, %v760
      %762 = vmatmul.bf16.gmra.mxu0 %v446
      %v763 = vpop.f32.mrf.mxu0
      %v764 = vadd.f32 %v715, %v763
      %v765 = vpop.f32.mrf.mxu0
      %v766 = vadd.f32 %v717, %v765
      %767 = vmatmul.bf16.gmra.mxu0 %v450
      %v768 = vpop.f32.mrf.mxu0
      %v769 = vadd.f32 %v720, %v768
      %v770 = vpop.f32.mrf.mxu0
      %v771 = vadd.f32 %v722, %v770
      %772 = vmatmul.bf16.gmra.mxu0 %v454
      %v773 = vpop.f32.mrf.mxu0
      %v774 = vadd.f32 %v725, %v773
      %v775 = vpop.f32.mrf.mxu0
      %v776 = vadd.f32 %v727, %v775
      %777 = vmatmul.bf16.gmra.mxu0 %v458
      %v778 = vpop.f32.mrf.mxu0
      %v779 = vadd.f32 %v730, %v778
      %v780 = vpop.f32.mrf.mxu0
      %v781 = vadd.f32 %v732, %v780
      %782 = vdwg.mxu0
      %783 = vmatpush.bf16.msra.mxu0 %v644
      %784 = vmatpush.bf16.msra.mxu0 %v643
      %785 = vmatpush.bf16.msra.mxu0 %v642
      %786 = vmatpush.bf16.msra.mxu0 %v641
      %787 = vmatpush.bf16.msra.mxu0 %v640
      %788 = vmatpush.bf16.msra.mxu0 %v639
      %789 = vmatpush.bf16.msra.mxu0 %v638
      %790 = vmatpush.bf16.msra.mxu0 %v637
      %791 = vmatmul.bf16.gmra.mxu0 %v431
      %v792 = vpop.f32.mrf.mxu0
      %v793 = vadd.f32 %v744, %v792
      %v794 = vpop.f32.mrf.mxu0
      %v795 = vadd.f32 %v746, %v794
      %796 = vmatmul.bf16.gmra.mxu0 %v435
      %v797 = vpop.f32.mrf.mxu0
      %v798 = vadd.f32 %v749, %v797
      %v799 = vpop.f32.mrf.mxu0
      %v800 = vadd.f32 %v751, %v799
      %801 = vmatmul.bf16.gmra.mxu0 %v439
      %v802 = vpop.f32.mrf.mxu0
      %v803 = vadd.f32 %v754, %v802
      %v804 = vpop.f32.mrf.mxu0
      %v805 = vadd.f32 %v756, %v804
      %806 = vmatmul.bf16.gmra.mxu0 %v443
      %v807 = vpop.f32.mrf.mxu0
      %v808 = vadd.f32 %v759, %v807
      %v809 = vpop.f32.mrf.mxu0
      %v810 = vadd.f32 %v761, %v809
      %811 = vmatmul.bf16.gmra.mxu0 %v447
      %v812 = vpop.f32.mrf.mxu0
      %v813 = vadd.f32 %v764, %v812
      %v814 = vpop.f32.mrf.mxu0
      %v815 = vadd.f32 %v766, %v814
      %816 = vmatmul.bf16.gmra.mxu0 %v451
      %v817 = vpop.f32.mrf.mxu0
      %v818 = vadd.f32 %v769, %v817
      %v819 = vpop.f32.mrf.mxu0
      %v820 = vadd.f32 %v771, %v819
      %821 = vmatmul.bf16.gmra.mxu0 %v455
      %v822 = vpop.f32.mrf.mxu0
      %v823 = vadd.f32 %v774, %v822
      %v824 = vpop.f32.mrf.mxu0
      %v825 = vadd.f32 %v776, %v824
      %826 = vmatmul.bf16.gmra.mxu0 %v459
      %v827 = vpop.f32.mrf.mxu0
      %v828 = vadd.f32 %v779, %v827
      %v829 = vpop.f32.mrf.mxu0
      %v830 = vadd.f32 %v781, %v829
      %831 = vdwg.mxu0
      %832 = vmatpush.bf16.msra.mxu0 %v652
      %833 = vmatpush.bf16.msra.mxu0 %v651
      %834 = vmatpush.bf16.msra.mxu0 %v650
      %835 = vmatpush.bf16.msra.mxu0 %v649
      %836 = vmatpush.bf16.msra.mxu0 %v648
      %837 = vmatpush.bf16.msra.mxu0 %v647
      %838 = vmatpush.bf16.msra.mxu0 %v646
      %839 = vmatpush.bf16.msra.mxu0 %v645
      %840 = vmatmul.bf16.gmra.mxu0 %v432
      %v841 = vpop.f32.mrf.mxu0
      %v842 = vadd.f32 %v793, %v841
      %v843 = vpop.f32.mrf.mxu0
      %v844 = vadd.f32 %v795, %v843
      %845 = vmatmul.bf16.gmra.mxu0 %v436
      %v846 = vpop.f32.mrf.mxu0
      %v847 = vadd.f32 %v798, %v846
      %v848 = vpop.f32.mrf.mxu0
      %v849 = vadd.f32 %v800, %v848
      %850 = vmatmul.bf16.gmra.mxu0 %v440
      %v851 = vpop.f32.mrf.mxu0
      %v852 = vadd.f32 %v803, %v851
      %v853 = vpop.f32.mrf.mxu0
      %v854 = vadd.f32 %v805, %v853
      %855 = vmatmul.bf16.gmra.mxu0 %v444
      %v856 = vpop.f32.mrf.mxu0
      %v857 = vadd.f32 %v808, %v856
      %v858 = vpop.f32.mrf.mxu0
      %v859 = vadd.f32 %v810, %v858
      %860 = vmatmul.bf16.gmra.mxu0 %v448
      %v861 = vpop.f32.mrf.mxu0
      %v862 = vadd.f32 %v813, %v861
      %v863 = vpop.f32.mrf.mxu0
      %v864 = vadd.f32 %v815, %v863
      %865 = vmatmul.bf16.gmra.mxu0 %v452
      %v866 = vpop.f32.mrf.mxu0
      %v867 = vadd.f32 %v818, %v866
      %v868 = vpop.f32.mrf.mxu0
      %v869 = vadd.f32 %v820, %v868
      %870 = vmatmul.bf16.gmra.mxu0 %v456
      %v871 = vpop.f32.mrf.mxu0
      %v872 = vadd.f32 %v823, %v871
      %v873 = vpop.f32.mrf.mxu0
      %v874 = vadd.f32 %v825, %v873
      %875 = vmatmul.bf16.gmra.mxu0 %v460
      %v876 = vpop.f32.mrf.mxu0
      %v877 = vadd.f32 %v828, %v876
      %v878 = vpop.f32.mrf.mxu0
      %v879 = vadd.f32 %v830, %v878
      %880 = vdwg.mxu0
      %v881 = vmax.f32 %v842, 0.0
      %v882 = vmax.f32 %v844, 0.0
      %v883 = vmax.f32 %v847, 0.0
      %v884 = vmax.f32 %v849, 0.0
      %v885 = vmax.f32 %v852, 0.0
      %v886 = vmax.f32 %v854, 0.0
      %v887 = vmax.f32 %v857, 0.0
      %v888 = vmax.f32 %v859, 0.0
      %v889 = vmax.f32 %v862, 0.0
      %v890 = vmax.f32 %v864, 0.0
      %v891 = vmax.f32 %v867, 0.0
      %v892 = vmax.f32 %v869, 0.0
      %v893 = vmax.f32 %v872, 0.0
      %v894 = vmax.f32 %v874, 0.0
      %v895 = vmax.f32 %v877, 0.0
      %v896 = vmax.f32 %v879, 0.0
      %v897 = vpack.c.bf16 %v881, %v881
      %v898 = vpack.c.bf16 %v882, %v882
      %v899 = vpack.c.bf16 %v883, %v883
      %v900 = vpack.c.bf16 %v884, %v884
      %v901 = vpack.c.bf16 %v885, %v885
      %v902 = vpack.c.bf16 %v886, %v886
      %v903 = vpack.c.bf16 %v887, %v887
      %v904 = vpack.c.bf16 %v888, %v888
      %v905 = vpack.c.bf16 %v889, %v889
      %v906 = vpack.c.bf16 %v890, %v890
      %v907 = vpack.c.bf16 %v891, %v891
      %v908 = vpack.c.bf16 %v892, %v892
      %v909 = vpack.c.bf16 %v893, %v893
      %v910 = vpack.c.bf16 %v894, %v894
      %v911 = vpack.c.bf16 %v895, %v895
      %v912 = vpack.c.bf16 %v896, %v896
      %913 = vst [vmem:[%s231] sm:$0xf] %v897
      %914 = vst [vmem:[%s231 + $0x4] sm:$0xf] %v898
      %915 = vst [vmem:[%s231 + $0x8] sm:$0xf] %v899
      %916 = vst [vmem:[%s231 + $0xc] sm:$0xf] %v900
      %917 = vst [vmem:[%s231 + $0x10] sm:$0xf] %v901
      %918 = vst [vmem:[%s231 + $0x14] sm:$0xf] %v902
      %919 = vst [vmem:[%s231 + $0x18] sm:$0xf] %v903
      %920 = vst [vmem:[%s231 + $0x1c] sm:$0xf] %v904
      %921 = vst [vmem:[%s231 + $0x20] sm:$0xf] %v905
      %922 = vst [vmem:[%s231 + $0x24] sm:$0xf] %v906
      %923 = vst [vmem:[%s231 + $0x28] sm:$0xf] %v907
      %924 = vst [vmem:[%s231 + $0x2c] sm:$0xf] %v908
      %925 = vst [vmem:[%s231 + $0x30] sm:$0xf] %v909
      %926 = vst [vmem:[%s231 + $0x34] sm:$0xf] %v910
      %927 = vst [vmem:[%s231 + $0x38] sm:$0xf] %v911
      %928 = vst [vmem:[%s231 + $0x3c] sm:$0xf] %v912
      %s929 = smul.u32 16, %s19
      %p930 = scmp.lt.s32.totalorder %s18, 3
      %s931 = scalar_select %p930, %s18, 3
      %p932 = scmp.lt.s32.totalorder %s929, 15
      %s933 = scalar_select %p932, %s929, 15
      %s934 = smul.addr %s931, 16
      %s935 = sadd.s32 %s933, %s934
      %s936 = smul.addr %s935, 4
      %s937 = scalar_lea.vmem %s3, %s936
      // Predicated region
      $region33: #{_lambda_.24} parent=31 // pred_check
        %p938 = pneg %p121
      $region34: #{_lambda_.24} parent=31 // pred_check_branch
        %940 = sbr.rel (%p938) target = $region36
      $region35: #{_lambda_.24} parent=31 // pred_region
        %s941 = smul.u32 16, %s19
      $region36: #{_lambda_.24} parent=31 // pred_fallthru
        _
    $region32: #{_lambda_.24} parent=5 // pred_fallthru
      _
    %p942 = scmp.le.s32.totalorder 2, %s9
    // Predicated region
    $region37: #{_lambda_.24} parent=5 // pred_check
      %p943 = pneg %p942
    $region38: #{_lambda_.24} parent=5 // pred_check_branch
      %945 = sbr.rel (%p943) target = $region40
    $region39: #{_lambda_.24} parent=5 // pred_region
      %s946 = ssub.s32 %s9, 2
      // Predicated region
      $region41: #{_lambda_.24} parent=39 // pred_check
        %p947 = pneg %p127
      $region42: #{_lambda_.24} parent=39 // pred_check_branch
        %949 = sbr.rel (%p947) target = $region44
      $region43: #{_lambda_.24} parent=39 // pred_region
        %s950 = smul.u32 16, %s21
        %p951 = scmp.lt.s32.totalorder %s20, 3
        %s952 = scalar_select %p951, %s20, 3
        %p953 = scmp.lt.s32.totalorder %s950, 15
        %s954 = scalar_select %p953, %s950, 15
        %s955 = smul.addr %s952, 16
        %s956 = sadd.s32 %s954, %s955
        %s957 = smul.addr %s956, 4
        %s958 = scalar_lea.vmem %s3, %s957
      $region44: #{_lambda_.24} parent=39 // pred_fallthru
        _
    $region40: #{_lambda_.24} parent=5 // pred_fallthru
      _
  $region6: #{_lambda_.24} parent=0 // loop_footer
    %s13 = sadd.s32 1, %s9
  $region7: #{_lambda_.24} parent=0 // loop_footer_branch
    %8 = sbr.rel target = $region3
  $region8: #{_lambda_.24} parent=0 // loop_exit
    _

// kernel: _lambda_.25
$region0: #{_lambda_.25}
  #allocation0 [shape = 'u32[]', space=smem, size = 0x4, offset = 0x4, fixed_abs, tag = 'smem constant byte address 0x4 - core index']
  #allocation1 [shape = 'u32[72,128]{1,0:T(1,128)}', space=vmem, size = 0x9000, scoped, tag = 'internal scratch']
  %s0 = inlined_call_operand.vmem [shape: bf16[4,512,256], index: 0, kind: input, shape index: {}]
  %s1 = inlined_call_operand.vmem [shape: bf16[4,256,128], index: 1, kind: input, shape index: {}]
  %s2 = inlined_call_operand.vmem [shape: f32[1,128], index: 2, kind: input, shape index: {}]
  %s3 = inlined_call_operand.vmem [shape: bf16[4,512,128], index: 3, kind: output, shape index: {}]
  %s4 = sld [smem:[#allocation0]]
  $region45: #{_lambda_.25} parent=0
    _
  %s6 = ssub.s32 1, %s4
  %s7 = scalar_select 0, %s6, %s4
  loop: start=0, step=1, limit=6
  $region2: #{_lambda_.25} parent=0 // loop_pre_header
    _
  $region3: #{_lambda_.25} parent=0 // loop_header
    %s9 = sphi 0, %s13
    %p10 = scmp.ge.s32.totalorder %s9, 6
    %s16 = sphi 0, %s28
    %s17 = sphi 0, %s24
    %s18 = sphi 0, %s16
    %s19 = sphi 0, %s17
    %s20 = sphi 0, %s18
    %s21 = sphi 0, %s19
    %s33 = sphi 0, %s35
    %s36 = sphi 0, %s33
    %s37 = sphi 0, %s36
    %s53 = sphi 0, %s37
    %s59 = sphi 0, %s61
    %s62 = sphi 0, %s59
    %s63 = sphi 0, %s62
    %s79 = sphi 0, %s63
    %s83 = sphi 0, %s83
    %s85 = sphi 0, %s83
    %s86 = sphi 0, %s85
    %s100 = sphi 0, %s86
    %s108 = sphi 0, %s110
    %s111 = sphi 0, %s108
    %s112 = sphi 0, %s111
    %s128 = sphi 0, %s112
  $region4: #{_lambda_.25} parent=0 // loop_header_branch
    %12 = sbr.rel (%p10) target = $region8
  $region5: #{_lambda_.25} parent=0 // loop_body
    %s14 = ssub.s32 %s9, 1
    %s15 = ssub.s32 %s9, 2
    %s22 = sadd.s32 1, %s17
    %p23 = scmp.ge.s32.totalorder %s22, 1
    %s24 = scalar_select %p23, 0, %s22
    %s25 = sadd.s32 1, %s16
    %s26 = scalar_select %p23, %s25, %s16
    %p27 = scmp.ge.s32.totalorder %s26, 4
    %s28 = scalar_select %p27, 0, %s26
    %s29 = ssub.s32 %s16, %s28
    %s30 = ssub.s32 %s17, %s24
    %s31 = sor.u32 %s29, %s30
    %p32 = scmp.eq.s32.totalorder %s31, 0
    %s34 = sadd.s32 %s33, 1
    %s35 = scalar_select %p32, %s33, %s34
    %p38 = pneg %p32
    %p39 = scmp.eq.s32.totalorder %s9, 3
    %p40 = por %p38, %p39
    %p41 = scmp.ne.s32.totalorder %s33, %s36
    %p42 = scmp.eq.s32.totalorder %s9, 0
    %p43 = por %p41, %p42
    %p44 = scmp.ne.s32.totalorder %s33, %s36
    %p45 = scmp.eq.s32.totalorder %s14, 3
    %p46 = por %p44, %p45
    %p47 = scmp.ne.s32.totalorder %s36, %s37
    %p48 = scmp.eq.s32.totalorder %s14, 0
    %p49 = por %p47, %p48
    %p50 = scmp.ne.s32.totalorder %s36, %s37
    %p51 = scmp.eq.s32.totalorder %s15, 3
    %p52 = por %p50, %p51
    %p54 = scmp.ne.s32.totalorder %s37, %s53
    %p55 = scmp.eq.s32.totalorder %s15, 0
    %p56 = por %p54, %p55
    %s57 = ssub.s32 %s16, %s28
    %p58 = scmp.eq.s32.totalorder %s57, 0
    %s60 = sadd.s32 %s59, 1
    %s61 = scalar_select %p58, %s59, %s60
    %p64 = pneg %p58
    %p65 = scmp.eq.s32.totalorder %s9, 3
    %p66 = por %p64, %p65
    %p67 = scmp.ne.s32.totalorder %s59, %s62
    %p68 = scmp.eq.s32.totalorder %s9, 0
    %p69 = por %p67, %p68
    %p70 = scmp.ne.s32.totalorder %s59, %s62
    %p71 = scmp.eq.s32.totalorder %s14, 3
    %p72 = por %p70, %p71
    %p73 = scmp.ne.s32.totalorder %s62, %s63
    %p74 = scmp.eq.s32.totalorder %s14, 0
    %p75 = por %p73, %p74
    %p76 = scmp.ne.s32.totalorder %s62, %s63
    %p77 = scmp.eq.s32.totalorder %s15, 3
    %p78 = por %p76, %p77
    %p80 = scmp.ne.s32.totalorder %s63, %s79
    %p81 = scmp.eq.s32.totalorder %s15, 0
    %p82 = por %p80, %p81
    %s84 = sadd.s32 %s83, 1
    %p87 = scmp.eq.s32.totalorder %s9, 3
    %p88 = scmp.ne.s32.totalorder %s83, %s85
    %p89 = scmp.eq.s32.totalorder %s9, 0
    %p90 = por %p88, %p89
    %p91 = scmp.ne.s32.totalorder %s83, %s85
    %p92 = scmp.eq.s32.totalorder %s14, 3
    %p93 = por %p91, %p92
    %p94 = scmp.ne.s32.totalorder %s85, %s86
    %p95 = scmp.eq.s32.totalorder %s14, 0
    %p96 = por %p94, %p95
    %p97 = scmp.ne.s32.totalorder %s85, %s86
    %p98 = scmp.eq.s32.totalorder %s15, 3
    %p99 = por %p97, %p98
    %p101 = scmp.ne.s32.totalorder %s86, %s100
    %p102 = scmp.eq.s32.totalorder %s15, 0
    %p103 = por %p101, %p102
    %s104 = ssub.s32 %s16, %s28
    %s105 = ssub.s32 %s17, %s24
    %s106 = sor.u32 %s104, %s105
    %p107 = scmp.eq.s32.totalorder %s106, 0
    %s109 = sadd.s32 %s108, 1
    %s110 = scalar_select %p107, %s108, %s109
    %p113 = pneg %p107
    %p114 = scmp.eq.s32.totalorder %s9, 3
    %p115 = por %p113, %p114
    %p116 = scmp.ne.s32.totalorder %s108, %s111
    %p117 = scmp.eq.s32.totalorder %s9, 0
    %p118 = por %p116, %p117
    %p119 = scmp.ne.s32.totalorder %s108, %s111
    %p120 = scmp.eq.s32.totalorder %s14, 3
    %p121 = por %p119, %p120
    %p122 = scmp.ne.s32.totalorder %s111, %s112
    %p123 = scmp.eq.s32.totalorder %s14, 0
    %p124 = por %p122, %p123
    %p125 = scmp.ne.s32.totalorder %s111, %s112
    %p126 = scmp.eq.s32.totalorder %s15, 3
    %p127 = por %p125, %p126
    %p129 = scmp.ne.s32.totalorder %s112, %s128
    %p130 = scmp.eq.s32.totalorder %s15, 0
    %p131 = por %p129, %p130
    %p132 = scmp.le.s32.totalorder 1, %s9
    %p133 = scmp.lt.s32.totalorder %s9, 5
    %p134 = pnand %p132, %p133
    %p135 = pneg %p134
    // Predicated region
    $region9: #{_lambda_.25} parent=5 // pred_check
      _
    $region10: #{_lambda_.25} parent=5 // pred_check_branch
      %137 = sbr.rel (%p134) target = $region12
    $region11: #{_lambda_.25} parent=5 // pred_region
      %s138 = ssub.s32 %s9, 1
      // Predicated region
      $region13: #{_lambda_.25} parent=11 // pred_check
        %p139 = pneg %p96
      $region14: #{_lambda_.25} parent=11 // pred_check_branch
        %141 = sbr.rel (%p139) target = $region16
      $region15: #{_lambda_.25} parent=11 // pred_region
        _
      $region16: #{_lambda_.25} parent=11 // pred_fallthru
        _
    $region12: #{_lambda_.25} parent=5 // pred_fallthru
      _
    %p142 = scmp.lt.s32.totalorder %s9, 4
    // Predicated region
    $region17: #{_lambda_.25} parent=5 // pred_check
      %p143 = pneg %p142
    $region18: #{_lambda_.25} parent=5 // pred_check_branch
      %145 = sbr.rel (%p143) target = $region20
    $region19: #{_lambda_.25} parent=5 // pred_region
      // Predicated region
      $region21: #{_lambda_.25} parent=19 // pred_check
        %p146 = pneg %p43
      $region22: #{_lambda_.25} parent=19 // pred_check_branch
        %148 = sbr.rel (%p146) target = $region24
      $region23: #{_lambda_.25} parent=19 // pred_region
        %s149 = smul.u32 64, %s17
        %p150 = scmp.lt.s32.totalorder %s16, 3
        %s151 = scalar_select %p150, %s16, 3
        %p152 = scmp.lt.s32.totalorder %s149, 63
        %s153 = scalar_select %p152, %s149, 63
        %s154 = smul.addr %s153, 2
        %s155 = smul.addr %s151, 128
        %s156 = sadd.s32 %s154, %s155
        %s157 = smul.addr %s156, 4
        %s158 = scalar_lea.vmem %s0, %s157
        %s159 = smul.u32 64, %s17
      $region24: #{_lambda_.25} parent=19 // pred_fallthru
        _
      // Predicated region
      $region25: #{_lambda_.25} parent=19 // pred_check
        %p160 = pneg %p69
      $region26: #{_lambda_.25} parent=19 // pred_check_branch
        %162 = sbr.rel (%p160) target = $region28
      $region27: #{_lambda_.25} parent=19 // pred_region
        %p163 = scmp.lt.s32.totalorder %s16, 3
        %s164 = scalar_select %p163, %s16, 3
        %s165 = smul.addr %s164, 32
        %s166 = smul.addr %s165, 4
        %s167 = scalar_lea.vmem %s1, %s166
      $region28: #{_lambda_.25} parent=19 // pred_fallthru
        _
    $region20: #{_lambda_.25} parent=5 // pred_fallthru
      _
    %p168 = scmp.le.s32.totalorder 1, %s9
    %p169 = scmp.lt.s32.totalorder %s9, 5
    %p170 = pnand %p168, %p169
    %p171 = pneg %p170
    // Predicated region
    $region29: #{_lambda_.25} parent=5 // pred_check
      _
    $region30: #{_lambda_.25} parent=5 // pred_check_branch
      %173 = sbr.rel (%p170) target = $region32
    $region31: #{_lambda_.25} parent=5 // pred_region
      %s174 = ssub.s32 %s9, 1
      %s175 = smul.u32 64, %s19
      %p176 = scmp.lt.s32.totalorder %s18, 3
      %s177 = scalar_select %p176, %s18, 3
      %p178 = scmp.lt.s32.totalorder %s175, 63
      %s179 = scalar_select %p178, %s175, 63
      %s180 = smul.addr %s179, 2
      %s181 = smul.addr %s177, 128
      %s182 = sadd.s32 %s180, %s181
      %s183 = smul.addr %s182, 4
      %s184 = scalar_lea.vmem %s0, %s183
      %p185 = pneg %p49
      %p186 = pneg %p46
      %p187 = scmp.lt.s32.totalorder %s18, 3
      %s188 = scalar_select %p187, %s18, 3
      %s189 = smul.addr %s188, 32
      %s190 = smul.addr %s189, 4
      %s191 = scalar_lea.vmem %s1, %s190
      %p192 = pneg %p75
      %p193 = pneg %p72
      %p194 = pneg %p96
      %p195 = pneg %p93
      %p196 = pneg %p124
      %p197 = pneg %p121
      %s198 = smul.u32 64, %s19
      %p199 = scmp.lt.s32.totalorder %s18, 3
      %s200 = scalar_select %p199, %s18, 3
      %p201 = scmp.lt.s32.totalorder %s198, 63
      %s202 = scalar_select %p201, %s198, 63
      %s203 = smul.addr %s200, 64
      %s204 = sadd.s32 %s202, %s203
      %s205 = smul.addr %s204, 4
      %s206 = scalar_lea.vmem %s3, %s205
      %s207 = smul.u32 64, %s19
      %p208 = scmp.lt.s32.totalorder %s18, 3
      %s209 = scalar_select %p208, %s18, 3
      %p210 = scmp.lt.s32.totalorder %s207, 63
      %s211 = scalar_select %p210, %s207, 63
      %s212 = smul.addr %s211, 2
      %s213 = smul.addr %s209, 128
      %s214 = sadd.s32 %s212, %s213
      %s215 = smul.addr %s214, 4
      %s216 = scalar_lea.vmem %s0, %s215
      %s217 = smul.u32 64, %s19
      %p218 = scmp.lt.s32.totalorder %s18, 3
      %s219 = scalar_select %p218, %s18, 3
      %s220 = smul.addr %s219, 32
      %s221 = smul.addr %s220, 4
      %s222 = scalar_lea.vmem %s1, %s221
      %s223 = smul.u32 64, %s19
      %p224 = scmp.lt.s32.totalorder %s18, 3
      %s225 = scalar_select %p224, %s18, 3
      %p226 = scmp.lt.s32.totalorder %s223, 63
      %s227 = scalar_select %p226, %s223, 63
      %s228 = smul.addr %s225, 64
      %s229 = sadd.s32 %s227, %s228
      %s230 = smul.addr %s229, 4
      %s231 = scalar_lea.vmem %s3, %s230
      %s232 = smul.u32 64, %s19
      %v233 = vld [vmem:[%s216] sm:$0xff]
      %v234 = vld [vmem:[%s216 + $0x8] sm:$0xff]
      %v235 = vld [vmem:[%s216 + $0x10] sm:$0xff]
      %v236 = vld [vmem:[%s216 + $0x18] sm:$0xff]
      %v237 = vld [vmem:[%s216 + $0x20] sm:$0xff]
      %v238 = vld [vmem:[%s216 + $0x28] sm:$0xff]
      %v239 = vld [vmem:[%s216 + $0x30] sm:$0xff]
      %v240 = vld [vmem:[%s216 + $0x38] sm:$0xff]
      %v241 = vld [vmem:[%s216 + $0x40] sm:$0xff]
      %v242 = vld [vmem:[%s216 + $0x48] sm:$0xff]
      %v243 = vld [vmem:[%s216 + $0x50] sm:$0xff]
      %v244 = vld [vmem:[%s216 + $0x58] sm:$0xff]
      %v245 = vld [vmem:[%s216 + $0x60] sm:$0xff]
      %v246 = vld [vmem:[%s216 + $0x68] sm:$0xff]
      %v247 = vld [vmem:[%s216 + $0x70] sm:$0xff]
      %v248 = vld [vmem:[%s216 + $0x78] sm:$0xff]
      %v249 = vld [vmem:[%s216 + $0x80] sm:$0xff]
      %v250 = vld [vmem:[%s216 + $0x88] sm:$0xff]
      %v251 = vld [vmem:[%s216 + $0x90] sm:$0xff]
      %v252 = vld [vmem:[%s216 + $0x98] sm:$0xff]
      %v253 = vld [vmem:[%s216 + $0xa0] sm:$0xff]
      %v254 = vld [vmem:[%s216 + $0xa8] sm:$0xff]
      %v255 = vld [vmem:[%s216 + $0xb0] sm:$0xff]
      %v256 = vld [vmem:[%s216 + $0xb8] sm:$0xff]
      %v257 = vld [vmem:[%s216 + $0xc0] sm:$0xff]
      %v258 = vld [vmem:[%s216 + $0xc8] sm:$0xff]
      %v259 = vld [vmem:[%s216 + $0xd0] sm:$0xff]
      %v260 = vld [vmem:[%s216 + $0xd8] sm:$0xff]
      %v261 = vld [vmem:[%s216 + $0xe0] sm:$0xff]
      %v262 = vld [vmem:[%s216 + $0xe8] sm:$0xff]
      %v263 = vld [vmem:[%s216 + $0xf0] sm:$0xff]
      %v264 = vld [vmem:[%s216 + $0xf8] sm:$0xff]
      %v265 = vld [vmem:[%s216 + $0x100] sm:$0xff]
      %v266 = vld [vmem:[%s216 + $0x108] sm:$0xff]
      %v267 = vld [vmem:[%s216 + $0x110] sm:$0xff]
      %v268 = vld [vmem:[%s216 + $0x118] sm:$0xff]
      %v269 = vld [vmem:[%s216 + $0x120] sm:$0xff]
      %v270 = vld [vmem:[%s216 + $0x128] sm:$0xff]
      %v271 = vld [vmem:[%s216 + $0x130] sm:$0xff]
      %v272 = vld [vmem:[%s216 + $0x138] sm:$0xff]
      %v273 = vld [vmem:[%s216 + $0x140] sm:$0xff]
      %v274 = vld [vmem:[%s216 + $0x148] sm:$0xff]
      %v275 = vld [vmem:[%s216 + $0x150] sm:$0xff]
      %v276 = vld [vmem:[%s216 + $0x158] sm:$0xff]
      %v277 = vld [vmem:[%s216 + $0x160] sm:$0xff]
      %v278 = vld [vmem:[%s216 + $0x168] sm:$0xff]
      %v279 = vld [vmem:[%s216 + $0x170] sm:$0xff]
      %v280 = vld [vmem:[%s216 + $0x178] sm:$0xff]
      %v281 = vld [vmem:[%s216 + $0x180] sm:$0xff]
      %v282 = vld [vmem:[%s216 + $0x188] sm:$0xff]
      %v283 = vld [vmem:[%s216 + $0x190] sm:$0xff]
      %v284 = vld [vmem:[%s216 + $0x198] sm:$0xff]
      %v285 = vld [vmem:[%s216 + $0x1a0] sm:$0xff]
      %v286 = vld [vmem:[%s216 + $0x1a8] sm:$0xff]
      %v287 = vld [vmem:[%s216 + $0x1b0] sm:$0xff]
      %v288 = vld [vmem:[%s216 + $0x1b8] sm:$0xff]
      %v289 = vld [vmem:[%s216 + $0x1c0] sm:$0xff]
      %v290 = vld [vmem:[%s216 + $0x1c8] sm:$0xff]
      %v291 = vld [vmem:[%s216 + $0x1d0] sm:$0xff]
      %v292 = vld [vmem:[%s216 + $0x1d8] sm:$0xff]
      %v293 = vld [vmem:[%s216 + $0x1e0] sm:$0xff]
      %v294 = vld [vmem:[%s216 + $0x1e8] sm:$0xff]
      %v295 = vld [vmem:[%s216 + $0x1f0] sm:$0xff]
      %v296 = vld [vmem:[%s216 + $0x1f8] sm:$0xff]
      %v297 = vld [vmem:[%s222] sm:$0xf]
      %v298 = vld [vmem:[%s222 + $0x4] sm:$0xf]
      %v299 = vld [vmem:[%s222 + $0x8] sm:$0xf]
      %v300 = vld [vmem:[%s222 + $0xc] sm:$0xf]
      %v301 = vld [vmem:[%s222 + $0x10] sm:$0xf]
      %v302 = vld [vmem:[%s222 + $0x14] sm:$0xf]
      %v303 = vld [vmem:[%s222 + $0x18] sm:$0xf]
      %v304 = vld [vmem:[%s222 + $0x1c] sm:$0xf]
      %v305 = vld [vmem:[%s222 + $0x20] sm:$0xf]
      %v306 = vld [vmem:[%s222 + $0x24] sm:$0xf]
      %v307 = vld [vmem:[%s222 + $0x28] sm:$0xf]
      %v308 = vld [vmem:[%s222 + $0x2c] sm:$0xf]
      %v309 = vld [vmem:[%s222 + $0x30] sm:$0xf]
      %v310 = vld [vmem:[%s222 + $0x34] sm:$0xf]
      %v311 = vld [vmem:[%s222 + $0x38] sm:$0xf]
      %v312 = vld [vmem:[%s222 + $0x3c] sm:$0xf]
      %v313 = vld [vmem:[%s222 + $0x40] sm:$0xf]
      %v314 = vld [vmem:[%s222 + $0x44] sm:$0xf]
      %v315 = vld [vmem:[%s222 + $0x48] sm:$0xf]
      %v316 = vld [vmem:[%s222 + $0x4c] sm:$0xf]
      %v317 = vld [vmem:[%s222 + $0x50] sm:$0xf]
      %v318 = vld [vmem:[%s222 + $0x54] sm:$0xf]
      %v319 = vld [vmem:[%s222 + $0x58] sm:$0xf]
      %v320 = vld [vmem:[%s222 + $0x5c] sm:$0xf]
      %v321 = vld [vmem:[%s222 + $0x60] sm:$0xf]
      %v322 = vld [vmem:[%s222 + $0x64] sm:$0xf]
      %v323 = vld [vmem:[%s222 + $0x68] sm:$0xf]
      %v324 = vld [vmem:[%s222 + $0x6c] sm:$0xf]
      %v325 = vld [vmem:[%s222 + $0x70] sm:$0xf]
      %v326 = vld [vmem:[%s222 + $0x74] sm:$0xf]
      %v327 = vld [vmem:[%s222 + $0x78] sm:$0xf]
      %v328 = vld [vmem:[%s222 + $0x7c] sm:$0xf]
      %v329 = vld [vmem:[%s2] sm:$0x1]
      %v331 = vperm.slane %v329, 0
      %v397 = vunpack.c.l.b16 %v233
      %v398 = vunpack.c.h.b16 %v233
      %v399 = vunpack.c.l.b16 %v234
      %v400 = vunpack.c.h.b16 %v234
      %v401 = vunpack.c.l.b16 %v235
      %v402 = vunpack.c.h.b16 %v235
      %v403 = vunpack.c.l.b16 %v236
      %v404 = vunpack.c.h.b16 %v236
      %v405 = vunpack.c.l.b16 %v237
      %v406 = vunpack.c.h.b16 %v237
      %v407 = vunpack.c.l.b16 %v238
      %v408 = vunpack.c.h.b16 %v238
      %v409 = vunpack.c.l.b16 %v239
      %v410 = vunpack.c.h.b16 %v239
      %v411 = vunpack.c.l.b16 %v240
      %v412 = vunpack.c.h.b16 %v240
      %v413 = vunpack.c.l.b16 %v241
      %v414 = vunpack.c.h.b16 %v241
      %v415 = vunpack.c.l.b16 %v242
      %v416 = vunpack.c.h.b16 %v242
      %v417 = vunpack.c.l.b16 %v243
      %v418 = vunpack.c.h.b16 %v243
      %v419 = vunpack.c.l.b16 %v244
      %v420 = vunpack.c.h.b16 %v244
      %v421 = vunpack.c.l.b16 %v245
      %v422 = vunpack.c.h.b16 %v245
      %v423 = vunpack.c.l.b16 %v246
      %v424 = vunpack.c.h.b16 %v246
      %v425 = vunpack.c.l.b16 %v247
      %v426 = vunpack.c.h.b16 %v247
      %v427 = vunpack.c.l.b16 %v248
      %v428 = vunpack.c.h.b16 %v248
      %v429 = vunpack.c.l.b16 %v249
      %v430 = vunpack.c.h.b16 %v249
      %v431 = vunpack.c.l.b16 %v250
      %v432 = vunpack.c.h.b16 %v250
      %v433 = vunpack.c.l.b16 %v251
      %v434 = vunpack.c.h.b16 %v251
      %v435 = vunpack.c.l.b16 %v252
      %v436 = vunpack.c.h.b16 %v252
      %v437 = vunpack.c.l.b16 %v253
      %v438 = vunpack.c.h.b16 %v253
      %v439 = vunpack.c.l.b16 %v254
      %v440 = vunpack.c.h.b16 %v254
      %v441 = vunpack.c.l.b16 %v255
      %v442 = vunpack.c.h.b16 %v255
      %v443 = vunpack.c.l.b16 %v256
      %v444 = vunpack.c.h.b16 %v256
      %v445 = vunpack.c.l.b16 %v257
      %v446 = vunpack.c.h.b16 %v257
      %v447 = vunpack.c.l.b16 %v258
      %v448 = vunpack.c.h.b16 %v258
      %v449 = vunpack.c.l.b16 %v259
      %v450 = vunpack.c.h.b16 %v259
      %v451 = vunpack.c.l.b16 %v260
      %v452 = vunpack.c.h.b16 %v260
      %v453 = vunpack.c.l.b16 %v261
      %v454 = vunpack.c.h.b16 %v261
      %v455 = vunpack.c.l.b16 %v262
      %v456 = vunpack.c.h.b16 %v262
      %v457 = vunpack.c.l.b16 %v263
      %v458 = vunpack.c.h.b16 %v263
      %v459 = vunpack.c.l.b16 %v264
      %v460 = vunpack.c.h.b16 %v264
      %v461 = vunpack.c.l.b16 %v265
      %v462 = vunpack.c.h.b16 %v265
      %v463 = vunpack.c.l.b16 %v266
      %v464 = vunpack.c.h.b16 %v266
      %v465 = vunpack.c.l.b16 %v267
      %v466 = vunpack.c.h.b16 %v267
      %v467 = vunpack.c.l.b16 %v268
      %v468 = vunpack.c.h.b16 %v268
      %v469 = vunpack.c.l.b16 %v269
      %v470 = vunpack.c.h.b16 %v269
      %v471 = vunpack.c.l.b16 %v270
      %v472 = vunpack.c.h.b16 %v270
      %v473 = vunpack.c.l.b16 %v271
      %v474 = vunpack.c.h.b16 %v271
      %v475 = vunpack.c.l.b16 %v272
      %v476 = vunpack.c.h.b16 %v272
      %v477 = vunpack.c.l.b16 %v273
      %v478 = vunpack.c.h.b16 %v273
      %v479 = vunpack.c.l.b16 %v274
      %v480 = vunpack.c.h.b16 %v274
      %v481 = vunpack.c.l.b16 %v275
      %v482 = vunpack.c.h.b16 %v275
      %v483 = vunpack.c.l.b16 %v276
      %v484 = vunpack.c.h.b16 %v276
      %v485 = vunpack.c.l.b16 %v277
      %v486 = vunpack.c.h.b16 %v277
      %v487 = vunpack.c.l.b16 %v278
      %v488 = vunpack.c.h.b16 %v278
      %v489 = vunpack.c.l.b16 %v279
      %v490 = vunpack.c.h.b16 %v279
      %v491 = vunpack.c.l.b16 %v280
      %v492 = vunpack.c.h.b16 %v280
      %v493 = vunpack.c.l.b16 %v281
      %v494 = vunpack.c.h.b16 %v281
      %v495 = vunpack.c.l.b16 %v282
      %v496 = vunpack.c.h.b16 %v282
      %v497 = vunpack.c.l.b16 %v283
      %v498 = vunpack.c.h.b16 %v283
      %v499 = vunpack.c.l.b16 %v284
      %v500 = vunpack.c.h.b16 %v284
      %v501 = vunpack.c.l.b16 %v285
      %v502 = vunpack.c.h.b16 %v285
      %v503 = vunpack.c.l.b16 %v286
      %v504 = vunpack.c.h.b16 %v286
      %v505 = vunpack.c.l.b16 %v287
      %v506 = vunpack.c.h.b16 %v287
      %v507 = vunpack.c.l.b16 %v288
      %v508 = vunpack.c.h.b16 %v288
      %v509 = vunpack.c.l.b16 %v289
      %v510 = vunpack.c.h.b16 %v289
      %v511 = vunpack.c.l.b16 %v290
      %v512 = vunpack.c.h.b16 %v290
      %v513 = vunpack.c.l.b16 %v291
      %v514 = vunpack.c.h.b16 %v291
      %v515 = vunpack.c.l.b16 %v292
      %v516 = vunpack.c.h.b16 %v292
      %v517 = vunpack.c.l.b16 %v293
      %v518 = vunpack.c.h.b16 %v293
      %v519 = vunpack.c.l.b16 %v294
      %v520 = vunpack.c.h.b16 %v294
      %v521 = vunpack.c.l.b16 %v295
      %v522 = vunpack.c.h.b16 %v295
      %v523 = vunpack.c.l.b16 %v296
      %v524 = vunpack.c.h.b16 %v296
      %v525 = vpack.c.b16 %v399, %v397
      %v526 = vpack.c.b16 %v400, %v398
      %v527 = vpack.c.b16 %v403, %v401
      %v528 = vpack.c.b16 %v404, %v402
      %v529 = vpack.c.b16 %v407, %v405
      %v530 = vpack.c.b16 %v408, %v406
      %v531 = vpack.c.b16 %v411, %v409
      %v532 = vpack.c.b16 %v412, %v410
      %v533 = vpack.c.b16 %v415, %v413
      %v534 = vpack.c.b16 %v416, %v414
      %v535 = vpack.c.b16 %v419, %v417
      %v536 = vpack.c.b16 %v420, %v418
      %v537 = vpack.c.b16 %v423, %v421
      %v538 = vpack.c.b16 %v424, %v422
      %v539 = vpack.c.b16 %v427, %v425
      %v540 = vpack.c.b16 %v428, %v426
      %v541 = vpack.c.b16 %v431, %v429
      %v542 = vpack.c.b16 %v432, %v430
      %v543 = vpack.c.b16 %v435, %v433
      %v544 = vpack.c.b16 %v436, %v434
      %v545 = vpack.c.b16 %v439, %v437
      %v546 = vpack.c.b16 %v440, %v438
      %v547 = vpack.c.b16 %v443, %v441
      %v548 = vpack.c.b16 %v444, %v442
      %v549 = vpack.c.b16 %v447, %v445
      %v550 = vpack.c.b16 %v448, %v446
      %v551 = vpack.c.b16 %v451, %v449
      %v552 = vpack.c.b16 %v452, %v450
      %v553 = vpack.c.b16 %v455, %v453
      %v554 = vpack.c.b16 %v456, %v454
      %v555 = vpack.c.b16 %v459, %v457
      %v556 = vpack.c.b16 %v460, %v458
      %v557 = vpack.c.b16 %v463, %v461
      %v558 = vpack.c.b16 %v464, %v462
      %v559 = vpack.c.b16 %v467, %v465
      %v560 = vpack.c.b16 %v468, %v466
      %v561 = vpack.c.b16 %v471, %v469
      %v562 = vpack.c.b16 %v472, %v470
      %v563 = vpack.c.b16 %v475, %v473
      %v564 = vpack.c.b16 %v476, %v474
      %v565 = vpack.c.b16 %v479, %v477
      %v566 = vpack.c.b16 %v480, %v478
      %v567 = vpack.c.b16 %v483, %v481
      %v568 = vpack.c.b16 %v484, %v482
      %v569 = vpack.c.b16 %v487, %v485
      %v570 = vpack.c.b16 %v488, %v486
      %v571 = vpack.c.b16 %v491, %v489
      %v572 = vpack.c.b16 %v492, %v490
      %v573 = vpack.c.b16 %v495, %v493
      %v574 = vpack.c.b16 %v496, %v494
      %v575 = vpack.c.b16 %v499, %v497
      %v576 = vpack.c.b16 %v500, %v498
      %v577 = vpack.c.b16 %v503, %v501
      %v578 = vpack.c.b16 %v504, %v502
      %v579 = vpack.c.b16 %v507, %v505
      %v580 = vpack.c.b16 %v508, %v506
      %v581 = vpack.c.b16 %v511, %v509
      %v582 = vpack.c.b16 %v512, %v510
      %v583 = vpack.c.b16 %v515, %v513
      %v584 = vpack.c.b16 %v516, %v514
      %v585 = vpack.c.b16 %v519, %v517
      %v586 = vpack.c.b16 %v520, %v518
      %v587 = vpack.c.b16 %v523, %v521
      %v588 = vpack.c.b16 %v524, %v522
      %v685 = vunpack.c.l.b16 %v297
      %v686 = vunpack.c.l.b16 %v298
      %v687 = vunpack.c.l.b16 %v299
      %v688 = vunpack.c.l.b16 %v300
      %v689 = vunpack.c.l.b16 %v301
      %v690 = vunpack.c.l.b16 %v302
      %v691 = vunpack.c.l.b16 %v303
      %v692 = vunpack.c.l.b16 %v304
      %v693 = vunpack.c.l.b16 %v305
      %v694 = vunpack.c.l.b16 %v306
      %v695 = vunpack.c.l.b16 %v307
      %v696 = vunpack.c.l.b16 %v308
      %v697 = vunpack.c.l.b16 %v309
      %v698 = vunpack.c.l.b16 %v310
      %v699 = vunpack.c.l.b16 %v311
      %v700 = vunpack.c.l.b16 %v312
      %v701 = vunpack.c.l.b16 %v313
      %v702 = vunpack.c.l.b16 %v314
      %v703 = vunpack.c.l.b16 %v315
      %v704 = vunpack.c.l.b16 %v316
      %v705 = vunpack.c.l.b16 %v317
      %v706 = vunpack.c.l.b16 %v318
      %v707 = vunpack.c.l.b16 %v319
      %v708 = vunpack.c.l.b16 %v320
      %v709 = vunpack.c.l.b16 %v321
      %v710 = vunpack.c.l.b16 %v322
      %v711 = vunpack.c.l.b16 %v323
      %v712 = vunpack.c.l.b16 %v324
      %v713 = vunpack.c.l.b16 %v325
      %v714 = vunpack.c.l.b16 %v326
      %v715 = vunpack.c.l.b16 %v327
      %v716 = vunpack.c.l.b16 %v328
      %v717 = vpack.c.b16 %v686, %v685
      %v718 = vpack.c.b16 %v688, %v687
      %v719 = vpack.c.b16 %v690, %v689
      %v720 = vpack.c.b16 %v692, %v691
      %v721 = vpack.c.b16 %v694, %v693
      %v722 = vpack.c.b16 %v696, %v695
      %v723 = vpack.c.b16 %v698, %v697
      %v724 = vpack.c.b16 %v700, %v699
      %v725 = vpack.c.b16 %v702, %v701
      %v726 = vpack.c.b16 %v704, %v703
      %v727 = vpack.c.b16 %v706, %v705
      %v728 = vpack.c.b16 %v708, %v707
      %v729 = vpack.c.b16 %v710, %v709
      %v730 = vpack.c.b16 %v712, %v711
      %v731 = vpack.c.b16 %v714, %v713
      %v732 = vpack.c.b16 %v716, %v715
      %749 = vmatpush.bf16.msra.mxu0 %v724
      %750 = vmatpush.bf16.msra.mxu0 %v723
      %751 = vmatpush.bf16.msra.mxu0 %v722
      %752 = vmatpush.bf16.msra.mxu0 %v721
      %753 = vmatpush.bf16.msra.mxu0 %v720
      %754 = vmatpush.bf16.msra.mxu0 %v719
      %755 = vmatpush.bf16.msra.mxu0 %v718
      %756 = vmatpush.bf16.msra.mxu0 %v717
      %757 = vmatmul.bf16.gmra.mxu0 %v525
      %v758 = vpop.f32.mrf.mxu0
      %v759 = vadd.f32 %v331, %v758
      %v760 = vpop.f32.mrf.mxu0
      %v761 = vadd.f32 %v331, %v760
      %762 = vmatmul.bf16.gmra.mxu0 %v527
      %v763 = vpop.f32.mrf.mxu0
      %v764 = vadd.f32 %v331, %v763
      %v765 = vpop.f32.mrf.mxu0
      %v766 = vadd.f32 %v331, %v765
      %767 = vmatmul.bf16.gmra.mxu0 %v529
      %v768 = vpop.f32.mrf.mxu0
      %v769 = vadd.f32 %v331, %v768
      %v770 = vpop.f32.mrf.mxu0
      %v771 = vadd.f32 %v331, %v770
      %772 = vmatmul.bf16.gmra.mxu0 %v531
      %v773 = vpop.f32.mrf.mxu0
      %v774 = vadd.f32 %v331, %v773
      %v775 = vpop.f32.mrf.mxu0
      %v776 = vadd.f32 %v331, %v775
      %777 = vmatmul.bf16.gmra.mxu0 %v533
      %v778 = vpop.f32.mrf.mxu0
      %v779 = vadd.f32 %v331, %v778
      %v780 = vpop.f32.mrf.mxu0
      %v781 = vadd.f32 %v331, %v780
      %782 = vmatmul.bf16.gmra.mxu0 %v535
      %v783 = vpop.f32.mrf.mxu0
      %v784 = vadd.f32 %v331, %v783
      %v785 = vpop.f32.mrf.mxu0
      %v786 = vadd.f32 %v331, %v785
      %787 = vmatmul.bf16.gmra.mxu0 %v537
      %v788 = vpop.f32.mrf.mxu0
      %v789 = vadd.f32 %v331, %v788
      %v790 = vpop.f32.mrf.mxu0
      %v791 = vadd.f32 %v331, %v790
      %792 = vmatmul.bf16.gmra.mxu0 %v539
      %v793 = vpop.f32.mrf.mxu0
      %v794 = vadd.f32 %v331, %v793
      %v795 = vpop.f32.mrf.mxu0
      %v796 = vadd.f32 %v331, %v795
      %797 = vmatmul.bf16.gmra.mxu0 %v541
      %v798 = vpop.f32.mrf.mxu0
      %v799 = vadd.f32 %v331, %v798
      %v800 = vpop.f32.mrf.mxu0
      %v801 = vadd.f32 %v331, %v800
      %802 = vmatmul.bf16.gmra.mxu0 %v543
      %v803 = vpop.f32.mrf.mxu0
      %v804 = vadd.f32 %v331, %v803
      %v805 = vpop.f32.mrf.mxu0
      %v806 = vadd.f32 %v331, %v805
      %807 = vmatmul.bf16.gmra.mxu0 %v545
      %v808 = vpop.f32.mrf.mxu0
      %v809 = vadd.f32 %v331, %v808
      %v810 = vpop.f32.mrf.mxu0
      %v811 = vadd.f32 %v331, %v810
      %812 = vmatmul.bf16.gmra.mxu0 %v547
      %v813 = vpop.f32.mrf.mxu0
      %v814 = vadd.f32 %v331, %v813
      %v815 = vpop.f32.mrf.mxu0
      %v816 = vadd.f32 %v331, %v815
      %817 = vmatmul.bf16.gmra.mxu0 %v549
      %v818 = vpop.f32.mrf.mxu0
      %v819 = vadd.f32 %v331, %v818
      %v820 = vpop.f32.mrf.mxu0
      %v821 = vadd.f32 %v331, %v820
      %822 = vmatmul.bf16.gmra.mxu0 %v551
      %v823 = vpop.f32.mrf.mxu0
      %v824 = vadd.f32 %v331, %v823
      %v825 = vpop.f32.mrf.mxu0
      %v826 = vadd.f32 %v331, %v825
      %827 = vmatmul.bf16.gmra.mxu0 %v553
      %v828 = vpop.f32.mrf.mxu0
      %v829 = vadd.f32 %v331, %v828
      %v830 = vpop.f32.mrf.mxu0
      %v831 = vadd.f32 %v331, %v830
      %832 = vmatmul.bf16.gmra.mxu0 %v555
      %v833 = vpop.f32.mrf.mxu0
      %v834 = vadd.f32 %v331, %v833
      %v835 = vpop.f32.mrf.mxu0
      %v836 = vadd.f32 %v331, %v835
      %837 = vmatmul.bf16.gmra.mxu0 %v557
      %v838 = vpop.f32.mrf.mxu0
      %v839 = vadd.f32 %v331, %v838
      %v840 = vpop.f32.mrf.mxu0
      %v841 = vadd.f32 %v331, %v840
      %842 = vmatmul.bf16.gmra.mxu0 %v559
      %v843 = vpop.f32.mrf.mxu0
      %v844 = vadd.f32 %v331, %v843
      %v845 = vpop.f32.mrf.mxu0
      %v846 = vadd.f32 %v331, %v845
      %847 = vmatmul.bf16.gmra.mxu0 %v561
      %v848 = vpop.f32.mrf.mxu0
      %v849 = vadd.f32 %v331, %v848
      %v850 = vpop.f32.mrf.mxu0
      %v851 = vadd.f32 %v331, %v850
      %852 = vmatmul.bf16.gmra.mxu0 %v563
      %v853 = vpop.f32.mrf.mxu0
      %v854 = vadd.f32 %v331, %v853
      %v855 = vpop.f32.mrf.mxu0
      %v856 = vadd.f32 %v331, %v855
      %857 = vmatmul.bf16.gmra.mxu0 %v565
      %v858 = vpop.f32.mrf.mxu0
      %v859 = vadd.f32 %v331, %v858
      %v860 = vpop.f32.mrf.mxu0
      %v861 = vadd.f32 %v331, %v860
      %862 = vmatmul.bf16.gmra.mxu0 %v567
      %v863 = vpop.f32.mrf.mxu0
      %v864 = vadd.f32 %v331, %v863
      %v865 = vpop.f32.mrf.mxu0
      %v866 = vadd.f32 %v331, %v865
      %867 = vmatmul.bf16.gmra.mxu0 %v569
      %v868 = vpop.f32.mrf.mxu0
      %v869 = vadd.f32 %v331, %v868
      %v870 = vpop.f32.mrf.mxu0
      %v871 = vadd.f32 %v331, %v870
      %872 = vmatmul.bf16.gmra.mxu0 %v571
      %v873 = vpop.f32.mrf.mxu0
      %v874 = vadd.f32 %v331, %v873
      %v875 = vpop.f32.mrf.mxu0
      %v876 = vadd.f32 %v331, %v875
      %877 = vmatmul.bf16.gmra.mxu0 %v573
      %v878 = vpop.f32.mrf.mxu0
      %v879 = vadd.f32 %v331, %v878
      %v880 = vpop.f32.mrf.mxu0
      %v881 = vadd.f32 %v331, %v880
      %882 = vmatmul.bf16.gmra.mxu0 %v575
      %v883 = vpop.f32.mrf.mxu0
      %v884 = vadd.f32 %v331, %v883
      %v885 = vpop.f32.mrf.mxu0
      %v886 = vadd.f32 %v331, %v885
      %887 = vmatmul.bf16.gmra.mxu0 %v577
      %v888 = vpop.f32.mrf.mxu0
      %v889 = vadd.f32 %v331, %v888
      %v890 = vpop.f32.mrf.mxu0
      %v891 = vadd.f32 %v331, %v890
      %892 = vmatmul.bf16.gmra.mxu0 %v579
      %v893 = vpop.f32.mrf.mxu0
      %v894 = vadd.f32 %v331, %v893
      %v895 = vpop.f32.mrf.mxu0
      %v896 = vadd.f32 %v331, %v895
      %897 = vmatmul.bf16.gmra.mxu0 %v581
      %v898 = vpop.f32.mrf.mxu0
      %v899 = vadd.f32 %v331, %v898
      %v900 = vpop.f32.mrf.mxu0
      %v901 = vadd.f32 %v331, %v900
      %902 = vmatmul.bf16.gmra.mxu0 %v583
      %v903 = vpop.f32.mrf.mxu0
      %v904 = vadd.f32 %v331, %v903
      %v905 = vpop.f32.mrf.mxu0
      %v906 = vadd.f32 %v331, %v905
      %907 = vmatmul.bf16.gmra.mxu0 %v585
      %v908 = vpop.f32.mrf.mxu0
      %v909 = vadd.f32 %v331, %v908
      %v910 = vpop.f32.mrf.mxu0
      %v911 = vadd.f32 %v331, %v910
      %912 = vmatmul.bf16.gmra.mxu0 %v587
      %v913 = vpop.f32.mrf.mxu0
      %v914 = vadd.f32 %v331, %v913
      %v915 = vpop.f32.mrf.mxu0
      %v916 = vadd.f32 %v331, %v915
      %917 = vdwg.mxu0
      %918 = vmatpush.bf16.msra.mxu0 %v732
      %919 = vmatpush.bf16.msra.mxu0 %v731
      %920 = vmatpush.bf16.msra.mxu0 %v730
      %921 = vmatpush.bf16.msra.mxu0 %v729
      %922 = vmatpush.bf16.msra.mxu0 %v728
      %923 = vmatpush.bf16.msra.mxu0 %v727
      %924 = vmatpush.bf16.msra.mxu0 %v726
      %925 = vmatpush.bf16.msra.mxu0 %v725
      %926 = vmatmul.bf16.gmra.mxu0 %v526
      %v927 = vpop.f32.mrf.mxu0
      %v928 = vadd.f32 %v759, %v927
      %v929 = vpop.f32.mrf.mxu0
      %v930 = vadd.f32 %v761, %v929
      %931 = vmatmul.bf16.gmra.mxu0 %v528
      %v932 = vpop.f32.mrf.mxu0
      %v933 = vadd.f32 %v764, %v932
      %v934 = vpop.f32.mrf.mxu0
      %v935 = vadd.f32 %v766, %v934
      %936 = vmatmul.bf16.gmra.mxu0 %v530
      %v937 = vpop.f32.mrf.mxu0
      %v938 = vadd.f32 %v769, %v937
      %v939 = vpop.f32.mrf.mxu0
      %v940 = vadd.f32 %v771, %v939
      %941 = vmatmul.bf16.gmra.mxu0 %v532
      %v942 = vpop.f32.mrf.mxu0
      %v943 = vadd.f32 %v774, %v942
      %v944 = vpop.f32.mrf.mxu0
      %v945 = vadd.f32 %v776, %v944
      %946 = vmatmul.bf16.gmra.mxu0 %v534
      %v947 = vpop.f32.mrf.mxu0
      %v948 = vadd.f32 %v779, %v947
      %v949 = vpop.f32.mrf.mxu0
      %v950 = vadd.f32 %v781, %v949
      %951 = vmatmul.bf16.gmra.mxu0 %v536
      %v952 = vpop.f32.mrf.mxu0
      %v953 = vadd.f32 %v784, %v952
      %v954 = vpop.f32.mrf.mxu0
      %v955 = vadd.f32 %v786, %v954
      %956 = vmatmul.bf16.gmra.mxu0 %v538
      %v957 = vpop.f32.mrf.mxu0
      %v958 = vadd.f32 %v789, %v957
      %v959 = vpop.f32.mrf.mxu0
      %v960 = vadd.f32 %v791, %v959
      %961 = vmatmul.bf16.gmra.mxu0 %v540
      %v962 = vpop.f32.mrf.mxu0
      %v963 = vadd.f32 %v794, %v962
      %v964 = vpop.f32.mrf.mxu0
      %v965 = vadd.f32 %v796, %v964
      %966 = vmatmul.bf16.gmra.mxu0 %v542
      %v967 = vpop.f32.mrf.mxu0
      %v968 = vadd.f32 %v799, %v967
      %v969 = vpop.f32.mrf.mxu0
      %v970 = vadd.f32 %v801, %v969
      %971 = vmatmul.bf16.gmra.mxu0 %v544
      %v972 = vpop.f32.mrf.mxu0
      %v973 = vadd.f32 %v804, %v972
      %v974 = vpop.f32.mrf.mxu0
      %v975 = vadd.f32 %v806, %v974
      %976 = vmatmul.bf16.gmra.mxu0 %v546
      %v977 = vpop.f32.mrf.mxu0
      %v978 = vadd.f32 %v809, %v977
      %v979 = vpop.f32.mrf.mxu0
      %v980 = vadd.f32 %v811, %v979
      %981 = vmatmul.bf16.gmra.mxu0 %v548
      %v982 = vpop.f32.mrf.mxu0
      %v983 = vadd.f32 %v814, %v982
      %v984 = vpop.f32.mrf.mxu0
      %v985 = vadd.f32 %v816, %v984
      %986 = vmatmul.bf16.gmra.mxu0 %v550
      %v987 = vpop.f32.mrf.mxu0
      %v988 = vadd.f32 %v819, %v987
      %v989 = vpop.f32.mrf.mxu0
      %v990 = vadd.f32 %v821, %v989
      %991 = vmatmul.bf16.gmra.mxu0 %v552
      %v992 = vpop.f32.mrf.mxu0
      %v993 = vadd.f32 %v824, %v992
      %v994 = vpop.f32.mrf.mxu0
      %v995 = vadd.f32 %v826, %v994
      %996 = vmatmul.bf16.gmra.mxu0 %v554
      %v997 = vpop.f32.mrf.mxu0
      %v998 = vadd.f32 %v829, %v997
      %v999 = vpop.f32.mrf.mxu0
      %v1000 = vadd.f32 %v831, %v999
      %1001 = vmatmul.bf16.gmra.mxu0 %v556
      %v1002 = vpop.f32.mrf.mxu0
      %v1003 = vadd.f32 %v834, %v1002
      %v1004 = vpop.f32.mrf.mxu0
      %v1005 = vadd.f32 %v836, %v1004
      %1006 = vmatmul.bf16.gmra.mxu0 %v558
      %v1007 = vpop.f32.mrf.mxu0
      %v1008 = vadd.f32 %v839, %v1007
      %v1009 = vpop.f32.mrf.mxu0
      %v1010 = vadd.f32 %v841, %v1009
      %1011 = vmatmul.bf16.gmra.mxu0 %v560
      %v1012 = vpop.f32.mrf.mxu0
      %v1013 = vadd.f32 %v844, %v1012
      %v1014 = vpop.f32.mrf.mxu0
      %v1015 = vadd.f32 %v846, %v1014
      %1016 = vmatmul.bf16.gmra.mxu0 %v562
      %v1017 = vpop.f32.mrf.mxu0
      %v1018 = vadd.f32 %v849, %v1017
      %v1019 = vpop.f32.mrf.mxu0
      %v1020 = vadd.f32 %v851, %v1019
      %1021 = vmatmul.bf16.gmra.mxu0 %v564
      %v1022 = vpop.f32.mrf.mxu0
      %v1023 = vadd.f32 %v854, %v1022
      %v1024 = vpop.f32.mrf.mxu0
      %v1025 = vadd.f32 %v856, %v1024
      %1026 = vmatmul.bf16.gmra.mxu0 %v566
      %v1027 = vpop.f32.mrf.mxu0
      %v1028 = vadd.f32 %v859, %v1027
      %v1029 = vpop.f32.mrf.mxu0
      %v1030 = vadd.f32 %v861, %v1029
      %1031 = vmatmul.bf16.gmra.mxu0 %v568
      %v1032 = vpop.f32.mrf.mxu0
      %v1033 = vadd.f32 %v864, %v1032
      %v1034 = vpop.f32.mrf.mxu0
      %v1035 = vadd.f32 %v866, %v1034
      %1036 = vmatmul.bf16.gmra.mxu0 %v570
      %v1037 = vpop.f32.mrf.mxu0
      %v1038 = vadd.f32 %v869, %v1037
      %v1039 = vpop.f32.mrf.mxu0
      %v1040 = vadd.f32 %v871, %v1039
      %1041 = vmatmul.bf16.gmra.mxu0 %v572
      %v1042 = vpop.f32.mrf.mxu0
      %v1043 = vadd.f32 %v874, %v1042
      %v1044 = vpop.f32.mrf.mxu0
      %v1045 = vadd.f32 %v876, %v1044
      %1046 = vmatmul.bf16.gmra.mxu0 %v574
      %v1047 = vpop.f32.mrf.mxu0
      %v1048 = vadd.f32 %v879, %v1047
      %v1049 = vpop.f32.mrf.mxu0
      %v1050 = vadd.f32 %v881, %v1049
      %1051 = vmatmul.bf16.gmra.mxu0 %v576
      %v1052 = vpop.f32.mrf.mxu0
      %v1053 = vadd.f32 %v884, %v1052
      %v1054 = vpop.f32.mrf.mxu0
      %v1055 = vadd.f32 %v886, %v1054
      %1056 = vmatmul.bf16.gmra.mxu0 %v578
      %v1057 = vpop.f32.mrf.mxu0
      %v1058 = vadd.f32 %v889, %v1057
      %v1059 = vpop.f32.mrf.mxu0
      %v1060 = vadd.f32 %v891, %v1059
      %1061 = vmatmul.bf16.gmra.mxu0 %v580
      %v1062 = vpop.f32.mrf.mxu0
      %v1063 = vadd.f32 %v894, %v1062
      %v1064 = vpop.f32.mrf.mxu0
      %v1065 = vadd.f32 %v896, %v1064
      %1066 = vmatmul.bf16.gmra.mxu0 %v582
      %v1067 = vpop.f32.mrf.mxu0
      %v1068 = vadd.f32 %v899, %v1067
      %v1069 = vpop.f32.mrf.mxu0
      %v1070 = vadd.f32 %v901, %v1069
      %1071 = vmatmul.bf16.gmra.mxu0 %v584
      %v1072 = vpop.f32.mrf.mxu0
      %v1073 = vadd.f32 %v904, %v1072
      %v1074 = vpop.f32.mrf.mxu0
      %v1075 = vadd.f32 %v906, %v1074
      %1076 = vmatmul.bf16.gmra.mxu0 %v586
      %v1077 = vpop.f32.mrf.mxu0
      %v1078 = vadd.f32 %v909, %v1077
      %v1079 = vpop.f32.mrf.mxu0
      %v1080 = vadd.f32 %v911, %v1079
      %1081 = vmatmul.bf16.gmra.mxu0 %v588
      %v1082 = vpop.f32.mrf.mxu0
      %v1083 = vadd.f32 %v914, %v1082
      %v1084 = vpop.f32.mrf.mxu0
      %v1085 = vadd.f32 %v916, %v1084
      %1086 = vdwg.mxu0
      %v1087 = vmax.f32 %v928, 0.0
      %v1088 = vmax.f32 %v930, 0.0
      %v1089 = vmax.f32 %v933, 0.0
      %v1090 = vmax.f32 %v935, 0.0
      %v1091 = vmax.f32 %v938, 0.0
      %v1092 = vmax.f32 %v940, 0.0
      %v1093 = vmax.f32 %v943, 0.0
      %v1094 = vmax.f32 %v945, 0.0
      %v1095 = vmax.f32 %v948, 0.0
      %v1096 = vmax.f32 %v950, 0.0
      %v1097 = vmax.f32 %v953, 0.0
      %v1098 = vmax.f32 %v955, 0.0
      %v1099 = vmax.f32 %v958, 0.0
      %v1100 = vmax.f32 %v960, 0.0
      %v1101 = vmax.f32 %v963, 0.0
      %v1102 = vmax.f32 %v965, 0.0
      %v1103 = vmax.f32 %v968, 0.0
      %v1104 = vmax.f32 %v970, 0.0
      %v1105 = vmax.f32 %v973, 0.0
      %v1106 = vmax.f32 %v975, 0.0
      %v1107 = vmax.f32 %v978, 0.0
      %v1108 = vmax.f32 %v980, 0.0
      %v1109 = vmax.f32 %v983, 0.0
      %v1110 = vmax.f32 %v985, 0.0
      %v1111 = vmax.f32 %v988, 0.0
      %v1112 = vmax.f32 %v990, 0.0
      %v1113 = vmax.f32 %v993, 0.0
      %v1114 = vmax.f32 %v995, 0.0
      %v1115 = vmax.f32 %v998, 0.0
      %v1116 = vmax.f32 %v1000, 0.0
      %v1117 = vmax.f32 %v1003, 0.0
      %v1118 = vmax.f32 %v1005, 0.0
      %v1119 = vmax.f32 %v1008, 0.0
      %v1120 = vmax.f32 %v1010, 0.0
      %v1121 = vmax.f32 %v1013, 0.0
      %v1122 = vmax.f32 %v1015, 0.0
      %v1123 = vmax.f32 %v1018, 0.0
      %v1124 = vmax.f32 %v1020, 0.0
      %v1125 = vmax.f32 %v1023, 0.0
      %v1126 = vmax.f32 %v1025, 0.0
      %v1127 = vmax.f32 %v1028, 0.0
      %v1128 = vmax.f32 %v1030, 0.0
      %v1129 = vmax.f32 %v1033, 0.0
      %v1130 = vmax.f32 %v1035, 0.0
      %v1131 = vmax.f32 %v1038, 0.0
      %v1132 = vmax.f32 %v1040, 0.0
      %v1133 = vmax.f32 %v1043, 0.0
      %v1134 = vmax.f32 %v1045, 0.0
      %v1135 = vmax.f32 %v1048, 0.0
      %v1136 = vmax.f32 %v1050, 0.0
      %v1137 = vmax.f32 %v1053, 0.0
      %v1138 = vmax.f32 %v1055, 0.0
      %v1139 = vmax.f32 %v1058, 0.0
      %v1140 = vmax.f32 %v1060, 0.0
      %v1141 = vmax.f32 %v1063, 0.0
      %v1142 = vmax.f32 %v1065, 0.0
      %v1143 = vmax.f32 %v1068, 0.0
      %v1144 = vmax.f32 %v1070, 0.0
      %v1145 = vmax.f32 %v1073, 0.0
      %v1146 = vmax.f32 %v1075, 0.0
      %v1147 = vmax.f32 %v1078, 0.0
      %v1148 = vmax.f32 %v1080, 0.0
      %v1149 = vmax.f32 %v1083, 0.0
      %v1150 = vmax.f32 %v1085, 0.0
      %v1151 = vpack.c.bf16 %v1087, %v1087
      %v1152 = vpack.c.bf16 %v1088, %v1088
      %v1153 = vpack.c.bf16 %v1089, %v1089
      %v1154 = vpack.c.bf16 %v1090, %v1090
      %v1155 = vpack.c.bf16 %v1091, %v1091
      %v1156 = vpack.c.bf16 %v1092, %v1092
      %v1157 = vpack.c.bf16 %v1093, %v1093
      %v1158 = vpack.c.bf16 %v1094, %v1094
      %v1159 = vpack.c.bf16 %v1095, %v1095
      %v1160 = vpack.c.bf16 %v1096, %v1096
      %v1161 = vpack.c.bf16 %v1097, %v1097
      %v1162 = vpack.c.bf16 %v1098, %v1098
      %v1163 = vpack.c.bf16 %v1099, %v1099
      %v1164 = vpack.c.bf16 %v1100, %v1100
      %v1165 = vpack.c.bf16 %v1101, %v1101
      %v1166 = vpack.c.bf16 %v1102, %v1102
      %v1167 = vpack.c.bf16 %v1103, %v1103
      %v1168 = vpack.c.bf16 %v1104, %v1104
      %v1169 = vpack.c.bf16 %v1105, %v1105
      %v1170 = vpack.c.bf16 %v1106, %v1106
      %v1171 = vpack.c.bf16 %v1107, %v1107
      %v1172 = vpack.c.bf16 %v1108, %v1108
      %v1173 = vpack.c.bf16 %v1109, %v1109
      %v1174 = vpack.c.bf16 %v1110, %v1110
      %v1175 = vpack.c.bf16 %v1111, %v1111
      %v1176 = vpack.c.bf16 %v1112, %v1112
      %v1177 = vpack.c.bf16 %v1113, %v1113
      %v1178 = vpack.c.bf16 %v1114, %v1114
      %v1179 = vpack.c.bf16 %v1115, %v1115
      %v1180 = vpack.c.bf16 %v1116, %v1116
      %v1181 = vpack.c.bf16 %v1117, %v1117
      %v1182 = vpack.c.bf16 %v1118, %v1118
      %v1183 = vpack.c.bf16 %v1119, %v1119
      %v1184 = vpack.c.bf16 %v1120, %v1120
      %v1185 = vpack.c.bf16 %v1121, %v1121
      %v1186 = vpack.c.bf16 %v1122, %v1122
      %v1187 = vpack.c.bf16 %v1123, %v1123
      %v1188 = vpack.c.bf16 %v1124, %v1124
      %v1189 = vpack.c.bf16 %v1125, %v1125
      %v1190 = vpack.c.bf16 %v1126, %v1126
      %v1191 = vpack.c.bf16 %v1127, %v1127
      %v1192 = vpack.c.bf16 %v1128, %v1128
      %v1193 = vpack.c.bf16 %v1129, %v1129
      %v1194 = vpack.c.bf16 %v1130, %v1130
      %v1195 = vpack.c.bf16 %v1131, %v1131
      %v1196 = vpack.c.bf16 %v1132, %v1132
      %v1197 = vpack.c.bf16 %v1133, %v1133
      %v1198 = vpack.c.bf16 %v1134, %v1134
      %v1199 = vpack.c.bf16 %v1135, %v1135
      %v1200 = vpack.c.bf16 %v1136, %v1136
      %v1201 = vpack.c.bf16 %v1137, %v1137
      %v1202 = vpack.c.bf16 %v1138, %v1138
      %v1203 = vpack.c.bf16 %v1139, %v1139
      %v1204 = vpack.c.bf16 %v1140, %v1140
      %v1205 = vpack.c.bf16 %v1141, %v1141
      %v1206 = vpack.c.bf16 %v1142, %v1142
      %v1207 = vpack.c.bf16 %v1143, %v1143
      %v1208 = vpack.c.bf16 %v1144, %v1144
      %v1209 = vpack.c.bf16 %v1145, %v1145
      %v1210 = vpack.c.bf16 %v1146, %v1146
      %v1211 = vpack.c.bf16 %v1147, %v1147
      %v1212 = vpack.c.bf16 %v1148, %v1148
      %v1213 = vpack.c.bf16 %v1149, %v1149
      %v1214 = vpack.c.bf16 %v1150, %v1150
      %1215 = vst [vmem:[%s231] sm:$0xf] %v1151
      %1216 = vst [vmem:[%s231 + $0x4] sm:$0xf] %v1152
      %1217 = vst [vmem:[%s231 + $0x8] sm:$0xf] %v1153
      %1218 = vst [vmem:[%s231 + $0xc] sm:$0xf] %v1154
      %1219 = vst [vmem:[%s231 + $0x10] sm:$0xf] %v1155
      %1220 = vst [vmem:[%s231 + $0x14] sm:$0xf] %v1156
      %1221 = vst [vmem:[%s231 + $0x18] sm:$0xf] %v1157
      %1222 = vst [vmem:[%s231 + $0x1c] sm:$0xf] %v1158
      %1223 = vst [vmem:[%s231 + $0x20] sm:$0xf] %v1159
      %1224 = vst [vmem:[%s231 + $0x24] sm:$0xf] %v1160
      %1225 = vst [vmem:[%s231 + $0x28] sm:$0xf] %v1161
      %1226 = vst [vmem:[%s231 + $0x2c] sm:$0xf] %v1162
      %1227 = vst [vmem:[%s231 + $0x30] sm:$0xf] %v1163
      %1228 = vst [vmem:[%s231 + $0x34] sm:$0xf] %v1164
      %1229 = vst [vmem:[%s231 + $0x38] sm:$0xf] %v1165
      %1230 = vst [vmem:[%s231 + $0x3c] sm:$0xf] %v1166
      %1231 = vst [vmem:[%s231 + $0x40] sm:$0xf] %v1167
      %1232 = vst [vmem:[%s231 + $0x44] sm:$0xf] %v1168
      %1233 = vst [vmem:[%s231 + $0x48] sm:$0xf] %v1169
      %1234 = vst [vmem:[%s231 + $0x4c] sm:$0xf] %v1170
      %1235 = vst [vmem:[%s231 + $0x50] sm:$0xf] %v1171
      %1236 = vst [vmem:[%s231 + $0x54] sm:$0xf] %v1172
      %1237 = vst [vmem:[%s231 + $0x58] sm:$0xf] %v1173
      %1238 = vst [vmem:[%s231 + $0x5c] sm:$0xf] %v1174
      %1239 = vst [vmem:[%s231 + $0x60] sm:$0xf] %v1175
      %1240 = vst [vmem:[%s231 + $0x64] sm:$0xf] %v1176
      %1241 = vst [vmem:[%s231 + $0x68] sm:$0xf] %v1177
      %1242 = vst [vmem:[%s231 + $0x6c] sm:$0xf] %v1178
      %1243 = vst [vmem:[%s231 + $0x70] sm:$0xf] %v1179
      %1244 = vst [vmem:[%s231 + $0x74] sm:$0xf] %v1180
      %1245 = vst [vmem:[%s231 + $0x78] sm:$0xf] %v1181
      %1246 = vst [vmem:[%s231 + $0x7c] sm:$0xf] %v1182
      %1247 = vst [vmem:[%s231 + $0x80] sm:$0xf] %v1183
      %1248 = vst [vmem:[%s231 + $0x84] sm:$0xf] %v1184
      %1249 = vst [vmem:[%s231 + $0x88] sm:$0xf] %v1185
      %1250 = vst [vmem:[%s231 + $0x8c] sm:$0xf] %v1186
      %1251 = vst [vmem:[%s231 + $0x90] sm:$0xf] %v1187
      %1252 = vst [vmem:[%s231 + $0x94] sm:$0xf] %v1188
      %1253 = vst [vmem:[%s231 + $0x98] sm:$0xf] %v1189
      %1254 = vst [vmem:[%s231 + $0x9c] sm:$0xf] %v1190
      %1255 = vst [vmem:[%s231 + $0xa0] sm:$0xf] %v1191
      %1256 = vst [vmem:[%s231 + $0xa4] sm:$0xf] %v1192
      %1257 = vst [vmem:[%s231 + $0xa8] sm:$0xf] %v1193
      %1258 = vst [vmem:[%s231 + $0xac] sm:$0xf] %v1194
      %1259 = vst [vmem:[%s231 + $0xb0] sm:$0xf] %v1195
      %1260 = vst [vmem:[%s231 + $0xb4] sm:$0xf] %v1196
      %1261 = vst [vmem:[%s231 + $0xb8] sm:$0xf] %v1197
      %1262 = vst [vmem:[%s231 + $0xbc] sm:$0xf] %v1198
      %1263 = vst [vmem:[%s231 + $0xc0] sm:$0xf] %v1199
      %1264 = vst [vmem:[%s231 + $0xc4] sm:$0xf] %v1200
      %1265 = vst [vmem:[%s231 + $0xc8] sm:$0xf] %v1201
      %1266 = vst [vmem:[%s231 + $0xcc] sm:$0xf] %v1202
      %1267 = vst [vmem:[%s231 + $0xd0] sm:$0xf] %v1203
      %1268 = vst [vmem:[%s231 + $0xd4] sm:$0xf] %v1204
      %1269 = vst [vmem:[%s231 + $0xd8] sm:$0xf] %v1205
      %1270 = vst [vmem:[%s231 + $0xdc] sm:$0xf] %v1206
      %1271 = vst [vmem:[%s231 + $0xe0] sm:$0xf] %v1207
      %1272 = vst [vmem:[%s231 + $0xe4] sm:$0xf] %v1208
      %1273 = vst [vmem:[%s231 + $0xe8] sm:$0xf] %v1209
      %1274 = vst [vmem:[%s231 + $0xec] sm:$0xf] %v1210
      %1275 = vst [vmem:[%s231 + $0xf0] sm:$0xf] %v1211
      %1276 = vst [vmem:[%s231 + $0xf4] sm:$0xf] %v1212
      %1277 = vst [vmem:[%s231 + $0xf8] sm:$0xf] %v1213
      %1278 = vst [vmem:[%s231 + $0xfc] sm:$0xf] %v1214
      %s1279 = smul.u32 64, %s19
      %p1280 = scmp.lt.s32.totalorder %s18, 3
      %s1281 = scalar_select %p1280, %s18, 3
      %p1282 = scmp.lt.s32.totalorder %s1279, 63
      %s1283 = scalar_select %p1282, %s1279, 63
      %s1284 = smul.addr %s1281, 64
      %s1285 = sadd.s32 %s1283, %s1284
      %s1286 = smul.addr %s1285, 4
      %s1287 = scalar_lea.vmem %s3, %s1286
      // Predicated region
      $region33: #{_lambda_.25} parent=31 // pred_check
        %p1288 = pneg %p121
      $region34: #{_lambda_.25} parent=31 // pred_check_branch
        %1290 = sbr.rel (%p1288) target = $region36
      $region35: #{_lambda_.25} parent=31 // pred_region
        %s1291 = smul.u32 64, %s19
      $region36: #{_lambda_.25} parent=31 // pred_fallthru
        _
    $region32: #{_lambda_.25} parent=5 // pred_fallthru
      _
    %p1292 = scmp.le.s32.totalorder 2, %s9
    // Predicated region
    $region37: #{_lambda_.25} parent=5 // pred_check
      %p1293 = pneg %p1292
    $region38: #{_lambda_.25} parent=5 // pred_check_branch
      %1295 = sbr.rel (%p1293) target = $region40
    $region39: #{_lambda_.25} parent=5 // pred_region
      %s1296 = ssub.s32 %s9, 2
      // Predicated region
      $region41: #{_lambda_.25} parent=39 // pred_check
        %p1297 = pneg %p127
      $region42: #{_lambda_.25} parent=39 // pred_check_branch
        %1299 = sbr.rel (%p1297) target = $region44
      $region43: #{_lambda_.25} parent=39 // pred_region
        %s1300 = smul.u32 64, %s21
        %p1301 = scmp.lt.s32.totalorder %s20, 3
        %s1302 = scalar_select %p1301, %s20, 3
        %p1303 = scmp.lt.s32.totalorder %s1300, 63
        %s1304 = scalar_select %p1303, %s1300, 63
        %s1305 = smul.addr %s1302, 64
        %s1306 = sadd.s32 %s1304, %s1305
        %s1307 = smul.addr %s1306, 4
        %s1308 = scalar_lea.vmem %s3, %s1307
      $region44: #{_lambda_.25} parent=39 // pred_fallthru
        _
    $region40: #{_lambda_.25} parent=5 // pred_fallthru
      _
  $region6: #{_lambda_.25} parent=0 // loop_footer
    %s13 = sadd.s32 1, %s9
  $region7: #{_lambda_.25} parent=0 // loop_footer_branch
    %8 = sbr.rel target = $region3
  $region8: #{_lambda_.25} parent=0 // loop_exit
    _

// kernel: _lambda_.26
$region0: #{_lambda_.26}
  #allocation0 [shape = 'u32[]', space=smem, size = 0x4, offset = 0x4, fixed_abs, tag = 'smem constant byte address 0x4 - core index']
  #allocation1 [shape = 'u32[72,128]{1,0:T(1,128)}', space=vmem, size = 0x9000, scoped, tag = 'internal scratch']
  %s0 = inlined_call_operand.vmem [shape: bf16[4,2048,128], index: 0, kind: input, shape index: {}]
  %s1 = inlined_call_operand.vmem [shape: bf16[4,128,128], index: 1, kind: input, shape index: {}]
  %s2 = inlined_call_operand.vmem [shape: f32[1,128], index: 2, kind: input, shape index: {}]
  %s3 = inlined_call_operand.vmem [shape: bf16[4,2048,128], index: 3, kind: output, shape index: {}]
  %s4 = sld [smem:[#allocation0]]
  $region45: #{_lambda_.26} parent=0
    _
  %s6 = ssub.s32 1, %s4
  %s7 = scalar_select 0, %s6, %s4
  loop: start=0, step=1, limit=18
  $region2: #{_lambda_.26} parent=0 // loop_pre_header
    _
  $region3: #{_lambda_.26} parent=0 // loop_header
    %s9 = sphi 0, %s13
    %p10 = scmp.ge.s32.totalorder %s9, 18
    %s16 = sphi 0, %s28
    %s17 = sphi 0, %s24
    %s18 = sphi 0, %s16
    %s19 = sphi 0, %s17
    %s20 = sphi 0, %s18
    %s21 = sphi 0, %s19
    %s33 = sphi 0, %s35
    %s36 = sphi 0, %s33
    %s37 = sphi 0, %s36
    %s53 = sphi 0, %s37
    %s59 = sphi 0, %s61
    %s62 = sphi 0, %s59
    %s63 = sphi 0, %s62
    %s79 = sphi 0, %s63
    %s83 = sphi 0, %s83
    %s85 = sphi 0, %s83
    %s86 = sphi 0, %s85
    %s100 = sphi 0, %s86
    %s108 = sphi 0, %s110
    %s111 = sphi 0, %s108
    %s112 = sphi 0, %s111
    %s128 = sphi 0, %s112
  $region4: #{_lambda_.26} parent=0 // loop_header_branch
    %12 = sbr.rel (%p10) target = $region8
  $region5: #{_lambda_.26} parent=0 // loop_body
    %s14 = ssub.s32 %s9, 1
    %s15 = ssub.s32 %s9, 2
    %s22 = sadd.s32 1, %s17
    %p23 = scmp.ge.s32.totalorder %s22, 4
    %s24 = scalar_select %p23, 0, %s22
    %s25 = sadd.s32 1, %s16
    %s26 = scalar_select %p23, %s25, %s16
    %p27 = scmp.ge.s32.totalorder %s26, 4
    %s28 = scalar_select %p27, 0, %s26
    %s29 = ssub.s32 %s16, %s28
    %s30 = ssub.s32 %s17, %s24
    %s31 = sor.u32 %s29, %s30
    %p32 = scmp.eq.s32.totalorder %s31, 0
    %s34 = sadd.s32 %s33, 1
    %s35 = scalar_select %p32, %s33, %s34
    %p38 = pneg %p32
    %p39 = scmp.eq.s32.totalorder %s9, 15
    %p40 = por %p38, %p39
    %p41 = scmp.ne.s32.totalorder %s33, %s36
    %p42 = scmp.eq.s32.totalorder %s9, 0
    %p43 = por %p41, %p42
    %p44 = scmp.ne.s32.totalorder %s33, %s36
    %p45 = scmp.eq.s32.totalorder %s14, 15
    %p46 = por %p44, %p45
    %p47 = scmp.ne.s32.totalorder %s36, %s37
    %p48 = scmp.eq.s32.totalorder %s14, 0
    %p49 = por %p47, %p48
    %p50 = scmp.ne.s32.totalorder %s36, %s37
    %p51 = scmp.eq.s32.totalorder %s15, 15
    %p52 = por %p50, %p51
    %p54 = scmp.ne.s32.totalorder %s37, %s53
    %p55 = scmp.eq.s32.totalorder %s15, 0
    %p56 = por %p54, %p55
    %s57 = ssub.s32 %s16, %s28
    %p58 = scmp.eq.s32.totalorder %s57, 0
    %s60 = sadd.s32 %s59, 1
    %s61 = scalar_select %p58, %s59, %s60
    %p64 = pneg %p58
    %p65 = scmp.eq.s32.totalorder %s9, 15
    %p66 = por %p64, %p65
    %p67 = scmp.ne.s32.totalorder %s59, %s62
    %p68 = scmp.eq.s32.totalorder %s9, 0
    %p69 = por %p67, %p68
    %p70 = scmp.ne.s32.totalorder %s59, %s62
    %p71 = scmp.eq.s32.totalorder %s14, 15
    %p72 = por %p70, %p71
    %p73 = scmp.ne.s32.totalorder %s62, %s63
    %p74 = scmp.eq.s32.totalorder %s14, 0
    %p75 = por %p73, %p74
    %p76 = scmp.ne.s32.totalorder %s62, %s63
    %p77 = scmp.eq.s32.totalorder %s15, 15
    %p78 = por %p76, %p77
    %p80 = scmp.ne.s32.totalorder %s63, %s79
    %p81 = scmp.eq.s32.totalorder %s15, 0
    %p82 = por %p80, %p81
    %s84 = sadd.s32 %s83, 1
    %p87 = scmp.eq.s32.totalorder %s9, 15
    %p88 = scmp.ne.s32.totalorder %s83, %s85
    %p89 = scmp.eq.s32.totalorder %s9, 0
    %p90 = por %p88, %p89
    %p91 = scmp.ne.s32.totalorder %s83, %s85
    %p92 = scmp.eq.s32.totalorder %s14, 15
    %p93 = por %p91, %p92
    %p94 = scmp.ne.s32.totalorder %s85, %s86
    %p95 = scmp.eq.s32.totalorder %s14, 0
    %p96 = por %p94, %p95
    %p97 = scmp.ne.s32.totalorder %s85, %s86
    %p98 = scmp.eq.s32.totalorder %s15, 15
    %p99 = por %p97, %p98
    %p101 = scmp.ne.s32.totalorder %s86, %s100
    %p102 = scmp.eq.s32.totalorder %s15, 0
    %p103 = por %p101, %p102
    %s104 = ssub.s32 %s16, %s28
    %s105 = ssub.s32 %s17, %s24
    %s106 = sor.u32 %s104, %s105
    %p107 = scmp.eq.s32.totalorder %s106, 0
    %s109 = sadd.s32 %s108, 1
    %s110 = scalar_select %p107, %s108, %s109
    %p113 = pneg %p107
    %p114 = scmp.eq.s32.totalorder %s9, 15
    %p115 = por %p113, %p114
    %p116 = scmp.ne.s32.totalorder %s108, %s111
    %p117 = scmp.eq.s32.totalorder %s9, 0
    %p118 = por %p116, %p117
    %p119 = scmp.ne.s32.totalorder %s108, %s111
    %p120 = scmp.eq.s32.totalorder %s14, 15
    %p121 = por %p119, %p120
    %p122 = scmp.ne.s32.totalorder %s111, %s112
    %p123 = scmp.eq.s32.totalorder %s14, 0
    %p124 = por %p122, %p123
    %p125 = scmp.ne.s32.totalorder %s111, %s112
    %p126 = scmp.eq.s32.totalorder %s15, 15
    %p127 = por %p125, %p126
    %p129 = scmp.ne.s32.totalorder %s112, %s128
    %p130 = scmp.eq.s32.totalorder %s15, 0
    %p131 = por %p129, %p130
    %p132 = scmp.le.s32.totalorder 1, %s9
    %p133 = scmp.lt.s32.totalorder %s9, 17
    %p134 = pnand %p132, %p133
    %p135 = pneg %p134
    // Predicated region
    $region9: #{_lambda_.26} parent=5 // pred_check
      _
    $region10: #{_lambda_.26} parent=5 // pred_check_branch
      %137 = sbr.rel (%p134) target = $region12
    $region11: #{_lambda_.26} parent=5 // pred_region
      %s138 = ssub.s32 %s9, 1
      // Predicated region
      $region13: #{_lambda_.26} parent=11 // pred_check
        %p139 = pneg %p96
      $region14: #{_lambda_.26} parent=11 // pred_check_branch
        %141 = sbr.rel (%p139) target = $region16
      $region15: #{_lambda_.26} parent=11 // pred_region
        _
      $region16: #{_lambda_.26} parent=11 // pred_fallthru
        _
    $region12: #{_lambda_.26} parent=5 // pred_fallthru
      _
    %p142 = scmp.lt.s32.totalorder %s9, 16
    // Predicated region
    $region17: #{_lambda_.26} parent=5 // pred_check
      %p143 = pneg %p142
    $region18: #{_lambda_.26} parent=5 // pred_check_branch
      %145 = sbr.rel (%p143) target = $region20
    $region19: #{_lambda_.26} parent=5 // pred_region
      // Predicated region
      $region21: #{_lambda_.26} parent=19 // pred_check
        %p146 = pneg %p43
      $region22: #{_lambda_.26} parent=19 // pred_check_branch
        %148 = sbr.rel (%p146) target = $region24
      $region23: #{_lambda_.26} parent=19 // pred_region
        %s149 = smul.u32 64, %s17
        %p150 = scmp.lt.s32.totalorder %s16, 3
        %s151 = scalar_select %p150, %s16, 3
        %p152 = scmp.lt.s32.totalorder %s149, 255
        %s153 = scalar_select %p152, %s149, 255
        %s154 = smul.addr %s151, 256
        %s155 = sadd.s32 %s153, %s154
        %s156 = smul.addr %s155, 4
        %s157 = scalar_lea.vmem %s0, %s156
        %s158 = smul.u32 64, %s17
      $region24: #{_lambda_.26} parent=19 // pred_fallthru
        _
      // Predicated region
      $region25: #{_lambda_.26} parent=19 // pred_check
        %p159 = pneg %p69
      $region26: #{_lambda_.26} parent=19 // pred_check_branch
        %161 = sbr.rel (%p159) target = $region28
      $region27: #{_lambda_.26} parent=19 // pred_region
        %p162 = scmp.lt.s32.totalorder %s16, 3
        %s163 = scalar_select %p162, %s16, 3
        %s164 = smul.addr %s163, 16
        %s165 = smul.addr %s164, 4
        %s166 = scalar_lea.vmem %s1, %s165
      $region28: #{_lambda_.26} parent=19 // pred_fallthru
        _
    $region20: #{_lambda_.26} parent=5 // pred_fallthru
      _
    %p167 = scmp.le.s32.totalorder 1, %s9
    %p168 = scmp.lt.s32.totalorder %s9, 17
    %p169 = pnand %p167, %p168
    %p170 = pneg %p169
    // Predicated region
    $region29: #{_lambda_.26} parent=5 // pred_check
      _
    $region30: #{_lambda_.26} parent=5 // pred_check_branch
      %172 = sbr.rel (%p169) target = $region32
    $region31: #{_lambda_.26} parent=5 // pred_region
      %s173 = ssub.s32 %s9, 1
      %s174 = smul.u32 64, %s19
      %p175 = scmp.lt.s32.totalorder %s18, 3
      %s176 = scalar_select %p175, %s18, 3
      %p177 = scmp.lt.s32.totalorder %s174, 255
      %s178 = scalar_select %p177, %s174, 255
      %s179 = smul.addr %s176, 256
      %s180 = sadd.s32 %s178, %s179
      %s181 = smul.addr %s180, 4
      %s182 = scalar_lea.vmem %s0, %s181
      %p183 = pneg %p49
      %p184 = pneg %p46
      %p185 = scmp.lt.s32.totalorder %s18, 3
      %s186 = scalar_select %p185, %s18, 3
      %s187 = smul.addr %s186, 16
      %s188 = smul.addr %s187, 4
      %s189 = scalar_lea.vmem %s1, %s188
      %p190 = pneg %p75
      %p191 = pneg %p72
      %p192 = pneg %p96
      %p193 = pneg %p93
      %p194 = pneg %p124
      %p195 = pneg %p121
      %s196 = smul.u32 64, %s19
      %p197 = scmp.lt.s32.totalorder %s18, 3
      %s198 = scalar_select %p197, %s18, 3
      %p199 = scmp.lt.s32.totalorder %s196, 255
      %s200 = scalar_select %p199, %s196, 255
      %s201 = smul.addr %s198, 256
      %s202 = sadd.s32 %s200, %s201
      %s203 = smul.addr %s202, 4
      %s204 = scalar_lea.vmem %s3, %s203
      %s205 = smul.u32 64, %s19
      %p206 = scmp.lt.s32.totalorder %s18, 3
      %s207 = scalar_select %p206, %s18, 3
      %p208 = scmp.lt.s32.totalorder %s205, 255
      %s209 = scalar_select %p208, %s205, 255
      %s210 = smul.addr %s207, 256
      %s211 = sadd.s32 %s209, %s210
      %s212 = smul.addr %s211, 4
      %s213 = scalar_lea.vmem %s0, %s212
      %s214 = smul.u32 64, %s19
      %p215 = scmp.lt.s32.totalorder %s18, 3
      %s216 = scalar_select %p215, %s18, 3
      %s217 = smul.addr %s216, 16
      %s218 = smul.addr %s217, 4
      %s219 = scalar_lea.vmem %s1, %s218
      %s220 = smul.u32 64, %s19
      %p221 = scmp.lt.s32.totalorder %s18, 3
      %s222 = scalar_select %p221, %s18, 3
      %p223 = scmp.lt.s32.totalorder %s220, 255
      %s224 = scalar_select %p223, %s220, 255
      %s225 = smul.addr %s222, 256
      %s226 = sadd.s32 %s224, %s225
      %s227 = smul.addr %s226, 4
      %s228 = scalar_lea.vmem %s3, %s227
      %s229 = smul.u32 64, %s19
      %v230 = vld [vmem:[%s213] sm:$0xf]
      %v231 = vld [vmem:[%s213 + $0x4] sm:$0xf]
      %v232 = vld [vmem:[%s213 + $0x8] sm:$0xf]
      %v233 = vld [vmem:[%s213 + $0xc] sm:$0xf]
      %v234 = vld [vmem:[%s213 + $0x10] sm:$0xf]
      %v235 = vld [vmem:[%s213 + $0x14] sm:$0xf]
      %v236 = vld [vmem:[%s213 + $0x18] sm:$0xf]
      %v237 = vld [vmem:[%s213 + $0x1c] sm:$0xf]
      %v238 = vld [vmem:[%s213 + $0x20] sm:$0xf]
      %v239 = vld [vmem:[%s213 + $0x24] sm:$0xf]
      %v240 = vld [vmem:[%s213 + $0x28] sm:$0xf]
      %v241 = vld [vmem:[%s213 + $0x2c] sm:$0xf]
      %v242 = vld [vmem:[%s213 + $0x30] sm:$0xf]
      %v243 = vld [vmem:[%s213 + $0x34] sm:$0xf]
      %v244 = vld [vmem:[%s213 + $0x38] sm:$0xf]
      %v245 = vld [vmem:[%s213 + $0x3c] sm:$0xf]
      %v246 = vld [vmem:[%s213 + $0x40] sm:$0xf]
      %v247 = vld [vmem:[%s213 + $0x44] sm:$0xf]
      %v248 = vld [vmem:[%s213 + $0x48] sm:$0xf]
      %v249 = vld [vmem:[%s213 + $0x4c] sm:$0xf]
      %v250 = vld [vmem:[%s213 + $0x50] sm:$0xf]
      %v251 = vld [vmem:[%s213 + $0x54] sm:$0xf]
      %v252 = vld [vmem:[%s213 + $0x58] sm:$0xf]
      %v253 = vld [vmem:[%s213 + $0x5c] sm:$0xf]
      %v254 = vld [vmem:[%s213 + $0x60] sm:$0xf]
      %v255 = vld [vmem:[%s213 + $0x64] sm:$0xf]
      %v256 = vld [vmem:[%s213 + $0x68] sm:$0xf]
      %v257 = vld [vmem:[%s213 + $0x6c] sm:$0xf]
      %v258 = vld [vmem:[%s213 + $0x70] sm:$0xf]
      %v259 = vld [vmem:[%s213 + $0x74] sm:$0xf]
      %v260 = vld [vmem:[%s213 + $0x78] sm:$0xf]
      %v261 = vld [vmem:[%s213 + $0x7c] sm:$0xf]
      %v262 = vld [vmem:[%s213 + $0x80] sm:$0xf]
      %v263 = vld [vmem:[%s213 + $0x84] sm:$0xf]
      %v264 = vld [vmem:[%s213 + $0x88] sm:$0xf]
      %v265 = vld [vmem:[%s213 + $0x8c] sm:$0xf]
      %v266 = vld [vmem:[%s213 + $0x90] sm:$0xf]
      %v267 = vld [vmem:[%s213 + $0x94] sm:$0xf]
      %v268 = vld [vmem:[%s213 + $0x98] sm:$0xf]
      %v269 = vld [vmem:[%s213 + $0x9c] sm:$0xf]
      %v270 = vld [vmem:[%s213 + $0xa0] sm:$0xf]
      %v271 = vld [vmem:[%s213 + $0xa4] sm:$0xf]
      %v272 = vld [vmem:[%s213 + $0xa8] sm:$0xf]
      %v273 = vld [vmem:[%s213 + $0xac] sm:$0xf]
      %v274 = vld [vmem:[%s213 + $0xb0] sm:$0xf]
      %v275 = vld [vmem:[%s213 + $0xb4] sm:$0xf]
      %v276 = vld [vmem:[%s213 + $0xb8] sm:$0xf]
      %v277 = vld [vmem:[%s213 + $0xbc] sm:$0xf]
      %v278 = vld [vmem:[%s213 + $0xc0] sm:$0xf]
      %v279 = vld [vmem:[%s213 + $0xc4] sm:$0xf]
      %v280 = vld [vmem:[%s213 + $0xc8] sm:$0xf]
      %v281 = vld [vmem:[%s213 + $0xcc] sm:$0xf]
      %v282 = vld [vmem:[%s213 + $0xd0] sm:$0xf]
      %v283 = vld [vmem:[%s213 + $0xd4] sm:$0xf]
      %v284 = vld [vmem:[%s213 + $0xd8] sm:$0xf]
      %v285 = vld [vmem:[%s213 + $0xdc] sm:$0xf]
      %v286 = vld [vmem:[%s213 + $0xe0] sm:$0xf]
      %v287 = vld [vmem:[%s213 + $0xe4] sm:$0xf]
      %v288 = vld [vmem:[%s213 + $0xe8] sm:$0xf]
      %v289 = vld [vmem:[%s213 + $0xec] sm:$0xf]
      %v290 = vld [vmem:[%s213 + $0xf0] sm:$0xf]
      %v291 = vld [vmem:[%s213 + $0xf4] sm:$0xf]
      %v292 = vld [vmem:[%s213 + $0xf8] sm:$0xf]
      %v293 = vld [vmem:[%s213 + $0xfc] sm:$0xf]
      %v294 = vld [vmem:[%s219] sm:$0xf]
      %v295 = vld [vmem:[%s219 + $0x4] sm:$0xf]
      %v296 = vld [vmem:[%s219 + $0x8] sm:$0xf]
      %v297 = vld [vmem:[%s219 + $0xc] sm:$0xf]
      %v298 = vld [vmem:[%s219 + $0x10] sm:$0xf]
      %v299 = vld [vmem:[%s219 + $0x14] sm:$0xf]
      %v300 = vld [vmem:[%s219 + $0x18] sm:$0xf]
      %v301 = vld [vmem:[%s219 + $0x1c] sm:$0xf]
      %v302 = vld [vmem:[%s219 + $0x20] sm:$0xf]
      %v303 = vld [vmem:[%s219 + $0x24] sm:$0xf]
      %v304 = vld [vmem:[%s219 + $0x28] sm:$0xf]
      %v305 = vld [vmem:[%s219 + $0x2c] sm:$0xf]
      %v306 = vld [vmem:[%s219 + $0x30] sm:$0xf]
      %v307 = vld [vmem:[%s219 + $0x34] sm:$0xf]
      %v308 = vld [vmem:[%s219 + $0x38] sm:$0xf]
      %v309 = vld [vmem:[%s219 + $0x3c] sm:$0xf]
      %v310 = vld [vmem:[%s2] sm:$0x1]
      %v312 = vperm.slane %v310, 0
      %v378 = vunpack.c.l.b16 %v230
      %v379 = vunpack.c.l.b16 %v231
      %v380 = vunpack.c.l.b16 %v232
      %v381 = vunpack.c.l.b16 %v233
      %v382 = vunpack.c.l.b16 %v234
      %v383 = vunpack.c.l.b16 %v235
      %v384 = vunpack.c.l.b16 %v236
      %v385 = vunpack.c.l.b16 %v237
      %v386 = vunpack.c.l.b16 %v238
      %v387 = vunpack.c.l.b16 %v239
      %v388 = vunpack.c.l.b16 %v240
      %v389 = vunpack.c.l.b16 %v241
      %v390 = vunpack.c.l.b16 %v242
      %v391 = vunpack.c.l.b16 %v243
      %v392 = vunpack.c.l.b16 %v244
      %v393 = vunpack.c.l.b16 %v245
      %v394 = vunpack.c.l.b16 %v246
      %v395 = vunpack.c.l.b16 %v247
      %v396 = vunpack.c.l.b16 %v248
      %v397 = vunpack.c.l.b16 %v249
      %v398 = vunpack.c.l.b16 %v250
      %v399 = vunpack.c.l.b16 %v251
      %v400 = vunpack.c.l.b16 %v252
      %v401 = vunpack.c.l.b16 %v253
      %v402 = vunpack.c.l.b16 %v254
      %v403 = vunpack.c.l.b16 %v255
      %v404 = vunpack.c.l.b16 %v256
      %v405 = vunpack.c.l.b16 %v257
      %v406 = vunpack.c.l.b16 %v258
      %v407 = vunpack.c.l.b16 %v259
      %v408 = vunpack.c.l.b16 %v260
      %v409 = vunpack.c.l.b16 %v261
      %v410 = vunpack.c.l.b16 %v262
      %v411 = vunpack.c.l.b16 %v263
      %v412 = vunpack.c.l.b16 %v264
      %v413 = vunpack.c.l.b16 %v265
      %v414 = vunpack.c.l.b16 %v266
      %v415 = vunpack.c.l.b16 %v267
      %v416 = vunpack.c.l.b16 %v268
      %v417 = vunpack.c.l.b16 %v269
      %v418 = vunpack.c.l.b16 %v270
      %v419 = vunpack.c.l.b16 %v271
      %v420 = vunpack.c.l.b16 %v272
      %v421 = vunpack.c.l.b16 %v273
      %v422 = vunpack.c.l.b16 %v274
      %v423 = vunpack.c.l.b16 %v275
      %v424 = vunpack.c.l.b16 %v276
      %v425 = vunpack.c.l.b16 %v277
      %v426 = vunpack.c.l.b16 %v278
      %v427 = vunpack.c.l.b16 %v279
      %v428 = vunpack.c.l.b16 %v280
      %v429 = vunpack.c.l.b16 %v281
      %v430 = vunpack.c.l.b16 %v282
      %v431 = vunpack.c.l.b16 %v283
      %v432 = vunpack.c.l.b16 %v284
      %v433 = vunpack.c.l.b16 %v285
      %v434 = vunpack.c.l.b16 %v286
      %v435 = vunpack.c.l.b16 %v287
      %v436 = vunpack.c.l.b16 %v288
      %v437 = vunpack.c.l.b16 %v289
      %v438 = vunpack.c.l.b16 %v290
      %v439 = vunpack.c.l.b16 %v291
      %v440 = vunpack.c.l.b16 %v292
      %v441 = vunpack.c.l.b16 %v293
      %v442 = vpack.c.b16 %v379, %v378
      %v443 = vpack.c.b16 %v381, %v380
      %v444 = vpack.c.b16 %v383, %v382
      %v445 = vpack.c.b16 %v385, %v384
      %v446 = vpack.c.b16 %v387, %v386
      %v447 = vpack.c.b16 %v389, %v388
      %v448 = vpack.c.b16 %v391, %v390
      %v449 = vpack.c.b16 %v393, %v392
      %v450 = vpack.c.b16 %v395, %v394
      %v451 = vpack.c.b16 %v397, %v396
      %v452 = vpack.c.b16 %v399, %v398
      %v453 = vpack.c.b16 %v401, %v400
      %v454 = vpack.c.b16 %v403, %v402
      %v455 = vpack.c.b16 %v405, %v404
      %v456 = vpack.c.b16 %v407, %v406
      %v457 = vpack.c.b16 %v409, %v408
      %v458 = vpack.c.b16 %v411, %v410
      %v459 = vpack.c.b16 %v413, %v412
      %v460 = vpack.c.b16 %v415, %v414
      %v461 = vpack.c.b16 %v417, %v416
      %v462 = vpack.c.b16 %v419, %v418
      %v463 = vpack.c.b16 %v421, %v420
      %v464 = vpack.c.b16 %v423, %v422
      %v465 = vpack.c.b16 %v425, %v424
      %v466 = vpack.c.b16 %v427, %v426
      %v467 = vpack.c.b16 %v429, %v428
      %v468 = vpack.c.b16 %v431, %v430
      %v469 = vpack.c.b16 %v433, %v432
      %v470 = vpack.c.b16 %v435, %v434
      %v471 = vpack.c.b16 %v437, %v436
      %v472 = vpack.c.b16 %v439, %v438
      %v473 = vpack.c.b16 %v441, %v440
      %v522 = vunpack.c.l.b16 %v294
      %v523 = vunpack.c.l.b16 %v295
      %v524 = vunpack.c.l.b16 %v296
      %v525 = vunpack.c.l.b16 %v297
      %v526 = vunpack.c.l.b16 %v298
      %v527 = vunpack.c.l.b16 %v299
      %v528 = vunpack.c.l.b16 %v300
      %v529 = vunpack.c.l.b16 %v301
      %v530 = vunpack.c.l.b16 %v302
      %v531 = vunpack.c.l.b16 %v303
      %v532 = vunpack.c.l.b16 %v304
      %v533 = vunpack.c.l.b16 %v305
      %v534 = vunpack.c.l.b16 %v306
      %v535 = vunpack.c.l.b16 %v307
      %v536 = vunpack.c.l.b16 %v308
      %v537 = vunpack.c.l.b16 %v309
      %v538 = vpack.c.b16 %v523, %v522
      %v539 = vpack.c.b16 %v525, %v524
      %v540 = vpack.c.b16 %v527, %v526
      %v541 = vpack.c.b16 %v529, %v528
      %v542 = vpack.c.b16 %v531, %v530
      %v543 = vpack.c.b16 %v533, %v532
      %v544 = vpack.c.b16 %v535, %v534
      %v545 = vpack.c.b16 %v537, %v536
      %554 = vmatpush.bf16.msra.mxu0 %v545
      %555 = vmatpush.bf16.msra.mxu0 %v544
      %556 = vmatpush.bf16.msra.mxu0 %v543
      %557 = vmatpush.bf16.msra.mxu0 %v542
      %558 = vmatpush.bf16.msra.mxu0 %v541
      %559 = vmatpush.bf16.msra.mxu0 %v540
      %560 = vmatpush.bf16.msra.mxu0 %v539
      %561 = vmatpush.bf16.msra.mxu0 %v538
      %562 = vmatmul.bf16.gmra.mxu0 %v442
      %v563 = vpop.f32.mrf.mxu0
      %v564 = vadd.f32 %v312, %v563
      %v565 = vpop.f32.mrf.mxu0
      %v566 = vadd.f32 %v312, %v565
      %567 = vmatmul.bf16.gmra.mxu0 %v443
      %v568 = vpop.f32.mrf.mxu0
      %v569 = vadd.f32 %v312, %v568
      %v570 = vpop.f32.mrf.mxu0
      %v571 = vadd.f32 %v312, %v570
      %572 = vmatmul.bf16.gmra.mxu0 %v444
      %v573 = vpop.f32.mrf.mxu0
      %v574 = vadd.f32 %v312, %v573
      %v575 = vpop.f32.mrf.mxu0
      %v576 = vadd.f32 %v312, %v575
      %577 = vmatmul.bf16.gmra.mxu0 %v445
      %v578 = vpop.f32.mrf.mxu0
      %v579 = vadd.f32 %v312, %v578
      %v580 = vpop.f32.mrf.mxu0
      %v581 = vadd.f32 %v312, %v580
      %582 = vmatmul.bf16.gmra.mxu0 %v446
      %v583 = vpop.f32.mrf.mxu0
      %v584 = vadd.f32 %v312, %v583
      %v585 = vpop.f32.mrf.mxu0
      %v586 = vadd.f32 %v312, %v585
      %587 = vmatmul.bf16.gmra.mxu0 %v447
      %v588 = vpop.f32.mrf.mxu0
      %v589 = vadd.f32 %v312, %v588
      %v590 = vpop.f32.mrf.mxu0
      %v591 = vadd.f32 %v312, %v590
      %592 = vmatmul.bf16.gmra.mxu0 %v448
      %v593 = vpop.f32.mrf.mxu0
      %v594 = vadd.f32 %v312, %v593
      %v595 = vpop.f32.mrf.mxu0
      %v596 = vadd.f32 %v312, %v595
      %597 = vmatmul.bf16.gmra.mxu0 %v449
      %v598 = vpop.f32.mrf.mxu0
      %v599 = vadd.f32 %v312, %v598
      %v600 = vpop.f32.mrf.mxu0
      %v601 = vadd.f32 %v312, %v600
      %602 = vmatmul.bf16.gmra.mxu0 %v450
      %v603 = vpop.f32.mrf.mxu0
      %v604 = vadd.f32 %v312, %v603
      %v605 = vpop.f32.mrf.mxu0
      %v606 = vadd.f32 %v312, %v605
      %607 = vmatmul.bf16.gmra.mxu0 %v451
      %v608 = vpop.f32.mrf.mxu0
      %v609 = vadd.f32 %v312, %v608
      %v610 = vpop.f32.mrf.mxu0
      %v611 = vadd.f32 %v312, %v610
      %612 = vmatmul.bf16.gmra.mxu0 %v452
      %v613 = vpop.f32.mrf.mxu0
      %v614 = vadd.f32 %v312, %v613
      %v615 = vpop.f32.mrf.mxu0
      %v616 = vadd.f32 %v312, %v615
      %617 = vmatmul.bf16.gmra.mxu0 %v453
      %v618 = vpop.f32.mrf.mxu0
      %v619 = vadd.f32 %v312, %v618
      %v620 = vpop.f32.mrf.mxu0
      %v621 = vadd.f32 %v312, %v620
      %622 = vmatmul.bf16.gmra.mxu0 %v454
      %v623 = vpop.f32.mrf.mxu0
      %v624 = vadd.f32 %v312, %v623
      %v625 = vpop.f32.mrf.mxu0
      %v626 = vadd.f32 %v312, %v625
      %627 = vmatmul.bf16.gmra.mxu0 %v455
      %v628 = vpop.f32.mrf.mxu0
      %v629 = vadd.f32 %v312, %v628
      %v630 = vpop.f32.mrf.mxu0
      %v631 = vadd.f32 %v312, %v630
      %632 = vmatmul.bf16.gmra.mxu0 %v456
      %v633 = vpop.f32.mrf.mxu0
      %v634 = vadd.f32 %v312, %v633
      %v635 = vpop.f32.mrf.mxu0
      %v636 = vadd.f32 %v312, %v635
      %637 = vmatmul.bf16.gmra.mxu0 %v457
      %v638 = vpop.f32.mrf.mxu0
      %v639 = vadd.f32 %v312, %v638
      %v640 = vpop.f32.mrf.mxu0
      %v641 = vadd.f32 %v312, %v640
      %642 = vmatmul.bf16.gmra.mxu0 %v458
      %v643 = vpop.f32.mrf.mxu0
      %v644 = vadd.f32 %v312, %v643
      %v645 = vpop.f32.mrf.mxu0
      %v646 = vadd.f32 %v312, %v645
      %647 = vmatmul.bf16.gmra.mxu0 %v459
      %v648 = vpop.f32.mrf.mxu0
      %v649 = vadd.f32 %v312, %v648
      %v650 = vpop.f32.mrf.mxu0
      %v651 = vadd.f32 %v312, %v650
      %652 = vmatmul.bf16.gmra.mxu0 %v460
      %v653 = vpop.f32.mrf.mxu0
      %v654 = vadd.f32 %v312, %v653
      %v655 = vpop.f32.mrf.mxu0
      %v656 = vadd.f32 %v312, %v655
      %657 = vmatmul.bf16.gmra.mxu0 %v461
      %v658 = vpop.f32.mrf.mxu0
      %v659 = vadd.f32 %v312, %v658
      %v660 = vpop.f32.mrf.mxu0
      %v661 = vadd.f32 %v312, %v660
      %662 = vmatmul.bf16.gmra.mxu0 %v462
      %v663 = vpop.f32.mrf.mxu0
      %v664 = vadd.f32 %v312, %v663
      %v665 = vpop.f32.mrf.mxu0
      %v666 = vadd.f32 %v312, %v665
      %667 = vmatmul.bf16.gmra.mxu0 %v463
      %v668 = vpop.f32.mrf.mxu0
      %v669 = vadd.f32 %v312, %v668
      %v670 = vpop.f32.mrf.mxu0
      %v671 = vadd.f32 %v312, %v670
      %672 = vmatmul.bf16.gmra.mxu0 %v464
      %v673 = vpop.f32.mrf.mxu0
      %v674 = vadd.f32 %v312, %v673
      %v675 = vpop.f32.mrf.mxu0
      %v676 = vadd.f32 %v312, %v675
      %677 = vmatmul.bf16.gmra.mxu0 %v465
      %v678 = vpop.f32.mrf.mxu0
      %v679 = vadd.f32 %v312, %v678
      %v680 = vpop.f32.mrf.mxu0
      %v681 = vadd.f32 %v312, %v680
      %682 = vmatmul.bf16.gmra.mxu0 %v466
      %v683 = vpop.f32.mrf.mxu0
      %v684 = vadd.f32 %v312, %v683
      %v685 = vpop.f32.mrf.mxu0
      %v686 = vadd.f32 %v312, %v685
      %687 = vmatmul.bf16.gmra.mxu0 %v467
      %v688 = vpop.f32.mrf.mxu0
      %v689 = vadd.f32 %v312, %v688
      %v690 = vpop.f32.mrf.mxu0
      %v691 = vadd.f32 %v312, %v690
      %692 = vmatmul.bf16.gmra.mxu0 %v468
      %v693 = vpop.f32.mrf.mxu0
      %v694 = vadd.f32 %v312, %v693
      %v695 = vpop.f32.mrf.mxu0
      %v696 = vadd.f32 %v312, %v695
      %697 = vmatmul.bf16.gmra.mxu0 %v469
      %v698 = vpop.f32.mrf.mxu0
      %v699 = vadd.f32 %v312, %v698
      %v700 = vpop.f32.mrf.mxu0
      %v701 = vadd.f32 %v312, %v700
      %702 = vmatmul.bf16.gmra.mxu0 %v470
      %v703 = vpop.f32.mrf.mxu0
      %v704 = vadd.f32 %v312, %v703
      %v705 = vpop.f32.mrf.mxu0
      %v706 = vadd.f32 %v312, %v705
      %707 = vmatmul.bf16.gmra.mxu0 %v471
      %v708 = vpop.f32.mrf.mxu0
      %v709 = vadd.f32 %v312, %v708
      %v710 = vpop.f32.mrf.mxu0
      %v711 = vadd.f32 %v312, %v710
      %712 = vmatmul.bf16.gmra.mxu0 %v472
      %v713 = vpop.f32.mrf.mxu0
      %v714 = vadd.f32 %v312, %v713
      %v715 = vpop.f32.mrf.mxu0
      %v716 = vadd.f32 %v312, %v715
      %717 = vmatmul.bf16.gmra.mxu0 %v473
      %v718 = vpop.f32.mrf.mxu0
      %v719 = vadd.f32 %v312, %v718
      %v720 = vpop.f32.mrf.mxu0
      %v721 = vadd.f32 %v312, %v720
      %722 = vdwg.mxu0
      %v723 = vmax.f32 %v564, 0.0
      %v724 = vmax.f32 %v566, 0.0
      %v725 = vmax.f32 %v569, 0.0
      %v726 = vmax.f32 %v571, 0.0
      %v727 = vmax.f32 %v574, 0.0
      %v728 = vmax.f32 %v576, 0.0
      %v729 = vmax.f32 %v579, 0.0
      %v730 = vmax.f32 %v581, 0.0
      %v731 = vmax.f32 %v584, 0.0
      %v732 = vmax.f32 %v586, 0.0
      %v733 = vmax.f32 %v589, 0.0
      %v734 = vmax.f32 %v591, 0.0
      %v735 = vmax.f32 %v594, 0.0
      %v736 = vmax.f32 %v596, 0.0
      %v737 = vmax.f32 %v599, 0.0
      %v738 = vmax.f32 %v601, 0.0
      %v739 = vmax.f32 %v604, 0.0
      %v740 = vmax.f32 %v606, 0.0
      %v741 = vmax.f32 %v609, 0.0
      %v742 = vmax.f32 %v611, 0.0
      %v743 = vmax.f32 %v614, 0.0
      %v744 = vmax.f32 %v616, 0.0
      %v745 = vmax.f32 %v619, 0.0
      %v746 = vmax.f32 %v621, 0.0
      %v747 = vmax.f32 %v624, 0.0
      %v748 = vmax.f32 %v626, 0.0
      %v749 = vmax.f32 %v629, 0.0
      %v750 = vmax.f32 %v631, 0.0
      %v751 = vmax.f32 %v634, 0.0
      %v752 = vmax.f32 %v636, 0.0
      %v753 = vmax.f32 %v639, 0.0
      %v754 = vmax.f32 %v641, 0.0
      %v755 = vmax.f32 %v644, 0.0
      %v756 = vmax.f32 %v646, 0.0
      %v757 = vmax.f32 %v649, 0.0
      %v758 = vmax.f32 %v651, 0.0
      %v759 = vmax.f32 %v654, 0.0
      %v760 = vmax.f32 %v656, 0.0
      %v761 = vmax.f32 %v659, 0.0
      %v762 = vmax.f32 %v661, 0.0
      %v763 = vmax.f32 %v664, 0.0
      %v764 = vmax.f32 %v666, 0.0
      %v765 = vmax.f32 %v669, 0.0
      %v766 = vmax.f32 %v671, 0.0
      %v767 = vmax.f32 %v674, 0.0
      %v768 = vmax.f32 %v676, 0.0
      %v769 = vmax.f32 %v679, 0.0
      %v770 = vmax.f32 %v681, 0.0
      %v771 = vmax.f32 %v684, 0.0
      %v772 = vmax.f32 %v686, 0.0
      %v773 = vmax.f32 %v689, 0.0
      %v774 = vmax.f32 %v691, 0.0
      %v775 = vmax.f32 %v694, 0.0
      %v776 = vmax.f32 %v696, 0.0
      %v777 = vmax.f32 %v699, 0.0
      %v778 = vmax.f32 %v701, 0.0
      %v779 = vmax.f32 %v704, 0.0
      %v780 = vmax.f32 %v706, 0.0
      %v781 = vmax.f32 %v709, 0.0
      %v782 = vmax.f32 %v711, 0.0
      %v783 = vmax.f32 %v714, 0.0
      %v784 = vmax.f32 %v716, 0.0
      %v785 = vmax.f32 %v719, 0.0
      %v786 = vmax.f32 %v721, 0.0
      %v787 = vpack.c.bf16 %v723, %v723
      %v788 = vpack.c.bf16 %v724, %v724
      %v789 = vpack.c.bf16 %v725, %v725
      %v790 = vpack.c.bf16 %v726, %v726
      %v791 = vpack.c.bf16 %v727, %v727
      %v792 = vpack.c.bf16 %v728, %v728
      %v793 = vpack.c.bf16 %v729, %v729
      %v794 = vpack.c.bf16 %v730, %v730
      %v795 = vpack.c.bf16 %v731, %v731
      %v796 = vpack.c.bf16 %v732, %v732
      %v797 = vpack.c.bf16 %v733, %v733
      %v798 = vpack.c.bf16 %v734, %v734
      %v799 = vpack.c.bf16 %v735, %v735
      %v800 = vpack.c.bf16 %v736, %v736
      %v801 = vpack.c.bf16 %v737, %v737
      %v802 = vpack.c.bf16 %v738, %v738
      %v803 = vpack.c.bf16 %v739, %v739
      %v804 = vpack.c.bf16 %v740, %v740
      %v805 = vpack.c.bf16 %v741, %v741
      %v806 = vpack.c.bf16 %v742, %v742
      %v807 = vpack.c.bf16 %v743, %v743
      %v808 = vpack.c.bf16 %v744, %v744
      %v809 = vpack.c.bf16 %v745, %v745
      %v810 = vpack.c.bf16 %v746, %v746
      %v811 = vpack.c.bf16 %v747, %v747
      %v812 = vpack.c.bf16 %v748, %v748
      %v813 = vpack.c.bf16 %v749, %v749
      %v814 = vpack.c.bf16 %v750, %v750
      %v815 = vpack.c.bf16 %v751, %v751
      %v816 = vpack.c.bf16 %v752, %v752
      %v817 = vpack.c.bf16 %v753, %v753
      %v818 = vpack.c.bf16 %v754, %v754
      %v819 = vpack.c.bf16 %v755, %v755
      %v820 = vpack.c.bf16 %v756, %v756
      %v821 = vpack.c.bf16 %v757, %v757
      %v822 = vpack.c.bf16 %v758, %v758
      %v823 = vpack.c.bf16 %v759, %v759
      %v824 = vpack.c.bf16 %v760, %v760
      %v825 = vpack.c.bf16 %v761, %v761
      %v826 = vpack.c.bf16 %v762, %v762
      %v827 = vpack.c.bf16 %v763, %v763
      %v828 = vpack.c.bf16 %v764, %v764
      %v829 = vpack.c.bf16 %v765, %v765
      %v830 = vpack.c.bf16 %v766, %v766
      %v831 = vpack.c.bf16 %v767, %v767
      %v832 = vpack.c.bf16 %v768, %v768
      %v833 = vpack.c.bf16 %v769, %v769
      %v834 = vpack.c.bf16 %v770, %v770
      %v835 = vpack.c.bf16 %v771, %v771
      %v836 = vpack.c.bf16 %v772, %v772
      %v837 = vpack.c.bf16 %v773, %v773
      %v838 = vpack.c.bf16 %v774, %v774
      %v839 = vpack.c.bf16 %v775, %v775
      %v840 = vpack.c.bf16 %v776, %v776
      %v841 = vpack.c.bf16 %v777, %v777
      %v842 = vpack.c.bf16 %v778, %v778
      %v843 = vpack.c.bf16 %v779, %v779
      %v844 = vpack.c.bf16 %v780, %v780
      %v845 = vpack.c.bf16 %v781, %v781
      %v846 = vpack.c.bf16 %v782, %v782
      %v847 = vpack.c.bf16 %v783, %v783
      %v848 = vpack.c.bf16 %v784, %v784
      %v849 = vpack.c.bf16 %v785, %v785
      %v850 = vpack.c.bf16 %v786, %v786
      %851 = vst [vmem:[%s228] sm:$0xf] %v787
      %852 = vst [vmem:[%s228 + $0x4] sm:$0xf] %v788
      %853 = vst [vmem:[%s228 + $0x8] sm:$0xf] %v789
      %854 = vst [vmem:[%s228 + $0xc] sm:$0xf] %v790
      %855 = vst [vmem:[%s228 + $0x10] sm:$0xf] %v791
      %856 = vst [vmem:[%s228 + $0x14] sm:$0xf] %v792
      %857 = vst [vmem:[%s228 + $0x18] sm:$0xf] %v793
      %858 = vst [vmem:[%s228 + $0x1c] sm:$0xf] %v794
      %859 = vst [vmem:[%s228 + $0x20] sm:$0xf] %v795
      %860 = vst [vmem:[%s228 + $0x24] sm:$0xf] %v796
      %861 = vst [vmem:[%s228 + $0x28] sm:$0xf] %v797
      %862 = vst [vmem:[%s228 + $0x2c] sm:$0xf] %v798
      %863 = vst [vmem:[%s228 + $0x30] sm:$0xf] %v799
      %864 = vst [vmem:[%s228 + $0x34] sm:$0xf] %v800
      %865 = vst [vmem:[%s228 + $0x38] sm:$0xf] %v801
      %866 = vst [vmem:[%s228 + $0x3c] sm:$0xf] %v802
      %867 = vst [vmem:[%s228 + $0x40] sm:$0xf] %v803
      %868 = vst [vmem:[%s228 + $0x44] sm:$0xf] %v804
      %869 = vst [vmem:[%s228 + $0x48] sm:$0xf] %v805
      %870 = vst [vmem:[%s228 + $0x4c] sm:$0xf] %v806
      %871 = vst [vmem:[%s228 + $0x50] sm:$0xf] %v807
      %872 = vst [vmem:[%s228 + $0x54] sm:$0xf] %v808
      %873 = vst [vmem:[%s228 + $0x58] sm:$0xf] %v809
      %874 = vst [vmem:[%s228 + $0x5c] sm:$0xf] %v810
      %875 = vst [vmem:[%s228 + $0x60] sm:$0xf] %v811
      %876 = vst [vmem:[%s228 + $0x64] sm:$0xf] %v812
      %877 = vst [vmem:[%s228 + $0x68] sm:$0xf] %v813
      %878 = vst [vmem:[%s228 + $0x6c] sm:$0xf] %v814
      %879 = vst [vmem:[%s228 + $0x70] sm:$0xf] %v815
      %880 = vst [vmem:[%s228 + $0x74] sm:$0xf] %v816
      %881 = vst [vmem:[%s228 + $0x78] sm:$0xf] %v817
      %882 = vst [vmem:[%s228 + $0x7c] sm:$0xf] %v818
      %883 = vst [vmem:[%s228 + $0x80] sm:$0xf] %v819
      %884 = vst [vmem:[%s228 + $0x84] sm:$0xf] %v820
      %885 = vst [vmem:[%s228 + $0x88] sm:$0xf] %v821
      %886 = vst [vmem:[%s228 + $0x8c] sm:$0xf] %v822
      %887 = vst [vmem:[%s228 + $0x90] sm:$0xf] %v823
      %888 = vst [vmem:[%s228 + $0x94] sm:$0xf] %v824
      %889 = vst [vmem:[%s228 + $0x98] sm:$0xf] %v825
      %890 = vst [vmem:[%s228 + $0x9c] sm:$0xf] %v826
      %891 = vst [vmem:[%s228 + $0xa0] sm:$0xf] %v827
      %892 = vst [vmem:[%s228 + $0xa4] sm:$0xf] %v828
      %893 = vst [vmem:[%s228 + $0xa8] sm:$0xf] %v829
      %894 = vst [vmem:[%s228 + $0xac] sm:$0xf] %v830
      %895 = vst [vmem:[%s228 + $0xb0] sm:$0xf] %v831
      %896 = vst [vmem:[%s228 + $0xb4] sm:$0xf] %v832
      %897 = vst [vmem:[%s228 + $0xb8] sm:$0xf] %v833
      %898 = vst [vmem:[%s228 + $0xbc] sm:$0xf] %v834
      %899 = vst [vmem:[%s228 + $0xc0] sm:$0xf] %v835
      %900 = vst [vmem:[%s228 + $0xc4] sm:$0xf] %v836
      %901 = vst [vmem:[%s228 + $0xc8] sm:$0xf] %v837
      %902 = vst [vmem:[%s228 + $0xcc] sm:$0xf] %v838
      %903 = vst [vmem:[%s228 + $0xd0] sm:$0xf] %v839
      %904 = vst [vmem:[%s228 + $0xd4] sm:$0xf] %v840
      %905 = vst [vmem:[%s228 + $0xd8] sm:$0xf] %v841
      %906 = vst [vmem:[%s228 + $0xdc] sm:$0xf] %v842
      %907 = vst [vmem:[%s228 + $0xe0] sm:$0xf] %v843
      %908 = vst [vmem:[%s228 + $0xe4] sm:$0xf] %v844
      %909 = vst [vmem:[%s228 + $0xe8] sm:$0xf] %v845
      %910 = vst [vmem:[%s228 + $0xec] sm:$0xf] %v846
      %911 = vst [vmem:[%s228 + $0xf0] sm:$0xf] %v847
      %912 = vst [vmem:[%s228 + $0xf4] sm:$0xf] %v848
      %913 = vst [vmem:[%s228 + $0xf8] sm:$0xf] %v849
      %914 = vst [vmem:[%s228 + $0xfc] sm:$0xf] %v850
      %s915 = smul.u32 64, %s19
      %p916 = scmp.lt.s32.totalorder %s18, 3
      %s917 = scalar_select %p916, %s18, 3
      %p918 = scmp.lt.s32.totalorder %s915, 255
      %s919 = scalar_select %p918, %s915, 255
      %s920 = smul.addr %s917, 256
      %s921 = sadd.s32 %s919, %s920
      %s922 = smul.addr %s921, 4
      %s923 = scalar_lea.vmem %s3, %s922
      // Predicated region
      $region33: #{_lambda_.26} parent=31 // pred_check
        %p924 = pneg %p121
      $region34: #{_lambda_.26} parent=31 // pred_check_branch
        %926 = sbr.rel (%p924) target = $region36
      $region35: #{_lambda_.26} parent=31 // pred_region
        %s927 = smul.u32 64, %s19
      $region36: #{_lambda_.26} parent=31 // pred_fallthru
        _
    $region32: #{_lambda_.26} parent=5 // pred_fallthru
      _
    %p928 = scmp.le.s32.totalorder 2, %s9
    // Predicated region
    $region37: #{_lambda_.26} parent=5 // pred_check
      %p929 = pneg %p928
    $region38: #{_lambda_.26} parent=5 // pred_check_branch
      %931 = sbr.rel (%p929) target = $region40
    $region39: #{_lambda_.26} parent=5 // pred_region
      %s932 = ssub.s32 %s9, 2
      // Predicated region
      $region41: #{_lambda_.26} parent=39 // pred_check
        %p933 = pneg %p127
      $region42: #{_lambda_.26} parent=39 // pred_check_branch
        %935 = sbr.rel (%p933) target = $region44
      $region43: #{_lambda_.26} parent=39 // pred_region
        %s936 = smul.u32 64, %s21
        %p937 = scmp.lt.s32.totalorder %s20, 3
        %s938 = scalar_select %p937, %s20, 3
        %p939 = scmp.lt.s32.totalorder %s936, 255
        %s940 = scalar_select %p939, %s936, 255
        %s941 = smul.addr %s938, 256
        %s942 = sadd.s32 %s940, %s941
        %s943 = smul.addr %s942, 4
        %s944 = scalar_lea.vmem %s3, %s943
      $region44: #{_lambda_.26} parent=39 // pred_fallthru
        _
    $region40: #{_lambda_.26} parent=5 // pred_fallthru
      _
  $region6: #{_lambda_.26} parent=0 // loop_footer
    %s13 = sadd.s32 1, %s9
  $region7: #{_lambda_.26} parent=0 // loop_footer_branch
    %8 = sbr.rel target = $region3
  $region8: #{_lambda_.26} parent=0 // loop_exit
    _

// kernel: _lambda_.27
$region0: #{_lambda_.27}
  #allocation0 [shape = 'u32[]', space=smem, size = 0x4, offset = 0x4, fixed_abs, tag = 'smem constant byte address 0x4 - core index']
  #allocation1 [shape = 'u32[72,128]{1,0:T(1,128)}', space=vmem, size = 0x9000, scoped, tag = 'internal scratch']
  %s0 = inlined_call_operand.vmem [shape: bf16[4,8192,128], index: 0, kind: input, shape index: {}]
  %s1 = inlined_call_operand.vmem [shape: bf16[4,128,128], index: 1, kind: input, shape index: {}]
  %s2 = inlined_call_operand.vmem [shape: f32[1,128], index: 2, kind: input, shape index: {}]
  %s3 = inlined_call_operand.vmem [shape: bf16[4,8192,128], index: 3, kind: output, shape index: {}]
  %s4 = sld [smem:[#allocation0]]
  $region45: #{_lambda_.27} parent=0
    _
  %s6 = ssub.s32 1, %s4
  %s7 = scalar_select 0, %s6, %s4
  loop: start=0, step=1, limit=66
  $region2: #{_lambda_.27} parent=0 // loop_pre_header
    _
  $region3: #{_lambda_.27} parent=0 // loop_header
    %s9 = sphi 0, %s13
    %p10 = scmp.ge.s32.totalorder %s9, 66
    %s16 = sphi 0, %s28
    %s17 = sphi 0, %s24
    %s18 = sphi 0, %s16
    %s19 = sphi 0, %s17
    %s20 = sphi 0, %s18
    %s21 = sphi 0, %s19
    %s33 = sphi 0, %s35
    %s36 = sphi 0, %s33
    %s37 = sphi 0, %s36
    %s53 = sphi 0, %s37
    %s59 = sphi 0, %s61
    %s62 = sphi 0, %s59
    %s63 = sphi 0, %s62
    %s79 = sphi 0, %s63
    %s83 = sphi 0, %s83
    %s85 = sphi 0, %s83
    %s86 = sphi 0, %s85
    %s100 = sphi 0, %s86
    %s108 = sphi 0, %s110
    %s111 = sphi 0, %s108
    %s112 = sphi 0, %s111
    %s128 = sphi 0, %s112
  $region4: #{_lambda_.27} parent=0 // loop_header_branch
    %12 = sbr.rel (%p10) target = $region8
  $region5: #{_lambda_.27} parent=0 // loop_body
    %s14 = ssub.s32 %s9, 1
    %s15 = ssub.s32 %s9, 2
    %s22 = sadd.s32 1, %s17
    %p23 = scmp.ge.s32.totalorder %s22, 16
    %s24 = scalar_select %p23, 0, %s22
    %s25 = sadd.s32 1, %s16
    %s26 = scalar_select %p23, %s25, %s16
    %p27 = scmp.ge.s32.totalorder %s26, 4
    %s28 = scalar_select %p27, 0, %s26
    %s29 = ssub.s32 %s16, %s28
    %s30 = ssub.s32 %s17, %s24
    %s31 = sor.u32 %s29, %s30
    %p32 = scmp.eq.s32.totalorder %s31, 0
    %s34 = sadd.s32 %s33, 1
    %s35 = scalar_select %p32, %s33, %s34
    %p38 = pneg %p32
    %p39 = scmp.eq.s32.totalorder %s9, 63
    %p40 = por %p38, %p39
    %p41 = scmp.ne.s32.totalorder %s33, %s36
    %p42 = scmp.eq.s32.totalorder %s9, 0
    %p43 = por %p41, %p42
    %p44 = scmp.ne.s32.totalorder %s33, %s36
    %p45 = scmp.eq.s32.totalorder %s14, 63
    %p46 = por %p44, %p45
    %p47 = scmp.ne.s32.totalorder %s36, %s37
    %p48 = scmp.eq.s32.totalorder %s14, 0
    %p49 = por %p47, %p48
    %p50 = scmp.ne.s32.totalorder %s36, %s37
    %p51 = scmp.eq.s32.totalorder %s15, 63
    %p52 = por %p50, %p51
    %p54 = scmp.ne.s32.totalorder %s37, %s53
    %p55 = scmp.eq.s32.totalorder %s15, 0
    %p56 = por %p54, %p55
    %s57 = ssub.s32 %s16, %s28
    %p58 = scmp.eq.s32.totalorder %s57, 0
    %s60 = sadd.s32 %s59, 1
    %s61 = scalar_select %p58, %s59, %s60
    %p64 = pneg %p58
    %p65 = scmp.eq.s32.totalorder %s9, 63
    %p66 = por %p64, %p65
    %p67 = scmp.ne.s32.totalorder %s59, %s62
    %p68 = scmp.eq.s32.totalorder %s9, 0
    %p69 = por %p67, %p68
    %p70 = scmp.ne.s32.totalorder %s59, %s62
    %p71 = scmp.eq.s32.totalorder %s14, 63
    %p72 = por %p70, %p71
    %p73 = scmp.ne.s32.totalorder %s62, %s63
    %p74 = scmp.eq.s32.totalorder %s14, 0
    %p75 = por %p73, %p74
    %p76 = scmp.ne.s32.totalorder %s62, %s63
    %p77 = scmp.eq.s32.totalorder %s15, 63
    %p78 = por %p76, %p77
    %p80 = scmp.ne.s32.totalorder %s63, %s79
    %p81 = scmp.eq.s32.totalorder %s15, 0
    %p82 = por %p80, %p81
    %s84 = sadd.s32 %s83, 1
    %p87 = scmp.eq.s32.totalorder %s9, 63
    %p88 = scmp.ne.s32.totalorder %s83, %s85
    %p89 = scmp.eq.s32.totalorder %s9, 0
    %p90 = por %p88, %p89
    %p91 = scmp.ne.s32.totalorder %s83, %s85
    %p92 = scmp.eq.s32.totalorder %s14, 63
    %p93 = por %p91, %p92
    %p94 = scmp.ne.s32.totalorder %s85, %s86
    %p95 = scmp.eq.s32.totalorder %s14, 0
    %p96 = por %p94, %p95
    %p97 = scmp.ne.s32.totalorder %s85, %s86
    %p98 = scmp.eq.s32.totalorder %s15, 63
    %p99 = por %p97, %p98
    %p101 = scmp.ne.s32.totalorder %s86, %s100
    %p102 = scmp.eq.s32.totalorder %s15, 0
    %p103 = por %p101, %p102
    %s104 = ssub.s32 %s16, %s28
    %s105 = ssub.s32 %s17, %s24
    %s106 = sor.u32 %s104, %s105
    %p107 = scmp.eq.s32.totalorder %s106, 0
    %s109 = sadd.s32 %s108, 1
    %s110 = scalar_select %p107, %s108, %s109
    %p113 = pneg %p107
    %p114 = scmp.eq.s32.totalorder %s9, 63
    %p115 = por %p113, %p114
    %p116 = scmp.ne.s32.totalorder %s108, %s111
    %p117 = scmp.eq.s32.totalorder %s9, 0
    %p118 = por %p116, %p117
    %p119 = scmp.ne.s32.totalorder %s108, %s111
    %p120 = scmp.eq.s32.totalorder %s14, 63
    %p121 = por %p119, %p120
    %p122 = scmp.ne.s32.totalorder %s111, %s112
    %p123 = scmp.eq.s32.totalorder %s14, 0
    %p124 = por %p122, %p123
    %p125 = scmp.ne.s32.totalorder %s111, %s112
    %p126 = scmp.eq.s32.totalorder %s15, 63
    %p127 = por %p125, %p126
    %p129 = scmp.ne.s32.totalorder %s112, %s128
    %p130 = scmp.eq.s32.totalorder %s15, 0
    %p131 = por %p129, %p130
    %p132 = scmp.le.s32.totalorder 1, %s9
    %p133 = scmp.lt.s32.totalorder %s9, 65
    %p134 = pnand %p132, %p133
    %p135 = pneg %p134
    // Predicated region
    $region9: #{_lambda_.27} parent=5 // pred_check
      _
    $region10: #{_lambda_.27} parent=5 // pred_check_branch
      %137 = sbr.rel (%p134) target = $region12
    $region11: #{_lambda_.27} parent=5 // pred_region
      %s138 = ssub.s32 %s9, 1
      // Predicated region
      $region13: #{_lambda_.27} parent=11 // pred_check
        %p139 = pneg %p96
      $region14: #{_lambda_.27} parent=11 // pred_check_branch
        %141 = sbr.rel (%p139) target = $region16
      $region15: #{_lambda_.27} parent=11 // pred_region
        _
      $region16: #{_lambda_.27} parent=11 // pred_fallthru
        _
    $region12: #{_lambda_.27} parent=5 // pred_fallthru
      _
    %p142 = scmp.lt.s32.totalorder %s9, 64
    // Predicated region
    $region17: #{_lambda_.27} parent=5 // pred_check
      %p143 = pneg %p142
    $region18: #{_lambda_.27} parent=5 // pred_check_branch
      %145 = sbr.rel (%p143) target = $region20
    $region19: #{_lambda_.27} parent=5 // pred_region
      // Predicated region
      $region21: #{_lambda_.27} parent=19 // pred_check
        %p146 = pneg %p43
      $region22: #{_lambda_.27} parent=19 // pred_check_branch
        %148 = sbr.rel (%p146) target = $region24
      $region23: #{_lambda_.27} parent=19 // pred_region
        %s149 = smul.u32 64, %s17
        %p150 = scmp.lt.s32.totalorder %s16, 3
        %s151 = scalar_select %p150, %s16, 3
        %p152 = scmp.lt.s32.totalorder %s149, 1023
        %s153 = scalar_select %p152, %s149, 1023
        %s154 = smul.addr %s151, 1024
        %s155 = sadd.s32 %s153, %s154
        %s156 = smul.addr %s155, 4
        %s157 = scalar_lea.vmem %s0, %s156
        %s158 = smul.u32 64, %s17
      $region24: #{_lambda_.27} parent=19 // pred_fallthru
        _
      // Predicated region
      $region25: #{_lambda_.27} parent=19 // pred_check
        %p159 = pneg %p69
      $region26: #{_lambda_.27} parent=19 // pred_check_branch
        %161 = sbr.rel (%p159) target = $region28
      $region27: #{_lambda_.27} parent=19 // pred_region
        %p162 = scmp.lt.s32.totalorder %s16, 3
        %s163 = scalar_select %p162, %s16, 3
        %s164 = smul.addr %s163, 16
        %s165 = smul.addr %s164, 4
        %s166 = scalar_lea.vmem %s1, %s165
      $region28: #{_lambda_.27} parent=19 // pred_fallthru
        _
    $region20: #{_lambda_.27} parent=5 // pred_fallthru
      _
    %p167 = scmp.le.s32.totalorder 1, %s9
    %p168 = scmp.lt.s32.totalorder %s9, 65
    %p169 = pnand %p167, %p168
    %p170 = pneg %p169
    // Predicated region
    $region29: #{_lambda_.27} parent=5 // pred_check
      _
    $region30: #{_lambda_.27} parent=5 // pred_check_branch
      %172 = sbr.rel (%p169) target = $region32
    $region31: #{_lambda_.27} parent=5 // pred_region
      %s173 = ssub.s32 %s9, 1
      %s174 = smul.u32 64, %s19
      %p175 = scmp.lt.s32.totalorder %s18, 3
      %s176 = scalar_select %p175, %s18, 3
      %p177 = scmp.lt.s32.totalorder %s174, 1023
      %s178 = scalar_select %p177, %s174, 1023
      %s179 = smul.addr %s176, 1024
      %s180 = sadd.s32 %s178, %s179
      %s181 = smul.addr %s180, 4
      %s182 = scalar_lea.vmem %s0, %s181
      %p183 = pneg %p49
      %p184 = pneg %p46
      %p185 = scmp.lt.s32.totalorder %s18, 3
      %s186 = scalar_select %p185, %s18, 3
      %s187 = smul.addr %s186, 16
      %s188 = smul.addr %s187, 4
      %s189 = scalar_lea.vmem %s1, %s188
      %p190 = pneg %p75
      %p191 = pneg %p72
      %p192 = pneg %p96
      %p193 = pneg %p93
      %p194 = pneg %p124
      %p195 = pneg %p121
      %s196 = smul.u32 64, %s19
      %p197 = scmp.lt.s32.totalorder %s18, 3
      %s198 = scalar_select %p197, %s18, 3
      %p199 = scmp.lt.s32.totalorder %s196, 1023
      %s200 = scalar_select %p199, %s196, 1023
      %s201 = smul.addr %s198, 1024
      %s202 = sadd.s32 %s200, %s201
      %s203 = smul.addr %s202, 4
      %s204 = scalar_lea.vmem %s3, %s203
      %s205 = smul.u32 64, %s19
      %p206 = scmp.lt.s32.totalorder %s18, 3
      %s207 = scalar_select %p206, %s18, 3
      %p208 = scmp.lt.s32.totalorder %s205, 1023
      %s209 = scalar_select %p208, %s205, 1023
      %s210 = smul.addr %s207, 1024
      %s211 = sadd.s32 %s209, %s210
      %s212 = smul.addr %s211, 4
      %s213 = scalar_lea.vmem %s0, %s212
      %s214 = smul.u32 64, %s19
      %p215 = scmp.lt.s32.totalorder %s18, 3
      %s216 = scalar_select %p215, %s18, 3
      %s217 = smul.addr %s216, 16
      %s218 = smul.addr %s217, 4
      %s219 = scalar_lea.vmem %s1, %s218
      %s220 = smul.u32 64, %s19
      %p221 = scmp.lt.s32.totalorder %s18, 3
      %s222 = scalar_select %p221, %s18, 3
      %p223 = scmp.lt.s32.totalorder %s220, 1023
      %s224 = scalar_select %p223, %s220, 1023
      %s225 = smul.addr %s222, 1024
      %s226 = sadd.s32 %s224, %s225
      %s227 = smul.addr %s226, 4
      %s228 = scalar_lea.vmem %s3, %s227
      %s229 = smul.u32 64, %s19
      %v230 = vld [vmem:[%s213] sm:$0xf]
      %v231 = vld [vmem:[%s213 + $0x4] sm:$0xf]
      %v232 = vld [vmem:[%s213 + $0x8] sm:$0xf]
      %v233 = vld [vmem:[%s213 + $0xc] sm:$0xf]
      %v234 = vld [vmem:[%s213 + $0x10] sm:$0xf]
      %v235 = vld [vmem:[%s213 + $0x14] sm:$0xf]
      %v236 = vld [vmem:[%s213 + $0x18] sm:$0xf]
      %v237 = vld [vmem:[%s213 + $0x1c] sm:$0xf]
      %v238 = vld [vmem:[%s213 + $0x20] sm:$0xf]
      %v239 = vld [vmem:[%s213 + $0x24] sm:$0xf]
      %v240 = vld [vmem:[%s213 + $0x28] sm:$0xf]
      %v241 = vld [vmem:[%s213 + $0x2c] sm:$0xf]
      %v242 = vld [vmem:[%s213 + $0x30] sm:$0xf]
      %v243 = vld [vmem:[%s213 + $0x34] sm:$0xf]
      %v244 = vld [vmem:[%s213 + $0x38] sm:$0xf]
      %v245 = vld [vmem:[%s213 + $0x3c] sm:$0xf]
      %v246 = vld [vmem:[%s213 + $0x40] sm:$0xf]
      %v247 = vld [vmem:[%s213 + $0x44] sm:$0xf]
      %v248 = vld [vmem:[%s213 + $0x48] sm:$0xf]
      %v249 = vld [vmem:[%s213 + $0x4c] sm:$0xf]
      %v250 = vld [vmem:[%s213 + $0x50] sm:$0xf]
      %v251 = vld [vmem:[%s213 + $0x54] sm:$0xf]
      %v252 = vld [vmem:[%s213 + $0x58] sm:$0xf]
      %v253 = vld [vmem:[%s213 + $0x5c] sm:$0xf]
      %v254 = vld [vmem:[%s213 + $0x60] sm:$0xf]
      %v255 = vld [vmem:[%s213 + $0x64] sm:$0xf]
      %v256 = vld [vmem:[%s213 + $0x68] sm:$0xf]
      %v257 = vld [vmem:[%s213 + $0x6c] sm:$0xf]
      %v258 = vld [vmem:[%s213 + $0x70] sm:$0xf]
      %v259 = vld [vmem:[%s213 + $0x74] sm:$0xf]
      %v260 = vld [vmem:[%s213 + $0x78] sm:$0xf]
      %v261 = vld [vmem:[%s213 + $0x7c] sm:$0xf]
      %v262 = vld [vmem:[%s213 + $0x80] sm:$0xf]
      %v263 = vld [vmem:[%s213 + $0x84] sm:$0xf]
      %v264 = vld [vmem:[%s213 + $0x88] sm:$0xf]
      %v265 = vld [vmem:[%s213 + $0x8c] sm:$0xf]
      %v266 = vld [vmem:[%s213 + $0x90] sm:$0xf]
      %v267 = vld [vmem:[%s213 + $0x94] sm:$0xf]
      %v268 = vld [vmem:[%s213 + $0x98] sm:$0xf]
      %v269 = vld [vmem:[%s213 + $0x9c] sm:$0xf]
      %v270 = vld [vmem:[%s213 + $0xa0] sm:$0xf]
      %v271 = vld [vmem:[%s213 + $0xa4] sm:$0xf]
      %v272 = vld [vmem:[%s213 + $0xa8] sm:$0xf]
      %v273 = vld [vmem:[%s213 + $0xac] sm:$0xf]
      %v274 = vld [vmem:[%s213 + $0xb0] sm:$0xf]
      %v275 = vld [vmem:[%s213 + $0xb4] sm:$0xf]
      %v276 = vld [vmem:[%s213 + $0xb8] sm:$0xf]
      %v277 = vld [vmem:[%s213 + $0xbc] sm:$0xf]
      %v278 = vld [vmem:[%s213 + $0xc0] sm:$0xf]
      %v279 = vld [vmem:[%s213 + $0xc4] sm:$0xf]
      %v280 = vld [vmem:[%s213 + $0xc8] sm:$0xf]
      %v281 = vld [vmem:[%s213 + $0xcc] sm:$0xf]
      %v282 = vld [vmem:[%s213 + $0xd0] sm:$0xf]
      %v283 = vld [vmem:[%s213 + $0xd4] sm:$0xf]
      %v284 = vld [vmem:[%s213 + $0xd8] sm:$0xf]
      %v285 = vld [vmem:[%s213 + $0xdc] sm:$0xf]
      %v286 = vld [vmem:[%s213 + $0xe0] sm:$0xf]
      %v287 = vld [vmem:[%s213 + $0xe4] sm:$0xf]
      %v288 = vld [vmem:[%s213 + $0xe8] sm:$0xf]
      %v289 = vld [vmem:[%s213 + $0xec] sm:$0xf]
      %v290 = vld [vmem:[%s213 + $0xf0] sm:$0xf]
      %v291 = vld [vmem:[%s213 + $0xf4] sm:$0xf]
      %v292 = vld [vmem:[%s213 + $0xf8] sm:$0xf]
      %v293 = vld [vmem:[%s213 + $0xfc] sm:$0xf]
      %v294 = vld [vmem:[%s219] sm:$0xf]
      %v295 = vld [vmem:[%s219 + $0x4] sm:$0xf]
      %v296 = vld [vmem:[%s219 + $0x8] sm:$0xf]
      %v297 = vld [vmem:[%s219 + $0xc] sm:$0xf]
      %v298 = vld [vmem:[%s219 + $0x10] sm:$0xf]
      %v299 = vld [vmem:[%s219 + $0x14] sm:$0xf]
      %v300 = vld [vmem:[%s219 + $0x18] sm:$0xf]
      %v301 = vld [vmem:[%s219 + $0x1c] sm:$0xf]
      %v302 = vld [vmem:[%s219 + $0x20] sm:$0xf]
      %v303 = vld [vmem:[%s219 + $0x24] sm:$0xf]
      %v304 = vld [vmem:[%s219 + $0x28] sm:$0xf]
      %v305 = vld [vmem:[%s219 + $0x2c] sm:$0xf]
      %v306 = vld [vmem:[%s219 + $0x30] sm:$0xf]
      %v307 = vld [vmem:[%s219 + $0x34] sm:$0xf]
      %v308 = vld [vmem:[%s219 + $0x38] sm:$0xf]
      %v309 = vld [vmem:[%s219 + $0x3c] sm:$0xf]
      %v310 = vld [vmem:[%s2] sm:$0x1]
      %v312 = vperm.slane %v310, 0
      %v378 = vunpack.c.l.b16 %v230
      %v379 = vunpack.c.l.b16 %v231
      %v380 = vunpack.c.l.b16 %v232
      %v381 = vunpack.c.l.b16 %v233
      %v382 = vunpack.c.l.b16 %v234
      %v383 = vunpack.c.l.b16 %v235
      %v384 = vunpack.c.l.b16 %v236
      %v385 = vunpack.c.l.b16 %v237
      %v386 = vunpack.c.l.b16 %v238
      %v387 = vunpack.c.l.b16 %v239
      %v388 = vunpack.c.l.b16 %v240
      %v389 = vunpack.c.l.b16 %v241
      %v390 = vunpack.c.l.b16 %v242
      %v391 = vunpack.c.l.b16 %v243
      %v392 = vunpack.c.l.b16 %v244
      %v393 = vunpack.c.l.b16 %v245
      %v394 = vunpack.c.l.b16 %v246
      %v395 = vunpack.c.l.b16 %v247
      %v396 = vunpack.c.l.b16 %v248
      %v397 = vunpack.c.l.b16 %v249
      %v398 = vunpack.c.l.b16 %v250
      %v399 = vunpack.c.l.b16 %v251
      %v400 = vunpack.c.l.b16 %v252
      %v401 = vunpack.c.l.b16 %v253
      %v402 = vunpack.c.l.b16 %v254
      %v403 = vunpack.c.l.b16 %v255
      %v404 = vunpack.c.l.b16 %v256
      %v405 = vunpack.c.l.b16 %v257
      %v406 = vunpack.c.l.b16 %v258
      %v407 = vunpack.c.l.b16 %v259
      %v408 = vunpack.c.l.b16 %v260
      %v409 = vunpack.c.l.b16 %v261
      %v410 = vunpack.c.l.b16 %v262
      %v411 = vunpack.c.l.b16 %v263
      %v412 = vunpack.c.l.b16 %v264
      %v413 = vunpack.c.l.b16 %v265
      %v414 = vunpack.c.l.b16 %v266
      %v415 = vunpack.c.l.b16 %v267
      %v416 = vunpack.c.l.b16 %v268
      %v417 = vunpack.c.l.b16 %v269
      %v418 = vunpack.c.l.b16 %v270
      %v419 = vunpack.c.l.b16 %v271
      %v420 = vunpack.c.l.b16 %v272
      %v421 = vunpack.c.l.b16 %v273
      %v422 = vunpack.c.l.b16 %v274
      %v423 = vunpack.c.l.b16 %v275
      %v424 = vunpack.c.l.b16 %v276
      %v425 = vunpack.c.l.b16 %v277
      %v426 = vunpack.c.l.b16 %v278
      %v427 = vunpack.c.l.b16 %v279
      %v428 = vunpack.c.l.b16 %v280
      %v429 = vunpack.c.l.b16 %v281
      %v430 = vunpack.c.l.b16 %v282
      %v431 = vunpack.c.l.b16 %v283
      %v432 = vunpack.c.l.b16 %v284
      %v433 = vunpack.c.l.b16 %v285
      %v434 = vunpack.c.l.b16 %v286
      %v435 = vunpack.c.l.b16 %v287
      %v436 = vunpack.c.l.b16 %v288
      %v437 = vunpack.c.l.b16 %v289
      %v438 = vunpack.c.l.b16 %v290
      %v439 = vunpack.c.l.b16 %v291
      %v440 = vunpack.c.l.b16 %v292
      %v441 = vunpack.c.l.b16 %v293
      %v442 = vpack.c.b16 %v379, %v378
      %v443 = vpack.c.b16 %v381, %v380
      %v444 = vpack.c.b16 %v383, %v382
      %v445 = vpack.c.b16 %v385, %v384
      %v446 = vpack.c.b16 %v387, %v386
      %v447 = vpack.c.b16 %v389, %v388
      %v448 = vpack.c.b16 %v391, %v390
      %v449 = vpack.c.b16 %v393, %v392
      %v450 = vpack.c.b16 %v395, %v394
      %v451 = vpack.c.b16 %v397, %v396
      %v452 = vpack.c.b16 %v399, %v398
      %v453 = vpack.c.b16 %v401, %v400
      %v454 = vpack.c.b16 %v403, %v402
      %v455 = vpack.c.b16 %v405, %v404
      %v456 = vpack.c.b16 %v407, %v406
      %v457 = vpack.c.b16 %v409, %v408
      %v458 = vpack.c.b16 %v411, %v410
      %v459 = vpack.c.b16 %v413, %v412
      %v460 = vpack.c.b16 %v415, %v414
      %v461 = vpack.c.b16 %v417, %v416
      %v462 = vpack.c.b16 %v419, %v418
      %v463 = vpack.c.b16 %v421, %v420
      %v464 = vpack.c.b16 %v423, %v422
      %v465 = vpack.c.b16 %v425, %v424
      %v466 = vpack.c.b16 %v427, %v426
      %v467 = vpack.c.b16 %v429, %v428
      %v468 = vpack.c.b16 %v431, %v430
      %v469 = vpack.c.b16 %v433, %v432
      %v470 = vpack.c.b16 %v435, %v434
      %v471 = vpack.c.b16 %v437, %v436
      %v472 = vpack.c.b16 %v439, %v438
      %v473 = vpack.c.b16 %v441, %v440
      %v522 = vunpack.c.l.b16 %v294
      %v523 = vunpack.c.l.b16 %v295
      %v524 = vunpack.c.l.b16 %v296
      %v525 = vunpack.c.l.b16 %v297
      %v526 = vunpack.c.l.b16 %v298
      %v527 = vunpack.c.l.b16 %v299
      %v528 = vunpack.c.l.b16 %v300
      %v529 = vunpack.c.l.b16 %v301
      %v530 = vunpack.c.l.b16 %v302
      %v531 = vunpack.c.l.b16 %v303
      %v532 = vunpack.c.l.b16 %v304
      %v533 = vunpack.c.l.b16 %v305
      %v534 = vunpack.c.l.b16 %v306
      %v535 = vunpack.c.l.b16 %v307
      %v536 = vunpack.c.l.b16 %v308
      %v537 = vunpack.c.l.b16 %v309
      %v538 = vpack.c.b16 %v523, %v522
      %v539 = vpack.c.b16 %v525, %v524
      %v540 = vpack.c.b16 %v527, %v526
      %v541 = vpack.c.b16 %v529, %v528
      %v542 = vpack.c.b16 %v531, %v530
      %v543 = vpack.c.b16 %v533, %v532
      %v544 = vpack.c.b16 %v535, %v534
      %v545 = vpack.c.b16 %v537, %v536
      %554 = vmatpush.bf16.msra.mxu0 %v545
      %555 = vmatpush.bf16.msra.mxu0 %v544
      %556 = vmatpush.bf16.msra.mxu0 %v543
      %557 = vmatpush.bf16.msra.mxu0 %v542
      %558 = vmatpush.bf16.msra.mxu0 %v541
      %559 = vmatpush.bf16.msra.mxu0 %v540
      %560 = vmatpush.bf16.msra.mxu0 %v539
      %561 = vmatpush.bf16.msra.mxu0 %v538
      %562 = vmatmul.bf16.gmra.mxu0 %v442
      %v563 = vpop.f32.mrf.mxu0
      %v564 = vadd.f32 %v312, %v563
      %v565 = vpop.f32.mrf.mxu0
      %v566 = vadd.f32 %v312, %v565
      %567 = vmatmul.bf16.gmra.mxu0 %v443
      %v568 = vpop.f32.mrf.mxu0
      %v569 = vadd.f32 %v312, %v568
      %v570 = vpop.f32.mrf.mxu0
      %v571 = vadd.f32 %v312, %v570
      %572 = vmatmul.bf16.gmra.mxu0 %v444
      %v573 = vpop.f32.mrf.mxu0
      %v574 = vadd.f32 %v312, %v573
      %v575 = vpop.f32.mrf.mxu0
      %v576 = vadd.f32 %v312, %v575
      %577 = vmatmul.bf16.gmra.mxu0 %v445
      %v578 = vpop.f32.mrf.mxu0
      %v579 = vadd.f32 %v312, %v578
      %v580 = vpop.f32.mrf.mxu0
      %v581 = vadd.f32 %v312, %v580
      %582 = vmatmul.bf16.gmra.mxu0 %v446
      %v583 = vpop.f32.mrf.mxu0
      %v584 = vadd.f32 %v312, %v583
      %v585 = vpop.f32.mrf.mxu0
      %v586 = vadd.f32 %v312, %v585
      %587 = vmatmul.bf16.gmra.mxu0 %v447
      %v588 = vpop.f32.mrf.mxu0
      %v589 = vadd.f32 %v312, %v588
      %v590 = vpop.f32.mrf.mxu0
      %v591 = vadd.f32 %v312, %v590
      %592 = vmatmul.bf16.gmra.mxu0 %v448
      %v593 = vpop.f32.mrf.mxu0
      %v594 = vadd.f32 %v312, %v593
      %v595 = vpop.f32.mrf.mxu0
      %v596 = vadd.f32 %v312, %v595
      %597 = vmatmul.bf16.gmra.mxu0 %v449
      %v598 = vpop.f32.mrf.mxu0
      %v599 = vadd.f32 %v312, %v598
      %v600 = vpop.f32.mrf.mxu0
      %v601 = vadd.f32 %v312, %v600
      %602 = vmatmul.bf16.gmra.mxu0 %v450
      %v603 = vpop.f32.mrf.mxu0
      %v604 = vadd.f32 %v312, %v603
      %v605 = vpop.f32.mrf.mxu0
      %v606 = vadd.f32 %v312, %v605
      %607 = vmatmul.bf16.gmra.mxu0 %v451
      %v608 = vpop.f32.mrf.mxu0
      %v609 = vadd.f32 %v312, %v608
      %v610 = vpop.f32.mrf.mxu0
      %v611 = vadd.f32 %v312, %v610
      %612 = vmatmul.bf16.gmra.mxu0 %v452
      %v613 = vpop.f32.mrf.mxu0
      %v614 = vadd.f32 %v312, %v613
      %v615 = vpop.f32.mrf.mxu0
      %v616 = vadd.f32 %v312, %v615
      %617 = vmatmul.bf16.gmra.mxu0 %v453
      %v618 = vpop.f32.mrf.mxu0
      %v619 = vadd.f32 %v312, %v618
      %v620 = vpop.f32.mrf.mxu0
      %v621 = vadd.f32 %v312, %v620
      %622 = vmatmul.bf16.gmra.mxu0 %v454
      %v623 = vpop.f32.mrf.mxu0
      %v624 = vadd.f32 %v312, %v623
      %v625 = vpop.f32.mrf.mxu0
      %v626 = vadd.f32 %v312, %v625
      %627 = vmatmul.bf16.gmra.mxu0 %v455
      %v628 = vpop.f32.mrf.mxu0
      %v629 = vadd.f32 %v312, %v628
      %v630 = vpop.f32.mrf.mxu0
      %v631 = vadd.f32 %v312, %v630
      %632 = vmatmul.bf16.gmra.mxu0 %v456
      %v633 = vpop.f32.mrf.mxu0
      %v634 = vadd.f32 %v312, %v633
      %v635 = vpop.f32.mrf.mxu0
      %v636 = vadd.f32 %v312, %v635
      %637 = vmatmul.bf16.gmra.mxu0 %v457
      %v638 = vpop.f32.mrf.mxu0
      %v639 = vadd.f32 %v312, %v638
      %v640 = vpop.f32.mrf.mxu0
      %v641 = vadd.f32 %v312, %v640
      %642 = vmatmul.bf16.gmra.mxu0 %v458
      %v643 = vpop.f32.mrf.mxu0
      %v644 = vadd.f32 %v312, %v643
      %v645 = vpop.f32.mrf.mxu0
      %v646 = vadd.f32 %v312, %v645
      %647 = vmatmul.bf16.gmra.mxu0 %v459
      %v648 = vpop.f32.mrf.mxu0
      %v649 = vadd.f32 %v312, %v648
      %v650 = vpop.f32.mrf.mxu0
      %v651 = vadd.f32 %v312, %v650
      %652 = vmatmul.bf16.gmra.mxu0 %v460
      %v653 = vpop.f32.mrf.mxu0
      %v654 = vadd.f32 %v312, %v653
      %v655 = vpop.f32.mrf.mxu0
      %v656 = vadd.f32 %v312, %v655
      %657 = vmatmul.bf16.gmra.mxu0 %v461
      %v658 = vpop.f32.mrf.mxu0
      %v659 = vadd.f32 %v312, %v658
      %v660 = vpop.f32.mrf.mxu0
      %v661 = vadd.f32 %v312, %v660
      %662 = vmatmul.bf16.gmra.mxu0 %v462
      %v663 = vpop.f32.mrf.mxu0
      %v664 = vadd.f32 %v312, %v663
      %v665 = vpop.f32.mrf.mxu0
      %v666 = vadd.f32 %v312, %v665
      %667 = vmatmul.bf16.gmra.mxu0 %v463
      %v668 = vpop.f32.mrf.mxu0
      %v669 = vadd.f32 %v312, %v668
      %v670 = vpop.f32.mrf.mxu0
      %v671 = vadd.f32 %v312, %v670
      %672 = vmatmul.bf16.gmra.mxu0 %v464
      %v673 = vpop.f32.mrf.mxu0
      %v674 = vadd.f32 %v312, %v673
      %v675 = vpop.f32.mrf.mxu0
      %v676 = vadd.f32 %v312, %v675
      %677 = vmatmul.bf16.gmra.mxu0 %v465
      %v678 = vpop.f32.mrf.mxu0
      %v679 = vadd.f32 %v312, %v678
      %v680 = vpop.f32.mrf.mxu0
      %v681 = vadd.f32 %v312, %v680
      %682 = vmatmul.bf16.gmra.mxu0 %v466
      %v683 = vpop.f32.mrf.mxu0
      %v684 = vadd.f32 %v312, %v683
      %v685 = vpop.f32.mrf.mxu0
      %v686 = vadd.f32 %v312, %v685
      %687 = vmatmul.bf16.gmra.mxu0 %v467
      %v688 = vpop.f32.mrf.mxu0
      %v689 = vadd.f32 %v312, %v688
      %v690 = vpop.f32.mrf.mxu0
      %v691 = vadd.f32 %v312, %v690
      %692 = vmatmul.bf16.gmra.mxu0 %v468
      %v693 = vpop.f32.mrf.mxu0
      %v694 = vadd.f32 %v312, %v693
      %v695 = vpop.f32.mrf.mxu0
      %v696 = vadd.f32 %v312, %v695
      %697 = vmatmul.bf16.gmra.mxu0 %v469
      %v698 = vpop.f32.mrf.mxu0
      %v699 = vadd.f32 %v312, %v698
      %v700 = vpop.f32.mrf.mxu0
      %v701 = vadd.f32 %v312, %v700
      %702 = vmatmul.bf16.gmra.mxu0 %v470
      %v703 = vpop.f32.mrf.mxu0
      %v704 = vadd.f32 %v312, %v703
      %v705 = vpop.f32.mrf.mxu0
      %v706 = vadd.f32 %v312, %v705
      %707 = vmatmul.bf16.gmra.mxu0 %v471
      %v708 = vpop.f32.mrf.mxu0
      %v709 = vadd.f32 %v312, %v708
      %v710 = vpop.f32.mrf.mxu0
      %v711 = vadd.f32 %v312, %v710
      %712 = vmatmul.bf16.gmra.mxu0 %v472
      %v713 = vpop.f32.mrf.mxu0
      %v714 = vadd.f32 %v312, %v713
      %v715 = vpop.f32.mrf.mxu0
      %v716 = vadd.f32 %v312, %v715
      %717 = vmatmul.bf16.gmra.mxu0 %v473
      %v718 = vpop.f32.mrf.mxu0
      %v719 = vadd.f32 %v312, %v718
      %v720 = vpop.f32.mrf.mxu0
      %v721 = vadd.f32 %v312, %v720
      %722 = vdwg.mxu0
      %v723 = vtanh.pop %v564
      %v724 = vtanh.pop %v566
      %v725 = vtanh.pop %v569
      %v726 = vtanh.pop %v571
      %v727 = vtanh.pop %v574
      %v728 = vtanh.pop %v576
      %v729 = vtanh.pop %v579
      %v730 = vtanh.pop %v581
      %v731 = vtanh.pop %v584
      %v732 = vtanh.pop %v586
      %v733 = vtanh.pop %v589
      %v734 = vtanh.pop %v591
      %v735 = vtanh.pop %v594
      %v736 = vtanh.pop %v596
      %v737 = vtanh.pop %v599
      %v738 = vtanh.pop %v601
      %v739 = vtanh.pop %v604
      %v740 = vtanh.pop %v606
      %v741 = vtanh.pop %v609
      %v742 = vtanh.pop %v611
      %v743 = vtanh.pop %v614
      %v744 = vtanh.pop %v616
      %v745 = vtanh.pop %v619
      %v746 = vtanh.pop %v621
      %v747 = vtanh.pop %v624
      %v748 = vtanh.pop %v626
      %v749 = vtanh.pop %v629
      %v750 = vtanh.pop %v631
      %v751 = vtanh.pop %v634
      %v752 = vtanh.pop %v636
      %v753 = vtanh.pop %v639
      %v754 = vtanh.pop %v641
      %v755 = vtanh.pop %v644
      %v756 = vtanh.pop %v646
      %v757 = vtanh.pop %v649
      %v758 = vtanh.pop %v651
      %v759 = vtanh.pop %v654
      %v760 = vtanh.pop %v656
      %v761 = vtanh.pop %v659
      %v762 = vtanh.pop %v661
      %v763 = vtanh.pop %v664
      %v764 = vtanh.pop %v666
      %v765 = vtanh.pop %v669
      %v766 = vtanh.pop %v671
      %v767 = vtanh.pop %v674
      %v768 = vtanh.pop %v676
      %v769 = vtanh.pop %v679
      %v770 = vtanh.pop %v681
      %v771 = vtanh.pop %v684
      %v772 = vtanh.pop %v686
      %v773 = vtanh.pop %v689
      %v774 = vtanh.pop %v691
      %v775 = vtanh.pop %v694
      %v776 = vtanh.pop %v696
      %v777 = vtanh.pop %v699
      %v778 = vtanh.pop %v701
      %v779 = vtanh.pop %v704
      %v780 = vtanh.pop %v706
      %v781 = vtanh.pop %v709
      %v782 = vtanh.pop %v711
      %v783 = vtanh.pop %v714
      %v784 = vtanh.pop %v716
      %v785 = vtanh.pop %v719
      %v786 = vtanh.pop %v721
      %v787 = vpack.c.bf16 %v723, %v723
      %v788 = vpack.c.bf16 %v724, %v724
      %v789 = vpack.c.bf16 %v725, %v725
      %v790 = vpack.c.bf16 %v726, %v726
      %v791 = vpack.c.bf16 %v727, %v727
      %v792 = vpack.c.bf16 %v728, %v728
      %v793 = vpack.c.bf16 %v729, %v729
      %v794 = vpack.c.bf16 %v730, %v730
      %v795 = vpack.c.bf16 %v731, %v731
      %v796 = vpack.c.bf16 %v732, %v732
      %v797 = vpack.c.bf16 %v733, %v733
      %v798 = vpack.c.bf16 %v734, %v734
      %v799 = vpack.c.bf16 %v735, %v735
      %v800 = vpack.c.bf16 %v736, %v736
      %v801 = vpack.c.bf16 %v737, %v737
      %v802 = vpack.c.bf16 %v738, %v738
      %v803 = vpack.c.bf16 %v739, %v739
      %v804 = vpack.c.bf16 %v740, %v740
      %v805 = vpack.c.bf16 %v741, %v741
      %v806 = vpack.c.bf16 %v742, %v742
      %v807 = vpack.c.bf16 %v743, %v743
      %v808 = vpack.c.bf16 %v744, %v744
      %v809 = vpack.c.bf16 %v745, %v745
      %v810 = vpack.c.bf16 %v746, %v746
      %v811 = vpack.c.bf16 %v747, %v747
      %v812 = vpack.c.bf16 %v748, %v748
      %v813 = vpack.c.bf16 %v749, %v749
      %v814 = vpack.c.bf16 %v750, %v750
      %v815 = vpack.c.bf16 %v751, %v751
      %v816 = vpack.c.bf16 %v752, %v752
      %v817 = vpack.c.bf16 %v753, %v753
      %v818 = vpack.c.bf16 %v754, %v754
      %v819 = vpack.c.bf16 %v755, %v755
      %v820 = vpack.c.bf16 %v756, %v756
      %v821 = vpack.c.bf16 %v757, %v757
      %v822 = vpack.c.bf16 %v758, %v758
      %v823 = vpack.c.bf16 %v759, %v759
      %v824 = vpack.c.bf16 %v760, %v760
      %v825 = vpack.c.bf16 %v761, %v761
      %v826 = vpack.c.bf16 %v762, %v762
      %v827 = vpack.c.bf16 %v763, %v763
      %v828 = vpack.c.bf16 %v764, %v764
      %v829 = vpack.c.bf16 %v765, %v765
      %v830 = vpack.c.bf16 %v766, %v766
      %v831 = vpack.c.bf16 %v767, %v767
      %v832 = vpack.c.bf16 %v768, %v768
      %v833 = vpack.c.bf16 %v769, %v769
      %v834 = vpack.c.bf16 %v770, %v770
      %v835 = vpack.c.bf16 %v771, %v771
      %v836 = vpack.c.bf16 %v772, %v772
      %v837 = vpack.c.bf16 %v773, %v773
      %v838 = vpack.c.bf16 %v774, %v774
      %v839 = vpack.c.bf16 %v775, %v775
      %v840 = vpack.c.bf16 %v776, %v776
      %v841 = vpack.c.bf16 %v777, %v777
      %v842 = vpack.c.bf16 %v778, %v778
      %v843 = vpack.c.bf16 %v779, %v779
      %v844 = vpack.c.bf16 %v780, %v780
      %v845 = vpack.c.bf16 %v781, %v781
      %v846 = vpack.c.bf16 %v782, %v782
      %v847 = vpack.c.bf16 %v783, %v783
      %v848 = vpack.c.bf16 %v784, %v784
      %v849 = vpack.c.bf16 %v785, %v785
      %v850 = vpack.c.bf16 %v786, %v786
      %851 = vst [vmem:[%s228] sm:$0xf] %v787
      %852 = vst [vmem:[%s228 + $0x4] sm:$0xf] %v788
      %853 = vst [vmem:[%s228 + $0x8] sm:$0xf] %v789
      %854 = vst [vmem:[%s228 + $0xc] sm:$0xf] %v790
      %855 = vst [vmem:[%s228 + $0x10] sm:$0xf] %v791
      %856 = vst [vmem:[%s228 + $0x14] sm:$0xf] %v792
      %857 = vst [vmem:[%s228 + $0x18] sm:$0xf] %v793
      %858 = vst [vmem:[%s228 + $0x1c] sm:$0xf] %v794
      %859 = vst [vmem:[%s228 + $0x20] sm:$0xf] %v795
      %860 = vst [vmem:[%s228 + $0x24] sm:$0xf] %v796
      %861 = vst [vmem:[%s228 + $0x28] sm:$0xf] %v797
      %862 = vst [vmem:[%s228 + $0x2c] sm:$0xf] %v798
      %863 = vst [vmem:[%s228 + $0x30] sm:$0xf] %v799
      %864 = vst [vmem:[%s228 + $0x34] sm:$0xf] %v800
      %865 = vst [vmem:[%s228 + $0x38] sm:$0xf] %v801
      %866 = vst [vmem:[%s228 + $0x3c] sm:$0xf] %v802
      %867 = vst [vmem:[%s228 + $0x40] sm:$0xf] %v803
      %868 = vst [vmem:[%s228 + $0x44] sm:$0xf] %v804
      %869 = vst [vmem:[%s228 + $0x48] sm:$0xf] %v805
      %870 = vst [vmem:[%s228 + $0x4c] sm:$0xf] %v806
      %871 = vst [vmem:[%s228 + $0x50] sm:$0xf] %v807
      %872 = vst [vmem:[%s228 + $0x54] sm:$0xf] %v808
      %873 = vst [vmem:[%s228 + $0x58] sm:$0xf] %v809
      %874 = vst [vmem:[%s228 + $0x5c] sm:$0xf] %v810
      %875 = vst [vmem:[%s228 + $0x60] sm:$0xf] %v811
      %876 = vst [vmem:[%s228 + $0x64] sm:$0xf] %v812
      %877 = vst [vmem:[%s228 + $0x68] sm:$0xf] %v813
      %878 = vst [vmem:[%s228 + $0x6c] sm:$0xf] %v814
      %879 = vst [vmem:[%s228 + $0x70] sm:$0xf] %v815
      %880 = vst [vmem:[%s228 + $0x74] sm:$0xf] %v816
      %881 = vst [vmem:[%s228 + $0x78] sm:$0xf] %v817
      %882 = vst [vmem:[%s228 + $0x7c] sm:$0xf] %v818
      %883 = vst [vmem:[%s228 + $0x80] sm:$0xf] %v819
      %884 = vst [vmem:[%s228 + $0x84] sm:$0xf] %v820
      %885 = vst [vmem:[%s228 + $0x88] sm:$0xf] %v821
      %886 = vst [vmem:[%s228 + $0x8c] sm:$0xf] %v822
      %887 = vst [vmem:[%s228 + $0x90] sm:$0xf] %v823
      %888 = vst [vmem:[%s228 + $0x94] sm:$0xf] %v824
      %889 = vst [vmem:[%s228 + $0x98] sm:$0xf] %v825
      %890 = vst [vmem:[%s228 + $0x9c] sm:$0xf] %v826
      %891 = vst [vmem:[%s228 + $0xa0] sm:$0xf] %v827
      %892 = vst [vmem:[%s228 + $0xa4] sm:$0xf] %v828
      %893 = vst [vmem:[%s228 + $0xa8] sm:$0xf] %v829
      %894 = vst [vmem:[%s228 + $0xac] sm:$0xf] %v830
      %895 = vst [vmem:[%s228 + $0xb0] sm:$0xf] %v831
      %896 = vst [vmem:[%s228 + $0xb4] sm:$0xf] %v832
      %897 = vst [vmem:[%s228 + $0xb8] sm:$0xf] %v833
      %898 = vst [vmem:[%s228 + $0xbc] sm:$0xf] %v834
      %899 = vst [vmem:[%s228 + $0xc0] sm:$0xf] %v835
      %900 = vst [vmem:[%s228 + $0xc4] sm:$0xf] %v836
      %901 = vst [vmem:[%s228 + $0xc8] sm:$0xf] %v837
      %902 = vst [vmem:[%s228 + $0xcc] sm:$0xf] %v838
      %903 = vst [vmem:[%s228 + $0xd0] sm:$0xf] %v839
      %904 = vst [vmem:[%s228 + $0xd4] sm:$0xf] %v840
      %905 = vst [vmem:[%s228 + $0xd8] sm:$0xf] %v841
      %906 = vst [vmem:[%s228 + $0xdc] sm:$0xf] %v842
      %907 = vst [vmem:[%s228 + $0xe0] sm:$0xf] %v843
      %908 = vst [vmem:[%s228 + $0xe4] sm:$0xf] %v844
      %909 = vst [vmem:[%s228 + $0xe8] sm:$0xf] %v845
      %910 = vst [vmem:[%s228 + $0xec] sm:$0xf] %v846
      %911 = vst [vmem:[%s228 + $0xf0] sm:$0xf] %v847
      %912 = vst [vmem:[%s228 + $0xf4] sm:$0xf] %v848
      %913 = vst [vmem:[%s228 + $0xf8] sm:$0xf] %v849
      %914 = vst [vmem:[%s228 + $0xfc] sm:$0xf] %v850
      %s915 = smul.u32 64, %s19
      %p916 = scmp.lt.s32.totalorder %s18, 3
      %s917 = scalar_select %p916, %s18, 3
      %p918 = scmp.lt.s32.totalorder %s915, 1023
      %s919 = scalar_select %p918, %s915, 1023
      %s920 = smul.addr %s917, 1024
      %s921 = sadd.s32 %s919, %s920
      %s922 = smul.addr %s921, 4
      %s923 = scalar_lea.vmem %s3, %s922
      // Predicated region
      $region33: #{_lambda_.27} parent=31 // pred_check
        %p924 = pneg %p121
      $region34: #{_lambda_.27} parent=31 // pred_check_branch
        %926 = sbr.rel (%p924) target = $region36
      $region35: #{_lambda_.27} parent=31 // pred_region
        %s927 = smul.u32 64, %s19
      $region36: #{_lambda_.27} parent=31 // pred_fallthru
        _
    $region32: #{_lambda_.27} parent=5 // pred_fallthru
      _
    %p928 = scmp.le.s32.totalorder 2, %s9
    // Predicated region
    $region37: #{_lambda_.27} parent=5 // pred_check
      %p929 = pneg %p928
    $region38: #{_lambda_.27} parent=5 // pred_check_branch
      %931 = sbr.rel (%p929) target = $region40
    $region39: #{_lambda_.27} parent=5 // pred_region
      %s932 = ssub.s32 %s9, 2
      // Predicated region
      $region41: #{_lambda_.27} parent=39 // pred_check
        %p933 = pneg %p127
      $region42: #{_lambda_.27} parent=39 // pred_check_branch
        %935 = sbr.rel (%p933) target = $region44
      $region43: #{_lambda_.27} parent=39 // pred_region
        %s936 = smul.u32 64, %s21
        %p937 = scmp.lt.s32.totalorder %s20, 3
        %s938 = scalar_select %p937, %s20, 3
        %p939 = scmp.lt.s32.totalorder %s936, 1023
        %s940 = scalar_select %p939, %s936, 1023
        %s941 = smul.addr %s938, 1024
        %s942 = sadd.s32 %s940, %s941
        %s943 = smul.addr %s942, 4
        %s944 = scalar_lea.vmem %s3, %s943
      $region44: #{_lambda_.27} parent=39 // pred_fallthru
        _
    $region40: #{_lambda_.27} parent=5 // pred_fallthru
      _
  $region6: #{_lambda_.27} parent=0 // loop_footer
    %s13 = sadd.s32 1, %s9
  $region7: #{_lambda_.27} parent=0 // loop_footer_branch
    %8 = sbr.rel target = $region3
  $region8: #{_lambda_.27} parent=0 // loop_exit
    _

</llo_original>
